<compile_context>
chip_gen: v5e
topology: v5e:2x2
jax: 0.10.0
libtpu: 0.0.40
codegen_flags: <defaults>
</compile_context>

<pallas_src>
import functools

import numpy as np
import jax
import jax.numpy as jnp
from jax.experimental import pallas as pl
from jax.experimental.pallas import tpu as pltpu

F_DIM = 8            # input_dim (spectrogram frequency bins)
Z_DIM = 16           # latent_dim
S_DIM = Z_DIM // 2   # style_dim default
T_DIM = 20           # time frames: 20 -> 10 -> 5 so 256*5 = 1280 == Linear(1280,512)
T2 = 10
T3 = 5
BN_EPS = 1e-5

CONST_NAMES = ('S_enc2', 'S_enc3', 'P_enc', 'R_dec', 'S_dec1', 'S_dec2')
PARAM_NAMES = (
    'W_enc1', 'b_enc1', 'g_enc1', 'be_enc1',
    'W_enc2', 'b_enc2', 'g_enc2', 'be_enc2',
    'W_enc3', 'b_enc3', 'g_enc3', 'be_enc3',
    'W_fc_enc', 'b_fc_enc', 'g_fc_enc', 'be_fc_enc',
    'W_zhead', 'b_zhead',
    'W_fc_dec1', 'b_fc_dec1', 'g_fc_dec1', 'be_fc_dec1',
    'W_fc_dec2', 'b_fc_dec2', 'g_fc_dec2', 'be_fc_dec2',
    'W_dec1', 'b_dec1', 'g_dec1', 'be_dec1',
    'W_dec2', 'b_dec2', 'g_dec2', 'be_dec2',
    'W_xhead', 'b_xhead',
    'W_scaler',
)
N_DATA = 3   # x_rows, eps_z, eps_x


# ---------------------------------------------------------------------------
# The single fused kernel
# ---------------------------------------------------------------------------
def _fused_forward_kernel(*refs):
    n_in = N_DATA + len(CONST_NAMES) + len(PARAM_NAMES)
    x_ref, eps_z_ref, eps_x_ref = refs[:N_DATA]
    c = dict(zip(CONST_NAMES, refs[N_DATA:N_DATA + len(CONST_NAMES)]))
    p = dict(zip(PARAM_NAMES, refs[N_DATA + len(CONST_NAMES):n_in]))
    zmu_ref, zvar_ref, z_out_ref, xmu_ref, xvar_ref, xs_ref, pt_ref = refs[n_in:]

    def mm(a, w_ref):
        # bf16 MXU matmul with f32 accumulation (weights stored bf16).
        return jnp.dot(a.astype(jnp.bfloat16), w_ref[...],
                       preferred_element_type=jnp.float32)

    def bn_tanh(y, g_ref, be_ref):
        # BatchNorm (training-mode batch stats, biased variance) + tanh, in f32.
        mean = jnp.mean(y, axis=0, keepdims=True)
        var = jnp.mean((y - mean) ** 2, axis=0, keepdims=True)
        y = (y - mean) * jax.lax.rsqrt(var + BN_EPS)
        return jnp.tanh(y * g_ref[...] + be_ref[...])

    def conv3(h, s_ref, w_ref, cin):
        # 3-tap time conv / conv-transpose:  y = sum_k (S_k @ h) @ W[k*C:(k+1)*C]
        acc = None
        for k in range(3):
            g = jnp.dot(s_ref[k], h, preferred_element_type=jnp.float32)
            y = jnp.dot(g.astype(jnp.bfloat16),
                        w_ref[k * cin:(k + 1) * cin, :],
                        preferred_element_type=jnp.float32)
            acc = y if acc is None else acc + y
        return acc

    # ---------------- encoder ----------------
    h = bn_tanh(mm(x_ref[...], p['W_enc1']) + p['b_enc1'][...],
                p['g_enc1'], p['be_enc1'])                                  # (B*20, 64)
    h = bn_tanh(conv3(h, c['S_enc2'], p['W_enc2'], 64) + p['b_enc2'][...],
                p['g_enc2'], p['be_enc2'])                                  # (B*10, 128)
    h = bn_tanh(conv3(h, c['S_enc3'], p['W_enc3'], 128) + p['b_enc3'][...],
                p['g_enc3'], p['be_enc3'])                                  # (B*5, 256)

    # torch.flatten (channel-major) + Linear(1280, 512): the flatten permutation
    # is folded into W_fc_enc's rows at init, so here it is just a per-timestep
    # row-gather + matmul accumulation over the 5 remaining time steps.
    acc = None
    for t in range(T3):
        g = jnp.dot(c['P_enc'][t], h, preferred_element_type=jnp.float32)   # (B, 256)
        y = jnp.dot(g.astype(jnp.bfloat16),
                    p['W_fc_enc'][t * 256:(t + 1) * 256, :],
                    preferred_element_type=jnp.float32)
        acc = y if acc is None else acc + y
    h = bn_tanh(acc + p['b_fc_enc'][...], p['g_fc_enc'], p['be_fc_enc'])    # (B, 512)

    # fused mu/var heads + reparameterization epilogue
    zy = mm(h, p['W_zhead']) + p['b_zhead'][...]                            # (B, 2*Z)
    z_mu = zy[:, :Z_DIM]
    z_var = zy[:, Z_DIM:]
    z = z_mu + eps_z_ref[...] * jnp.exp(z_var * 0.5)
    zmu_ref[...] = z_mu
    zvar_ref[...] = z_var
    z_out_ref[...] = z

    # pair-distance epilogue:  sqrt(sum((z[:-1,s:] - z[1:,s:])^2)) * scaler
    zs = z[:, S_DIM:]
    diff = zs[:-1, :] - zs[1:, :]
    dist = jnp.sqrt(jnp.sum(diff * diff, axis=-1, keepdims=True))
    pt_ref[...] = dist * p['W_scaler'][...]

    # ---------------- decoder ----------------
    h = bn_tanh(mm(z, p['W_fc_dec1']) + p['b_fc_dec1'][...],
                p['g_fc_dec1'], p['be_fc_dec1'])                            # (B, 512)
    fc2 = bn_tanh(mm(h, p['W_fc_dec2']) + p['b_fc_dec2'][...],
                  p['g_fc_dec2'], p['be_fc_dec2'])                          # (B, 1280)
    # torch reshape (B, 256, 5, 1) is channel-major; W_fc_dec2's columns (and
    # its BN params) were permuted to time-major at init, so each 256-wide lane
    # slab is one timestep; scatter rows into the (B*5, 256) conv layout.
    hdec = None
    for t in range(T3):
        y = jnp.dot(c['R_dec'][t], fc2[:, t * 256:(t + 1) * 256],
                    preferred_element_type=jnp.float32)                     # (B*5, 256)
        hdec = y if hdec is None else hdec + y
    h = bn_tanh(conv3(hdec, c['S_dec1'], p['W_dec1'], 256) + p['b_dec1'][...],
                p['g_dec1'], p['be_dec1'])                                  # (B*10, 128)
    h = bn_tanh(conv3(h, c['S_dec2'], p['W_dec2'], 128) + p['b_dec2'][...],
                p['g_dec2'], p['be_dec2'])                                  # (B*20, 64)

    # fused mu/var output heads (ConvT(64,1,(1,F)) == per-row linear 64->F,
    # single scalar bias per output channel broadcast over F) + reparam.
    xy = mm(h, p['W_xhead']) + p['b_xhead'][...]                            # (B*20, 2*F)
    x_mu = xy[:, :F_DIM]
    x_var = xy[:, F_DIM:]
    x_s = x_mu + eps_x_ref[...] * jnp.exp(x_var * 0.5)
    xmu_ref[...] = x_mu
    xvar_ref[...] = x_var
    xs_ref[...] = x_s


def _fused_forward(params, consts, x_rows, eps_z, eps_x_rows):
    b = eps_z.shape[0]
    inputs = [x_rows, eps_z, eps_x_rows]
    inputs += [consts[n] for n in CONST_NAMES]
    inputs += [params[n] for n in PARAM_NAMES]
    out_shape = (
        jax.ShapeDtypeStruct((b, Z_DIM), jnp.float32),          # z_mu
        jax.ShapeDtypeStruct((b, Z_DIM), jnp.float32),          # z_var
        jax.ShapeDtypeStruct((b, Z_DIM), jnp.float32),          # z sample
        jax.ShapeDtypeStruct((b * T_DIM, F_DIM), jnp.float32),  # x_mu
        jax.ShapeDtypeStruct((b * T_DIM, F_DIM), jnp.float32),  # x_var
        jax.ShapeDtypeStruct((b * T_DIM, F_DIM), jnp.float32),  # x sample
        jax.ShapeDtypeStruct((b - 1, 1), jnp.float32),          # pt
    )
    vmem = pl.BlockSpec(memory_space=pltpu.MemorySpace.VMEM)
    return pl.pallas_call(
        _fused_forward_kernel,
        out_shape=out_shape,
        in_specs=[vmem] * len(inputs),
        out_specs=tuple(vmem for _ in out_shape),
        compiler_params=pltpu.CompilerParams(
            # Whole model (~3.3 MiB bf16 weights + tiny activations + selection
            # matrices) fits comfortably; set the limit explicitly so v5e's
            # 16 MiB default and v7x's 64 MiB part behave identically.
            vmem_limit_bytes=32 * 1024 * 1024),
        # TODO(synk): no grid -> single TensorCore; a row-tiled grid over the
        # big FCs only pays off for much larger batch sizes (v7x megacore).
    )(*inputs)


# ---------------------------------------------------------------------------
# Batch-size-dependent 0/1 selection matrices (time convs / flatten / reshape)
# ---------------------------------------------------------------------------
@functools.lru_cache(maxsize=None)
def make_consts(B):
    def conv_sel(T):                      # Conv (3,1), stride 2, pad 1 along time
        T_out = (T + 2 - 3) // 2 + 1
        S = np.zeros((3, B * T_out, B * T), np.float32)
        for k in range(3):
            for b in range(B):
                for to in range(T_out):
                    ti = 2 * to - 1 + k
                    if 0 <= ti < T:
                        S[k, b * T_out + to, b * T + ti] = 1.0
        return S, T_out

    def convT_sel(T):                     # ConvT (3,1), stride 2, pad 1, outpad 1
        T_out = 2 * T
        T_up = (T - 1) * 2 + 1
        S = np.zeros((3, B * T_out, B * T), np.float32)
        for k in range(3):
            for b in range(B):
                for to in range(T_out):
                    u = to + k - 1        # left pad = kernel-1-pad = 1
                    if 0 <= u < T_up and u % 2 == 0:
                        S[k, b * T_out + to, b * T + u // 2] = 1.0
        return S

    S_enc2, t2 = conv_sel(T_DIM)          # 20 -> 10
    S_enc3, t3 = conv_sel(t2)             # 10 -> 5
    assert t2 == T2 and t3 == T3 and 256 * t3 == 1280
    P = np.zeros((T3, B, B * T3), np.float32)   # gather time t rows -> (B, C)
    R = np.zeros((T3, B * T3, B), np.float32)   # scatter (B, C) -> rows b*5+t
    for t in range(T3):
        for b in range(B):
            P[t, b, b * T3 + t] = 1.0
            R[t, b * T3 + t, b] = 1.0
    consts = {'S_enc2': S_enc2, 'S_enc3': S_enc3, 'P_enc': P, 'R_dec': R,
              'S_dec1': convT_sel(T3), 'S_dec2': convT_sel(T2)}
    return {k: jnp.asarray(v) for k, v in consts.items()}


# ---------------------------------------------------------------------------
# Deterministic synthetic parameters (shapes dictated by the nn.Module)
# ---------------------------------------------------------------------------
def init_params(key):
    ks = jax.random.split(key, 13)
    s = 0.05
    f32, bf16 = jnp.float32, jnp.bfloat16

    def w(k, shape):
        return jax.random.normal(k, shape, f32) * s

    p = {}
    # encoder convs: Conv2d(1,64,(1,F)) / Conv2d(64,128,(3,1),2,1) / Conv2d(128,256,(3,1),2,1)
    p['W_enc1'] = w(ks[0], (F_DIM, 64)).astype(bf16)
    p['b_enc1'] = jnp.zeros((1, 64), f32); p['g_enc1'] = jnp.ones((1, 64), f32); p['be_enc1'] = jnp.zeros((1, 64), f32)
    p['W_enc2'] = w(ks[1], (3 * 64, 128)).astype(bf16)
    p['b_enc2'] = jnp.zeros((1, 128), f32); p['g_enc2'] = jnp.ones((1, 128), f32); p['be_enc2'] = jnp.zeros((1, 128), f32)
    p['W_enc3'] = w(ks[2], (3 * 128, 256)).astype(bf16)
    p['b_enc3'] = jnp.zeros((1, 256), f32); p['g_enc3'] = jnp.ones((1, 256), f32); p['be_enc3'] = jnp.zeros((1, 256), f32)

    # fc_layer_enc: Linear(1280,512)+BN+tanh.  Fold the channel-major torch.flatten
    # (row index c*5+t) into a time-major row order (t*256+c) once at init.
    w_cm = w(ks[3], (1280, 512))
    p['W_fc_enc'] = w_cm.reshape(256, 5, 512).transpose(1, 0, 2).reshape(1280, 512).astype(bf16)
    p['b_fc_enc'] = jnp.zeros((1, 512), f32); p['g_fc_enc'] = jnp.ones((1, 512), f32); p['be_fc_enc'] = jnp.zeros((1, 512), f32)

    # fused mu/var encoder heads: Linear(512,z) || Linear(512,z)
    p['W_zhead'] = jnp.concatenate([w(ks[4], (512, Z_DIM)), w(ks[5], (512, Z_DIM))], axis=1).astype(bf16)
    p['b_zhead'] = jnp.zeros((1, 2 * Z_DIM), f32)

    # fc_layer_dec: Linear(z,512)+BN+tanh, Linear(512,1280)+BN+tanh
    p['W_fc_dec1'] = w(ks[6], (Z_DIM, 512)).astype(bf16)
    p['b_fc_dec1'] = jnp.zeros((1, 512), f32); p['g_fc_dec1'] = jnp.ones((1, 512), f32); p['be_fc_dec1'] = jnp.zeros((1, 512), f32)
    w_cm = w(ks[7], (512, 1280))
    perm_cols = lambda a: a.reshape(512, 256, 5).transpose(0, 2, 1).reshape(512, 1280)
    perm_vec = lambda v: v.reshape(1, 256, 5).transpose(0, 2, 1).reshape(1, 1280)
    p['W_fc_dec2'] = perm_cols(w_cm).astype(bf16)       # columns permuted to time-major
    p['b_fc_dec2'] = perm_vec(jnp.zeros((1, 1280), f32))
    p['g_fc_dec2'] = perm_vec(jnp.ones((1, 1280), f32))
    p['be_fc_dec2'] = perm_vec(jnp.zeros((1, 1280), f32))

    # deconvs: ConvT(256,128,(3,1),2,1,op1) / ConvT(128,64,(3,1),2,1,op1)
    p['W_dec1'] = w(ks[8], (3 * 256, 128)).astype(bf16)
    p['b_dec1'] = jnp.zeros((1, 128), f32); p['g_dec1'] = jnp.ones((1, 128), f32); p['be_dec1'] = jnp.zeros((1, 128), f32)
    p['W_dec2'] = w(ks[9], (3 * 128, 64)).astype(bf16)
    p['b_dec2'] = jnp.zeros((1, 64), f32); p['g_dec2'] = jnp.ones((1, 64), f32); p['be_dec2'] = jnp.zeros((1, 64), f32)

    # output heads: ConvT(64,1,(1,F)) == per-row linear 64 -> F; scalar bias per
    # output channel broadcast across F (modeled correctly this time).
    p['W_xhead'] = jnp.concatenate([w(ks[10], (64, F_DIM)), w(ks[11], (64, F_DIM))], axis=1).astype(bf16)
    b_mu_dec = jnp.zeros((), f32); b_var_dec = jnp.zeros((), f32)
    p['b_xhead'] = jnp.concatenate([jnp.broadcast_to(b_mu_dec, (1, F_DIM)),
                                    jnp.broadcast_to(b_var_dec, (1, F_DIM))], axis=1)

    # scaler: Linear(1,1,bias=False)
    p['W_scaler'] = jax.random.normal(ks[12], (1, 1), f32) * s + 1.0
    return p


# ---------------------------------------------------------------------------
# Forward pass (SpeechVAE_Triplet_Pair.forward, non-dict batch path)
# ---------------------------------------------------------------------------
@jax.jit
def _forward_jit(params, consts, x, eps_z, eps_x):
    b = x.shape[0]
    z_mu, z_var, z, x_mu, x_var, x_s, pt = _fused_forward(
        params, consts,
        x.reshape(b * T_DIM, F_DIM), eps_z, eps_x.reshape(b * T_DIM, F_DIM))
    shape = (b, 1, T_DIM, F_DIM)
    return {'qz_x': [z_mu, z_var], 'z': z,
            'px_z': [x_mu.reshape(shape), x_var.reshape(shape)],
            'x': x_s.reshape(shape), 'pt': pt, 'targets': x}


def speech_vae_triplet_pair_forward(params, batch, key):
    # non-dict batch path: targets = batch
    b = batch.shape[0]
    k1, k2 = jax.random.split(key)
    # TODO(synk): torch.randn_like noise is drawn host-side with jax.random
    # (deterministic) instead of the in-kernel TPU PRNG.
    eps_z = jax.random.normal(k1, (b, Z_DIM), jnp.float32)
    eps_x = jax.random.normal(k2, (b, 1, T_DIM, F_DIM), jnp.float32)
    consts = make_consts(b)
    return _forward_jit(params, consts, batch, eps_z, eps_x)


if __name__ == "__main__":
    key = jax.random.PRNGKey(0)
    kp, kx, ke = jax.random.split(key, 3)
    params = init_params(kp)

    B = 3
    x = jax.random.normal(kx, (B, 1, T_DIM, F_DIM), jnp.float32)   # NCHW like PyTorch

    out = speech_vae_triplet_pair_forward(params, x, ke)
    out = jax.tree_util.tree_map(jax.block_until_ready, out)

    assert out['z'].shape == (B, Z_DIM)
    assert out['qz_x'][0].shape == (B, Z_DIM) and out['qz_x'][1].shape == (B, Z_DIM)
    assert out['x'].shape == (B, 1, T_DIM, F_DIM)
    assert out['px_z'][0].shape == (B, 1, T_DIM, F_DIM)
    assert out['pt'].shape == (B - 1, 1)
    finite = [out['z'], out['x'], out['pt'], out['px_z'][0], out['px_z'][1],
              out['qz_x'][0], out['qz_x'][1]]
    assert all(bool(jnp.all(jnp.isfinite(v))) for v in finite)
    print("KERNEL_OK")
</pallas_src>

<mosaic_0001>
module attributes {stable_mosaic.version = 11 : i64} {
  func.func @_fused_forward_kernel(%arg0: memref<60x8xf32, #tpu.memory_space<vmem>>, %arg1: memref<3x16xf32, #tpu.memory_space<vmem>>, %arg2: memref<60x8xf32, #tpu.memory_space<vmem>>, %arg3: memref<3x30x60xf32, #tpu.memory_space<vmem>>, %arg4: memref<3x15x30xf32, #tpu.memory_space<vmem>>, %arg5: memref<5x3x15xf32, #tpu.memory_space<vmem>>, %arg6: memref<5x15x3xf32, #tpu.memory_space<vmem>>, %arg7: memref<3x30x15xf32, #tpu.memory_space<vmem>>, %arg8: memref<3x60x30xf32, #tpu.memory_space<vmem>>, %arg9: memref<8x64xbf16, #tpu.memory_space<vmem>>, %arg10: memref<1x64xf32, #tpu.memory_space<vmem>>, %arg11: memref<1x64xf32, #tpu.memory_space<vmem>>, %arg12: memref<1x64xf32, #tpu.memory_space<vmem>>, %arg13: memref<192x128xbf16, #tpu.memory_space<vmem>>, %arg14: memref<1x128xf32, #tpu.memory_space<vmem>>, %arg15: memref<1x128xf32, #tpu.memory_space<vmem>>, %arg16: memref<1x128xf32, #tpu.memory_space<vmem>>, %arg17: memref<384x256xbf16, #tpu.memory_space<vmem>>, %arg18: memref<1x256xf32, #tpu.memory_space<vmem>>, %arg19: memref<1x256xf32, #tpu.memory_space<vmem>>, %arg20: memref<1x256xf32, #tpu.memory_space<vmem>>, %arg21: memref<1280x512xbf16, #tpu.memory_space<vmem>>, %arg22: memref<1x512xf32, #tpu.memory_space<vmem>>, %arg23: memref<1x512xf32, #tpu.memory_space<vmem>>, %arg24: memref<1x512xf32, #tpu.memory_space<vmem>>, %arg25: memref<512x32xbf16, #tpu.memory_space<vmem>>, %arg26: memref<1x32xf32, #tpu.memory_space<vmem>>, %arg27: memref<16x512xbf16, #tpu.memory_space<vmem>>, %arg28: memref<1x512xf32, #tpu.memory_space<vmem>>, %arg29: memref<1x512xf32, #tpu.memory_space<vmem>>, %arg30: memref<1x512xf32, #tpu.memory_space<vmem>>, %arg31: memref<512x1280xbf16, #tpu.memory_space<vmem>>, %arg32: memref<1x1280xf32, #tpu.memory_space<vmem>>, %arg33: memref<1x1280xf32, #tpu.memory_space<vmem>>, %arg34: memref<1x1280xf32, #tpu.memory_space<vmem>>, %arg35: memref<768x128xbf16, #tpu.memory_space<vmem>>, %arg36: memref<1x128xf32, #tpu.memory_space<vmem>>, %arg37: memref<1x128xf32, #tpu.memory_space<vmem>>, %arg38: memref<1x128xf32, #tpu.memory_space<vmem>>, %arg39: memref<384x64xbf16, #tpu.memory_space<vmem>>, %arg40: memref<1x64xf32, #tpu.memory_space<vmem>>, %arg41: memref<1x64xf32, #tpu.memory_space<vmem>>, %arg42: memref<1x64xf32, #tpu.memory_space<vmem>>, %arg43: memref<64x16xbf16, #tpu.memory_space<vmem>>, %arg44: memref<1x16xf32, #tpu.memory_space<vmem>>, %arg45: memref<1x1xf32, #tpu.memory_space<vmem>>, %arg46: memref<3x16xf32, #tpu.memory_space<vmem>>, %arg47: memref<3x16xf32, #tpu.memory_space<vmem>>, %arg48: memref<3x16xf32, #tpu.memory_space<vmem>>, %arg49: memref<60x8xf32, #tpu.memory_space<vmem>>, %arg50: memref<60x8xf32, #tpu.memory_space<vmem>>, %arg51: memref<60x8xf32, #tpu.memory_space<vmem>>, %arg52: memref<2x1xf32, #tpu.memory_space<vmem>>) attributes {dimension_semantics = [], scalar_prefetch = 0 : i64, scratch_operands = 0 : i64, tpu.core_type = #tpu.core_type<tc>} {
    %c0 = arith.constant 0 : index
    %c0_0 = arith.constant 0 : index
    %0 = vector.load %arg0[%c0, %c0_0] : memref<60x8xf32, #tpu.memory_space<vmem>>, vector<60x8xf32>
    %1 = arith.truncf %0 : vector<60x8xf32> to vector<60x8xbf16>
    %c0_1 = arith.constant 0 : index
    %c0_2 = arith.constant 0 : index
    %2 = vector.load %arg9[%c0_1, %c0_2] : memref<8x64xbf16, #tpu.memory_space<vmem>>, vector<8x64xbf16>
    %cst = arith.constant dense<0.000000e+00> : vector<60x64xf32>
    %3 = tpu.matmul %1, %2, %cst {dimension_numbers = #tpu.dot_dimension_numbers<[1], [0], [0], [1], [0, 0, 1, 1], [], []>} : vector<60x8xbf16>, vector<8x64xbf16>, vector<60x64xf32> -> vector<60x64xf32>
    %c0_3 = arith.constant 0 : index
    %c0_4 = arith.constant 0 : index
    %4 = vector.load %arg10[%c0_3, %c0_4] : memref<1x64xf32, #tpu.memory_space<vmem>>, vector<1x64xf32>
    %5 = vector.broadcast %4 : vector<1x64xf32> to vector<60x64xf32>
    %6 = arith.addf %3, %5 : vector<60x64xf32>
    %cst_5 = arith.constant dense<0.000000e+00> : vector<64xf32>
    %7 = vector.multi_reduction <add>, %6, %cst_5 [0] : vector<60x64xf32> to vector<64xf32>
    %8 = vector.shape_cast %7 : vector<64xf32> to vector<1x64xf32>
    %cst_6 = arith.constant 6.000000e+01 : f32
    %9 = vector.broadcast %cst_6 : f32 to vector<1x64xf32>
    %10 = arith.divf %8, %9 : vector<1x64xf32>
    %11 = vector.broadcast %10 : vector<1x64xf32> to vector<60x64xf32>
    %12 = arith.subf %6, %11 : vector<60x64xf32>
    %13 = arith.mulf %12, %12 : vector<60x64xf32>
    %cst_7 = arith.constant dense<0.000000e+00> : vector<64xf32>
    %14 = vector.multi_reduction <add>, %13, %cst_7 [0] : vector<60x64xf32> to vector<64xf32>
    %15 = vector.shape_cast %14 : vector<64xf32> to vector<1x64xf32>
    %cst_8 = arith.constant 6.000000e+01 : f32
    %16 = vector.broadcast %cst_8 : f32 to vector<1x64xf32>
    %17 = arith.divf %15, %16 : vector<1x64xf32>
    %18 = vector.broadcast %10 : vector<1x64xf32> to vector<60x64xf32>
    %19 = arith.subf %6, %18 : vector<60x64xf32>
    %cst_9 = arith.constant 9.99999974E-6 : f32
    %20 = vector.broadcast %cst_9 : f32 to vector<1x64xf32>
    %21 = arith.addf %17, %20 : vector<1x64xf32>
    %22 = math.rsqrt %21 : vector<1x64xf32>
    %23 = vector.broadcast %22 : vector<1x64xf32> to vector<60x64xf32>
    %24 = arith.mulf %19, %23 : vector<60x64xf32>
    %c0_10 = arith.constant 0 : index
    %c0_11 = arith.constant 0 : index
    %25 = vector.load %arg11[%c0_10, %c0_11] : memref<1x64xf32, #tpu.memory_space<vmem>>, vector<1x64xf32>
    %26 = vector.broadcast %25 : vector<1x64xf32> to vector<60x64xf32>
    %27 = arith.mulf %24, %26 : vector<60x64xf32>
    %c0_12 = arith.constant 0 : index
    %c0_13 = arith.constant 0 : index
    %28 = vector.load %arg12[%c0_12, %c0_13] : memref<1x64xf32, #tpu.memory_space<vmem>>, vector<1x64xf32>
    %29 = vector.broadcast %28 : vector<1x64xf32> to vector<60x64xf32>
    %30 = arith.addf %27, %29 : vector<60x64xf32>
    %31 = math.tanh %30 : vector<60x64xf32>
    %c0_14 = arith.constant 0 : index
    %c0_15 = arith.constant 0 : index
    %c0_16 = arith.constant 0 : index
    %32 = vector.load %arg3[%c0_14, %c0_15, %c0_16] : memref<3x30x60xf32, #tpu.memory_space<vmem>>, vector<1x30x60xf32>
    %33 = vector.shape_cast %32 : vector<1x30x60xf32> to vector<30x60xf32>
    %cst_17 = arith.constant dense<0.000000e+00> : vector<30x64xf32>
    %34 = tpu.matmul %33, %31, %cst_17 {dimension_numbers = #tpu.dot_dimension_numbers<[1], [0], [0], [1], [0, 0, 1, 1], [], []>} : vector<30x60xf32>, vector<60x64xf32>, vector<30x64xf32> -> vector<30x64xf32>
    %35 = arith.truncf %34 : vector<30x64xf32> to vector<30x64xbf16>
    %c0_18 = arith.constant 0 : index
    %c0_19 = arith.constant 0 : index
    %36 = vector.load %arg13[%c0_18, %c0_19] : memref<192x128xbf16, #tpu.memory_space<vmem>>, vector<64x128xbf16>
    %cst_20 = arith.constant dense<0.000000e+00> : vector<30x128xf32>
    %37 = tpu.matmul %35, %36, %cst_20 {dimension_numbers = #tpu.dot_dimension_numbers<[1], [0], [0], [1], [0, 0, 1, 1], [], []>} : vector<30x64xbf16>, vector<64x128xbf16>, vector<30x128xf32> -> vector<30x128xf32>
    %c1 = arith.constant 1 : index
    %c0_21 = arith.constant 0 : index
    %c0_22 = arith.constant 0 : index
    %38 = vector.load %arg3[%c1, %c0_21, %c0_22] : memref<3x30x60xf32, #tpu.memory_space<vmem>>, vector<1x30x60xf32>
    %39 = vector.shape_cast %38 : vector<1x30x60xf32> to vector<30x60xf32>
    %cst_23 = arith.constant dense<0.000000e+00> : vector<30x64xf32>
    %40 = tpu.matmul %39, %31, %cst_23 {dimension_numbers = #tpu.dot_dimension_numbers<[1], [0], [0], [1], [0, 0, 1, 1], [], []>} : vector<30x60xf32>, vector<60x64xf32>, vector<30x64xf32> -> vector<30x64xf32>
    %41 = arith.truncf %40 : vector<30x64xf32> to vector<30x64xbf16>
    %c64 = arith.constant 64 : index
    %c0_24 = arith.constant 0 : index
    %42 = vector.load %arg13[%c64, %c0_24] : memref<192x128xbf16, #tpu.memory_space<vmem>>, vector<64x128xbf16>
    %cst_25 = arith.constant dense<0.000000e+00> : vector<30x128xf32>
    %43 = tpu.matmul %41, %42, %cst_25 {dimension_numbers = #tpu.dot_dimension_numbers<[1], [0], [0], [1], [0, 0, 1, 1], [], []>} : vector<30x64xbf16>, vector<64x128xbf16>, vector<30x128xf32> -> vector<30x128xf32>
    %44 = arith.addf %37, %43 : vector<30x128xf32>
    %c2 = arith.constant 2 : index
    %c0_26 = arith.constant 0 : index
    %c0_27 = arith.constant 0 : index
    %45 = vector.load %arg3[%c2, %c0_26, %c0_27] : memref<3x30x60xf32, #tpu.memory_space<vmem>>, vector<1x30x60xf32>
    %46 = vector.shape_cast %45 : vector<1x30x60xf32> to vector<30x60xf32>
    %cst_28 = arith.constant dense<0.000000e+00> : vector<30x64xf32>
    %47 = tpu.matmul %46, %31, %cst_28 {dimension_numbers = #tpu.dot_dimension_numbers<[1], [0], [0], [1], [0, 0, 1, 1], [], []>} : vector<30x60xf32>, vector<60x64xf32>, vector<30x64xf32> -> vector<30x64xf32>
    %48 = arith.truncf %47 : vector<30x64xf32> to vector<30x64xbf16>
    %c128 = arith.constant 128 : index
    %c0_29 = arith.constant 0 : index
    %49 = vector.load %arg13[%c128, %c0_29] : memref<192x128xbf16, #tpu.memory_space<vmem>>, vector<64x128xbf16>
    %cst_30 = arith.constant dense<0.000000e+00> : vector<30x128xf32>
    %50 = tpu.matmul %48, %49, %cst_30 {dimension_numbers = #tpu.dot_dimension_numbers<[1], [0], [0], [1], [0, 0, 1, 1], [], []>} : vector<30x64xbf16>, vector<64x128xbf16>, vector<30x128xf32> -> vector<30x128xf32>
    %51 = arith.addf %44, %50 : vector<30x128xf32>
    %c0_31 = arith.constant 0 : index
    %c0_32 = arith.constant 0 : index
    %52 = vector.load %arg14[%c0_31, %c0_32] : memref<1x128xf32, #tpu.memory_space<vmem>>, vector<1x128xf32>
    %53 = vector.broadcast %52 : vector<1x128xf32> to vector<30x128xf32>
    %54 = arith.addf %51, %53 : vector<30x128xf32>
    %cst_33 = arith.constant dense<0.000000e+00> : vector<128xf32>
    %55 = vector.multi_reduction <add>, %54, %cst_33 [0] : vector<30x128xf32> to vector<128xf32>
    %56 = vector.shape_cast %55 : vector<128xf32> to vector<1x128xf32>
    %cst_34 = arith.constant 3.000000e+01 : f32
    %57 = vector.broadcast %cst_34 : f32 to vector<1x128xf32>
    %58 = arith.divf %56, %57 : vector<1x128xf32>
    %59 = vector.broadcast %58 : vector<1x128xf32> to vector<30x128xf32>
    %60 = arith.subf %54, %59 : vector<30x128xf32>
    %61 = arith.mulf %60, %60 : vector<30x128xf32>
    %cst_35 = arith.constant dense<0.000000e+00> : vector<128xf32>
    %62 = vector.multi_reduction <add>, %61, %cst_35 [0] : vector<30x128xf32> to vector<128xf32>
    %63 = vector.shape_cast %62 : vector<128xf32> to vector<1x128xf32>
    %cst_36 = arith.constant 3.000000e+01 : f32
    %64 = vector.broadcast %cst_36 : f32 to vector<1x128xf32>
    %65 = arith.divf %63, %64 : vector<1x128xf32>
    %66 = vector.broadcast %58 : vector<1x128xf32> to vector<30x128xf32>
    %67 = arith.subf %54, %66 : vector<30x128xf32>
    %cst_37 = arith.constant 9.99999974E-6 : f32
    %68 = vector.broadcast %cst_37 : f32 to vector<1x128xf32>
    %69 = arith.addf %65, %68 : vector<1x128xf32>
    %70 = math.rsqrt %69 : vector<1x128xf32>
    %71 = vector.broadcast %70 : vector<1x128xf32> to vector<30x128xf32>
    %72 = arith.mulf %67, %71 : vector<30x128xf32>
    %c0_38 = arith.constant 0 : index
    %c0_39 = arith.constant 0 : index
    %73 = vector.load %arg15[%c0_38, %c0_39] : memref<1x128xf32, #tpu.memory_space<vmem>>, vector<1x128xf32>
    %74 = vector.broadcast %73 : vector<1x128xf32> to vector<30x128xf32>
    %75 = arith.mulf %72, %74 : vector<30x128xf32>
    %c0_40 = arith.constant 0 : index
    %c0_41 = arith.constant 0 : index
    %76 = vector.load %arg16[%c0_40, %c0_41] : memref<1x128xf32, #tpu.memory_space<vmem>>, vector<1x128xf32>
    %77 = vector.broadcast %76 : vector<1x128xf32> to vector<30x128xf32>
    %78 = arith.addf %75, %77 : vector<30x128xf32>
    %79 = math.tanh %78 : vector<30x128xf32>
    %c0_42 = arith.constant 0 : index
    %c0_43 = arith.constant 0 : index
    %c0_44 = arith.constant 0 : index
    %80 = vector.load %arg4[%c0_42, %c0_43, %c0_44] : memref<3x15x30xf32, #tpu.memory_space<vmem>>, vector<1x15x30xf32>
    %81 = vector.shape_cast %80 : vector<1x15x30xf32> to vector<15x30xf32>
    %cst_45 = arith.constant dense<0.000000e+00> : vector<15x128xf32>
    %82 = tpu.matmul %81, %79, %cst_45 {dimension_numbers = #tpu.dot_dimension_numbers<[1], [0], [0], [1], [0, 0, 1, 1], [], []>} : vector<15x30xf32>, vector<30x128xf32>, vector<15x128xf32> -> vector<15x128xf32>
    %83 = arith.truncf %82 : vector<15x128xf32> to vector<15x128xbf16>
    %c0_46 = arith.constant 0 : index
    %c0_47 = arith.constant 0 : index
    %84 = vector.load %arg17[%c0_46, %c0_47] : memref<384x256xbf16, #tpu.memory_space<vmem>>, vector<128x256xbf16>
    %cst_48 = arith.constant dense<0.000000e+00> : vector<15x256xf32>
    %85 = tpu.matmul %83, %84, %cst_48 {dimension_numbers = #tpu.dot_dimension_numbers<[1], [0], [0], [1], [0, 0, 1, 1], [], []>} : vector<15x128xbf16>, vector<128x256xbf16>, vector<15x256xf32> -> vector<15x256xf32>
    %c1_49 = arith.constant 1 : index
    %c0_50 = arith.constant 0 : index
    %c0_51 = arith.constant 0 : index
    %86 = vector.load %arg4[%c1_49, %c0_50, %c0_51] : memref<3x15x30xf32, #tpu.memory_space<vmem>>, vector<1x15x30xf32>
    %87 = vector.shape_cast %86 : vector<1x15x30xf32> to vector<15x30xf32>
    %cst_52 = arith.constant dense<0.000000e+00> : vector<15x128xf32>
    %88 = tpu.matmul %87, %79, %cst_52 {dimension_numbers = #tpu.dot_dimension_numbers<[1], [0], [0], [1], [0, 0, 1, 1], [], []>} : vector<15x30xf32>, vector<30x128xf32>, vector<15x128xf32> -> vector<15x128xf32>
    %89 = arith.truncf %88 : vector<15x128xf32> to vector<15x128xbf16>
    %c128_53 = arith.constant 128 : index
    %c0_54 = arith.constant 0 : index
    %90 = vector.load %arg17[%c128_53, %c0_54] : memref<384x256xbf16, #tpu.memory_space<vmem>>, vector<128x256xbf16>
    %cst_55 = arith.constant dense<0.000000e+00> : vector<15x256xf32>
    %91 = tpu.matmul %89, %90, %cst_55 {dimension_numbers = #tpu.dot_dimension_numbers<[1], [0], [0], [1], [0, 0, 1, 1], [], []>} : vector<15x128xbf16>, vector<128x256xbf16>, vector<15x256xf32> -> vector<15x256xf32>
    %92 = arith.addf %85, %91 : vector<15x256xf32>
    %c2_56 = arith.constant 2 : index
    %c0_57 = arith.constant 0 : index
    %c0_58 = arith.constant 0 : index
    %93 = vector.load %arg4[%c2_56, %c0_57, %c0_58] : memref<3x15x30xf32, #tpu.memory_space<vmem>>, vector<1x15x30xf32>
    %94 = vector.shape_cast %93 : vector<1x15x30xf32> to vector<15x30xf32>
    %cst_59 = arith.constant dense<0.000000e+00> : vector<15x128xf32>
    %95 = tpu.matmul %94, %79, %cst_59 {dimension_numbers = #tpu.dot_dimension_numbers<[1], [0], [0], [1], [0, 0, 1, 1], [], []>} : vector<15x30xf32>, vector<30x128xf32>, vector<15x128xf32> -> vector<15x128xf32>
    %96 = arith.truncf %95 : vector<15x128xf32> to vector<15x128xbf16>
    %c256 = arith.constant 256 : index
    %c0_60 = arith.constant 0 : index
    %97 = vector.load %arg17[%c256, %c0_60] : memref<384x256xbf16, #tpu.memory_space<vmem>>, vector<128x256xbf16>
    %cst_61 = arith.constant dense<0.000000e+00> : vector<15x256xf32>
    %98 = tpu.matmul %96, %97, %cst_61 {dimension_numbers = #tpu.dot_dimension_numbers<[1], [0], [0], [1], [0, 0, 1, 1], [], []>} : vector<15x128xbf16>, vector<128x256xbf16>, vector<15x256xf32> -> vector<15x256xf32>
    %99 = arith.addf %92, %98 : vector<15x256xf32>
    %c0_62 = arith.constant 0 : index
    %c0_63 = arith.constant 0 : index
    %100 = vector.load %arg18[%c0_62, %c0_63] : memref<1x256xf32, #tpu.memory_space<vmem>>, vector<1x256xf32>
    %101 = vector.broadcast %100 : vector<1x256xf32> to vector<15x256xf32>
    %102 = arith.addf %99, %101 : vector<15x256xf32>
    %cst_64 = arith.constant dense<0.000000e+00> : vector<256xf32>
    %103 = vector.multi_reduction <add>, %102, %cst_64 [0] : vector<15x256xf32> to vector<256xf32>
    %104 = vector.shape_cast %103 : vector<256xf32> to vector<1x256xf32>
    %cst_65 = arith.constant 1.500000e+01 : f32
    %105 = vector.broadcast %cst_65 : f32 to vector<1x256xf32>
    %106 = arith.divf %104, %105 : vector<1x256xf32>
    %107 = vector.broadcast %106 : vector<1x256xf32> to vector<15x256xf32>
    %108 = arith.subf %102, %107 : vector<15x256xf32>
    %109 = arith.mulf %108, %108 : vector<15x256xf32>
    %cst_66 = arith.constant dense<0.000000e+00> : vector<256xf32>
    %110 = vector.multi_reduction <add>, %109, %cst_66 [0] : vector<15x256xf32> to vector<256xf32>
    %111 = vector.shape_cast %110 : vector<256xf32> to vector<1x256xf32>
    %cst_67 = arith.constant 1.500000e+01 : f32
    %112 = vector.broadcast %cst_67 : f32 to vector<1x256xf32>
    %113 = arith.divf %111, %112 : vector<1x256xf32>
    %114 = vector.broadcast %106 : vector<1x256xf32> to vector<15x256xf32>
    %115 = arith.subf %102, %114 : vector<15x256xf32>
    %cst_68 = arith.constant 9.99999974E-6 : f32
    %116 = vector.broadcast %cst_68 : f32 to vector<1x256xf32>
    %117 = arith.addf %113, %116 : vector<1x256xf32>
    %118 = math.rsqrt %117 : vector<1x256xf32>
    %119 = vector.broadcast %118 : vector<1x256xf32> to vector<15x256xf32>
    %120 = arith.mulf %115, %119 : vector<15x256xf32>
    %c0_69 = arith.constant 0 : index
    %c0_70 = arith.constant 0 : index
    %121 = vector.load %arg19[%c0_69, %c0_70] : memref<1x256xf32, #tpu.memory_space<vmem>>, vector<1x256xf32>
    %122 = vector.broadcast %121 : vector<1x256xf32> to vector<15x256xf32>
    %123 = arith.mulf %120, %122 : vector<15x256xf32>
    %c0_71 = arith.constant 0 : index
    %c0_72 = arith.constant 0 : index
    %124 = vector.load %arg20[%c0_71, %c0_72] : memref<1x256xf32, #tpu.memory_space<vmem>>, vector<1x256xf32>
    %125 = vector.broadcast %124 : vector<1x256xf32> to vector<15x256xf32>
    %126 = arith.addf %123, %125 : vector<15x256xf32>
    %127 = math.tanh %126 : vector<15x256xf32>
    %c0_73 = arith.constant 0 : index
    %c0_74 = arith.constant 0 : index
    %c0_75 = arith.constant 0 : index
    %128 = vector.load %arg5[%c0_73, %c0_74, %c0_75] : memref<5x3x15xf32, #tpu.memory_space<vmem>>, vector<1x3x15xf32>
    %129 = vector.shape_cast %128 : vector<1x3x15xf32> to vector<3x15xf32>
    %cst_76 = arith.constant dense<0.000000e+00> : vector<3x256xf32>
    %130 = tpu.matmul %129, %127, %cst_76 {dimension_numbers = #tpu.dot_dimension_numbers<[1], [0], [0], [1], [0, 0, 1, 1], [], []>} : vector<3x15xf32>, vector<15x256xf32>, vector<3x256xf32> -> vector<3x256xf32>
    %131 = arith.truncf %130 : vector<3x256xf32> to vector<3x256xbf16>
    %c0_77 = arith.constant 0 : index
    %c0_78 = arith.constant 0 : index
    %132 = vector.load %arg21[%c0_77, %c0_78] : memref<1280x512xbf16, #tpu.memory_space<vmem>>, vector<256x512xbf16>
    %cst_79 = arith.constant dense<0.000000e+00> : vector<3x512xf32>
    %133 = tpu.matmul %131, %132, %cst_79 {dimension_numbers = #tpu.dot_dimension_numbers<[1], [0], [0], [1], [0, 0, 1, 1], [], []>} : vector<3x256xbf16>, vector<256x512xbf16>, vector<3x512xf32> -> vector<3x512xf32>
    %c1_80 = arith.constant 1 : index
    %c0_81 = arith.constant 0 : index
    %c0_82 = arith.constant 0 : index
    %134 = vector.load %arg5[%c1_80, %c0_81, %c0_82] : memref<5x3x15xf32, #tpu.memory_space<vmem>>, vector<1x3x15xf32>
    %135 = vector.shape_cast %134 : vector<1x3x15xf32> to vector<3x15xf32>
    %cst_83 = arith.constant dense<0.000000e+00> : vector<3x256xf32>
    %136 = tpu.matmul %135, %127, %cst_83 {dimension_numbers = #tpu.dot_dimension_numbers<[1], [0], [0], [1], [0, 0, 1, 1], [], []>} : vector<3x15xf32>, vector<15x256xf32>, vector<3x256xf32> -> vector<3x256xf32>
    %137 = arith.truncf %136 : vector<3x256xf32> to vector<3x256xbf16>
    %c256_84 = arith.constant 256 : index
    %c0_85 = arith.constant 0 : index
    %138 = vector.load %arg21[%c256_84, %c0_85] : memref<1280x512xbf16, #tpu.memory_space<vmem>>, vector<256x512xbf16>
    %cst_86 = arith.constant dense<0.000000e+00> : vector<3x512xf32>
    %139 = tpu.matmul %137, %138, %cst_86 {dimension_numbers = #tpu.dot_dimension_numbers<[1], [0], [0], [1], [0, 0, 1, 1], [], []>} : vector<3x256xbf16>, vector<256x512xbf16>, vector<3x512xf32> -> vector<3x512xf32>
    %140 = arith.addf %133, %139 : vector<3x512xf32>
    %c2_87 = arith.constant 2 : index
    %c0_88 = arith.constant 0 : index
    %c0_89 = arith.constant 0 : index
    %141 = vector.load %arg5[%c2_87, %c0_88, %c0_89] : memref<5x3x15xf32, #tpu.memory_space<vmem>>, vector<1x3x15xf32>
    %142 = vector.shape_cast %141 : vector<1x3x15xf32> to vector<3x15xf32>
    %cst_90 = arith.constant dense<0.000000e+00> : vector<3x256xf32>
    %143 = tpu.matmul %142, %127, %cst_90 {dimension_numbers = #tpu.dot_dimension_numbers<[1], [0], [0], [1], [0, 0, 1, 1], [], []>} : vector<3x15xf32>, vector<15x256xf32>, vector<3x256xf32> -> vector<3x256xf32>
    %144 = arith.truncf %143 : vector<3x256xf32> to vector<3x256xbf16>
    %c512 = arith.constant 512 : index
    %c0_91 = arith.constant 0 : index
    %145 = vector.load %arg21[%c512, %c0_91] : memref<1280x512xbf16, #tpu.memory_space<vmem>>, vector<256x512xbf16>
    %cst_92 = arith.constant dense<0.000000e+00> : vector<3x512xf32>
    %146 = tpu.matmul %144, %145, %cst_92 {dimension_numbers = #tpu.dot_dimension_numbers<[1], [0], [0], [1], [0, 0, 1, 1], [], []>} : vector<3x256xbf16>, vector<256x512xbf16>, vector<3x512xf32> -> vector<3x512xf32>
    %147 = arith.addf %140, %146 : vector<3x512xf32>
    %c3 = arith.constant 3 : index
    %c0_93 = arith.constant 0 : index
    %c0_94 = arith.constant 0 : index
    %148 = vector.load %arg5[%c3, %c0_93, %c0_94] : memref<5x3x15xf32, #tpu.memory_space<vmem>>, vector<1x3x15xf32>
    %149 = vector.shape_cast %148 : vector<1x3x15xf32> to vector<3x15xf32>
    %cst_95 = arith.constant dense<0.000000e+00> : vector<3x256xf32>
    %150 = tpu.matmul %149, %127, %cst_95 {dimension_numbers = #tpu.dot_dimension_numbers<[1], [0], [0], [1], [0, 0, 1, 1], [], []>} : vector<3x15xf32>, vector<15x256xf32>, vector<3x256xf32> -> vector<3x256xf32>
    %151 = arith.truncf %150 : vector<3x256xf32> to vector<3x256xbf16>
    %c768 = arith.constant 768 : index
    %c0_96 = arith.constant 0 : index
    %152 = vector.load %arg21[%c768, %c0_96] : memref<1280x512xbf16, #tpu.memory_space<vmem>>, vector<256x512xbf16>
    %cst_97 = arith.constant dense<0.000000e+00> : vector<3x512xf32>
    %153 = tpu.matmul %151, %152, %cst_97 {dimension_numbers = #tpu.dot_dimension_numbers<[1], [0], [0], [1], [0, 0, 1, 1], [], []>} : vector<3x256xbf16>, vector<256x512xbf16>, vector<3x512xf32> -> vector<3x512xf32>
    %154 = arith.addf %147, %153 : vector<3x512xf32>
    %c4 = arith.constant 4 : index
    %c0_98 = arith.constant 0 : index
    %c0_99 = arith.constant 0 : index
    %155 = vector.load %arg5[%c4, %c0_98, %c0_99] : memref<5x3x15xf32, #tpu.memory_space<vmem>>, vector<1x3x15xf32>
    %156 = vector.shape_cast %155 : vector<1x3x15xf32> to vector<3x15xf32>
    %cst_100 = arith.constant dense<0.000000e+00> : vector<3x256xf32>
    %157 = tpu.matmul %156, %127, %cst_100 {dimension_numbers = #tpu.dot_dimension_numbers<[1], [0], [0], [1], [0, 0, 1, 1], [], []>} : vector<3x15xf32>, vector<15x256xf32>, vector<3x256xf32> -> vector<3x256xf32>
    %158 = arith.truncf %157 : vector<3x256xf32> to vector<3x256xbf16>
    %c1024 = arith.constant 1024 : index
    %c0_101 = arith.constant 0 : index
    %159 = vector.load %arg21[%c1024, %c0_101] : memref<1280x512xbf16, #tpu.memory_space<vmem>>, vector<256x512xbf16>
    %cst_102 = arith.constant dense<0.000000e+00> : vector<3x512xf32>
    %160 = tpu.matmul %158, %159, %cst_102 {dimension_numbers = #tpu.dot_dimension_numbers<[1], [0], [0], [1], [0, 0, 1, 1], [], []>} : vector<3x256xbf16>, vector<256x512xbf16>, vector<3x512xf32> -> vector<3x512xf32>
    %161 = arith.addf %154, %160 : vector<3x512xf32>
    %c0_103 = arith.constant 0 : index
    %c0_104 = arith.constant 0 : index
    %162 = vector.load %arg22[%c0_103, %c0_104] : memref<1x512xf32, #tpu.memory_space<vmem>>, vector<1x512xf32>
    %163 = vector.broadcast %162 : vector<1x512xf32> to vector<3x512xf32>
    %164 = arith.addf %161, %163 : vector<3x512xf32>
    %cst_105 = arith.constant dense<0.000000e+00> : vector<512xf32>
    %165 = vector.multi_reduction <add>, %164, %cst_105 [0] : vector<3x512xf32> to vector<512xf32>
    %166 = vector.shape_cast %165 : vector<512xf32> to vector<1x512xf32>
    %cst_106 = arith.constant 3.000000e+00 : f32
    %167 = vector.broadcast %cst_106 : f32 to vector<1x512xf32>
    %168 = arith.divf %166, %167 : vector<1x512xf32>
    %169 = vector.broadcast %168 : vector<1x512xf32> to vector<3x512xf32>
    %170 = arith.subf %164, %169 : vector<3x512xf32>
    %171 = arith.mulf %170, %170 : vector<3x512xf32>
    %cst_107 = arith.constant dense<0.000000e+00> : vector<512xf32>
    %172 = vector.multi_reduction <add>, %171, %cst_107 [0] : vector<3x512xf32> to vector<512xf32>
    %173 = vector.shape_cast %172 : vector<512xf32> to vector<1x512xf32>
    %cst_108 = arith.constant 3.000000e+00 : f32
    %174 = vector.broadcast %cst_108 : f32 to vector<1x512xf32>
    %175 = arith.divf %173, %174 : vector<1x512xf32>
    %176 = vector.broadcast %168 : vector<1x512xf32> to vector<3x512xf32>
    %177 = arith.subf %164, %176 : vector<3x512xf32>
    %cst_109 = arith.constant 9.99999974E-6 : f32
    %178 = vector.broadcast %cst_109 : f32 to vector<1x512xf32>
    %179 = arith.addf %175, %178 : vector<1x512xf32>
    %180 = math.rsqrt %179 : vector<1x512xf32>
    %181 = vector.broadcast %180 : vector<1x512xf32> to vector<3x512xf32>
    %182 = arith.mulf %177, %181 : vector<3x512xf32>
    %c0_110 = arith.constant 0 : index
    %c0_111 = arith.constant 0 : index
    %183 = vector.load %arg23[%c0_110, %c0_111] : memref<1x512xf32, #tpu.memory_space<vmem>>, vector<1x512xf32>
    %184 = vector.broadcast %183 : vector<1x512xf32> to vector<3x512xf32>
    %185 = arith.mulf %182, %184 : vector<3x512xf32>
    %c0_112 = arith.constant 0 : index
    %c0_113 = arith.constant 0 : index
    %186 = vector.load %arg24[%c0_112, %c0_113] : memref<1x512xf32, #tpu.memory_space<vmem>>, vector<1x512xf32>
    %187 = vector.broadcast %186 : vector<1x512xf32> to vector<3x512xf32>
    %188 = arith.addf %185, %187 : vector<3x512xf32>
    %189 = math.tanh %188 : vector<3x512xf32>
    %190 = arith.truncf %189 : vector<3x512xf32> to vector<3x512xbf16>
    %c0_114 = arith.constant 0 : index
    %c0_115 = arith.constant 0 : index
    %191 = vector.load %arg25[%c0_114, %c0_115] : memref<512x32xbf16, #tpu.memory_space<vmem>>, vector<512x32xbf16>
    %cst_116 = arith.constant dense<0.000000e+00> : vector<3x32xf32>
    %192 = tpu.matmul %190, %191, %cst_116 {dimension_numbers = #tpu.dot_dimension_numbers<[1], [0], [0], [1], [0, 0, 1, 1], [], []>} : vector<3x512xbf16>, vector<512x32xbf16>, vector<3x32xf32> -> vector<3x32xf32>
    %c0_117 = arith.constant 0 : index
    %c0_118 = arith.constant 0 : index
    %193 = vector.load %arg26[%c0_117, %c0_118] : memref<1x32xf32, #tpu.memory_space<vmem>>, vector<1x32xf32>
    %194 = vector.broadcast %193 : vector<1x32xf32> to vector<3x32xf32>
    %195 = arith.addf %192, %194 : vector<3x32xf32>
    %196 = vector.extract_strided_slice %195 {offsets = [0, 0], sizes = [3, 16], strides = [1, 1]} : vector<3x32xf32> to vector<3x16xf32>
    %197 = vector.extract_strided_slice %195 {offsets = [0, 16], sizes = [3, 16], strides = [1, 1]} : vector<3x32xf32> to vector<3x16xf32>
    %c0_119 = arith.constant 0 : index
    %c0_120 = arith.constant 0 : index
    %198 = vector.load %arg1[%c0_119, %c0_120] : memref<3x16xf32, #tpu.memory_space<vmem>>, vector<3x16xf32>
    %cst_121 = arith.constant 5.000000e-01 : f32
    %199 = vector.broadcast %cst_121 : f32 to vector<3x16xf32>
    %200 = arith.mulf %197, %199 : vector<3x16xf32>
    %201 = math.exp %200 : vector<3x16xf32>
    %202 = arith.mulf %198, %201 : vector<3x16xf32>
    %203 = arith.addf %196, %202 : vector<3x16xf32>
    %c0_122 = arith.constant 0 : index
    %c0_123 = arith.constant 0 : index
    %204 = vector.load %arg46[%c0_122, %c0_123] : memref<3x16xf32, #tpu.memory_space<vmem>>, vector<3x16xf32>
    tpu.vector_store %arg46[%c0_122, %c0_123], %196 {strides = array<i32>} : memref<3x16xf32, #tpu.memory_space<vmem>>, vector<3x16xf32>,
    %c0_124 = arith.constant 0 : index
    %c0_125 = arith.constant 0 : index
    %205 = vector.load %arg47[%c0_124, %c0_125] : memref<3x16xf32, #tpu.memory_space<vmem>>, vector<3x16xf32>
    tpu.vector_store %arg47[%c0_124, %c0_125], %197 {strides = array<i32>} : memref<3x16xf32, #tpu.memory_space<vmem>>, vector<3x16xf32>,
    %c0_126 = arith.constant 0 : index
    %c0_127 = arith.constant 0 : index
    %206 = vector.load %arg48[%c0_126, %c0_127] : memref<3x16xf32, #tpu.memory_space<vmem>>, vector<3x16xf32>
    tpu.vector_store %arg48[%c0_126, %c0_127], %203 {strides = array<i32>} : memref<3x16xf32, #tpu.memory_space<vmem>>, vector<3x16xf32>,
    %207 = vector.extract_strided_slice %203 {offsets = [0, 8], sizes = [3, 8], strides = [1, 1]} : vector<3x16xf32> to vector<3x8xf32>
    %208 = vector.extract_strided_slice %207 {offsets = [0, 0], sizes = [2, 8], strides = [1, 1]} : vector<3x8xf32> to vector<2x8xf32>
    %209 = vector.extract_strided_slice %207 {offsets = [1, 0], sizes = [2, 8], strides = [1, 1]} : vector<3x8xf32> to vector<2x8xf32>
    %210 = arith.subf %208, %209 : vector<2x8xf32>
    %211 = arith.mulf %210, %210 : vector<2x8xf32>
    %cst_128 = arith.constant dense<0.000000e+00> : vector<2xf32>
    %212 = vector.multi_reduction <add>, %211, %cst_128 [1] : vector<2x8xf32> to vector<2xf32>
    %213 = vector.shape_cast %212 : vector<2xf32> to vector<2x1xf32>
    %214 = math.sqrt %213 : vector<2x1xf32>
    %c0_129 = arith.constant 0 : index
    %c0_130 = arith.constant 0 : index
    %215 = vector.load %arg45[%c0_129, %c0_130] : memref<1x1xf32, #tpu.memory_space<vmem>>, vector<1x1xf32>
    %216 = vector.broadcast %215 : vector<1x1xf32> to vector<2x1xf32>
    %217 = arith.mulf %214, %216 : vector<2x1xf32>
    %c0_131 = arith.constant 0 : index
    %c0_132 = arith.constant 0 : index
    %218 = vector.load %arg52[%c0_131, %c0_132] : memref<2x1xf32, #tpu.memory_space<vmem>>, vector<2x1xf32>
    tpu.vector_store %arg52[%c0_131, %c0_132], %217 {strides = array<i32>} : memref<2x1xf32, #tpu.memory_space<vmem>>, vector<2x1xf32>,
    %219 = arith.truncf %203 : vector<3x16xf32> to vector<3x16xbf16>
    %c0_133 = arith.constant 0 : index
    %c0_134 = arith.constant 0 : index
    %220 = vector.load %arg27[%c0_133, %c0_134] : memref<16x512xbf16, #tpu.memory_space<vmem>>, vector<16x512xbf16>
    %cst_135 = arith.constant dense<0.000000e+00> : vector<3x512xf32>
    %221 = tpu.matmul %219, %220, %cst_135 {dimension_numbers = #tpu.dot_dimension_numbers<[1], [0], [0], [1], [0, 0, 1, 1], [], []>} : vector<3x16xbf16>, vector<16x512xbf16>, vector<3x512xf32> -> vector<3x512xf32>
    %c0_136 = arith.constant 0 : index
    %c0_137 = arith.constant 0 : index
    %222 = vector.load %arg28[%c0_136, %c0_137] : memref<1x512xf32, #tpu.memory_space<vmem>>, vector<1x512xf32>
    %223 = vector.broadcast %222 : vector<1x512xf32> to vector<3x512xf32>
    %224 = arith.addf %221, %223 : vector<3x512xf32>
    %cst_138 = arith.constant dense<0.000000e+00> : vector<512xf32>
    %225 = vector.multi_reduction <add>, %224, %cst_138 [0] : vector<3x512xf32> to vector<512xf32>
    %226 = vector.shape_cast %225 : vector<512xf32> to vector<1x512xf32>
    %cst_139 = arith.constant 3.000000e+00 : f32
    %227 = vector.broadcast %cst_139 : f32 to vector<1x512xf32>
    %228 = arith.divf %226, %227 : vector<1x512xf32>
    %229 = vector.broadcast %228 : vector<1x512xf32> to vector<3x512xf32>
    %230 = arith.subf %224, %229 : vector<3x512xf32>
    %231 = arith.mulf %230, %230 : vector<3x512xf32>
    %cst_140 = arith.constant dense<0.000000e+00> : vector<512xf32>
    %232 = vector.multi_reduction <add>, %231, %cst_140 [0] : vector<3x512xf32> to vector<512xf32>
    %233 = vector.shape_cast %232 : vector<512xf32> to vector<1x512xf32>
    %cst_141 = arith.constant 3.000000e+00 : f32
    %234 = vector.broadcast %cst_141 : f32 to vector<1x512xf32>
    %235 = arith.divf %233, %234 : vector<1x512xf32>
    %236 = vector.broadcast %228 : vector<1x512xf32> to vector<3x512xf32>
    %237 = arith.subf %224, %236 : vector<3x512xf32>
    %cst_142 = arith.constant 9.99999974E-6 : f32
    %238 = vector.broadcast %cst_142 : f32 to vector<1x512xf32>
    %239 = arith.addf %235, %238 : vector<1x512xf32>
    %240 = math.rsqrt %239 : vector<1x512xf32>
    %241 = vector.broadcast %240 : vector<1x512xf32> to vector<3x512xf32>
    %242 = arith.mulf %237, %241 : vector<3x512xf32>
    %c0_143 = arith.constant 0 : index
    %c0_144 = arith.constant 0 : index
    %243 = vector.load %arg29[%c0_143, %c0_144] : memref<1x512xf32, #tpu.memory_space<vmem>>, vector<1x512xf32>
    %244 = vector.broadcast %243 : vector<1x512xf32> to vector<3x512xf32>
    %245 = arith.mulf %242, %244 : vector<3x512xf32>
    %c0_145 = arith.constant 0 : index
    %c0_146 = arith.constant 0 : index
    %246 = vector.load %arg30[%c0_145, %c0_146] : memref<1x512xf32, #tpu.memory_space<vmem>>, vector<1x512xf32>
    %247 = vector.broadcast %246 : vector<1x512xf32> to vector<3x512xf32>
    %248 = arith.addf %245, %247 : vector<3x512xf32>
    %249 = math.tanh %248 : vector<3x512xf32>
    %250 = arith.truncf %249 : vector<3x512xf32> to vector<3x512xbf16>
    %c0_147 = arith.constant 0 : index
    %c0_148 = arith.constant 0 : index
    %251 = vector.load %arg31[%c0_147, %c0_148] : memref<512x1280xbf16, #tpu.memory_space<vmem>>, vector<512x1280xbf16>
    %cst_149 = arith.constant dense<0.000000e+00> : vector<3x1280xf32>
    %252 = tpu.matmul %250, %251, %cst_149 {dimension_numbers = #tpu.dot_dimension_numbers<[1], [0], [0], [1], [0, 0, 1, 1], [], []>} : vector<3x512xbf16>, vector<512x1280xbf16>, vector<3x1280xf32> -> vector<3x1280xf32>
    %c0_150 = arith.constant 0 : index
    %c0_151 = arith.constant 0 : index
    %253 = vector.load %arg32[%c0_150, %c0_151] : memref<1x1280xf32, #tpu.memory_space<vmem>>, vector<1x1280xf32>
    %254 = vector.broadcast %253 : vector<1x1280xf32> to vector<3x1280xf32>
    %255 = arith.addf %252, %254 : vector<3x1280xf32>
    %cst_152 = arith.constant dense<0.000000e+00> : vector<1280xf32>
    %256 = vector.multi_reduction <add>, %255, %cst_152 [0] : vector<3x1280xf32> to vector<1280xf32>
    %257 = vector.shape_cast %256 : vector<1280xf32> to vector<1x1280xf32>
    %cst_153 = arith.constant 3.000000e+00 : f32
    %258 = vector.broadcast %cst_153 : f32 to vector<1x1280xf32>
    %259 = arith.divf %257, %258 : vector<1x1280xf32>
    %260 = vector.broadcast %259 : vector<1x1280xf32> to vector<3x1280xf32>
    %261 = arith.subf %255, %260 : vector<3x1280xf32>
    %262 = arith.mulf %261, %261 : vector<3x1280xf32>
    %cst_154 = arith.constant dense<0.000000e+00> : vector<1280xf32>
    %263 = vector.multi_reduction <add>, %262, %cst_154 [0] : vector<3x1280xf32> to vector<1280xf32>
    %264 = vector.shape_cast %263 : vector<1280xf32> to vector<1x1280xf32>
    %cst_155 = arith.constant 3.000000e+00 : f32
    %265 = vector.broadcast %cst_155 : f32 to vector<1x1280xf32>
    %266 = arith.divf %264, %265 : vector<1x1280xf32>
    %267 = vector.broadcast %259 : vector<1x1280xf32> to vector<3x1280xf32>
    %268 = arith.subf %255, %267 : vector<3x1280xf32>
    %cst_156 = arith.constant 9.99999974E-6 : f32
    %269 = vector.broadcast %cst_156 : f32 to vector<1x1280xf32>
    %270 = arith.addf %266, %269 : vector<1x1280xf32>
    %271 = math.rsqrt %270 : vector<1x1280xf32>
    %272 = vector.broadcast %271 : vector<1x1280xf32> to vector<3x1280xf32>
    %273 = arith.mulf %268, %272 : vector<3x1280xf32>
    %c0_157 = arith.constant 0 : index
    %c0_158 = arith.constant 0 : index
    %274 = vector.load %arg33[%c0_157, %c0_158] : memref<1x1280xf32, #tpu.memory_space<vmem>>, vector<1x1280xf32>
    %275 = vector.broadcast %274 : vector<1x1280xf32> to vector<3x1280xf32>
    %276 = arith.mulf %273, %275 : vector<3x1280xf32>
    %c0_159 = arith.constant 0 : index
    %c0_160 = arith.constant 0 : index
    %277 = vector.load %arg34[%c0_159, %c0_160] : memref<1x1280xf32, #tpu.memory_space<vmem>>, vector<1x1280xf32>
    %278 = vector.broadcast %277 : vector<1x1280xf32> to vector<3x1280xf32>
    %279 = arith.addf %276, %278 : vector<3x1280xf32>
    %280 = math.tanh %279 : vector<3x1280xf32>
    %c0_161 = arith.constant 0 : index
    %c0_162 = arith.constant 0 : index
    %c0_163 = arith.constant 0 : index
    %281 = vector.load %arg6[%c0_161, %c0_162, %c0_163] : memref<5x15x3xf32, #tpu.memory_space<vmem>>, vector<1x15x3xf32>
    %282 = vector.shape_cast %281 : vector<1x15x3xf32> to vector<15x3xf32>
    %283 = vector.extract_strided_slice %280 {offsets = [0, 0], sizes = [3, 256], strides = [1, 1]} : vector<3x1280xf32> to vector<3x256xf32>
    %cst_164 = arith.constant dense<0.000000e+00> : vector<15x256xf32>
    %284 = tpu.matmul %282, %283, %cst_164 {dimension_numbers = #tpu.dot_dimension_numbers<[1], [0], [0], [1], [0, 0, 1, 1], [], []>} : vector<15x3xf32>, vector<3x256xf32>, vector<15x256xf32> -> vector<15x256xf32>
    %c1_165 = arith.constant 1 : index
    %c0_166 = arith.constant 0 : index
    %c0_167 = arith.constant 0 : index
    %285 = vector.load %arg6[%c1_165, %c0_166, %c0_167] : memref<5x15x3xf32, #tpu.memory_space<vmem>>, vector<1x15x3xf32>
    %286 = vector.shape_cast %285 : vector<1x15x3xf32> to vector<15x3xf32>
    %287 = vector.extract_strided_slice %280 {offsets = [0, 256], sizes = [3, 256], strides = [1, 1]} : vector<3x1280xf32> to vector<3x256xf32>
    %cst_168 = arith.constant dense<0.000000e+00> : vector<15x256xf32>
    %288 = tpu.matmul %286, %287, %cst_168 {dimension_numbers = #tpu.dot_dimension_numbers<[1], [0], [0], [1], [0, 0, 1, 1], [], []>} : vector<15x3xf32>, vector<3x256xf32>, vector<15x256xf32> -> vector<15x256xf32>
    %289 = arith.addf %284, %288 : vector<15x256xf32>
    %c2_169 = arith.constant 2 : index
    %c0_170 = arith.constant 0 : index
    %c0_171 = arith.constant 0 : index
    %290 = vector.load %arg6[%c2_169, %c0_170, %c0_171] : memref<5x15x3xf32, #tpu.memory_space<vmem>>, vector<1x15x3xf32>
    %291 = vector.shape_cast %290 : vector<1x15x3xf32> to vector<15x3xf32>
    %292 = vector.extract_strided_slice %280 {offsets = [0, 512], sizes = [3, 256], strides = [1, 1]} : vector<3x1280xf32> to vector<3x256xf32>
    %cst_172 = arith.constant dense<0.000000e+00> : vector<15x256xf32>
    %293 = tpu.matmul %291, %292, %cst_172 {dimension_numbers = #tpu.dot_dimension_numbers<[1], [0], [0], [1], [0, 0, 1, 1], [], []>} : vector<15x3xf32>, vector<3x256xf32>, vector<15x256xf32> -> vector<15x256xf32>
    %294 = arith.addf %289, %293 : vector<15x256xf32>
    %c3_173 = arith.constant 3 : index
    %c0_174 = arith.constant 0 : index
    %c0_175 = arith.constant 0 : index
    %295 = vector.load %arg6[%c3_173, %c0_174, %c0_175] : memref<5x15x3xf32, #tpu.memory_space<vmem>>, vector<1x15x3xf32>
    %296 = vector.shape_cast %295 : vector<1x15x3xf32> to vector<15x3xf32>
    %297 = vector.extract_strided_slice %280 {offsets = [0, 768], sizes = [3, 256], strides = [1, 1]} : vector<3x1280xf32> to vector<3x256xf32>
    %cst_176 = arith.constant dense<0.000000e+00> : vector<15x256xf32>
    %298 = tpu.matmul %296, %297, %cst_176 {dimension_numbers = #tpu.dot_dimension_numbers<[1], [0], [0], [1], [0, 0, 1, 1], [], []>} : vector<15x3xf32>, vector<3x256xf32>, vector<15x256xf32> -> vector<15x256xf32>
    %299 = arith.addf %294, %298 : vector<15x256xf32>
    %c4_177 = arith.constant 4 : index
    %c0_178 = arith.constant 0 : index
    %c0_179 = arith.constant 0 : index
    %300 = vector.load %arg6[%c4_177, %c0_178, %c0_179] : memref<5x15x3xf32, #tpu.memory_space<vmem>>, vector<1x15x3xf32>
    %301 = vector.shape_cast %300 : vector<1x15x3xf32> to vector<15x3xf32>
    %302 = vector.extract_strided_slice %280 {offsets = [0, 1024], sizes = [3, 256], strides = [1, 1]} : vector<3x1280xf32> to vector<3x256xf32>
    %cst_180 = arith.constant dense<0.000000e+00> : vector<15x256xf32>
    %303 = tpu.matmul %301, %302, %cst_180 {dimension_numbers = #tpu.dot_dimension_numbers<[1], [0], [0], [1], [0, 0, 1, 1], [], []>} : vector<15x3xf32>, vector<3x256xf32>, vector<15x256xf32> -> vector<15x256xf32>
    %304 = arith.addf %299, %303 : vector<15x256xf32>
    %c0_181 = arith.constant 0 : index
    %c0_182 = arith.constant 0 : index
    %c0_183 = arith.constant 0 : index
    %305 = vector.load %arg7[%c0_181, %c0_182, %c0_183] : memref<3x30x15xf32, #tpu.memory_space<vmem>>, vector<1x30x15xf32>
    %306 = vector.shape_cast %305 : vector<1x30x15xf32> to vector<30x15xf32>
    %cst_184 = arith.constant dense<0.000000e+00> : vector<30x256xf32>
    %307 = tpu.matmul %306, %304, %cst_184 {dimension_numbers = #tpu.dot_dimension_numbers<[1], [0], [0], [1], [0, 0, 1, 1], [], []>} : vector<30x15xf32>, vector<15x256xf32>, vector<30x256xf32> -> vector<30x256xf32>
    %308 = arith.truncf %307 : vector<30x256xf32> to vector<30x256xbf16>
    %c0_185 = arith.constant 0 : index
    %c0_186 = arith.constant 0 : index
    %309 = vector.load %arg35[%c0_185, %c0_186] : memref<768x128xbf16, #tpu.memory_space<vmem>>, vector<256x128xbf16>
    %cst_187 = arith.constant dense<0.000000e+00> : vector<30x128xf32>
    %310 = tpu.matmul %308, %309, %cst_187 {dimension_numbers = #tpu.dot_dimension_numbers<[1], [0], [0], [1], [0, 0, 1, 1], [], []>} : vector<30x256xbf16>, vector<256x128xbf16>, vector<30x128xf32> -> vector<30x128xf32>
    %c1_188 = arith.constant 1 : index
    %c0_189 = arith.constant 0 : index
    %c0_190 = arith.constant 0 : index
    %311 = vector.load %arg7[%c1_188, %c0_189, %c0_190] : memref<3x30x15xf32, #tpu.memory_space<vmem>>, vector<1x30x15xf32>
    %312 = vector.shape_cast %311 : vector<1x30x15xf32> to vector<30x15xf32>
    %cst_191 = arith.constant dense<0.000000e+00> : vector<30x256xf32>
    %313 = tpu.matmul %312, %304, %cst_191 {dimension_numbers = #tpu.dot_dimension_numbers<[1], [0], [0], [1], [0, 0, 1, 1], [], []>} : vector<30x15xf32>, vector<15x256xf32>, vector<30x256xf32> -> vector<30x256xf32>
    %314 = arith.truncf %313 : vector<30x256xf32> to vector<30x256xbf16>
    %c256_192 = arith.constant 256 : index
    %c0_193 = arith.constant 0 : index
    %315 = vector.load %arg35[%c256_192, %c0_193] : memref<768x128xbf16, #tpu.memory_space<vmem>>, vector<256x128xbf16>
    %cst_194 = arith.constant dense<0.000000e+00> : vector<30x128xf32>
    %316 = tpu.matmul %314, %315, %cst_194 {dimension_numbers = #tpu.dot_dimension_numbers<[1], [0], [0], [1], [0, 0, 1, 1], [], []>} : vector<30x256xbf16>, vector<256x128xbf16>, vector<30x128xf32> -> vector<30x128xf32>
    %317 = arith.addf %310, %316 : vector<30x128xf32>
    %c2_195 = arith.constant 2 : index
    %c0_196 = arith.constant 0 : index
    %c0_197 = arith.constant 0 : index
    %318 = vector.load %arg7[%c2_195, %c0_196, %c0_197] : memref<3x30x15xf32, #tpu.memory_space<vmem>>, vector<1x30x15xf32>
    %319 = vector.shape_cast %318 : vector<1x30x15xf32> to vector<30x15xf32>
    %cst_198 = arith.constant dense<0.000000e+00> : vector<30x256xf32>
    %320 = tpu.matmul %319, %304, %cst_198 {dimension_numbers = #tpu.dot_dimension_numbers<[1], [0], [0], [1], [0, 0, 1, 1], [], []>} : vector<30x15xf32>, vector<15x256xf32>, vector<30x256xf32> -> vector<30x256xf32>
    %321 = arith.truncf %320 : vector<30x256xf32> to vector<30x256xbf16>
    %c512_199 = arith.constant 512 : index
    %c0_200 = arith.constant 0 : index
    %322 = vector.load %arg35[%c512_199, %c0_200] : memref<768x128xbf16, #tpu.memory_space<vmem>>, vector<256x128xbf16>
    %cst_201 = arith.constant dense<0.000000e+00> : vector<30x128xf32>
    %323 = tpu.matmul %321, %322, %cst_201 {dimension_numbers = #tpu.dot_dimension_numbers<[1], [0], [0], [1], [0, 0, 1, 1], [], []>} : vector<30x256xbf16>, vector<256x128xbf16>, vector<30x128xf32> -> vector<30x128xf32>
    %324 = arith.addf %317, %323 : vector<30x128xf32>
    %c0_202 = arith.constant 0 : index
    %c0_203 = arith.constant 0 : index
    %325 = vector.load %arg36[%c0_202, %c0_203] : memref<1x128xf32, #tpu.memory_space<vmem>>, vector<1x128xf32>
    %326 = vector.broadcast %325 : vector<1x128xf32> to vector<30x128xf32>
    %327 = arith.addf %324, %326 : vector<30x128xf32>
    %cst_204 = arith.constant dense<0.000000e+00> : vector<128xf32>
    %328 = vector.multi_reduction <add>, %327, %cst_204 [0] : vector<30x128xf32> to vector<128xf32>
    %329 = vector.shape_cast %328 : vector<128xf32> to vector<1x128xf32>
    %cst_205 = arith.constant 3.000000e+01 : f32
    %330 = vector.broadcast %cst_205 : f32 to vector<1x128xf32>
    %331 = arith.divf %329, %330 : vector<1x128xf32>
    %332 = vector.broadcast %331 : vector<1x128xf32> to vector<30x128xf32>
    %333 = arith.subf %327, %332 : vector<30x128xf32>
    %334 = arith.mulf %333, %333 : vector<30x128xf32>
    %cst_206 = arith.constant dense<0.000000e+00> : vector<128xf32>
    %335 = vector.multi_reduction <add>, %334, %cst_206 [0] : vector<30x128xf32> to vector<128xf32>
    %336 = vector.shape_cast %335 : vector<128xf32> to vector<1x128xf32>
    %cst_207 = arith.constant 3.000000e+01 : f32
    %337 = vector.broadcast %cst_207 : f32 to vector<1x128xf32>
    %338 = arith.divf %336, %337 : vector<1x128xf32>
    %339 = vector.broadcast %331 : vector<1x128xf32> to vector<30x128xf32>
    %340 = arith.subf %327, %339 : vector<30x128xf32>
    %cst_208 = arith.constant 9.99999974E-6 : f32
    %341 = vector.broadcast %cst_208 : f32 to vector<1x128xf32>
    %342 = arith.addf %338, %341 : vector<1x128xf32>
    %343 = math.rsqrt %342 : vector<1x128xf32>
    %344 = vector.broadcast %343 : vector<1x128xf32> to vector<30x128xf32>
    %345 = arith.mulf %340, %344 : vector<30x128xf32>
    %c0_209 = arith.constant 0 : index
    %c0_210 = arith.constant 0 : index
    %346 = vector.load %arg37[%c0_209, %c0_210] : memref<1x128xf32, #tpu.memory_space<vmem>>, vector<1x128xf32>
    %347 = vector.broadcast %346 : vector<1x128xf32> to vector<30x128xf32>
    %348 = arith.mulf %345, %347 : vector<30x128xf32>
    %c0_211 = arith.constant 0 : index
    %c0_212 = arith.constant 0 : index
    %349 = vector.load %arg38[%c0_211, %c0_212] : memref<1x128xf32, #tpu.memory_space<vmem>>, vector<1x128xf32>
    %350 = vector.broadcast %349 : vector<1x128xf32> to vector<30x128xf32>
    %351 = arith.addf %348, %350 : vector<30x128xf32>
    %352 = math.tanh %351 : vector<30x128xf32>
    %c0_213 = arith.constant 0 : index
    %c0_214 = arith.constant 0 : index
    %c0_215 = arith.constant 0 : index
    %353 = vector.load %arg8[%c0_213, %c0_214, %c0_215] : memref<3x60x30xf32, #tpu.memory_space<vmem>>, vector<1x60x30xf32>
    %354 = vector.shape_cast %353 : vector<1x60x30xf32> to vector<60x30xf32>
    %cst_216 = arith.constant dense<0.000000e+00> : vector<60x128xf32>
    %355 = tpu.matmul %354, %352, %cst_216 {dimension_numbers = #tpu.dot_dimension_numbers<[1], [0], [0], [1], [0, 0, 1, 1], [], []>} : vector<60x30xf32>, vector<30x128xf32>, vector<60x128xf32> -> vector<60x128xf32>
    %356 = arith.truncf %355 : vector<60x128xf32> to vector<60x128xbf16>
    %c0_217 = arith.constant 0 : index
    %c0_218 = arith.constant 0 : index
    %357 = vector.load %arg39[%c0_217, %c0_218] : memref<384x64xbf16, #tpu.memory_space<vmem>>, vector<128x64xbf16>
    %cst_219 = arith.constant dense<0.000000e+00> : vector<60x64xf32>
    %358 = tpu.matmul %356, %357, %cst_219 {dimension_numbers = #tpu.dot_dimension_numbers<[1], [0], [0], [1], [0, 0, 1, 1], [], []>} : vector<60x128xbf16>, vector<128x64xbf16>, vector<60x64xf32> -> vector<60x64xf32>
    %c1_220 = arith.constant 1 : index
    %c0_221 = arith.constant 0 : index
    %c0_222 = arith.constant 0 : index
    %359 = vector.load %arg8[%c1_220, %c0_221, %c0_222] : memref<3x60x30xf32, #tpu.memory_space<vmem>>, vector<1x60x30xf32>
    %360 = vector.shape_cast %359 : vector<1x60x30xf32> to vector<60x30xf32>
    %cst_223 = arith.constant dense<0.000000e+00> : vector<60x128xf32>
    %361 = tpu.matmul %360, %352, %cst_223 {dimension_numbers = #tpu.dot_dimension_numbers<[1], [0], [0], [1], [0, 0, 1, 1], [], []>} : vector<60x30xf32>, vector<30x128xf32>, vector<60x128xf32> -> vector<60x128xf32>
    %362 = arith.truncf %361 : vector<60x128xf32> to vector<60x128xbf16>
    %c128_224 = arith.constant 128 : index
    %c0_225 = arith.constant 0 : index
    %363 = vector.load %arg39[%c128_224, %c0_225] : memref<384x64xbf16, #tpu.memory_space<vmem>>, vector<128x64xbf16>
    %cst_226 = arith.constant dense<0.000000e+00> : vector<60x64xf32>
    %364 = tpu.matmul %362, %363, %cst_226 {dimension_numbers = #tpu.dot_dimension_numbers<[1], [0], [0], [1], [0, 0, 1, 1], [], []>} : vector<60x128xbf16>, vector<128x64xbf16>, vector<60x64xf32> -> vector<60x64xf32>
    %365 = arith.addf %358, %364 : vector<60x64xf32>
    %c2_227 = arith.constant 2 : index
    %c0_228 = arith.constant 0 : index
    %c0_229 = arith.constant 0 : index
    %366 = vector.load %arg8[%c2_227, %c0_228, %c0_229] : memref<3x60x30xf32, #tpu.memory_space<vmem>>, vector<1x60x30xf32>
    %367 = vector.shape_cast %366 : vector<1x60x30xf32> to vector<60x30xf32>
    %cst_230 = arith.constant dense<0.000000e+00> : vector<60x128xf32>
    %368 = tpu.matmul %367, %352, %cst_230 {dimension_numbers = #tpu.dot_dimension_numbers<[1], [0], [0], [1], [0, 0, 1, 1], [], []>} : vector<60x30xf32>, vector<30x128xf32>, vector<60x128xf32> -> vector<60x128xf32>
    %369 = arith.truncf %368 : vector<60x128xf32> to vector<60x128xbf16>
    %c256_231 = arith.constant 256 : index
    %c0_232 = arith.constant 0 : index
    %370 = vector.load %arg39[%c256_231, %c0_232] : memref<384x64xbf16, #tpu.memory_space<vmem>>, vector<128x64xbf16>
    %cst_233 = arith.constant dense<0.000000e+00> : vector<60x64xf32>
    %371 = tpu.matmul %369, %370, %cst_233 {dimension_numbers = #tpu.dot_dimension_numbers<[1], [0], [0], [1], [0, 0, 1, 1], [], []>} : vector<60x128xbf16>, vector<128x64xbf16>, vector<60x64xf32> -> vector<60x64xf32>
    %372 = arith.addf %365, %371 : vector<60x64xf32>
    %c0_234 = arith.constant 0 : index
    %c0_235 = arith.constant 0 : index
    %373 = vector.load %arg40[%c0_234, %c0_235] : memref<1x64xf32, #tpu.memory_space<vmem>>, vector<1x64xf32>
    %374 = vector.broadcast %373 : vector<1x64xf32> to vector<60x64xf32>
    %375 = arith.addf %372, %374 : vector<60x64xf32>
    %cst_236 = arith.constant dense<0.000000e+00> : vector<64xf32>
    %376 = vector.multi_reduction <add>, %375, %cst_236 [0] : vector<60x64xf32> to vector<64xf32>
    %377 = vector.shape_cast %376 : vector<64xf32> to vector<1x64xf32>
    %cst_237 = arith.constant 6.000000e+01 : f32
    %378 = vector.broadcast %cst_237 : f32 to vector<1x64xf32>
    %379 = arith.divf %377, %378 : vector<1x64xf32>
    %380 = vector.broadcast %379 : vector<1x64xf32> to vector<60x64xf32>
    %381 = arith.subf %375, %380 : vector<60x64xf32>
    %382 = arith.mulf %381, %381 : vector<60x64xf32>
    %cst_238 = arith.constant dense<0.000000e+00> : vector<64xf32>
    %383 = vector.multi_reduction <add>, %382, %cst_238 [0] : vector<60x64xf32> to vector<64xf32>
    %384 = vector.shape_cast %383 : vector<64xf32> to vector<1x64xf32>
    %cst_239 = arith.constant 6.000000e+01 : f32
    %385 = vector.broadcast %cst_239 : f32 to vector<1x64xf32>
    %386 = arith.divf %384, %385 : vector<1x64xf32>
    %387 = vector.broadcast %379 : vector<1x64xf32> to vector<60x64xf32>
    %388 = arith.subf %375, %387 : vector<60x64xf32>
    %cst_240 = arith.constant 9.99999974E-6 : f32
    %389 = vector.broadcast %cst_240 : f32 to vector<1x64xf32>
    %390 = arith.addf %386, %389 : vector<1x64xf32>
    %391 = math.rsqrt %390 : vector<1x64xf32>
    %392 = vector.broadcast %391 : vector<1x64xf32> to vector<60x64xf32>
    %393 = arith.mulf %388, %392 : vector<60x64xf32>
    %c0_241 = arith.constant 0 : index
    %c0_242 = arith.constant 0 : index
    %394 = vector.load %arg41[%c0_241, %c0_242] : memref<1x64xf32, #tpu.memory_space<vmem>>, vector<1x64xf32>
    %395 = vector.broadcast %394 : vector<1x64xf32> to vector<60x64xf32>
    %396 = arith.mulf %393, %395 : vector<60x64xf32>
    %c0_243 = arith.constant 0 : index
    %c0_244 = arith.constant 0 : index
    %397 = vector.load %arg42[%c0_243, %c0_244] : memref<1x64xf32, #tpu.memory_space<vmem>>, vector<1x64xf32>
    %398 = vector.broadcast %397 : vector<1x64xf32> to vector<60x64xf32>
    %399 = arith.addf %396, %398 : vector<60x64xf32>
    %400 = math.tanh %399 : vector<60x64xf32>
    %401 = arith.truncf %400 : vector<60x64xf32> to vector<60x64xbf16>
    %c0_245 = arith.constant 0 : index
    %c0_246 = arith.constant 0 : index
    %402 = vector.load %arg43[%c0_245, %c0_246] : memref<64x16xbf16, #tpu.memory_space<vmem>>, vector<64x16xbf16>
    %cst_247 = arith.constant dense<0.000000e+00> : vector<60x16xf32>
    %403 = tpu.matmul %401, %402, %cst_247 {dimension_numbers = #tpu.dot_dimension_numbers<[1], [0], [0], [1], [0, 0, 1, 1], [], []>} : vector<60x64xbf16>, vector<64x16xbf16>, vector<60x16xf32> -> vector<60x16xf32>
    %c0_248 = arith.constant 0 : index
    %c0_249 = arith.constant 0 : index
    %404 = vector.load %arg44[%c0_248, %c0_249] : memref<1x16xf32, #tpu.memory_space<vmem>>, vector<1x16xf32>
    %405 = vector.broadcast %404 : vector<1x16xf32> to vector<60x16xf32>
    %406 = arith.addf %403, %405 : vector<60x16xf32>
    %407 = vector.extract_strided_slice %406 {offsets = [0, 0], sizes = [60, 8], strides = [1, 1]} : vector<60x16xf32> to vector<60x8xf32>
    %408 = vector.extract_strided_slice %406 {offsets = [0, 8], sizes = [60, 8], strides = [1, 1]} : vector<60x16xf32> to vector<60x8xf32>
    %c0_250 = arith.constant 0 : index
    %c0_251 = arith.constant 0 : index
    %409 = vector.load %arg2[%c0_250, %c0_251] : memref<60x8xf32, #tpu.memory_space<vmem>>, vector<60x8xf32>
    %cst_252 = arith.constant 5.000000e-01 : f32
    %410 = vector.broadcast %cst_252 : f32 to vector<60x8xf32>
    %411 = arith.mulf %408, %410 : vector<60x8xf32>
    %412 = math.exp %411 : vector<60x8xf32>
    %413 = arith.mulf %409, %412 : vector<60x8xf32>
    %414 = arith.addf %407, %413 : vector<60x8xf32>
    %c0_253 = arith.constant 0 : index
    %c0_254 = arith.constant 0 : index
    %415 = vector.load %arg49[%c0_253, %c0_254] : memref<60x8xf32, #tpu.memory_space<vmem>>, vector<60x8xf32>
    tpu.vector_store %arg49[%c0_253, %c0_254], %407 {strides = array<i32>} : memref<60x8xf32, #tpu.memory_space<vmem>>, vector<60x8xf32>,
    %c0_255 = arith.constant 0 : index
    %c0_256 = arith.constant 0 : index
    %416 = vector.load %arg50[%c0_255, %c0_256] : memref<60x8xf32, #tpu.memory_space<vmem>>, vector<60x8xf32>
    tpu.vector_store %arg50[%c0_255, %c0_256], %408 {strides = array<i32>} : memref<60x8xf32, #tpu.memory_space<vmem>>, vector<60x8xf32>,
    %c0_257 = arith.constant 0 : index
    %c0_258 = arith.constant 0 : index
    %417 = vector.load %arg51[%c0_257, %c0_258] : memref<60x8xf32, #tpu.memory_space<vmem>>, vector<60x8xf32>
    tpu.vector_store %arg51[%c0_257, %c0_258], %414 {strides = array<i32>} : memref<60x8xf32, #tpu.memory_space<vmem>>, vector<60x8xf32>,
    return
  }
}

</mosaic_0001>

<llo_original>
// kernel: _forward_jit.1
$region0: #{_forward_jit.1}
  #allocation0 [shape = 'u32[]', space=smem, size = 0x4, offset = 0x4, fixed_abs, tag = 'smem constant byte address 0x4 - core index']
  #allocation1 [shape = 'u32[72,128]{1,0:T(1,128)}', space=vmem, size = 0x9000, scoped, tag = 'internal scratch']
  #allocation2 [shape = 'f32[1,1]{1,0:T(1,128)S(1)}', space=vmem, size = 0x200, scoped, tag = 'scoped memory for _forward_jit.1']
  %s0 = inlined_call_operand.smem [shape: u32[53], index: -1, kind: input, shape index: {}]
  %s1 = sld [smem:[%s0]]
  %s2 = scalar_lea.smem %s0, 1
  %s3 = sld [smem:[%s2]]
  %s4 = scalar_lea.smem %s0, 2
  %s5 = sld [smem:[%s4]]
  %s6 = scalar_lea.smem %s0, 3
  %s7 = sld [smem:[%s6]]
  %s8 = scalar_lea.smem %s0, 4
  %s9 = sld [smem:[%s8]]
  %s10 = scalar_lea.smem %s0, 5
  %s11 = sld [smem:[%s10]]
  %s12 = scalar_lea.smem %s0, 6
  %s13 = sld [smem:[%s12]]
  %s14 = scalar_lea.smem %s0, 7
  %s15 = sld [smem:[%s14]]
  %s16 = scalar_lea.smem %s0, 8
  %s17 = sld [smem:[%s16]]
  %s18 = scalar_lea.smem %s0, 9
  %s19 = sld [smem:[%s18]]
  %s20 = scalar_lea.smem %s0, 10
  %s21 = sld [smem:[%s20]]
  %s22 = scalar_lea.smem %s0, 11
  %s23 = sld [smem:[%s22]]
  %s24 = scalar_lea.smem %s0, 12
  %s25 = sld [smem:[%s24]]
  %s26 = scalar_lea.smem %s0, 13
  %s27 = sld [smem:[%s26]]
  %s28 = scalar_lea.smem %s0, 14
  %s29 = sld [smem:[%s28]]
  %s30 = scalar_lea.smem %s0, 15
  %s31 = sld [smem:[%s30]]
  %s32 = scalar_lea.smem %s0, 16
  %s33 = sld [smem:[%s32]]
  %s34 = scalar_lea.smem %s0, 17
  %s35 = sld [smem:[%s34]]
  %s36 = scalar_lea.smem %s0, 18
  %s37 = sld [smem:[%s36]]
  %s38 = scalar_lea.smem %s0, 19
  %s39 = sld [smem:[%s38]]
  %s40 = scalar_lea.smem %s0, 20
  %s41 = sld [smem:[%s40]]
  %s42 = scalar_lea.smem %s0, 21
  %s43 = sld [smem:[%s42]]
  %s44 = scalar_lea.smem %s0, 22
  %s45 = sld [smem:[%s44]]
  %s46 = scalar_lea.smem %s0, 23
  %s47 = sld [smem:[%s46]]
  %s48 = scalar_lea.smem %s0, 24
  %s49 = sld [smem:[%s48]]
  %s50 = scalar_lea.smem %s0, 25
  %s51 = sld [smem:[%s50]]
  %s52 = scalar_lea.smem %s0, 26
  %s53 = sld [smem:[%s52]]
  %s54 = scalar_lea.smem %s0, 27
  %s55 = sld [smem:[%s54]]
  %s56 = scalar_lea.smem %s0, 28
  %s57 = sld [smem:[%s56]]
  %s58 = scalar_lea.smem %s0, 29
  %s59 = sld [smem:[%s58]]
  %s60 = scalar_lea.smem %s0, 30
  %s61 = sld [smem:[%s60]]
  %s62 = scalar_lea.smem %s0, 31
  %s63 = sld [smem:[%s62]]
  %s64 = scalar_lea.smem %s0, 32
  %s65 = sld [smem:[%s64]]
  %s66 = scalar_lea.smem %s0, 33
  %s67 = sld [smem:[%s66]]
  %s68 = scalar_lea.smem %s0, 34
  %s69 = sld [smem:[%s68]]
  %s70 = scalar_lea.smem %s0, 35
  %s71 = sld [smem:[%s70]]
  %s72 = scalar_lea.smem %s0, 36
  %s73 = sld [smem:[%s72]]
  %s74 = scalar_lea.smem %s0, 37
  %s75 = sld [smem:[%s74]]
  %s76 = scalar_lea.smem %s0, 38
  %s77 = sld [smem:[%s76]]
  %s78 = scalar_lea.smem %s0, 39
  %s79 = sld [smem:[%s78]]
  %s80 = scalar_lea.smem %s0, 40
  %s81 = sld [smem:[%s80]]
  %s82 = scalar_lea.smem %s0, 41
  %s83 = sld [smem:[%s82]]
  %s84 = scalar_lea.smem %s0, 42
  %s85 = sld [smem:[%s84]]
  %s86 = scalar_lea.smem %s0, 43
  %s87 = sld [smem:[%s86]]
  %s88 = scalar_lea.smem %s0, 44
  %s89 = sld [smem:[%s88]]
  %s90 = scalar_lea.smem %s0, 45
  %s91 = sld [smem:[%s90]]
  %s92 = scalar_lea.smem %s0, 46
  %s93 = sld [smem:[%s92]]
  %s94 = scalar_lea.smem %s0, 47
  %s95 = sld [smem:[%s94]]
  %s96 = scalar_lea.smem %s0, 48
  %s97 = sld [smem:[%s96]]
  %s98 = scalar_lea.smem %s0, 49
  %s99 = sld [smem:[%s98]]
  %s100 = scalar_lea.smem %s0, 50
  %s101 = sld [smem:[%s100]]
  %s102 = scalar_lea.smem %s0, 51
  %s103 = sld [smem:[%s102]]
  %s104 = scalar_lea.smem %s0, 52
  %s105 = sld [smem:[%s104]]
  %106 = xla_tuple %s93, %s95, %s97, %s99, %s101, %s103, %s105
  %s107 = sld [smem:[#allocation0]]
  $region390: #{_forward_jit.1} parent=0
    _
  %s109 = ssub.s32 1, %s107
  %s110 = scalar_select 0, %s109, %s107
  %v111 = vstv %s91
  %112 = vst [vmem:[#allocation2] sm:$0x1] %v111
  $region1: #{_forward_jit.1} parent=0
    #allocation3 [shape = 'u8[2048]{0}', space=vmem, size = 0x800, scoped, tag = 'input window, operand 1, single buffered']
    #allocation4 [shape = 's32[1]{0}', space=sflag, size = 0x4, scoped, tag = 'scoped memory for _forward_jit.1']
    #allocation5 [shape = 's32[1]{0}', space=sflag, size = 0x4, scoped, tag = 'scoped memory for _forward_jit.1']
    #allocation6 [shape = 'u8[49152]{0}', space=vmem, size = 0xc000, scoped, tag = 'input window, operand 3, single buffered']
    #allocation7 [shape = 's32[1]{0}', space=sflag, size = 0x4, scoped, tag = 'scoped memory for _forward_jit.1']
    #allocation8 [shape = 'u8[24576]{0}', space=vmem, size = 0x6000, scoped, tag = 'input window, operand 4, single buffered']
    #allocation9 [shape = 'u8[10240]{0}', space=vmem, size = 0x2800, scoped, tag = 'input window, operand 5, single buffered']
    #allocation10 [shape = 's32[1]{0}', space=sflag, size = 0x4, scoped, tag = 'scoped memory for _forward_jit.1']
    #allocation11 [shape = 'u8[2048]{0}', space=vmem, size = 0x800, scoped, tag = 'input window, operand 9, single buffered']
    #allocation12 [shape = 'u8[512]{0}', space=vmem, size = 0x400, scoped, tag = 'input window, operand 10, single buffered']
    #allocation13 [shape = 's32[1]{0}', space=sflag, size = 0x4, scoped, tag = 'scoped memory for _forward_jit.1']
    #allocation14 [shape = 'u8[512]{0}', space=vmem, size = 0x400, scoped, tag = 'input window, operand 11, single buffered']
    #allocation15 [shape = 'u8[512]{0}', space=vmem, size = 0x400, scoped, tag = 'input window, operand 12, single buffered']
    #allocation16 [shape = 's32[1]{0}', space=sflag, size = 0x4, scoped, tag = 'scoped memory for _forward_jit.1']
    #allocation17 [shape = 'u8[49152]{0}', space=vmem, size = 0xc000, scoped, tag = 'input window, operand 13, single buffered']
    #allocation18 [shape = 'u8[512]{0}', space=vmem, size = 0x400, scoped, tag = 'input window, operand 14, single buffered']
    #allocation19 [shape = 's32[1]{0}', space=sflag, size = 0x4, scoped, tag = 'scoped memory for _forward_jit.1']
    #allocation20 [shape = 'u8[512]{0}', space=vmem, size = 0x400, scoped, tag = 'input window, operand 15, single buffered']
    #allocation21 [shape = 'u8[512]{0}', space=vmem, size = 0x400, scoped, tag = 'input window, operand 16, single buffered']
    #allocation22 [shape = 's32[1]{0}', space=sflag, size = 0x4, scoped, tag = 'scoped memory for _forward_jit.1']
    #allocation23 [shape = 'u8[196608]{0}', space=vmem, size = 0x30000, scoped, tag = 'input window, operand 17, single buffered']
    #allocation24 [shape = 'u8[1024]{0}', space=vmem, size = 0x400, scoped, tag = 'input window, operand 18, single buffered']
    #allocation25 [shape = 's32[1]{0}', space=sflag, size = 0x4, scoped, tag = 'scoped memory for _forward_jit.1']
    #allocation26 [shape = 'u8[1024]{0}', space=vmem, size = 0x400, scoped, tag = 'input window, operand 19, single buffered']
    #allocation27 [shape = 'u8[1024]{0}', space=vmem, size = 0x400, scoped, tag = 'input window, operand 20, single buffered']
    #allocation28 [shape = 's32[1]{0}', space=sflag, size = 0x4, scoped, tag = 'scoped memory for _forward_jit.1']
    #allocation29 [shape = 'u8[1310720]{0}', space=vmem, size = 0x140000, scoped, tag = 'input window, operand 21, single buffered']
    #allocation30 [shape = 'u8[2048]{0}', space=vmem, size = 0x800, scoped, tag = 'input window, operand 22, single buffered']
    #allocation31 [shape = 's32[1]{0}', space=sflag, size = 0x4, scoped, tag = 'scoped memory for _forward_jit.1']
    #allocation32 [shape = 'u8[2048]{0}', space=vmem, size = 0x800, scoped, tag = 'input window, operand 23, single buffered']
    #allocation33 [shape = 'u8[2048]{0}', space=vmem, size = 0x800, scoped, tag = 'input window, operand 24, single buffered']
    #allocation34 [shape = 's32[1]{0}', space=sflag, size = 0x4, scoped, tag = 'scoped memory for _forward_jit.1']
    #allocation35 [shape = 'u8[512]{0}', space=vmem, size = 0x400, scoped, tag = 'input window, operand 26, single buffered']
    #allocation36 [shape = 'u8[16384]{0}', space=vmem, size = 0x4000, scoped, tag = 'input window, operand 27, single buffered']
    #allocation37 [shape = 's32[1]{0}', space=sflag, size = 0x4, scoped, tag = 'scoped memory for _forward_jit.1']
    #allocation38 [shape = 'u8[2048]{0}', space=vmem, size = 0x800, scoped, tag = 'input window, operand 28, single buffered']
    #allocation39 [shape = 'u8[2048]{0}', space=vmem, size = 0x800, scoped, tag = 'input window, operand 29, single buffered']
    #allocation40 [shape = 's32[1]{0}', space=sflag, size = 0x4, scoped, tag = 'scoped memory for _forward_jit.1']
    #allocation41 [shape = 'u8[2048]{0}', space=vmem, size = 0x800, scoped, tag = 'input window, operand 30, single buffered']
    #allocation42 [shape = 'u8[1310720]{0}', space=vmem, size = 0x140000, scoped, tag = 'input window, operand 31, single buffered']
    #allocation43 [shape = 's32[1]{0}', space=sflag, size = 0x4, scoped, tag = 'scoped memory for _forward_jit.1']
    #allocation44 [shape = 'u8[5120]{0}', space=vmem, size = 0x1400, scoped, tag = 'input window, operand 32, single buffered']
    #allocation45 [shape = 'u8[5120]{0}', space=vmem, size = 0x1400, scoped, tag = 'input window, operand 33, single buffered']
    #allocation46 [shape = 's32[1]{0}', space=sflag, size = 0x4, scoped, tag = 'scoped memory for _forward_jit.1']
    #allocation47 [shape = 'u8[5120]{0}', space=vmem, size = 0x1400, scoped, tag = 'input window, operand 34, single buffered']
    #allocation48 [shape = 'u8[196608]{0}', space=vmem, size = 0x30000, scoped, tag = 'input window, operand 35, single buffered']
    #allocation49 [shape = 's32[1]{0}', space=sflag, size = 0x4, scoped, tag = 'scoped memory for _forward_jit.1']
    #allocation50 [shape = 'u8[512]{0}', space=vmem, size = 0x400, scoped, tag = 'input window, operand 36, single buffered']
    #allocation51 [shape = 'u8[512]{0}', space=vmem, size = 0x400, scoped, tag = 'input window, operand 37, single buffered']
    #allocation52 [shape = 's32[1]{0}', space=sflag, size = 0x4, scoped, tag = 'scoped memory for _forward_jit.1']
    #allocation53 [shape = 'u8[512]{0}', space=vmem, size = 0x400, scoped, tag = 'input window, operand 38, single buffered']
    #allocation54 [shape = 'u8[512]{0}', space=vmem, size = 0x400, scoped, tag = 'input window, operand 40, single buffered']
    #allocation55 [shape = 's32[1]{0}', space=sflag, size = 0x4, scoped, tag = 'scoped memory for _forward_jit.1']
    #allocation56 [shape = 'u8[512]{0}', space=vmem, size = 0x400, scoped, tag = 'input window, operand 41, single buffered']
    #allocation57 [shape = 'u8[512]{0}', space=vmem, size = 0x400, scoped, tag = 'input window, operand 42, single buffered']
    #allocation58 [shape = 's32[1]{0}', space=sflag, size = 0x4, scoped, tag = 'scoped memory for _forward_jit.1']
    #allocation59 [shape = 'u8[512]{0}', space=vmem, size = 0x400, scoped, tag = 'input window, operand 44, single buffered']
    #allocation60 [shape = 'u8[2048]{0}', space=vmem, size = 0x800, scoped, tag = 'output window, operand 0, single buffered']
    #allocation61 [shape = 'u8[2048]{0}', space=vmem, size = 0x800, scoped, tag = 'output window, operand 1, single buffered']
    #allocation62 [shape = 's32[1]{0}', space=sflag, size = 0x4, scoped, tag = 'scoped memory for _forward_jit.1']
    #allocation63 [shape = 'u8[2048]{0}', space=vmem, size = 0x800, scoped, tag = 'output window, operand 2, single buffered']
    %113 = vsyncpa [#allocation4], 0
    %114 = vsyncpa [#allocation7], 0
    %115 = vsyncpa [#allocation10], 0
    %116 = vsyncpa [#allocation13], 0
    %117 = vsyncpa [#allocation16], 0
    %118 = vsyncpa [#allocation19], 0
    %119 = vsyncpa [#allocation22], 0
    %120 = vsyncpa [#allocation25], 0
    %121 = vsyncpa [#allocation28], 0
    %122 = vsyncpa [#allocation31], 0
    %123 = vsyncpa [#allocation34], 0
    %124 = vsyncpa [#allocation37], 0
    %125 = vsyncpa [#allocation40], 0
    %126 = vsyncpa [#allocation43], 0
    %127 = vsyncpa [#allocation46], 0
    %128 = vsyncpa [#allocation49], 0
    %129 = vsyncpa [#allocation52], 0
    %130 = vsyncpa [#allocation55], 0
    %131 = vsyncpa [#allocation58], 0
    %132 = vsyncpa [#allocation5], 0
    %133 = vsyncpa [#allocation62], 0
    // Predicated region
    $region2: #{_forward_jit.1} parent=1 // pred_check
      _
    $region3: #{_forward_jit.1} parent=1 // pred_check_branch
      %135 = sbr.rel (0) target = $region5
    $region4: #{_forward_jit.1} parent=1 // pred_region
      _
    $region5: #{_forward_jit.1} parent=1 // pred_fallthru
      _
    // Predicated region
    $region6: #{_forward_jit.1} parent=1 // pred_check
      _
    $region7: #{_forward_jit.1} parent=1 // pred_check_branch
      %137 = sbr.rel (0) target = $region9
    $region8: #{_forward_jit.1} parent=1 // pred_region
      %139 = vsyncadd [#allocation4], 0
      %s141 = sshll.u32 %s3, 4
      %s142 = int_to_ptr.hbm [resolvable:$true] %s141
      %s143 = sshll.u32 [#allocation3], 4
      %s144 = int_to_ptr.vmem [resolvable:$true] %s143
      %146 = dma.hbm_to_vmem [thread:$0]  %s142, 64, %s144, [#allocation4]
    $region9: #{_forward_jit.1} parent=1 // pred_fallthru
      _
    // Predicated region
    $region10: #{_forward_jit.1} parent=1 // pred_check
      _
    $region11: #{_forward_jit.1} parent=1 // pred_check_branch
      %148 = sbr.rel (0) target = $region13
    $region12: #{_forward_jit.1} parent=1 // pred_region
      _
    $region13: #{_forward_jit.1} parent=1 // pred_fallthru
      _
    // Predicated region
    $region14: #{_forward_jit.1} parent=1 // pred_check
      _
    $region15: #{_forward_jit.1} parent=1 // pred_check_branch
      %150 = sbr.rel (0) target = $region17
    $region16: #{_forward_jit.1} parent=1 // pred_region
      %152 = vsyncadd [#allocation7], 0
      %s153 = sshll.u32 %s7, 4
      %s154 = int_to_ptr.hbm [resolvable:$true] %s153
      %s155 = sshll.u32 [#allocation6], 4
      %s156 = int_to_ptr.vmem [resolvable:$true] %s155
      %161 = dma.hbm_to_vmem [thread:$0]  %s154, 1536, %s156, [#allocation7], 128, 128, 8
    $region17: #{_forward_jit.1} parent=1 // pred_fallthru
      _
    // Predicated region
    $region18: #{_forward_jit.1} parent=1 // pred_check
      _
    $region19: #{_forward_jit.1} parent=1 // pred_check_branch
      %163 = sbr.rel (0) target = $region21
    $region20: #{_forward_jit.1} parent=1 // pred_region
      %165 = vsyncadd [#allocation7], 0
      %s166 = sshll.u32 %s9, 4
      %s167 = int_to_ptr.hbm [resolvable:$true] %s166
      %s168 = sshll.u32 [#allocation8], 4
      %s169 = int_to_ptr.vmem [resolvable:$true] %s168
      %174 = dma.hbm_to_vmem [thread:$0]  %s167, 768, %s169, [#allocation7], 128, 128, 8
    $region21: #{_forward_jit.1} parent=1 // pred_fallthru
      _
    // Predicated region
    $region22: #{_forward_jit.1} parent=1 // pred_check
      _
    $region23: #{_forward_jit.1} parent=1 // pred_check_branch
      %176 = sbr.rel (0) target = $region25
    $region24: #{_forward_jit.1} parent=1 // pred_region
      %178 = vsyncadd [#allocation10], 0
      %s179 = sshll.u32 %s11, 4
      %s180 = int_to_ptr.hbm [resolvable:$true] %s179
      %s181 = sshll.u32 [#allocation9], 4
      %s182 = int_to_ptr.vmem [resolvable:$true] %s181
      %187 = dma.hbm_to_vmem [thread:$0]  %s180, 320, %s182, [#allocation10], 64, 64, 4
    $region25: #{_forward_jit.1} parent=1 // pred_fallthru
      _
    // Predicated region
    $region26: #{_forward_jit.1} parent=1 // pred_check
      _
    $region27: #{_forward_jit.1} parent=1 // pred_check_branch
      %189 = sbr.rel (0) target = $region29
    $region28: #{_forward_jit.1} parent=1 // pred_region
      _
    $region29: #{_forward_jit.1} parent=1 // pred_fallthru
      _
    // Predicated region
    $region30: #{_forward_jit.1} parent=1 // pred_check
      _
    $region31: #{_forward_jit.1} parent=1 // pred_check_branch
      %191 = sbr.rel (0) target = $region33
    $region32: #{_forward_jit.1} parent=1 // pred_region
      _
    $region33: #{_forward_jit.1} parent=1 // pred_fallthru
      _
    // Predicated region
    $region34: #{_forward_jit.1} parent=1 // pred_check
      _
    $region35: #{_forward_jit.1} parent=1 // pred_check_branch
      %193 = sbr.rel (0) target = $region37
    $region36: #{_forward_jit.1} parent=1 // pred_region
      _
    $region37: #{_forward_jit.1} parent=1 // pred_fallthru
      _
    // Predicated region
    $region38: #{_forward_jit.1} parent=1 // pred_check
      _
    $region39: #{_forward_jit.1} parent=1 // pred_check_branch
      %195 = sbr.rel (0) target = $region41
    $region40: #{_forward_jit.1} parent=1 // pred_region
      %197 = vsyncadd [#allocation10], 0
      %s199 = sshll.u32 %s19, 4
      %s200 = int_to_ptr.hbm [resolvable:$true] %s199
      %s201 = sshll.u32 [#allocation11], 4
      %s202 = int_to_ptr.vmem [resolvable:$true] %s201
      %204 = dma.hbm_to_vmem [thread:$0]  %s200, 64, %s202, [#allocation10]
    $region41: #{_forward_jit.1} parent=1 // pred_fallthru
      _
    // Predicated region
    $region42: #{_forward_jit.1} parent=1 // pred_check
      _
    $region43: #{_forward_jit.1} parent=1 // pred_check_branch
      %206 = sbr.rel (0) target = $region45
    $region44: #{_forward_jit.1} parent=1 // pred_region
      %208 = vsyncadd [#allocation13], 0
      %s210 = sshll.u32 %s21, 4
      %s211 = int_to_ptr.hbm [resolvable:$true] %s210
      %s212 = sshll.u32 [#allocation12], 4
      %s213 = int_to_ptr.vmem [resolvable:$true] %s212
      %215 = dma.hbm_to_vmem [thread:$0]  %s211, 16, %s213, [#allocation13]
    $region45: #{_forward_jit.1} parent=1 // pred_fallthru
      _
    // Predicated region
    $region46: #{_forward_jit.1} parent=1 // pred_check
      _
    $region47: #{_forward_jit.1} parent=1 // pred_check_branch
      %217 = sbr.rel (0) target = $region49
    $region48: #{_forward_jit.1} parent=1 // pred_region
      %219 = vsyncadd [#allocation13], 0
      %s221 = sshll.u32 %s23, 4
      %s222 = int_to_ptr.hbm [resolvable:$true] %s221
      %s223 = sshll.u32 [#allocation14], 4
      %s224 = int_to_ptr.vmem [resolvable:$true] %s223
      %226 = dma.hbm_to_vmem [thread:$0]  %s222, 16, %s224, [#allocation13]
    $region49: #{_forward_jit.1} parent=1 // pred_fallthru
      _
    // Predicated region
    $region50: #{_forward_jit.1} parent=1 // pred_check
      _
    $region51: #{_forward_jit.1} parent=1 // pred_check_branch
      %228 = sbr.rel (0) target = $region53
    $region52: #{_forward_jit.1} parent=1 // pred_region
      %230 = vsyncadd [#allocation16], 0
      %s232 = sshll.u32 %s25, 4
      %s233 = int_to_ptr.hbm [resolvable:$true] %s232
      %s234 = sshll.u32 [#allocation15], 4
      %s235 = int_to_ptr.vmem [resolvable:$true] %s234
      %237 = dma.hbm_to_vmem [thread:$0]  %s233, 16, %s235, [#allocation16]
    $region53: #{_forward_jit.1} parent=1 // pred_fallthru
      _
    // Predicated region
    $region54: #{_forward_jit.1} parent=1 // pred_check
      _
    $region55: #{_forward_jit.1} parent=1 // pred_check_branch
      %239 = sbr.rel (0) target = $region57
    $region56: #{_forward_jit.1} parent=1 // pred_region
      %241 = vsyncadd [#allocation16], 0
      %s242 = sshll.u32 %s27, 4
      %s243 = int_to_ptr.hbm [resolvable:$true] %s242
      %s244 = sshll.u32 [#allocation17], 4
      %s245 = int_to_ptr.vmem [resolvable:$true] %s244
      %250 = dma.hbm_to_vmem [thread:$0]  %s243, 1536, %s245, [#allocation16], 64, 64, 4
    $region57: #{_forward_jit.1} parent=1 // pred_fallthru
      _
    // Predicated region
    $region58: #{_forward_jit.1} parent=1 // pred_check
      _
    $region59: #{_forward_jit.1} parent=1 // pred_check_branch
      %252 = sbr.rel (0) target = $region61
    $region60: #{_forward_jit.1} parent=1 // pred_region
      %254 = vsyncadd [#allocation19], 0
      %s256 = sshll.u32 %s29, 4
      %s257 = int_to_ptr.hbm [resolvable:$true] %s256
      %s258 = sshll.u32 [#allocation18], 4
      %s259 = int_to_ptr.vmem [resolvable:$true] %s258
      %261 = dma.hbm_to_vmem [thread:$0]  %s257, 16, %s259, [#allocation19]
    $region61: #{_forward_jit.1} parent=1 // pred_fallthru
      _
    // Predicated region
    $region62: #{_forward_jit.1} parent=1 // pred_check
      _
    $region63: #{_forward_jit.1} parent=1 // pred_check_branch
      %263 = sbr.rel (0) target = $region65
    $region64: #{_forward_jit.1} parent=1 // pred_region
      %265 = vsyncadd [#allocation19], 0
      %s267 = sshll.u32 %s31, 4
      %s268 = int_to_ptr.hbm [resolvable:$true] %s267
      %s269 = sshll.u32 [#allocation20], 4
      %s270 = int_to_ptr.vmem [resolvable:$true] %s269
      %272 = dma.hbm_to_vmem [thread:$0]  %s268, 16, %s270, [#allocation19]
    $region65: #{_forward_jit.1} parent=1 // pred_fallthru
      _
    // Predicated region
    $region66: #{_forward_jit.1} parent=1 // pred_check
      _
    $region67: #{_forward_jit.1} parent=1 // pred_check_branch
      %274 = sbr.rel (0) target = $region69
    $region68: #{_forward_jit.1} parent=1 // pred_region
      %276 = vsyncadd [#allocation22], 0
      %s278 = sshll.u32 %s33, 4
      %s279 = int_to_ptr.hbm [resolvable:$true] %s278
      %s280 = sshll.u32 [#allocation21], 4
      %s281 = int_to_ptr.vmem [resolvable:$true] %s280
      %283 = dma.hbm_to_vmem [thread:$0]  %s279, 16, %s281, [#allocation22]
    $region69: #{_forward_jit.1} parent=1 // pred_fallthru
      _
    // Predicated region
    $region70: #{_forward_jit.1} parent=1 // pred_check
      _
    $region71: #{_forward_jit.1} parent=1 // pred_check_branch
      %285 = sbr.rel (0) target = $region73
    $region72: #{_forward_jit.1} parent=1 // pred_region
      %287 = vsyncadd [#allocation22], 0
      %s288 = sshll.u32 %s35, 4
      %s289 = int_to_ptr.hbm [resolvable:$true] %s288
      %s290 = sshll.u32 [#allocation23], 4
      %s291 = int_to_ptr.vmem [resolvable:$true] %s290
      %296 = dma.hbm_to_vmem [thread:$0]  %s289, 6144, %s291, [#allocation22], 128, 128, 8
    $region73: #{_forward_jit.1} parent=1 // pred_fallthru
      _
    // Predicated region
    $region74: #{_forward_jit.1} parent=1 // pred_check
      _
    $region75: #{_forward_jit.1} parent=1 // pred_check_branch
      %298 = sbr.rel (0) target = $region77
    $region76: #{_forward_jit.1} parent=1 // pred_region
      %300 = vsyncadd [#allocation25], 0
      %s302 = sshll.u32 %s37, 4
      %s303 = int_to_ptr.hbm [resolvable:$true] %s302
      %s304 = sshll.u32 [#allocation24], 4
      %s305 = int_to_ptr.vmem [resolvable:$true] %s304
      %307 = dma.hbm_to_vmem [thread:$0]  %s303, 32, %s305, [#allocation25]
    $region77: #{_forward_jit.1} parent=1 // pred_fallthru
      _
    // Predicated region
    $region78: #{_forward_jit.1} parent=1 // pred_check
      _
    $region79: #{_forward_jit.1} parent=1 // pred_check_branch
      %309 = sbr.rel (0) target = $region81
    $region80: #{_forward_jit.1} parent=1 // pred_region
      %311 = vsyncadd [#allocation25], 0
      %s313 = sshll.u32 %s39, 4
      %s314 = int_to_ptr.hbm [resolvable:$true] %s313
      %s315 = sshll.u32 [#allocation26], 4
      %s316 = int_to_ptr.vmem [resolvable:$true] %s315
      %318 = dma.hbm_to_vmem [thread:$0]  %s314, 32, %s316, [#allocation25]
    $region81: #{_forward_jit.1} parent=1 // pred_fallthru
      _
    // Predicated region
    $region82: #{_forward_jit.1} parent=1 // pred_check
      _
    $region83: #{_forward_jit.1} parent=1 // pred_check_branch
      %320 = sbr.rel (0) target = $region85
    $region84: #{_forward_jit.1} parent=1 // pred_region
      %322 = vsyncadd [#allocation28], 0
      %s324 = sshll.u32 %s41, 4
      %s325 = int_to_ptr.hbm [resolvable:$true] %s324
      %s326 = sshll.u32 [#allocation27], 4
      %s327 = int_to_ptr.vmem [resolvable:$true] %s326
      %329 = dma.hbm_to_vmem [thread:$0]  %s325, 32, %s327, [#allocation28]
    $region85: #{_forward_jit.1} parent=1 // pred_fallthru
      _
    // Predicated region
    $region86: #{_forward_jit.1} parent=1 // pred_check
      _
    $region87: #{_forward_jit.1} parent=1 // pred_check_branch
      %331 = sbr.rel (0) target = $region89
    $region88: #{_forward_jit.1} parent=1 // pred_region
      %333 = vsyncadd [#allocation28], 0
      %s334 = sshll.u32 %s43, 4
      %s335 = int_to_ptr.hbm [resolvable:$true] %s334
      %s336 = sshll.u32 [#allocation29], 4
      %s337 = int_to_ptr.vmem [resolvable:$true] %s336
      %342 = dma.hbm_to_vmem [thread:$0]  %s335, 40960, %s337, [#allocation28], 256, 256, 16
    $region89: #{_forward_jit.1} parent=1 // pred_fallthru
      _
    // Predicated region
    $region90: #{_forward_jit.1} parent=1 // pred_check
      _
    $region91: #{_forward_jit.1} parent=1 // pred_check_branch
      %344 = sbr.rel (0) target = $region93
    $region92: #{_forward_jit.1} parent=1 // pred_region
      %346 = vsyncadd [#allocation31], 0
      %s348 = sshll.u32 %s45, 4
      %s349 = int_to_ptr.hbm [resolvable:$true] %s348
      %s350 = sshll.u32 [#allocation30], 4
      %s351 = int_to_ptr.vmem [resolvable:$true] %s350
      %353 = dma.hbm_to_vmem [thread:$0]  %s349, 64, %s351, [#allocation31]
    $region93: #{_forward_jit.1} parent=1 // pred_fallthru
      _
    // Predicated region
    $region94: #{_forward_jit.1} parent=1 // pred_check
      _
    $region95: #{_forward_jit.1} parent=1 // pred_check_branch
      %355 = sbr.rel (0) target = $region97
    $region96: #{_forward_jit.1} parent=1 // pred_region
      %357 = vsyncadd [#allocation31], 0
      %s359 = sshll.u32 %s47, 4
      %s360 = int_to_ptr.hbm [resolvable:$true] %s359
      %s361 = sshll.u32 [#allocation32], 4
      %s362 = int_to_ptr.vmem [resolvable:$true] %s361
      %364 = dma.hbm_to_vmem [thread:$0]  %s360, 64, %s362, [#allocation31]
    $region97: #{_forward_jit.1} parent=1 // pred_fallthru
      _
    // Predicated region
    $region98: #{_forward_jit.1} parent=1 // pred_check
      _
    $region99: #{_forward_jit.1} parent=1 // pred_check_branch
      %366 = sbr.rel (0) target = $region101
    $region100: #{_forward_jit.1} parent=1 // pred_region
      %368 = vsyncadd [#allocation34], 0
      %s370 = sshll.u32 %s49, 4
      %s371 = int_to_ptr.hbm [resolvable:$true] %s370
      %s372 = sshll.u32 [#allocation33], 4
      %s373 = int_to_ptr.vmem [resolvable:$true] %s372
      %375 = dma.hbm_to_vmem [thread:$0]  %s371, 64, %s373, [#allocation34]
    $region101: #{_forward_jit.1} parent=1 // pred_fallthru
      _
    // Predicated region
    $region102: #{_forward_jit.1} parent=1 // pred_check
      _
    $region103: #{_forward_jit.1} parent=1 // pred_check_branch
      %377 = sbr.rel (0) target = $region105
    $region104: #{_forward_jit.1} parent=1 // pred_region
      _
    $region105: #{_forward_jit.1} parent=1 // pred_fallthru
      _
    // Predicated region
    $region106: #{_forward_jit.1} parent=1 // pred_check
      _
    $region107: #{_forward_jit.1} parent=1 // pred_check_branch
      %379 = sbr.rel (0) target = $region109
    $region108: #{_forward_jit.1} parent=1 // pred_region
      %381 = vsyncadd [#allocation34], 0
      %s383 = sshll.u32 %s53, 4
      %s384 = int_to_ptr.hbm [resolvable:$true] %s383
      %s385 = sshll.u32 [#allocation35], 4
      %s386 = int_to_ptr.vmem [resolvable:$true] %s385
      %388 = dma.hbm_to_vmem [thread:$0]  %s384, 16, %s386, [#allocation34]
    $region109: #{_forward_jit.1} parent=1 // pred_fallthru
      _
    // Predicated region
    $region110: #{_forward_jit.1} parent=1 // pred_check
      _
    $region111: #{_forward_jit.1} parent=1 // pred_check_branch
      %390 = sbr.rel (0) target = $region113
    $region112: #{_forward_jit.1} parent=1 // pred_region
      %392 = vsyncadd [#allocation37], 0
      %s393 = sshll.u32 %s55, 4
      %s394 = int_to_ptr.hbm [resolvable:$true] %s393
      %s395 = sshll.u32 [#allocation36], 4
      %s396 = int_to_ptr.vmem [resolvable:$true] %s395
      %401 = dma.hbm_to_vmem [thread:$0]  %s394, 512, %s396, [#allocation37], 256, 256, 16
    $region113: #{_forward_jit.1} parent=1 // pred_fallthru
      _
    // Predicated region
    $region114: #{_forward_jit.1} parent=1 // pred_check
      _
    $region115: #{_forward_jit.1} parent=1 // pred_check_branch
      %403 = sbr.rel (0) target = $region117
    $region116: #{_forward_jit.1} parent=1 // pred_region
      %405 = vsyncadd [#allocation37], 0
      %s407 = sshll.u32 %s57, 4
      %s408 = int_to_ptr.hbm [resolvable:$true] %s407
      %s409 = sshll.u32 [#allocation38], 4
      %s410 = int_to_ptr.vmem [resolvable:$true] %s409
      %412 = dma.hbm_to_vmem [thread:$0]  %s408, 64, %s410, [#allocation37]
    $region117: #{_forward_jit.1} parent=1 // pred_fallthru
      _
    // Predicated region
    $region118: #{_forward_jit.1} parent=1 // pred_check
      _
    $region119: #{_forward_jit.1} parent=1 // pred_check_branch
      %414 = sbr.rel (0) target = $region121
    $region120: #{_forward_jit.1} parent=1 // pred_region
      %416 = vsyncadd [#allocation40], 0
      %s418 = sshll.u32 %s59, 4
      %s419 = int_to_ptr.hbm [resolvable:$true] %s418
      %s420 = sshll.u32 [#allocation39], 4
      %s421 = int_to_ptr.vmem [resolvable:$true] %s420
      %423 = dma.hbm_to_vmem [thread:$0]  %s419, 64, %s421, [#allocation40]
    $region121: #{_forward_jit.1} parent=1 // pred_fallthru
      _
    // Predicated region
    $region122: #{_forward_jit.1} parent=1 // pred_check
      _
    $region123: #{_forward_jit.1} parent=1 // pred_check_branch
      %425 = sbr.rel (0) target = $region125
    $region124: #{_forward_jit.1} parent=1 // pred_region
      %427 = vsyncadd [#allocation40], 0
      %s429 = sshll.u32 %s61, 4
      %s430 = int_to_ptr.hbm [resolvable:$true] %s429
      %s431 = sshll.u32 [#allocation41], 4
      %s432 = int_to_ptr.vmem [resolvable:$true] %s431
      %434 = dma.hbm_to_vmem [thread:$0]  %s430, 64, %s432, [#allocation40]
    $region125: #{_forward_jit.1} parent=1 // pred_fallthru
      _
    // Predicated region
    $region126: #{_forward_jit.1} parent=1 // pred_check
      _
    $region127: #{_forward_jit.1} parent=1 // pred_check_branch
      %436 = sbr.rel (0) target = $region129
    $region128: #{_forward_jit.1} parent=1 // pred_region
      %438 = vsyncadd [#allocation43], 0
      %s439 = sshll.u32 %s63, 4
      %s440 = int_to_ptr.hbm [resolvable:$true] %s439
      %s441 = sshll.u32 [#allocation42], 4
      %s442 = int_to_ptr.vmem [resolvable:$true] %s441
      %447 = dma.hbm_to_vmem [thread:$0]  %s440, 40960, %s442, [#allocation43], 640, 640, 40
    $region129: #{_forward_jit.1} parent=1 // pred_fallthru
      _
    // Predicated region
    $region130: #{_forward_jit.1} parent=1 // pred_check
      _
    $region131: #{_forward_jit.1} parent=1 // pred_check_branch
      %449 = sbr.rel (0) target = $region133
    $region132: #{_forward_jit.1} parent=1 // pred_region
      %451 = vsyncadd [#allocation43], 0
      %s453 = sshll.u32 %s65, 4
      %s454 = int_to_ptr.hbm [resolvable:$true] %s453
      %s455 = sshll.u32 [#allocation44], 4
      %s456 = int_to_ptr.vmem [resolvable:$true] %s455
      %458 = dma.hbm_to_vmem [thread:$0]  %s454, 160, %s456, [#allocation43]
    $region133: #{_forward_jit.1} parent=1 // pred_fallthru
      _
    // Predicated region
    $region134: #{_forward_jit.1} parent=1 // pred_check
      _
    $region135: #{_forward_jit.1} parent=1 // pred_check_branch
      %460 = sbr.rel (0) target = $region137
    $region136: #{_forward_jit.1} parent=1 // pred_region
      %462 = vsyncadd [#allocation46], 0
      %s464 = sshll.u32 %s67, 4
      %s465 = int_to_ptr.hbm [resolvable:$true] %s464
      %s466 = sshll.u32 [#allocation45], 4
      %s467 = int_to_ptr.vmem [resolvable:$true] %s466
      %469 = dma.hbm_to_vmem [thread:$0]  %s465, 160, %s467, [#allocation46]
    $region137: #{_forward_jit.1} parent=1 // pred_fallthru
      _
    // Predicated region
    $region138: #{_forward_jit.1} parent=1 // pred_check
      _
    $region139: #{_forward_jit.1} parent=1 // pred_check_branch
      %471 = sbr.rel (0) target = $region141
    $region140: #{_forward_jit.1} parent=1 // pred_region
      %473 = vsyncadd [#allocation46], 0
      %s475 = sshll.u32 %s69, 4
      %s476 = int_to_ptr.hbm [resolvable:$true] %s475
      %s477 = sshll.u32 [#allocation47], 4
      %s478 = int_to_ptr.vmem [resolvable:$true] %s477
      %480 = dma.hbm_to_vmem [thread:$0]  %s476, 160, %s478, [#allocation46]
    $region141: #{_forward_jit.1} parent=1 // pred_fallthru
      _
    // Predicated region
    $region142: #{_forward_jit.1} parent=1 // pred_check
      _
    $region143: #{_forward_jit.1} parent=1 // pred_check_branch
      %482 = sbr.rel (0) target = $region145
    $region144: #{_forward_jit.1} parent=1 // pred_region
      %484 = vsyncadd [#allocation49], 0
      %s485 = sshll.u32 %s71, 4
      %s486 = int_to_ptr.hbm [resolvable:$true] %s485
      %s487 = sshll.u32 [#allocation48], 4
      %s488 = int_to_ptr.vmem [resolvable:$true] %s487
      %493 = dma.hbm_to_vmem [thread:$0]  %s486, 6144, %s488, [#allocation49], 64, 64, 4
    $region145: #{_forward_jit.1} parent=1 // pred_fallthru
      _
    // Predicated region
    $region146: #{_forward_jit.1} parent=1 // pred_check
      _
    $region147: #{_forward_jit.1} parent=1 // pred_check_branch
      %495 = sbr.rel (0) target = $region149
    $region148: #{_forward_jit.1} parent=1 // pred_region
      %497 = vsyncadd [#allocation49], 0
      %s499 = sshll.u32 %s73, 4
      %s500 = int_to_ptr.hbm [resolvable:$true] %s499
      %s501 = sshll.u32 [#allocation50], 4
      %s502 = int_to_ptr.vmem [resolvable:$true] %s501
      %504 = dma.hbm_to_vmem [thread:$0]  %s500, 16, %s502, [#allocation49]
    $region149: #{_forward_jit.1} parent=1 // pred_fallthru
      _
    // Predicated region
    $region150: #{_forward_jit.1} parent=1 // pred_check
      _
    $region151: #{_forward_jit.1} parent=1 // pred_check_branch
      %506 = sbr.rel (0) target = $region153
    $region152: #{_forward_jit.1} parent=1 // pred_region
      %508 = vsyncadd [#allocation52], 0
      %s510 = sshll.u32 %s75, 4
      %s511 = int_to_ptr.hbm [resolvable:$true] %s510
      %s512 = sshll.u32 [#allocation51], 4
      %s513 = int_to_ptr.vmem [resolvable:$true] %s512
      %515 = dma.hbm_to_vmem [thread:$0]  %s511, 16, %s513, [#allocation52]
    $region153: #{_forward_jit.1} parent=1 // pred_fallthru
      _
    // Predicated region
    $region154: #{_forward_jit.1} parent=1 // pred_check
      _
    $region155: #{_forward_jit.1} parent=1 // pred_check_branch
      %517 = sbr.rel (0) target = $region157
    $region156: #{_forward_jit.1} parent=1 // pred_region
      %519 = vsyncadd [#allocation52], 0
      %s521 = sshll.u32 %s77, 4
      %s522 = int_to_ptr.hbm [resolvable:$true] %s521
      %s523 = sshll.u32 [#allocation53], 4
      %s524 = int_to_ptr.vmem [resolvable:$true] %s523
      %526 = dma.hbm_to_vmem [thread:$0]  %s522, 16, %s524, [#allocation52]
    $region157: #{_forward_jit.1} parent=1 // pred_fallthru
      _
    // Predicated region
    $region158: #{_forward_jit.1} parent=1 // pred_check
      _
    $region159: #{_forward_jit.1} parent=1 // pred_check_branch
      %528 = sbr.rel (0) target = $region161
    $region160: #{_forward_jit.1} parent=1 // pred_region
      _
    $region161: #{_forward_jit.1} parent=1 // pred_fallthru
      _
    // Predicated region
    $region162: #{_forward_jit.1} parent=1 // pred_check
      _
    $region163: #{_forward_jit.1} parent=1 // pred_check_branch
      %530 = sbr.rel (0) target = $region165
    $region164: #{_forward_jit.1} parent=1 // pred_region
      %532 = vsyncadd [#allocation55], 0
      %s534 = sshll.u32 %s81, 4
      %s535 = int_to_ptr.hbm [resolvable:$true] %s534
      %s536 = sshll.u32 [#allocation54], 4
      %s537 = int_to_ptr.vmem [resolvable:$true] %s536
      %539 = dma.hbm_to_vmem [thread:$0]  %s535, 16, %s537, [#allocation55]
    $region165: #{_forward_jit.1} parent=1 // pred_fallthru
      _
    // Predicated region
    $region166: #{_forward_jit.1} parent=1 // pred_check
      _
    $region167: #{_forward_jit.1} parent=1 // pred_check_branch
      %541 = sbr.rel (0) target = $region169
    $region168: #{_forward_jit.1} parent=1 // pred_region
      %543 = vsyncadd [#allocation55], 0
      %s545 = sshll.u32 %s83, 4
      %s546 = int_to_ptr.hbm [resolvable:$true] %s545
      %s547 = sshll.u32 [#allocation56], 4
      %s548 = int_to_ptr.vmem [resolvable:$true] %s547
      %550 = dma.hbm_to_vmem [thread:$0]  %s546, 16, %s548, [#allocation55]
    $region169: #{_forward_jit.1} parent=1 // pred_fallthru
      _
    // Predicated region
    $region170: #{_forward_jit.1} parent=1 // pred_check
      _
    $region171: #{_forward_jit.1} parent=1 // pred_check_branch
      %552 = sbr.rel (0) target = $region173
    $region172: #{_forward_jit.1} parent=1 // pred_region
      %554 = vsyncadd [#allocation58], 0
      %s556 = sshll.u32 %s85, 4
      %s557 = int_to_ptr.hbm [resolvable:$true] %s556
      %s558 = sshll.u32 [#allocation57], 4
      %s559 = int_to_ptr.vmem [resolvable:$true] %s558
      %561 = dma.hbm_to_vmem [thread:$0]  %s557, 16, %s559, [#allocation58]
    $region173: #{_forward_jit.1} parent=1 // pred_fallthru
      _
    // Predicated region
    $region174: #{_forward_jit.1} parent=1 // pred_check
      _
    $region175: #{_forward_jit.1} parent=1 // pred_check_branch
      %563 = sbr.rel (0) target = $region177
    $region176: #{_forward_jit.1} parent=1 // pred_region
      _
    $region177: #{_forward_jit.1} parent=1 // pred_fallthru
      _
    // Predicated region
    $region178: #{_forward_jit.1} parent=1 // pred_check
      _
    $region179: #{_forward_jit.1} parent=1 // pred_check_branch
      %565 = sbr.rel (0) target = $region181
    $region180: #{_forward_jit.1} parent=1 // pred_region
      %567 = vsyncadd [#allocation58], 0
      %s569 = sshll.u32 %s89, 4
      %s570 = int_to_ptr.hbm [resolvable:$true] %s569
      %s571 = sshll.u32 [#allocation59], 4
      %s572 = int_to_ptr.vmem [resolvable:$true] %s571
      %574 = dma.hbm_to_vmem [thread:$0]  %s570, 16, %s572, [#allocation58]
    $region181: #{_forward_jit.1} parent=1 // pred_fallthru
      _
    // Predicated region
    $region182: #{_forward_jit.1} parent=1 // pred_check
      _
    $region183: #{_forward_jit.1} parent=1 // pred_check_branch
      %576 = sbr.rel (0) target = $region185
    $region184: #{_forward_jit.1} parent=1 // pred_region
      _
    $region185: #{_forward_jit.1} parent=1 // pred_fallthru
      _
    // Predicated region
    $region186: #{_forward_jit.1} parent=1 // pred_check
      _
    $region187: #{_forward_jit.1} parent=1 // pred_check_branch
      %578 = sbr.rel (0) target = $region189
    $region188: #{_forward_jit.1} parent=1 // pred_region
      %580 = dma.done [#allocation4], 64
    $region189: #{_forward_jit.1} parent=1 // pred_fallthru
      _
    // Predicated region
    $region190: #{_forward_jit.1} parent=1 // pred_check
      _
    $region191: #{_forward_jit.1} parent=1 // pred_check_branch
      %582 = sbr.rel (0) target = $region193
    $region192: #{_forward_jit.1} parent=1 // pred_region
      %584 = dma.done [#allocation7], 1536
    $region193: #{_forward_jit.1} parent=1 // pred_fallthru
      _
    // Predicated region
    $region194: #{_forward_jit.1} parent=1 // pred_check
      _
    $region195: #{_forward_jit.1} parent=1 // pred_check_branch
      %586 = sbr.rel (0) target = $region197
    $region196: #{_forward_jit.1} parent=1 // pred_region
      %588 = dma.done [#allocation7], 768
    $region197: #{_forward_jit.1} parent=1 // pred_fallthru
      _
    // Predicated region
    $region198: #{_forward_jit.1} parent=1 // pred_check
      _
    $region199: #{_forward_jit.1} parent=1 // pred_check_branch
      %590 = sbr.rel (0) target = $region201
    $region200: #{_forward_jit.1} parent=1 // pred_region
      %592 = dma.done [#allocation10], 320
    $region201: #{_forward_jit.1} parent=1 // pred_fallthru
      _
    // Predicated region
    $region202: #{_forward_jit.1} parent=1 // pred_check
      _
    $region203: #{_forward_jit.1} parent=1 // pred_check_branch
      %594 = sbr.rel (0) target = $region205
    $region204: #{_forward_jit.1} parent=1 // pred_region
      %596 = dma.done [#allocation10], 64
    $region205: #{_forward_jit.1} parent=1 // pred_fallthru
      _
    // Predicated region
    $region206: #{_forward_jit.1} parent=1 // pred_check
      _
    $region207: #{_forward_jit.1} parent=1 // pred_check_branch
      %598 = sbr.rel (0) target = $region209
    $region208: #{_forward_jit.1} parent=1 // pred_region
      %600 = dma.done [#allocation13], 16
    $region209: #{_forward_jit.1} parent=1 // pred_fallthru
      _
    // Predicated region
    $region210: #{_forward_jit.1} parent=1 // pred_check
      _
    $region211: #{_forward_jit.1} parent=1 // pred_check_branch
      %602 = sbr.rel (0) target = $region213
    $region212: #{_forward_jit.1} parent=1 // pred_region
      %604 = dma.done [#allocation13], 16
    $region213: #{_forward_jit.1} parent=1 // pred_fallthru
      _
    // Predicated region
    $region214: #{_forward_jit.1} parent=1 // pred_check
      _
    $region215: #{_forward_jit.1} parent=1 // pred_check_branch
      %606 = sbr.rel (0) target = $region217
    $region216: #{_forward_jit.1} parent=1 // pred_region
      %608 = dma.done [#allocation16], 16
    $region217: #{_forward_jit.1} parent=1 // pred_fallthru
      _
    // Predicated region
    $region218: #{_forward_jit.1} parent=1 // pred_check
      _
    $region219: #{_forward_jit.1} parent=1 // pred_check_branch
      %610 = sbr.rel (0) target = $region221
    $region220: #{_forward_jit.1} parent=1 // pred_region
      %612 = dma.done [#allocation16], 1536
    $region221: #{_forward_jit.1} parent=1 // pred_fallthru
      _
    // Predicated region
    $region222: #{_forward_jit.1} parent=1 // pred_check
      _
    $region223: #{_forward_jit.1} parent=1 // pred_check_branch
      %614 = sbr.rel (0) target = $region225
    $region224: #{_forward_jit.1} parent=1 // pred_region
      %616 = dma.done [#allocation19], 16
    $region225: #{_forward_jit.1} parent=1 // pred_fallthru
      _
    // Predicated region
    $region226: #{_forward_jit.1} parent=1 // pred_check
      _
    $region227: #{_forward_jit.1} parent=1 // pred_check_branch
      %618 = sbr.rel (0) target = $region229
    $region228: #{_forward_jit.1} parent=1 // pred_region
      %620 = dma.done [#allocation19], 16
    $region229: #{_forward_jit.1} parent=1 // pred_fallthru
      _
    // Predicated region
    $region230: #{_forward_jit.1} parent=1 // pred_check
      _
    $region231: #{_forward_jit.1} parent=1 // pred_check_branch
      %622 = sbr.rel (0) target = $region233
    $region232: #{_forward_jit.1} parent=1 // pred_region
      %624 = dma.done [#allocation22], 16
    $region233: #{_forward_jit.1} parent=1 // pred_fallthru
      _
    // Predicated region
    $region234: #{_forward_jit.1} parent=1 // pred_check
      _
    $region235: #{_forward_jit.1} parent=1 // pred_check_branch
      %626 = sbr.rel (0) target = $region237
    $region236: #{_forward_jit.1} parent=1 // pred_region
      %628 = dma.done [#allocation22], 6144
    $region237: #{_forward_jit.1} parent=1 // pred_fallthru
      _
    // Predicated region
    $region238: #{_forward_jit.1} parent=1 // pred_check
      _
    $region239: #{_forward_jit.1} parent=1 // pred_check_branch
      %630 = sbr.rel (0) target = $region241
    $region240: #{_forward_jit.1} parent=1 // pred_region
      %632 = dma.done [#allocation25], 32
    $region241: #{_forward_jit.1} parent=1 // pred_fallthru
      _
    // Predicated region
    $region242: #{_forward_jit.1} parent=1 // pred_check
      _
    $region243: #{_forward_jit.1} parent=1 // pred_check_branch
      %634 = sbr.rel (0) target = $region245
    $region244: #{_forward_jit.1} parent=1 // pred_region
      %636 = dma.done [#allocation25], 32
    $region245: #{_forward_jit.1} parent=1 // pred_fallthru
      _
    // Predicated region
    $region246: #{_forward_jit.1} parent=1 // pred_check
      _
    $region247: #{_forward_jit.1} parent=1 // pred_check_branch
      %638 = sbr.rel (0) target = $region249
    $region248: #{_forward_jit.1} parent=1 // pred_region
      %640 = dma.done [#allocation28], 32
    $region249: #{_forward_jit.1} parent=1 // pred_fallthru
      _
    // Predicated region
    $region250: #{_forward_jit.1} parent=1 // pred_check
      _
    $region251: #{_forward_jit.1} parent=1 // pred_check_branch
      %642 = sbr.rel (0) target = $region253
    $region252: #{_forward_jit.1} parent=1 // pred_region
      %644 = dma.done [#allocation28], 40960
    $region253: #{_forward_jit.1} parent=1 // pred_fallthru
      _
    // Predicated region
    $region254: #{_forward_jit.1} parent=1 // pred_check
      _
    $region255: #{_forward_jit.1} parent=1 // pred_check_branch
      %646 = sbr.rel (0) target = $region257
    $region256: #{_forward_jit.1} parent=1 // pred_region
      %648 = dma.done [#allocation31], 64
    $region257: #{_forward_jit.1} parent=1 // pred_fallthru
      _
    // Predicated region
    $region258: #{_forward_jit.1} parent=1 // pred_check
      _
    $region259: #{_forward_jit.1} parent=1 // pred_check_branch
      %650 = sbr.rel (0) target = $region261
    $region260: #{_forward_jit.1} parent=1 // pred_region
      %652 = dma.done [#allocation31], 64
    $region261: #{_forward_jit.1} parent=1 // pred_fallthru
      _
    // Predicated region
    $region262: #{_forward_jit.1} parent=1 // pred_check
      _
    $region263: #{_forward_jit.1} parent=1 // pred_check_branch
      %654 = sbr.rel (0) target = $region265
    $region264: #{_forward_jit.1} parent=1 // pred_region
      %656 = dma.done [#allocation34], 64
    $region265: #{_forward_jit.1} parent=1 // pred_fallthru
      _
    // Predicated region
    $region266: #{_forward_jit.1} parent=1 // pred_check
      _
    $region267: #{_forward_jit.1} parent=1 // pred_check_branch
      %658 = sbr.rel (0) target = $region269
    $region268: #{_forward_jit.1} parent=1 // pred_region
      %660 = dma.done [#allocation34], 16
    $region269: #{_forward_jit.1} parent=1 // pred_fallthru
      _
    // Predicated region
    $region270: #{_forward_jit.1} parent=1 // pred_check
      _
    $region271: #{_forward_jit.1} parent=1 // pred_check_branch
      %662 = sbr.rel (0) target = $region273
    $region272: #{_forward_jit.1} parent=1 // pred_region
      %664 = dma.done [#allocation37], 512
    $region273: #{_forward_jit.1} parent=1 // pred_fallthru
      _
    // Predicated region
    $region274: #{_forward_jit.1} parent=1 // pred_check
      _
    $region275: #{_forward_jit.1} parent=1 // pred_check_branch
      %666 = sbr.rel (0) target = $region277
    $region276: #{_forward_jit.1} parent=1 // pred_region
      %668 = dma.done [#allocation37], 64
    $region277: #{_forward_jit.1} parent=1 // pred_fallthru
      _
    // Predicated region
    $region278: #{_forward_jit.1} parent=1 // pred_check
      _
    $region279: #{_forward_jit.1} parent=1 // pred_check_branch
      %670 = sbr.rel (0) target = $region281
    $region280: #{_forward_jit.1} parent=1 // pred_region
      %672 = dma.done [#allocation40], 64
    $region281: #{_forward_jit.1} parent=1 // pred_fallthru
      _
    // Predicated region
    $region282: #{_forward_jit.1} parent=1 // pred_check
      _
    $region283: #{_forward_jit.1} parent=1 // pred_check_branch
      %674 = sbr.rel (0) target = $region285
    $region284: #{_forward_jit.1} parent=1 // pred_region
      %676 = dma.done [#allocation40], 64
    $region285: #{_forward_jit.1} parent=1 // pred_fallthru
      _
    // Predicated region
    $region286: #{_forward_jit.1} parent=1 // pred_check
      _
    $region287: #{_forward_jit.1} parent=1 // pred_check_branch
      %678 = sbr.rel (0) target = $region289
    $region288: #{_forward_jit.1} parent=1 // pred_region
      %680 = dma.done [#allocation43], 40960
    $region289: #{_forward_jit.1} parent=1 // pred_fallthru
      _
    // Predicated region
    $region290: #{_forward_jit.1} parent=1 // pred_check
      _
    $region291: #{_forward_jit.1} parent=1 // pred_check_branch
      %682 = sbr.rel (0) target = $region293
    $region292: #{_forward_jit.1} parent=1 // pred_region
      %684 = dma.done [#allocation43], 160
    $region293: #{_forward_jit.1} parent=1 // pred_fallthru
      _
    // Predicated region
    $region294: #{_forward_jit.1} parent=1 // pred_check
      _
    $region295: #{_forward_jit.1} parent=1 // pred_check_branch
      %686 = sbr.rel (0) target = $region297
    $region296: #{_forward_jit.1} parent=1 // pred_region
      %688 = dma.done [#allocation46], 160
    $region297: #{_forward_jit.1} parent=1 // pred_fallthru
      _
    // Predicated region
    $region298: #{_forward_jit.1} parent=1 // pred_check
      _
    $region299: #{_forward_jit.1} parent=1 // pred_check_branch
      %690 = sbr.rel (0) target = $region301
    $region300: #{_forward_jit.1} parent=1 // pred_region
      %692 = dma.done [#allocation46], 160
    $region301: #{_forward_jit.1} parent=1 // pred_fallthru
      _
    // Predicated region
    $region302: #{_forward_jit.1} parent=1 // pred_check
      _
    $region303: #{_forward_jit.1} parent=1 // pred_check_branch
      %694 = sbr.rel (0) target = $region305
    $region304: #{_forward_jit.1} parent=1 // pred_region
      %696 = dma.done [#allocation49], 6144
    $region305: #{_forward_jit.1} parent=1 // pred_fallthru
      _
    // Predicated region
    $region306: #{_forward_jit.1} parent=1 // pred_check
      _
    $region307: #{_forward_jit.1} parent=1 // pred_check_branch
      %698 = sbr.rel (0) target = $region309
    $region308: #{_forward_jit.1} parent=1 // pred_region
      %700 = dma.done [#allocation49], 16
    $region309: #{_forward_jit.1} parent=1 // pred_fallthru
      _
    // Predicated region
    $region310: #{_forward_jit.1} parent=1 // pred_check
      _
    $region311: #{_forward_jit.1} parent=1 // pred_check_branch
      %702 = sbr.rel (0) target = $region313
    $region312: #{_forward_jit.1} parent=1 // pred_region
      %704 = dma.done [#allocation52], 16
    $region313: #{_forward_jit.1} parent=1 // pred_fallthru
      _
    // Predicated region
    $region314: #{_forward_jit.1} parent=1 // pred_check
      _
    $region315: #{_forward_jit.1} parent=1 // pred_check_branch
      %706 = sbr.rel (0) target = $region317
    $region316: #{_forward_jit.1} parent=1 // pred_region
      %708 = dma.done [#allocation52], 16
    $region317: #{_forward_jit.1} parent=1 // pred_fallthru
      _
    // Predicated region
    $region318: #{_forward_jit.1} parent=1 // pred_check
      _
    $region319: #{_forward_jit.1} parent=1 // pred_check_branch
      %710 = sbr.rel (0) target = $region321
    $region320: #{_forward_jit.1} parent=1 // pred_region
      %712 = dma.done [#allocation55], 16
    $region321: #{_forward_jit.1} parent=1 // pred_fallthru
      _
    // Predicated region
    $region322: #{_forward_jit.1} parent=1 // pred_check
      _
    $region323: #{_forward_jit.1} parent=1 // pred_check_branch
      %714 = sbr.rel (0) target = $region325
    $region324: #{_forward_jit.1} parent=1 // pred_region
      %716 = dma.done [#allocation55], 16
    $region325: #{_forward_jit.1} parent=1 // pred_fallthru
      _
    // Predicated region
    $region326: #{_forward_jit.1} parent=1 // pred_check
      _
    $region327: #{_forward_jit.1} parent=1 // pred_check_branch
      %718 = sbr.rel (0) target = $region329
    $region328: #{_forward_jit.1} parent=1 // pred_region
      %720 = dma.done [#allocation58], 16
    $region329: #{_forward_jit.1} parent=1 // pred_fallthru
      _
    // Predicated region
    $region330: #{_forward_jit.1} parent=1 // pred_check
      _
    $region331: #{_forward_jit.1} parent=1 // pred_check_branch
      %722 = sbr.rel (0) target = $region333
    $region332: #{_forward_jit.1} parent=1 // pred_region
      %724 = dma.done [#allocation58], 16
    $region333: #{_forward_jit.1} parent=1 // pred_fallthru
      _
    %v726 = vld [vmem:[%s1] sm:$0xff]
    %v727 = vld [vmem:[%s1 + $0x8] sm:$0xff]
    %v728 = vld [vmem:[%s1 + $0x10] sm:$0xff]
    %v729 = vld [vmem:[%s1 + $0x18] sm:$0xff]
    %v730 = vld [vmem:[%s1 + $0x20] sm:$0xff]
    %v731 = vld [vmem:[%s1 + $0x28] sm:$0xff]
    %v732 = vld [vmem:[%s1 + $0x30] sm:$0xff]
    %v733 = vld [vmem:[%s1 + $0x38] sm:$0xf]
    %v734 = vpack.c.bf16 %v727, %v726
    %v735 = vpack.c.bf16 %v729, %v728
    %v736 = vpack.c.bf16 %v731, %v730
    %v737 = vpack.c.bf16 %v733, %v732
    %v738 = vld [vmem:[#allocation11] sm:$0xf]
    %v739 = vld [vmem:[#allocation12] sm:$0x1]
    %v741 = vperm.slane %v739, 0
    %vm743 = vcmask 64512
    %v745 = vsel %vm743, %v734, 0
    %v748 = vsel %vm743, %v735, 0
    %v751 = vsel %vm743, %v736, 0
    %v754 = vsel %vm743, %v737, 0
    %vm756 = vcmask 1043456
    %v758 = vsel %vm756, %v738, 0
    %760 = vmatpush.bf16.msra.mxu0 0
    %761 = vmatpush.bf16.msra.mxu0 0
    %762 = vmatpush.bf16.msra.mxu0 0
    %763 = vmatpush.bf16.msra.mxu0 0
    %764 = vmatpush.bf16.msra.mxu0 0
    %765 = vmatpush.bf16.msra.mxu0 0
    %766 = vmatpush.bf16.msra.mxu0 0
    %767 = vmatpush.bf16.msra.mxu0 %v758
    %768 = vmatmul.bf16.gmra.mxu0 %v745
    %v769 = vpop.f32.mrf.mxu0
    %v770 = vadd.f32 %v741, %v769
    %v771 = vpop.f32.mrf.mxu0
    %v772 = vadd.f32 %v741, %v771
    %773 = vmatmul.bf16.gmra.mxu0 %v748
    %v774 = vpop.f32.mrf.mxu0
    %v775 = vadd.f32 %v741, %v774
    %v776 = vpop.f32.mrf.mxu0
    %v777 = vadd.f32 %v741, %v776
    %778 = vmatmul.bf16.gmra.mxu0 %v751
    %v779 = vpop.f32.mrf.mxu0
    %v780 = vadd.f32 %v741, %v779
    %v781 = vpop.f32.mrf.mxu0
    %v782 = vadd.f32 %v741, %v781
    %783 = vmatmul.bf16.gmra.mxu0 %v754
    %v784 = vpop.f32.mrf.mxu0
    %v785 = vadd.f32 %v741, %v784
    %v786 = vpop.f32.mrf.mxu0
    %v787 = vadd.f32 %v741, %v786
    %788 = vdwg.mxu0
    %vm789 = vcmask 523264
    %v790 = vsel %vm789, %v770, 0.0
    %v791 = vsel %vm789, %v772, 0.0
    %v792 = vadd.f32 %v790, %v791
    %v793 = vsel %vm789, %v775, 0.0
    %v794 = vadd.f32 %v792, %v793
    %v795 = vsel %vm789, %v777, 0.0
    %v796 = vadd.f32 %v794, %v795
    %v797 = vsel %vm789, %v780, 0.0
    %v798 = vadd.f32 %v796, %v797
    %v799 = vsel %vm789, %v782, 0.0
    %v800 = vadd.f32 %v798, %v799
    %v801 = vsel %vm789, %v785, 0.0
    %v802 = vadd.f32 %v800, %v801
    %vm803 = vcmask 519168
    %v804 = vsel %vm803, %v787, 0.0
    %v805 = vadd.f32 %v802, %v804
    %v806 = vrot.slane %v805, 4
    %v807 = vadd.f32 %v805, %v806
    %v808 = vrot.slane %v807, 2
    %v809 = vadd.f32 %v807, %v808
    %v810 = vrot.slane %v809, 1
    %v811 = vadd.f32 %v809, %v810
    %v812 = vrcp.pop 60.0
    %v813 = vmul.f32 60.0, %v812
    %v814 = vsub.f32 1.0, %v813
    %v815 = vmul.f32 %v812, %v814
    %v816 = vadd.f32 %v812, %v815
    %vm817 = vweird.f32 %v812
    %v818 = vsel %vm817, %v812, %v816
    %v819 = vmul.f32 %v811, %v818
    %v820 = vsub.f32 %v770, %v819
    %v821 = vsub.f32 %v772, %v819
    %v822 = vsub.f32 %v775, %v819
    %v823 = vsub.f32 %v777, %v819
    %v824 = vsub.f32 %v780, %v819
    %v825 = vsub.f32 %v782, %v819
    %v826 = vsub.f32 %v785, %v819
    %v827 = vsub.f32 %v787, %v819
    %v828 = vmul.f32 %v820, %v820
    %v829 = vmul.f32 %v821, %v821
    %v830 = vmul.f32 %v822, %v822
    %v831 = vmul.f32 %v823, %v823
    %v832 = vmul.f32 %v824, %v824
    %v833 = vmul.f32 %v825, %v825
    %v834 = vmul.f32 %v826, %v826
    %v835 = vmul.f32 %v827, %v827
    %v836 = vsel %vm789, %v828, 0.0
    %v837 = vsel %vm789, %v829, 0.0
    %v838 = vadd.f32 %v836, %v837
    %v839 = vsel %vm789, %v830, 0.0
    %v840 = vadd.f32 %v838, %v839
    %v841 = vsel %vm789, %v831, 0.0
    %v842 = vadd.f32 %v840, %v841
    %v843 = vsel %vm789, %v832, 0.0
    %v844 = vadd.f32 %v842, %v843
    %v845 = vsel %vm789, %v833, 0.0
    %v846 = vadd.f32 %v844, %v845
    %v847 = vsel %vm789, %v834, 0.0
    %v848 = vadd.f32 %v846, %v847
    %v849 = vsel %vm803, %v835, 0.0
    %v850 = vadd.f32 %v848, %v849
    %v851 = vrot.slane %v850, 4
    %v852 = vadd.f32 %v850, %v851
    %v853 = vrot.slane %v852, 2
    %v854 = vadd.f32 %v852, %v853
    %v855 = vrot.slane %v854, 1
    %v856 = vadd.f32 %v854, %v855
    %v857 = vmul.f32 %v856, %v818
    %v858 = vadd.f32 %v857, 1e-05
    %v859 = vrsqrt.pop %v858
    %v860 = vmul.f32 %v859, %v858
    %v861 = vmul.f32 %v860, %v859
    %v862 = vmul.f32 0.5, %v861
    %v863 = vsub.f32 1.5, %v862
    %v864 = vmul.f32 %v859, %v863
    %vm865 = vweird.f32 %v858
    %vm866 = vweird.f32 %v859
    %vm867 = vmor %vm865, %vm866
    %v868 = vsel %vm867, %v859, %v864
    %v869 = vmul.f32 %v820, %v868
    %v870 = vmul.f32 %v821, %v868
    %v871 = vmul.f32 %v822, %v868
    %v872 = vmul.f32 %v823, %v868
    %v873 = vmul.f32 %v824, %v868
    %v874 = vmul.f32 %v825, %v868
    %v875 = vmul.f32 %v826, %v868
    %v876 = vmul.f32 %v827, %v868
    %v877 = vld [vmem:[#allocation14] sm:$0x1]
    %v879 = vperm.slane %v877, 0
    %v881 = vmul.f32 %v869, %v879
    %v882 = vmul.f32 %v870, %v879
    %v883 = vmul.f32 %v871, %v879
    %v884 = vmul.f32 %v872, %v879
    %v885 = vmul.f32 %v873, %v879
    %v886 = vmul.f32 %v874, %v879
    %v887 = vmul.f32 %v875, %v879
    %v888 = vmul.f32 %v876, %v879
    %v889 = vld [vmem:[#allocation15] sm:$0x1]
    %v891 = vperm.slane %v889, 0
    %v893 = vadd.f32 %v881, %v891
    %v894 = vadd.f32 %v882, %v891
    %v895 = vadd.f32 %v883, %v891
    %v896 = vadd.f32 %v884, %v891
    %v897 = vadd.f32 %v885, %v891
    %v898 = vadd.f32 %v886, %v891
    %v899 = vadd.f32 %v887, %v891
    %v900 = vadd.f32 %v888, %v891
    %v901 = vtanh.pop %v893
    %v902 = vtanh.pop %v894
    %v903 = vtanh.pop %v895
    %v904 = vtanh.pop %v896
    %v905 = vtanh.pop %v897
    %v906 = vtanh.pop %v898
    %v907 = vtanh.pop %v899
    %v908 = vtanh.pop %v900
    %v909 = vld [vmem:[#allocation6] sm:$0xff]
    %v910 = vld [vmem:[#allocation6 + $0x8] sm:$0xff]
    %v911 = vld [vmem:[#allocation6 + $0x10] sm:$0xff]
    %v912 = vld [vmem:[#allocation6 + $0x18] sm:$0x3f]
    %vm913 = vcmask 490496
    %v915 = vsel %vm913, %v909, 0
    %v918 = vsel %vm913, %v910, 0
    %v921 = vsel %vm913, %v911, 0
    %v924 = vsel %vm913, %v912, 0
    %v927 = vsel %vm756, %v908, 0
    %929 = vmatpush.msra.mxu0 0.0
    %930 = vmatpush.msra.mxu0 0.0
    %931 = vmatpush.msra.mxu0 0.0
    %932 = vmatpush.msra.mxu0 0.0
    %933 = vmatpush.msra.mxu0 0.0
    %934 = vmatpush.msra.mxu0 0.0
    %935 = vmatpush.msra.mxu0 0.0
    %936 = vmatpush.msra.mxu0 0.0
    %937 = vmatpush.msra.mxu0 %v927
    %938 = vmatpush.msra.mxu0 %v907
    %939 = vmatpush.msra.mxu0 %v906
    %940 = vmatpush.msra.mxu0 %v905
    %941 = vmatpush.msra.mxu0 %v904
    %942 = vmatpush.msra.mxu0 %v903
    %943 = vmatpush.msra.mxu0 %v902
    %944 = vmatpush.msra.mxu0 %v901
    %945 = vmatmul.f32.gmra.mxu0 %v915
    %v946 = vpop.f32.mrf.mxu0
    %v947 = vadd.f32 0.0, %v946
    %948 = vmatmul.f32.gmra.mxu0 %v918
    %v949 = vpop.f32.mrf.mxu0
    %v950 = vadd.f32 0.0, %v949
    %951 = vmatmul.f32.gmra.mxu0 %v921
    %v952 = vpop.f32.mrf.mxu0
    %v953 = vadd.f32 0.0, %v952
    %954 = vmatmul.f32.gmra.mxu0 %v924
    %v955 = vpop.f32.mrf.mxu0
    %v956 = vadd.f32 0.0, %v955
    %957 = vdwg.mxu0
    %v958 = vpack.c.bf16 %v950, %v947
    %v959 = vpack.c.bf16 %v956, %v953
    %v960 = vld [vmem:[#allocation17] sm:$0xf]
    %v961 = vld [vmem:[#allocation17 + $0x4] sm:$0xf]
    %v962 = vld [vmem:[#allocation17 + $0x8] sm:$0xf]
    %v963 = vld [vmem:[#allocation17 + $0xc] sm:$0xf]
    %v964 = vld [vmem:[#allocation17 + $0x10] sm:$0xf]
    %v965 = vld [vmem:[#allocation17 + $0x14] sm:$0xf]
    %v966 = vld [vmem:[#allocation17 + $0x18] sm:$0xf]
    %v967 = vld [vmem:[#allocation17 + $0x1c] sm:$0xf]
    %s968 = scalar_lea.vmem [#allocation6], 32
    %v969 = vld [vmem:[%s968] sm:$0xff]
    %v970 = vld [vmem:[%s968 + $0x8] sm:$0xff]
    %v971 = vld [vmem:[%s968 + $0x10] sm:$0xff]
    %v972 = vld [vmem:[%s968 + $0x18] sm:$0x3f]
    %v974 = vsel %vm913, %v969, 0
    %v977 = vsel %vm913, %v970, 0
    %v980 = vsel %vm913, %v971, 0
    %v983 = vsel %vm913, %v972, 0
    %985 = vmatpush.msra.mxu0 0.0
    %986 = vmatpush.msra.mxu0 0.0
    %987 = vmatpush.msra.mxu0 0.0
    %988 = vmatpush.msra.mxu0 0.0
    %989 = vmatpush.msra.mxu0 0.0
    %990 = vmatpush.msra.mxu0 0.0
    %991 = vmatpush.msra.mxu0 0.0
    %992 = vmatpush.msra.mxu0 0.0
    %993 = vmatpush.msra.mxu0 %v927
    %994 = vmatpush.msra.mxu0 %v907
    %995 = vmatpush.msra.mxu0 %v906
    %996 = vmatpush.msra.mxu0 %v905
    %997 = vmatpush.msra.mxu0 %v904
    %998 = vmatpush.msra.mxu0 %v903
    %999 = vmatpush.msra.mxu0 %v902
    %1000 = vmatpush.msra.mxu0 %v901
    %1001 = vmatmul.f32.gmra.mxu0 %v974
    %v1002 = vpop.f32.mrf.mxu0
    %v1003 = vadd.f32 0.0, %v1002
    %1004 = vmatmul.f32.gmra.mxu0 %v977
    %v1005 = vpop.f32.mrf.mxu0
    %v1006 = vadd.f32 0.0, %v1005
    %1007 = vmatmul.f32.gmra.mxu0 %v980
    %v1008 = vpop.f32.mrf.mxu0
    %v1009 = vadd.f32 0.0, %v1008
    %1010 = vmatmul.f32.gmra.mxu0 %v983
    %v1011 = vpop.f32.mrf.mxu0
    %v1012 = vadd.f32 0.0, %v1011
    %1013 = vdwg.mxu0
    %v1014 = vpack.c.bf16 %v1006, %v1003
    %v1015 = vpack.c.bf16 %v1012, %v1009
    %v1016 = vld [vmem:[#allocation17 + $0x20] sm:$0xf]
    %v1017 = vld [vmem:[#allocation17 + $0x24] sm:$0xf]
    %v1018 = vld [vmem:[#allocation17 + $0x28] sm:$0xf]
    %v1019 = vld [vmem:[#allocation17 + $0x2c] sm:$0xf]
    %v1020 = vld [vmem:[#allocation17 + $0x30] sm:$0xf]
    %v1021 = vld [vmem:[#allocation17 + $0x34] sm:$0xf]
    %v1022 = vld [vmem:[#allocation17 + $0x38] sm:$0xf]
    %v1023 = vld [vmem:[#allocation17 + $0x3c] sm:$0xf]
    %v1032 = vunpack.c.l.b16 %v1016
    %v1033 = vunpack.c.l.b16 %v1017
    %v1034 = vunpack.c.l.b16 %v1018
    %v1035 = vunpack.c.l.b16 %v1019
    %v1036 = vunpack.c.l.b16 %v1020
    %v1037 = vunpack.c.l.b16 %v1021
    %v1038 = vunpack.c.l.b16 %v1022
    %v1039 = vunpack.c.l.b16 %v1023
    %v1040 = vpack.c.b16 %v1033, %v1032
    %v1041 = vpack.c.b16 %v1035, %v1034
    %v1042 = vpack.c.b16 %v1037, %v1036
    %v1043 = vpack.c.b16 %v1039, %v1038
    %v1049 = vsel %vm789, %v1014, 0
    %v1052 = vsel %vm789, %v1015, 0
    %1054 = vmatpush.bf16.msra.mxu0 0
    %1055 = vmatpush.bf16.msra.mxu0 0
    %1056 = vmatpush.bf16.msra.mxu0 0
    %1057 = vmatpush.bf16.msra.mxu0 0
    %1058 = vmatpush.bf16.msra.mxu0 %v1043
    %1059 = vmatpush.bf16.msra.mxu0 %v1042
    %1060 = vmatpush.bf16.msra.mxu0 %v1041
    %1061 = vmatpush.bf16.msra.mxu0 %v1040
    %1062 = vmatmul.bf16.gmra.mxu0 %v1049
    %v1063 = vpop.f32.mrf.mxu0
    %v1064 = vadd.f32 0.0, %v1063
    %v1065 = vpop.f32.mrf.mxu0
    %v1066 = vadd.f32 0.0, %v1065
    %1067 = vmatmul.bf16.gmra.mxu0 %v1052
    %v1068 = vpop.f32.mrf.mxu0
    %v1069 = vadd.f32 0.0, %v1068
    %v1070 = vpop.f32.mrf.mxu0
    %v1071 = vadd.f32 0.0, %v1070
    %1072 = vdwg.mxu0
    %v1081 = vunpack.c.l.b16 %v960
    %v1082 = vunpack.c.l.b16 %v961
    %v1083 = vunpack.c.l.b16 %v962
    %v1084 = vunpack.c.l.b16 %v963
    %v1085 = vunpack.c.l.b16 %v964
    %v1086 = vunpack.c.l.b16 %v965
    %v1087 = vunpack.c.l.b16 %v966
    %v1088 = vunpack.c.l.b16 %v967
    %v1089 = vpack.c.b16 %v1082, %v1081
    %v1090 = vpack.c.b16 %v1084, %v1083
    %v1091 = vpack.c.b16 %v1086, %v1085
    %v1092 = vpack.c.b16 %v1088, %v1087
    %v1098 = vsel %vm789, %v958, 0
    %v1101 = vsel %vm789, %v959, 0
    %1103 = vmatpush.bf16.msra.mxu0 0
    %1104 = vmatpush.bf16.msra.mxu0 0
    %1105 = vmatpush.bf16.msra.mxu0 0
    %1106 = vmatpush.bf16.msra.mxu0 0
    %1107 = vmatpush.bf16.msra.mxu0 %v1092
    %1108 = vmatpush.bf16.msra.mxu0 %v1091
    %1109 = vmatpush.bf16.msra.mxu0 %v1090
    %1110 = vmatpush.bf16.msra.mxu0 %v1089
    %1111 = vmatmul.bf16.gmra.mxu0 %v1098
    %v1112 = vpop.f32.mrf.mxu0
    %v1113 = vadd.f32 %v1064, %v1112
    %v1114 = vpop.f32.mrf.mxu0
    %v1115 = vadd.f32 %v1066, %v1114
    %1116 = vmatmul.bf16.gmra.mxu0 %v1101
    %v1117 = vpop.f32.mrf.mxu0
    %v1118 = vadd.f32 %v1069, %v1117
    %v1119 = vpop.f32.mrf.mxu0
    %v1120 = vadd.f32 %v1071, %v1119
    %1121 = vdwg.mxu0
    %s1122 = scalar_lea.vmem [#allocation6], 64
    %v1123 = vld [vmem:[%s1122] sm:$0xff]
    %v1124 = vld [vmem:[%s1122 + $0x8] sm:$0xff]
    %v1125 = vld [vmem:[%s1122 + $0x10] sm:$0xff]
    %v1126 = vld [vmem:[%s1122 + $0x18] sm:$0x3f]
    %v1128 = vsel %vm913, %v1123, 0
    %v1131 = vsel %vm913, %v1124, 0
    %v1134 = vsel %vm913, %v1125, 0
    %v1137 = vsel %vm913, %v1126, 0
    %1139 = vmatpush.msra.mxu0 0.0
    %1140 = vmatpush.msra.mxu0 0.0
    %1141 = vmatpush.msra.mxu0 0.0
    %1142 = vmatpush.msra.mxu0 0.0
    %1143 = vmatpush.msra.mxu0 0.0
    %1144 = vmatpush.msra.mxu0 0.0
    %1145 = vmatpush.msra.mxu0 0.0
    %1146 = vmatpush.msra.mxu0 0.0
    %1147 = vmatpush.msra.mxu0 %v927
    %1148 = vmatpush.msra.mxu0 %v907
    %1149 = vmatpush.msra.mxu0 %v906
    %1150 = vmatpush.msra.mxu0 %v905
    %1151 = vmatpush.msra.mxu0 %v904
    %1152 = vmatpush.msra.mxu0 %v903
    %1153 = vmatpush.msra.mxu0 %v902
    %1154 = vmatpush.msra.mxu0 %v901
    %1155 = vmatmul.f32.gmra.mxu0 %v1128
    %v1156 = vpop.f32.mrf.mxu0
    %v1157 = vadd.f32 0.0, %v1156
    %1158 = vmatmul.f32.gmra.mxu0 %v1131
    %v1159 = vpop.f32.mrf.mxu0
    %v1160 = vadd.f32 0.0, %v1159
    %1161 = vmatmul.f32.gmra.mxu0 %v1134
    %v1162 = vpop.f32.mrf.mxu0
    %v1163 = vadd.f32 0.0, %v1162
    %1164 = vmatmul.f32.gmra.mxu0 %v1137
    %v1165 = vpop.f32.mrf.mxu0
    %v1166 = vadd.f32 0.0, %v1165
    %1167 = vdwg.mxu0
    %v1168 = vpack.c.bf16 %v1160, %v1157
    %v1169 = vpack.c.bf16 %v1166, %v1163
    %v1170 = vld [vmem:[#allocation17 + $0x40] sm:$0xf]
    %v1171 = vld [vmem:[#allocation17 + $0x44] sm:$0xf]
    %v1172 = vld [vmem:[#allocation17 + $0x48] sm:$0xf]
    %v1173 = vld [vmem:[#allocation17 + $0x4c] sm:$0xf]
    %v1174 = vld [vmem:[#allocation17 + $0x50] sm:$0xf]
    %v1175 = vld [vmem:[#allocation17 + $0x54] sm:$0xf]
    %v1176 = vld [vmem:[#allocation17 + $0x58] sm:$0xf]
    %v1177 = vld [vmem:[#allocation17 + $0x5c] sm:$0xf]
    %v1186 = vunpack.c.l.b16 %v1170
    %v1187 = vunpack.c.l.b16 %v1171
    %v1188 = vunpack.c.l.b16 %v1172
    %v1189 = vunpack.c.l.b16 %v1173
    %v1190 = vunpack.c.l.b16 %v1174
    %v1191 = vunpack.c.l.b16 %v1175
    %v1192 = vunpack.c.l.b16 %v1176
    %v1193 = vunpack.c.l.b16 %v1177
    %v1194 = vpack.c.b16 %v1187, %v1186
    %v1195 = vpack.c.b16 %v1189, %v1188
    %v1196 = vpack.c.b16 %v1191, %v1190
    %v1197 = vpack.c.b16 %v1193, %v1192
    %v1203 = vsel %vm789, %v1168, 0
    %v1206 = vsel %vm789, %v1169, 0
    %1208 = vmatpush.bf16.msra.mxu0 0
    %1209 = vmatpush.bf16.msra.mxu0 0
    %1210 = vmatpush.bf16.msra.mxu0 0
    %1211 = vmatpush.bf16.msra.mxu0 0
    %1212 = vmatpush.bf16.msra.mxu0 %v1197
    %1213 = vmatpush.bf16.msra.mxu0 %v1196
    %1214 = vmatpush.bf16.msra.mxu0 %v1195
    %1215 = vmatpush.bf16.msra.mxu0 %v1194
    %1216 = vmatmul.bf16.gmra.mxu0 %v1203
    %v1217 = vpop.f32.mrf.mxu0
    %v1218 = vadd.f32 0.0, %v1217
    %v1219 = vpop.f32.mrf.mxu0
    %v1220 = vadd.f32 0.0, %v1219
    %1221 = vmatmul.bf16.gmra.mxu0 %v1206
    %v1222 = vpop.f32.mrf.mxu0
    %v1223 = vadd.f32 0.0, %v1222
    %v1224 = vpop.f32.mrf.mxu0
    %v1225 = vadd.f32 0.0, %v1224
    %1226 = vdwg.mxu0
    %v1227 = vadd.f32 %v1113, %v1218
    %v1228 = vadd.f32 %v1115, %v1220
    %v1229 = vadd.f32 %v1118, %v1223
    %v1230 = vadd.f32 %v1120, %v1225
    %v1231 = vld [vmem:[#allocation18] sm:$0x1]
    %v1233 = vperm.slane %v1231, 0
    %v1235 = vadd.f32 %v1227, %v1233
    %v1236 = vadd.f32 %v1228, %v1233
    %v1237 = vadd.f32 %v1229, %v1233
    %v1238 = vadd.f32 %v1230, %v1233
    %v1239 = vadd.f32 %v1235, %v1236
    %v1240 = vadd.f32 %v1239, %v1237
    %vm1241 = vcmask 1045504
    %v1242 = vsel %vm1241, %v1238, 0.0
    %v1243 = vadd.f32 %v1240, %v1242
    %v1244 = vrot.slane %v1243, 4
    %v1245 = vadd.f32 %v1243, %v1244
    %v1246 = vrot.slane %v1245, 2
    %v1247 = vadd.f32 %v1245, %v1246
    %v1248 = vrot.slane %v1247, 1
    %v1249 = vadd.f32 %v1247, %v1248
    %v1250 = vrcp.pop 30.0
    %v1251 = vmul.f32 30.0, %v1250
    %v1252 = vsub.f32 1.0, %v1251
    %v1253 = vmul.f32 %v1250, %v1252
    %v1254 = vadd.f32 %v1250, %v1253
    %vm1255 = vweird.f32 %v1250
    %v1256 = vsel %vm1255, %v1250, %v1254
    %v1257 = vmul.f32 %v1249, %v1256
    %v1258 = vsub.f32 %v1235, %v1257
    %v1259 = vsub.f32 %v1236, %v1257
    %v1260 = vsub.f32 %v1237, %v1257
    %v1261 = vsub.f32 %v1238, %v1257
    %v1262 = vmul.f32 %v1258, %v1258
    %v1263 = vmul.f32 %v1259, %v1259
    %v1264 = vmul.f32 %v1260, %v1260
    %v1265 = vmul.f32 %v1261, %v1261
    %v1266 = vadd.f32 %v1262, %v1263
    %v1267 = vadd.f32 %v1266, %v1264
    %v1268 = vsel %vm1241, %v1265, 0.0
    %v1269 = vadd.f32 %v1267, %v1268
    %v1270 = vrot.slane %v1269, 4
    %v1271 = vadd.f32 %v1269, %v1270
    %v1272 = vrot.slane %v1271, 2
    %v1273 = vadd.f32 %v1271, %v1272
    %v1274 = vrot.slane %v1273, 1
    %v1275 = vadd.f32 %v1273, %v1274
    %v1276 = vmul.f32 %v1275, %v1256
    %v1277 = vadd.f32 %v1276, 1e-05
    %v1278 = vrsqrt.pop %v1277
    %v1279 = vmul.f32 %v1278, %v1277
    %v1280 = vmul.f32 %v1279, %v1278
    %v1281 = vmul.f32 0.5, %v1280
    %v1282 = vsub.f32 1.5, %v1281
    %v1283 = vmul.f32 %v1278, %v1282
    %vm1284 = vweird.f32 %v1277
    %vm1285 = vweird.f32 %v1278
    %vm1286 = vmor %vm1284, %vm1285
    %v1287 = vsel %vm1286, %v1278, %v1283
    %v1288 = vmul.f32 %v1258, %v1287
    %v1289 = vmul.f32 %v1259, %v1287
    %v1290 = vmul.f32 %v1260, %v1287
    %v1291 = vmul.f32 %v1261, %v1287
    %v1292 = vld [vmem:[#allocation20] sm:$0x1]
    %v1294 = vperm.slane %v1292, 0
    %v1296 = vmul.f32 %v1288, %v1294
    %v1297 = vmul.f32 %v1289, %v1294
    %v1298 = vmul.f32 %v1290, %v1294
    %v1299 = vmul.f32 %v1291, %v1294
    %v1300 = vld [vmem:[#allocation21] sm:$0x1]
    %v1302 = vperm.slane %v1300, 0
    %v1304 = vadd.f32 %v1296, %v1302
    %v1305 = vadd.f32 %v1297, %v1302
    %v1306 = vadd.f32 %v1298, %v1302
    %v1307 = vadd.f32 %v1299, %v1302
    %v1308 = vtanh.pop %v1304
    %v1309 = vtanh.pop %v1305
    %v1310 = vtanh.pop %v1306
    %v1311 = vtanh.pop %v1307
    %v1312 = vld [vmem:[#allocation8] sm:$0xff]
    %v1313 = vld [vmem:[#allocation8 + $0x8] sm:$0x7f]
    %vm1314 = vcmask 244736
    %v1316 = vsel %vm1314, %v1312, 0
    %v1319 = vsel %vm1314, %v1313, 0
    %v1322 = vsel %vm1241, %v1311, 0
    %1324 = vmatpush.msra.mxu0 0.0
    %1325 = vmatpush.msra.mxu0 0.0
    %1326 = vmatpush.msra.mxu0 0.0
    %1327 = vmatpush.msra.mxu0 0.0
    %1328 = vmatpush.msra.mxu0 0.0
    %1329 = vmatpush.msra.mxu0 0.0
    %1330 = vmatpush.msra.mxu0 0.0
    %1331 = vmatpush.msra.mxu0 0.0
    %1332 = vmatpush.msra.mxu0 0.0
    %1333 = vmatpush.msra.mxu0 0.0
    %1334 = vmatpush.msra.mxu0 0.0
    %1335 = vmatpush.msra.mxu0 0.0
    %1336 = vmatpush.msra.mxu0 %v1322
    %1337 = vmatpush.msra.mxu0 %v1310
    %1338 = vmatpush.msra.mxu0 %v1309
    %1339 = vmatpush.msra.mxu0 %v1308
    %1340 = vmatmul.f32.gmra.mxu0 %v1316
    %v1341 = vpop.f32.mrf.mxu0
    %v1342 = vadd.f32 0.0, %v1341
    %1343 = vmatmul.f32.gmra.mxu0 %v1319
    %v1344 = vpop.f32.mrf.mxu0
    %v1345 = vadd.f32 0.0, %v1344
    %1346 = vdwg.mxu0
    %v1347 = vpack.c.bf16 %v1345, %v1342
    %v1348 = vld [vmem:[#allocation23] sm:$0xff]
    %v1349 = vld [vmem:[#allocation23 + $0x8] sm:$0xff]
    %v1350 = vld [vmem:[#allocation23 + $0x10] sm:$0xff]
    %v1351 = vld [vmem:[#allocation23 + $0x18] sm:$0xff]
    %v1352 = vld [vmem:[#allocation23 + $0x20] sm:$0xff]
    %v1353 = vld [vmem:[#allocation23 + $0x28] sm:$0xff]
    %v1354 = vld [vmem:[#allocation23 + $0x30] sm:$0xff]
    %v1355 = vld [vmem:[#allocation23 + $0x38] sm:$0xff]
    %v1356 = vld [vmem:[#allocation23 + $0x40] sm:$0xff]
    %v1357 = vld [vmem:[#allocation23 + $0x48] sm:$0xff]
    %v1358 = vld [vmem:[#allocation23 + $0x50] sm:$0xff]
    %v1359 = vld [vmem:[#allocation23 + $0x58] sm:$0xff]
    %v1360 = vld [vmem:[#allocation23 + $0x60] sm:$0xff]
    %v1361 = vld [vmem:[#allocation23 + $0x68] sm:$0xff]
    %v1362 = vld [vmem:[#allocation23 + $0x70] sm:$0xff]
    %v1363 = vld [vmem:[#allocation23 + $0x78] sm:$0xff]
    %s1364 = scalar_lea.vmem [#allocation8], 16
    %v1365 = vld [vmem:[%s1364] sm:$0xff]
    %v1366 = vld [vmem:[%s1364 + $0x8] sm:$0x7f]
    %v1368 = vsel %vm1314, %v1365, 0
    %v1371 = vsel %vm1314, %v1366, 0
    %1373 = vmatpush.msra.mxu0 0.0
    %1374 = vmatpush.msra.mxu0 0.0
    %1375 = vmatpush.msra.mxu0 0.0
    %1376 = vmatpush.msra.mxu0 0.0
    %1377 = vmatpush.msra.mxu0 0.0
    %1378 = vmatpush.msra.mxu0 0.0
    %1379 = vmatpush.msra.mxu0 0.0
    %1380 = vmatpush.msra.mxu0 0.0
    %1381 = vmatpush.msra.mxu0 0.0
    %1382 = vmatpush.msra.mxu0 0.0
    %1383 = vmatpush.msra.mxu0 0.0
    %1384 = vmatpush.msra.mxu0 0.0
    %1385 = vmatpush.msra.mxu0 %v1322
    %1386 = vmatpush.msra.mxu0 %v1310
    %1387 = vmatpush.msra.mxu0 %v1309
    %1388 = vmatpush.msra.mxu0 %v1308
    %1389 = vmatmul.f32.gmra.mxu0 %v1368
    %v1390 = vpop.f32.mrf.mxu0
    %v1391 = vadd.f32 0.0, %v1390
    %1392 = vmatmul.f32.gmra.mxu0 %v1371
    %v1393 = vpop.f32.mrf.mxu0
    %v1394 = vadd.f32 0.0, %v1393
    %1395 = vdwg.mxu0
    %v1396 = vpack.c.bf16 %v1394, %v1391
    %v1397 = vld [vmem:[#allocation23 + $0x80] sm:$0xff]
    %v1398 = vld [vmem:[#allocation23 + $0x88] sm:$0xff]
    %v1399 = vld [vmem:[#allocation23 + $0x90] sm:$0xff]
    %v1400 = vld [vmem:[#allocation23 + $0x98] sm:$0xff]
    %v1401 = vld [vmem:[#allocation23 + $0xa0] sm:$0xff]
    %v1402 = vld [vmem:[#allocation23 + $0xa8] sm:$0xff]
    %v1403 = vld [vmem:[#allocation23 + $0xb0] sm:$0xff]
    %v1404 = vld [vmem:[#allocation23 + $0xb8] sm:$0xff]
    %v1405 = vld [vmem:[#allocation23 + $0xc0] sm:$0xff]
    %v1406 = vld [vmem:[#allocation23 + $0xc8] sm:$0xff]
    %v1407 = vld [vmem:[#allocation23 + $0xd0] sm:$0xff]
    %v1408 = vld [vmem:[#allocation23 + $0xd8] sm:$0xff]
    %v1409 = vld [vmem:[#allocation23 + $0xe0] sm:$0xff]
    %v1410 = vld [vmem:[#allocation23 + $0xe8] sm:$0xff]
    %v1411 = vld [vmem:[#allocation23 + $0xf0] sm:$0xff]
    %v1412 = vld [vmem:[#allocation23 + $0xf8] sm:$0xff]
    %v1429 = vunpack.c.l.b16 %v1397
    %v1430 = vunpack.c.h.b16 %v1397
    %v1431 = vunpack.c.l.b16 %v1398
    %v1432 = vunpack.c.h.b16 %v1398
    %v1433 = vunpack.c.l.b16 %v1399
    %v1434 = vunpack.c.h.b16 %v1399
    %v1435 = vunpack.c.l.b16 %v1400
    %v1436 = vunpack.c.h.b16 %v1400
    %v1437 = vunpack.c.l.b16 %v1401
    %v1438 = vunpack.c.h.b16 %v1401
    %v1439 = vunpack.c.l.b16 %v1402
    %v1440 = vunpack.c.h.b16 %v1402
    %v1441 = vunpack.c.l.b16 %v1403
    %v1442 = vunpack.c.h.b16 %v1403
    %v1443 = vunpack.c.l.b16 %v1404
    %v1444 = vunpack.c.h.b16 %v1404
    %v1445 = vunpack.c.l.b16 %v1405
    %v1446 = vunpack.c.h.b16 %v1405
    %v1447 = vunpack.c.l.b16 %v1406
    %v1448 = vunpack.c.h.b16 %v1406
    %v1449 = vunpack.c.l.b16 %v1407
    %v1450 = vunpack.c.h.b16 %v1407
    %v1451 = vunpack.c.l.b16 %v1408
    %v1452 = vunpack.c.h.b16 %v1408
    %v1453 = vunpack.c.l.b16 %v1409
    %v1454 = vunpack.c.h.b16 %v1409
    %v1455 = vunpack.c.l.b16 %v1410
    %v1456 = vunpack.c.h.b16 %v1410
    %v1457 = vunpack.c.l.b16 %v1411
    %v1458 = vunpack.c.h.b16 %v1411
    %v1459 = vunpack.c.l.b16 %v1412
    %v1460 = vunpack.c.h.b16 %v1412
    %v1461 = vpack.c.b16 %v1431, %v1429
    %v1462 = vpack.c.b16 %v1432, %v1430
    %v1463 = vpack.c.b16 %v1435, %v1433
    %v1464 = vpack.c.b16 %v1436, %v1434
    %v1465 = vpack.c.b16 %v1439, %v1437
    %v1466 = vpack.c.b16 %v1440, %v1438
    %v1467 = vpack.c.b16 %v1443, %v1441
    %v1468 = vpack.c.b16 %v1444, %v1442
    %v1469 = vpack.c.b16 %v1447, %v1445
    %v1470 = vpack.c.b16 %v1448, %v1446
    %v1471 = vpack.c.b16 %v1451, %v1449
    %v1472 = vpack.c.b16 %v1452, %v1450
    %v1473 = vpack.c.b16 %v1455, %v1453
    %v1474 = vpack.c.b16 %v1456, %v1454
    %v1475 = vpack.c.b16 %v1459, %v1457
    %v1476 = vpack.c.b16 %v1460, %v1458
    %1493 = vmatpush.bf16.msra.mxu0 %v1475
    %1494 = vmatpush.bf16.msra.mxu0 %v1473
    %1495 = vmatpush.bf16.msra.mxu0 %v1471
    %1496 = vmatpush.bf16.msra.mxu0 %v1469
    %1497 = vmatpush.bf16.msra.mxu0 %v1467
    %1498 = vmatpush.bf16.msra.mxu0 %v1465
    %1499 = vmatpush.bf16.msra.mxu0 %v1463
    %1500 = vmatpush.bf16.msra.mxu0 %v1461
    %1501 = vmatmul.bf16.gmra.mxu0 %v1396
    %v1502 = vpop.f32.mrf.mxu0
    %v1503 = vadd.f32 0.0, %v1502
    %v1504 = vpop.f32.mrf.mxu0
    %v1505 = vadd.f32 0.0, %v1504
    %1506 = vdwg.mxu0
    %1507 = vmatpush.bf16.msra.mxu0 %v1476
    %1508 = vmatpush.bf16.msra.mxu0 %v1474
    %1509 = vmatpush.bf16.msra.mxu0 %v1472
    %1510 = vmatpush.bf16.msra.mxu0 %v1470
    %1511 = vmatpush.bf16.msra.mxu0 %v1468
    %1512 = vmatpush.bf16.msra.mxu0 %v1466
    %1513 = vmatpush.bf16.msra.mxu0 %v1464
    %1514 = vmatpush.bf16.msra.mxu0 %v1462
    %1515 = vmatmul.bf16.gmra.mxu0 %v1396
    %v1516 = vpop.f32.mrf.mxu0
    %v1517 = vadd.f32 0.0, %v1516
    %v1518 = vpop.f32.mrf.mxu0
    %v1519 = vadd.f32 0.0, %v1518
    %1520 = vdwg.mxu0
    %v1537 = vunpack.c.l.b16 %v1348
    %v1538 = vunpack.c.h.b16 %v1348
    %v1539 = vunpack.c.l.b16 %v1349
    %v1540 = vunpack.c.h.b16 %v1349
    %v1541 = vunpack.c.l.b16 %v1350
    %v1542 = vunpack.c.h.b16 %v1350
    %v1543 = vunpack.c.l.b16 %v1351
    %v1544 = vunpack.c.h.b16 %v1351
    %v1545 = vunpack.c.l.b16 %v1352
    %v1546 = vunpack.c.h.b16 %v1352
    %v1547 = vunpack.c.l.b16 %v1353
    %v1548 = vunpack.c.h.b16 %v1353
    %v1549 = vunpack.c.l.b16 %v1354
    %v1550 = vunpack.c.h.b16 %v1354
    %v1551 = vunpack.c.l.b16 %v1355
    %v1552 = vunpack.c.h.b16 %v1355
    %v1553 = vunpack.c.l.b16 %v1356
    %v1554 = vunpack.c.h.b16 %v1356
    %v1555 = vunpack.c.l.b16 %v1357
    %v1556 = vunpack.c.h.b16 %v1357
    %v1557 = vunpack.c.l.b16 %v1358
    %v1558 = vunpack.c.h.b16 %v1358
    %v1559 = vunpack.c.l.b16 %v1359
    %v1560 = vunpack.c.h.b16 %v1359
    %v1561 = vunpack.c.l.b16 %v1360
    %v1562 = vunpack.c.h.b16 %v1360
    %v1563 = vunpack.c.l.b16 %v1361
    %v1564 = vunpack.c.h.b16 %v1361
    %v1565 = vunpack.c.l.b16 %v1362
    %v1566 = vunpack.c.h.b16 %v1362
    %v1567 = vunpack.c.l.b16 %v1363
    %v1568 = vunpack.c.h.b16 %v1363
    %v1569 = vpack.c.b16 %v1539, %v1537
    %v1570 = vpack.c.b16 %v1540, %v1538
    %v1571 = vpack.c.b16 %v1543, %v1541
    %v1572 = vpack.c.b16 %v1544, %v1542
    %v1573 = vpack.c.b16 %v1547, %v1545
    %v1574 = vpack.c.b16 %v1548, %v1546
    %v1575 = vpack.c.b16 %v1551, %v1549
    %v1576 = vpack.c.b16 %v1552, %v1550
    %v1577 = vpack.c.b16 %v1555, %v1553
    %v1578 = vpack.c.b16 %v1556, %v1554
    %v1579 = vpack.c.b16 %v1559, %v1557
    %v1580 = vpack.c.b16 %v1560, %v1558
    %v1581 = vpack.c.b16 %v1563, %v1561
    %v1582 = vpack.c.b16 %v1564, %v1562
    %v1583 = vpack.c.b16 %v1567, %v1565
    %v1584 = vpack.c.b16 %v1568, %v1566
    %1601 = vmatpush.bf16.msra.mxu0 %v1583
    %1602 = vmatpush.bf16.msra.mxu0 %v1581
    %1603 = vmatpush.bf16.msra.mxu0 %v1579
    %1604 = vmatpush.bf16.msra.mxu0 %v1577
    %1605 = vmatpush.bf16.msra.mxu0 %v1575
    %1606 = vmatpush.bf16.msra.mxu0 %v1573
    %1607 = vmatpush.bf16.msra.mxu0 %v1571
    %1608 = vmatpush.bf16.msra.mxu0 %v1569
    %1609 = vmatmul.bf16.gmra.mxu0 %v1347
    %v1610 = vpop.f32.mrf.mxu0
    %v1611 = vadd.f32 %v1503, %v1610
    %v1612 = vpop.f32.mrf.mxu0
    %v1613 = vadd.f32 %v1505, %v1612
    %1614 = vdwg.mxu0
    %1615 = vmatpush.bf16.msra.mxu0 %v1584
    %1616 = vmatpush.bf16.msra.mxu0 %v1582
    %1617 = vmatpush.bf16.msra.mxu0 %v1580
    %1618 = vmatpush.bf16.msra.mxu0 %v1578
    %1619 = vmatpush.bf16.msra.mxu0 %v1576
    %1620 = vmatpush.bf16.msra.mxu0 %v1574
    %1621 = vmatpush.bf16.msra.mxu0 %v1572
    %1622 = vmatpush.bf16.msra.mxu0 %v1570
    %1623 = vmatmul.bf16.gmra.mxu0 %v1347
    %v1624 = vpop.f32.mrf.mxu0
    %v1625 = vadd.f32 %v1517, %v1624
    %v1626 = vpop.f32.mrf.mxu0
    %v1627 = vadd.f32 %v1519, %v1626
    %1628 = vdwg.mxu0
    %s1629 = scalar_lea.vmem [#allocation8], 32
    %v1630 = vld [vmem:[%s1629] sm:$0xff]
    %v1631 = vld [vmem:[%s1629 + $0x8] sm:$0x7f]
    %v1633 = vsel %vm1314, %v1630, 0
    %v1636 = vsel %vm1314, %v1631, 0
    %1638 = vmatpush.msra.mxu0 0.0
    %1639 = vmatpush.msra.mxu0 0.0
    %1640 = vmatpush.msra.mxu0 0.0
    %1641 = vmatpush.msra.mxu0 0.0
    %1642 = vmatpush.msra.mxu0 0.0
    %1643 = vmatpush.msra.mxu0 0.0
    %1644 = vmatpush.msra.mxu0 0.0
    %1645 = vmatpush.msra.mxu0 0.0
    %1646 = vmatpush.msra.mxu0 0.0
    %1647 = vmatpush.msra.mxu0 0.0
    %1648 = vmatpush.msra.mxu0 0.0
    %1649 = vmatpush.msra.mxu0 0.0
    %1650 = vmatpush.msra.mxu0 %v1322
    %1651 = vmatpush.msra.mxu0 %v1310
    %1652 = vmatpush.msra.mxu0 %v1309
    %1653 = vmatpush.msra.mxu0 %v1308
    %1654 = vmatmul.f32.gmra.mxu0 %v1633
    %v1655 = vpop.f32.mrf.mxu0
    %v1656 = vadd.f32 0.0, %v1655
    %1657 = vmatmul.f32.gmra.mxu0 %v1636
    %v1658 = vpop.f32.mrf.mxu0
    %v1659 = vadd.f32 0.0, %v1658
    %1660 = vdwg.mxu0
    %v1661 = vpack.c.bf16 %v1659, %v1656
    %v1662 = vld [vmem:[#allocation23 + $0x100] sm:$0xff]
    %v1663 = vld [vmem:[#allocation23 + $0x108] sm:$0xff]
    %v1664 = vld [vmem:[#allocation23 + $0x110] sm:$0xff]
    %v1665 = vld [vmem:[#allocation23 + $0x118] sm:$0xff]
    %v1666 = vld [vmem:[#allocation23 + $0x120] sm:$0xff]
    %v1667 = vld [vmem:[#allocation23 + $0x128] sm:$0xff]
    %v1668 = vld [vmem:[#allocation23 + $0x130] sm:$0xff]
    %v1669 = vld [vmem:[#allocation23 + $0x138] sm:$0xff]
    %v1670 = vld [vmem:[#allocation23 + $0x140] sm:$0xff]
    %v1671 = vld [vmem:[#allocation23 + $0x148] sm:$0xff]
    %v1672 = vld [vmem:[#allocation23 + $0x150] sm:$0xff]
    %v1673 = vld [vmem:[#allocation23 + $0x158] sm:$0xff]
    %v1674 = vld [vmem:[#allocation23 + $0x160] sm:$0xff]
    %v1675 = vld [vmem:[#allocation23 + $0x168] sm:$0xff]
    %v1676 = vld [vmem:[#allocation23 + $0x170] sm:$0xff]
    %v1677 = vld [vmem:[#allocation23 + $0x178] sm:$0xff]
    %v1694 = vunpack.c.l.b16 %v1662
    %v1695 = vunpack.c.h.b16 %v1662
    %v1696 = vunpack.c.l.b16 %v1663
    %v1697 = vunpack.c.h.b16 %v1663
    %v1698 = vunpack.c.l.b16 %v1664
    %v1699 = vunpack.c.h.b16 %v1664
    %v1700 = vunpack.c.l.b16 %v1665
    %v1701 = vunpack.c.h.b16 %v1665
    %v1702 = vunpack.c.l.b16 %v1666
    %v1703 = vunpack.c.h.b16 %v1666
    %v1704 = vunpack.c.l.b16 %v1667
    %v1705 = vunpack.c.h.b16 %v1667
    %v1706 = vunpack.c.l.b16 %v1668
    %v1707 = vunpack.c.h.b16 %v1668
    %v1708 = vunpack.c.l.b16 %v1669
    %v1709 = vunpack.c.h.b16 %v1669
    %v1710 = vunpack.c.l.b16 %v1670
    %v1711 = vunpack.c.h.b16 %v1670
    %v1712 = vunpack.c.l.b16 %v1671
    %v1713 = vunpack.c.h.b16 %v1671
    %v1714 = vunpack.c.l.b16 %v1672
    %v1715 = vunpack.c.h.b16 %v1672
    %v1716 = vunpack.c.l.b16 %v1673
    %v1717 = vunpack.c.h.b16 %v1673
    %v1718 = vunpack.c.l.b16 %v1674
    %v1719 = vunpack.c.h.b16 %v1674
    %v1720 = vunpack.c.l.b16 %v1675
    %v1721 = vunpack.c.h.b16 %v1675
    %v1722 = vunpack.c.l.b16 %v1676
    %v1723 = vunpack.c.h.b16 %v1676
    %v1724 = vunpack.c.l.b16 %v1677
    %v1725 = vunpack.c.h.b16 %v1677
    %v1726 = vpack.c.b16 %v1696, %v1694
    %v1727 = vpack.c.b16 %v1697, %v1695
    %v1728 = vpack.c.b16 %v1700, %v1698
    %v1729 = vpack.c.b16 %v1701, %v1699
    %v1730 = vpack.c.b16 %v1704, %v1702
    %v1731 = vpack.c.b16 %v1705, %v1703
    %v1732 = vpack.c.b16 %v1708, %v1706
    %v1733 = vpack.c.b16 %v1709, %v1707
    %v1734 = vpack.c.b16 %v1712, %v1710
    %v1735 = vpack.c.b16 %v1713, %v1711
    %v1736 = vpack.c.b16 %v1716, %v1714
    %v1737 = vpack.c.b16 %v1717, %v1715
    %v1738 = vpack.c.b16 %v1720, %v1718
    %v1739 = vpack.c.b16 %v1721, %v1719
    %v1740 = vpack.c.b16 %v1724, %v1722
    %v1741 = vpack.c.b16 %v1725, %v1723
    %1758 = vmatpush.bf16.msra.mxu0 %v1740
    %1759 = vmatpush.bf16.msra.mxu0 %v1738
    %1760 = vmatpush.bf16.msra.mxu0 %v1736
    %1761 = vmatpush.bf16.msra.mxu0 %v1734
    %1762 = vmatpush.bf16.msra.mxu0 %v1732
    %1763 = vmatpush.bf16.msra.mxu0 %v1730
    %1764 = vmatpush.bf16.msra.mxu0 %v1728
    %1765 = vmatpush.bf16.msra.mxu0 %v1726
    %1766 = vmatmul.bf16.gmra.mxu0 %v1661
    %v1767 = vpop.f32.mrf.mxu0
    %v1768 = vadd.f32 0.0, %v1767
    %v1769 = vpop.f32.mrf.mxu0
    %v1770 = vadd.f32 0.0, %v1769
    %1771 = vdwg.mxu0
    %1772 = vmatpush.bf16.msra.mxu0 %v1741
    %1773 = vmatpush.bf16.msra.mxu0 %v1739
    %1774 = vmatpush.bf16.msra.mxu0 %v1737
    %1775 = vmatpush.bf16.msra.mxu0 %v1735
    %1776 = vmatpush.bf16.msra.mxu0 %v1733
    %1777 = vmatpush.bf16.msra.mxu0 %v1731
    %1778 = vmatpush.bf16.msra.mxu0 %v1729
    %1779 = vmatpush.bf16.msra.mxu0 %v1727
    %1780 = vmatmul.bf16.gmra.mxu0 %v1661
    %v1781 = vpop.f32.mrf.mxu0
    %v1782 = vadd.f32 0.0, %v1781
    %v1783 = vpop.f32.mrf.mxu0
    %v1784 = vadd.f32 0.0, %v1783
    %1785 = vdwg.mxu0
    %v1786 = vadd.f32 %v1611, %v1768
    %v1787 = vadd.f32 %v1625, %v1782
    %v1788 = vadd.f32 %v1613, %v1770
    %v1789 = vadd.f32 %v1627, %v1784
    %v1790 = vld [vmem:[#allocation24] sm:$0x3]
    %v1792 = vperm.slane %v1790, 0
    %v1793 = vperm.slane %v1790, 1
    %v1796 = vadd.f32 %v1786, %v1792
    %v1797 = vadd.f32 %v1787, %v1793
    %v1798 = vadd.f32 %v1788, %v1792
    %v1799 = vadd.f32 %v1789, %v1793
    %vm1800 = vcmask 1046528
    %v1801 = vsel %vm1800, %v1798, 0.0
    %v1802 = vadd.f32 %v1796, %v1801
    %v1803 = vrot.slane %v1802, 4
    %v1804 = vadd.f32 %v1802, %v1803
    %v1805 = vrot.slane %v1804, 2
    %v1806 = vadd.f32 %v1804, %v1805
    %v1807 = vrot.slane %v1806, 1
    %v1808 = vadd.f32 %v1806, %v1807
    %v1809 = vsel %vm1800, %v1799, 0.0
    %v1810 = vadd.f32 %v1797, %v1809
    %v1811 = vrot.slane %v1810, 4
    %v1812 = vadd.f32 %v1810, %v1811
    %v1813 = vrot.slane %v1812, 2
    %v1814 = vadd.f32 %v1812, %v1813
    %v1815 = vrot.slane %v1814, 1
    %v1816 = vadd.f32 %v1814, %v1815
    %v1817 = vrcp.pop 15.0
    %v1818 = vmul.f32 15.0, %v1817
    %v1819 = vsub.f32 1.0, %v1818
    %v1820 = vmul.f32 %v1817, %v1819
    %v1821 = vadd.f32 %v1817, %v1820
    %vm1822 = vweird.f32 %v1817
    %v1823 = vsel %vm1822, %v1817, %v1821
    %v1824 = vmul.f32 %v1808, %v1823
    %v1825 = vmul.f32 %v1816, %v1823
    %v1826 = vsub.f32 %v1796, %v1824
    %v1827 = vsub.f32 %v1797, %v1825
    %v1828 = vsub.f32 %v1798, %v1824
    %v1829 = vsub.f32 %v1799, %v1825
    %v1830 = vmul.f32 %v1826, %v1826
    %v1831 = vmul.f32 %v1827, %v1827
    %v1832 = vmul.f32 %v1828, %v1828
    %v1833 = vmul.f32 %v1829, %v1829
    %v1834 = vsel %vm1800, %v1832, 0.0
    %v1835 = vadd.f32 %v1830, %v1834
    %v1836 = vrot.slane %v1835, 4
    %v1837 = vadd.f32 %v1835, %v1836
    %v1838 = vrot.slane %v1837, 2
    %v1839 = vadd.f32 %v1837, %v1838
    %v1840 = vrot.slane %v1839, 1
    %v1841 = vadd.f32 %v1839, %v1840
    %v1842 = vsel %vm1800, %v1833, 0.0
    %v1843 = vadd.f32 %v1831, %v1842
    %v1844 = vrot.slane %v1843, 4
    %v1845 = vadd.f32 %v1843, %v1844
    %v1846 = vrot.slane %v1845, 2
    %v1847 = vadd.f32 %v1845, %v1846
    %v1848 = vrot.slane %v1847, 1
    %v1849 = vadd.f32 %v1847, %v1848
    %v1850 = vmul.f32 %v1841, %v1823
    %v1851 = vmul.f32 %v1849, %v1823
    %v1852 = vadd.f32 %v1850, 1e-05
    %v1853 = vadd.f32 %v1851, 1e-05
    %v1854 = vrsqrt.pop %v1852
    %v1855 = vmul.f32 %v1854, %v1852
    %v1856 = vmul.f32 %v1855, %v1854
    %v1857 = vmul.f32 0.5, %v1856
    %v1858 = vsub.f32 1.5, %v1857
    %v1859 = vmul.f32 %v1854, %v1858
    %vm1860 = vweird.f32 %v1852
    %vm1861 = vweird.f32 %v1854
    %vm1862 = vmor %vm1860, %vm1861
    %v1863 = vsel %vm1862, %v1854, %v1859
    %v1864 = vrsqrt.pop %v1853
    %v1865 = vmul.f32 %v1864, %v1853
    %v1866 = vmul.f32 %v1865, %v1864
    %v1867 = vmul.f32 0.5, %v1866
    %v1868 = vsub.f32 1.5, %v1867
    %v1869 = vmul.f32 %v1864, %v1868
    %vm1870 = vweird.f32 %v1853
    %vm1871 = vweird.f32 %v1864
    %vm1872 = vmor %vm1870, %vm1871
    %v1873 = vsel %vm1872, %v1864, %v1869
    %v1874 = vmul.f32 %v1826, %v1863
    %v1875 = vmul.f32 %v1827, %v1873
    %v1876 = vmul.f32 %v1828, %v1863
    %v1877 = vmul.f32 %v1829, %v1873
    %v1878 = vld [vmem:[#allocation26] sm:$0x3]
    %v1880 = vperm.slane %v1878, 0
    %v1881 = vperm.slane %v1878, 1
    %v1884 = vmul.f32 %v1874, %v1880
    %v1885 = vmul.f32 %v1875, %v1881
    %v1886 = vmul.f32 %v1876, %v1880
    %v1887 = vmul.f32 %v1877, %v1881
    %v1888 = vld [vmem:[#allocation27] sm:$0x3]
    %v1890 = vperm.slane %v1888, 0
    %v1891 = vperm.slane %v1888, 1
    %v1894 = vadd.f32 %v1884, %v1890
    %v1895 = vadd.f32 %v1885, %v1891
    %v1896 = vadd.f32 %v1886, %v1890
    %v1897 = vadd.f32 %v1887, %v1891
    %v1898 = vtanh.pop %v1894
    %v1899 = vtanh.pop %v1895
    %v1900 = vtanh.pop %v1896
    %v1901 = vtanh.pop %v1897
    %v1902 = vld [vmem:[#allocation9] sm:$0x7]
    %vm1903 = vcmask 121856
    %v1905 = vsel %vm1903, %v1902, 0
    %v1908 = vsel %vm1800, %v1900, 0
    %v1911 = vsel %vm1800, %v1901, 0
    %1913 = vmatpush.msra.mxu0 0.0
    %1914 = vmatpush.msra.mxu0 0.0
    %1915 = vmatpush.msra.mxu0 0.0
    %1916 = vmatpush.msra.mxu0 0.0
    %1917 = vmatpush.msra.mxu0 0.0
    %1918 = vmatpush.msra.mxu0 0.0
    %1919 = vmatpush.msra.mxu0 0.0
    %1920 = vmatpush.msra.mxu0 0.0
    %1921 = vmatpush.msra.mxu0 0.0
    %1922 = vmatpush.msra.mxu0 0.0
    %1923 = vmatpush.msra.mxu0 0.0
    %1924 = vmatpush.msra.mxu0 0.0
    %1925 = vmatpush.msra.mxu0 0.0
    %1926 = vmatpush.msra.mxu0 0.0
    %1927 = vmatpush.msra.mxu0 %v1908
    %1928 = vmatpush.msra.mxu0 %v1898
    %1929 = vmatmul.f32.gmra.mxu0 %v1905
    %v1930 = vpop.f32.mrf.mxu0
    %v1931 = vadd.f32 0.0, %v1930
    %1932 = vdwg.mxu0
    %1933 = vmatpush.msra.mxu0 0.0
    %1934 = vmatpush.msra.mxu0 0.0
    %1935 = vmatpush.msra.mxu0 0.0
    %1936 = vmatpush.msra.mxu0 0.0
    %1937 = vmatpush.msra.mxu0 0.0
    %1938 = vmatpush.msra.mxu0 0.0
    %1939 = vmatpush.msra.mxu0 0.0
    %1940 = vmatpush.msra.mxu0 0.0
    %1941 = vmatpush.msra.mxu0 0.0
    %1942 = vmatpush.msra.mxu0 0.0
    %1943 = vmatpush.msra.mxu0 0.0
    %1944 = vmatpush.msra.mxu0 0.0
    %1945 = vmatpush.msra.mxu0 0.0
    %1946 = vmatpush.msra.mxu0 0.0
    %1947 = vmatpush.msra.mxu0 %v1911
    %1948 = vmatpush.msra.mxu0 %v1899
    %1949 = vmatmul.f32.gmra.mxu0 %v1905
    %v1950 = vpop.f32.mrf.mxu0
    %v1951 = vadd.f32 0.0, %v1950
    %1952 = vdwg.mxu0
    %v1953 = vpack.c.bf16 %v1931, %v1931
    %v1954 = vpack.c.bf16 %v1951, %v1951
    %v1955 = vld [vmem:[#allocation29] sm:$0xff]
    %v1956 = vld [vmem:[#allocation29 + $0x8] sm:$0xff]
    %v1957 = vld [vmem:[#allocation29 + $0x10] sm:$0xff]
    %v1958 = vld [vmem:[#allocation29 + $0x18] sm:$0xff]
    %v1959 = vld [vmem:[#allocation29 + $0x20] sm:$0xff]
    %v1960 = vld [vmem:[#allocation29 + $0x28] sm:$0xff]
    %v1961 = vld [vmem:[#allocation29 + $0x30] sm:$0xff]
    %v1962 = vld [vmem:[#allocation29 + $0x38] sm:$0xff]
    %v1963 = vld [vmem:[#allocation29 + $0x40] sm:$0xff]
    %v1964 = vld [vmem:[#allocation29 + $0x48] sm:$0xff]
    %v1965 = vld [vmem:[#allocation29 + $0x50] sm:$0xff]
    %v1966 = vld [vmem:[#allocation29 + $0x58] sm:$0xff]
    %v1967 = vld [vmem:[#allocation29 + $0x60] sm:$0xff]
    %v1968 = vld [vmem:[#allocation29 + $0x68] sm:$0xff]
    %v1969 = vld [vmem:[#allocation29 + $0x70] sm:$0xff]
    %v1970 = vld [vmem:[#allocation29 + $0x78] sm:$0xff]
    %v1971 = vld [vmem:[#allocation29 + $0x80] sm:$0xff]
    %v1972 = vld [vmem:[#allocation29 + $0x88] sm:$0xff]
    %v1973 = vld [vmem:[#allocation29 + $0x90] sm:$0xff]
    %v1974 = vld [vmem:[#allocation29 + $0x98] sm:$0xff]
    %v1975 = vld [vmem:[#allocation29 + $0xa0] sm:$0xff]
    %v1976 = vld [vmem:[#allocation29 + $0xa8] sm:$0xff]
    %v1977 = vld [vmem:[#allocation29 + $0xb0] sm:$0xff]
    %v1978 = vld [vmem:[#allocation29 + $0xb8] sm:$0xff]
    %v1979 = vld [vmem:[#allocation29 + $0xc0] sm:$0xff]
    %v1980 = vld [vmem:[#allocation29 + $0xc8] sm:$0xff]
    %v1981 = vld [vmem:[#allocation29 + $0xd0] sm:$0xff]
    %v1982 = vld [vmem:[#allocation29 + $0xd8] sm:$0xff]
    %v1983 = vld [vmem:[#allocation29 + $0xe0] sm:$0xff]
    %v1984 = vld [vmem:[#allocation29 + $0xe8] sm:$0xff]
    %v1985 = vld [vmem:[#allocation29 + $0xf0] sm:$0xff]
    %v1986 = vld [vmem:[#allocation29 + $0xf8] sm:$0xff]
    %v1987 = vld [vmem:[#allocation29 + $0x100] sm:$0xff]
    %v1988 = vld [vmem:[#allocation29 + $0x108] sm:$0xff]
    %v1989 = vld [vmem:[#allocation29 + $0x110] sm:$0xff]
    %v1990 = vld [vmem:[#allocation29 + $0x118] sm:$0xff]
    %v1991 = vld [vmem:[#allocation29 + $0x120] sm:$0xff]
    %v1992 = vld [vmem:[#allocation29 + $0x128] sm:$0xff]
    %v1993 = vld [vmem:[#allocation29 + $0x130] sm:$0xff]
    %v1994 = vld [vmem:[#allocation29 + $0x138] sm:$0xff]
    %v1995 = vld [vmem:[#allocation29 + $0x140] sm:$0xff]
    %v1996 = vld [vmem:[#allocation29 + $0x148] sm:$0xff]
    %v1997 = vld [vmem:[#allocation29 + $0x150] sm:$0xff]
    %v1998 = vld [vmem:[#allocation29 + $0x158] sm:$0xff]
    %v1999 = vld [vmem:[#allocation29 + $0x160] sm:$0xff]
    %v2000 = vld [vmem:[#allocation29 + $0x168] sm:$0xff]
    %v2001 = vld [vmem:[#allocation29 + $0x170] sm:$0xff]
    %v2002 = vld [vmem:[#allocation29 + $0x178] sm:$0xff]
    %v2003 = vld [vmem:[#allocation29 + $0x180] sm:$0xff]
    %v2004 = vld [vmem:[#allocation29 + $0x188] sm:$0xff]
    %v2005 = vld [vmem:[#allocation29 + $0x190] sm:$0xff]
    %v2006 = vld [vmem:[#allocation29 + $0x198] sm:$0xff]
    %v2007 = vld [vmem:[#allocation29 + $0x1a0] sm:$0xff]
    %v2008 = vld [vmem:[#allocation29 + $0x1a8] sm:$0xff]
    %v2009 = vld [vmem:[#allocation29 + $0x1b0] sm:$0xff]
    %v2010 = vld [vmem:[#allocation29 + $0x1b8] sm:$0xff]
    %v2011 = vld [vmem:[#allocation29 + $0x1c0] sm:$0xff]
    %v2012 = vld [vmem:[#allocation29 + $0x1c8] sm:$0xff]
    %v2013 = vld [vmem:[#allocation29 + $0x1d0] sm:$0xff]
    %v2014 = vld [vmem:[#allocation29 + $0x1d8] sm:$0xff]
    %v2015 = vld [vmem:[#allocation29 + $0x1e0] sm:$0xff]
    %v2016 = vld [vmem:[#allocation29 + $0x1e8] sm:$0xff]
    %v2017 = vld [vmem:[#allocation29 + $0x1f0] sm:$0xff]
    %v2018 = vld [vmem:[#allocation29 + $0x1f8] sm:$0xff]
    %s2019 = scalar_lea.vmem [#allocation9], 4
    %v2020 = vld [vmem:[%s2019] sm:$0x7]
    %v2022 = vsel %vm1903, %v2020, 0
    %2024 = vmatpush.msra.mxu0 0.0
    %2025 = vmatpush.msra.mxu0 0.0
    %2026 = vmatpush.msra.mxu0 0.0
    %2027 = vmatpush.msra.mxu0 0.0
    %2028 = vmatpush.msra.mxu0 0.0
    %2029 = vmatpush.msra.mxu0 0.0
    %2030 = vmatpush.msra.mxu0 0.0
    %2031 = vmatpush.msra.mxu0 0.0
    %2032 = vmatpush.msra.mxu0 0.0
    %2033 = vmatpush.msra.mxu0 0.0
    %2034 = vmatpush.msra.mxu0 0.0
    %2035 = vmatpush.msra.mxu0 0.0
    %2036 = vmatpush.msra.mxu0 0.0
    %2037 = vmatpush.msra.mxu0 0.0
    %2038 = vmatpush.msra.mxu0 %v1908
    %2039 = vmatpush.msra.mxu0 %v1898
    %2040 = vmatmul.f32.gmra.mxu0 %v2022
    %v2041 = vpop.f32.mrf.mxu0
    %v2042 = vadd.f32 0.0, %v2041
    %2043 = vdwg.mxu0
    %2044 = vmatpush.msra.mxu0 0.0
    %2045 = vmatpush.msra.mxu0 0.0
    %2046 = vmatpush.msra.mxu0 0.0
    %2047 = vmatpush.msra.mxu0 0.0
    %2048 = vmatpush.msra.mxu0 0.0
    %2049 = vmatpush.msra.mxu0 0.0
    %2050 = vmatpush.msra.mxu0 0.0
    %2051 = vmatpush.msra.mxu0 0.0
    %2052 = vmatpush.msra.mxu0 0.0
    %2053 = vmatpush.msra.mxu0 0.0
    %2054 = vmatpush.msra.mxu0 0.0
    %2055 = vmatpush.msra.mxu0 0.0
    %2056 = vmatpush.msra.mxu0 0.0
    %2057 = vmatpush.msra.mxu0 0.0
    %2058 = vmatpush.msra.mxu0 %v1911
    %2059 = vmatpush.msra.mxu0 %v1899
    %2060 = vmatmul.f32.gmra.mxu0 %v2022
    %v2061 = vpop.f32.mrf.mxu0
    %v2062 = vadd.f32 0.0, %v2061
    %2063 = vdwg.mxu0
    %v2064 = vpack.c.bf16 %v2042, %v2042
    %v2065 = vpack.c.bf16 %v2062, %v2062
    %v2066 = vld [vmem:[#allocation29 + $0x200] sm:$0xff]
    %v2067 = vld [vmem:[#allocation29 + $0x208] sm:$0xff]
    %v2068 = vld [vmem:[#allocation29 + $0x210] sm:$0xff]
    %v2069 = vld [vmem:[#allocation29 + $0x218] sm:$0xff]
    %v2070 = vld [vmem:[#allocation29 + $0x220] sm:$0xff]
    %v2071 = vld [vmem:[#allocation29 + $0x228] sm:$0xff]
    %v2072 = vld [vmem:[#allocation29 + $0x230] sm:$0xff]
    %v2073 = vld [vmem:[#allocation29 + $0x238] sm:$0xff]
    %v2074 = vld [vmem:[#allocation29 + $0x240] sm:$0xff]
    %v2075 = vld [vmem:[#allocation29 + $0x248] sm:$0xff]
    %v2076 = vld [vmem:[#allocation29 + $0x250] sm:$0xff]
    %v2077 = vld [vmem:[#allocation29 + $0x258] sm:$0xff]
    %v2078 = vld [vmem:[#allocation29 + $0x260] sm:$0xff]
    %v2079 = vld [vmem:[#allocation29 + $0x268] sm:$0xff]
    %v2080 = vld [vmem:[#allocation29 + $0x270] sm:$0xff]
    %v2081 = vld [vmem:[#allocation29 + $0x278] sm:$0xff]
    %v2082 = vld [vmem:[#allocation29 + $0x280] sm:$0xff]
    %v2083 = vld [vmem:[#allocation29 + $0x288] sm:$0xff]
    %v2084 = vld [vmem:[#allocation29 + $0x290] sm:$0xff]
    %v2085 = vld [vmem:[#allocation29 + $0x298] sm:$0xff]
    %v2086 = vld [vmem:[#allocation29 + $0x2a0] sm:$0xff]
    %v2087 = vld [vmem:[#allocation29 + $0x2a8] sm:$0xff]
    %v2088 = vld [vmem:[#allocation29 + $0x2b0] sm:$0xff]
    %v2089 = vld [vmem:[#allocation29 + $0x2b8] sm:$0xff]
    %v2090 = vld [vmem:[#allocation29 + $0x2c0] sm:$0xff]
    %v2091 = vld [vmem:[#allocation29 + $0x2c8] sm:$0xff]
    %v2092 = vld [vmem:[#allocation29 + $0x2d0] sm:$0xff]
    %v2093 = vld [vmem:[#allocation29 + $0x2d8] sm:$0xff]
    %v2094 = vld [vmem:[#allocation29 + $0x2e0] sm:$0xff]
    %v2095 = vld [vmem:[#allocation29 + $0x2e8] sm:$0xff]
    %v2096 = vld [vmem:[#allocation29 + $0x2f0] sm:$0xff]
    %v2097 = vld [vmem:[#allocation29 + $0x2f8] sm:$0xff]
    %v2098 = vld [vmem:[#allocation29 + $0x300] sm:$0xff]
    %v2099 = vld [vmem:[#allocation29 + $0x308] sm:$0xff]
    %v2100 = vld [vmem:[#allocation29 + $0x310] sm:$0xff]
    %v2101 = vld [vmem:[#allocation29 + $0x318] sm:$0xff]
    %v2102 = vld [vmem:[#allocation29 + $0x320] sm:$0xff]
    %v2103 = vld [vmem:[#allocation29 + $0x328] sm:$0xff]
    %v2104 = vld [vmem:[#allocation29 + $0x330] sm:$0xff]
    %v2105 = vld [vmem:[#allocation29 + $0x338] sm:$0xff]
    %v2106 = vld [vmem:[#allocation29 + $0x340] sm:$0xff]
    %v2107 = vld [vmem:[#allocation29 + $0x348] sm:$0xff]
    %v2108 = vld [vmem:[#allocation29 + $0x350] sm:$0xff]
    %v2109 = vld [vmem:[#allocation29 + $0x358] sm:$0xff]
    %v2110 = vld [vmem:[#allocation29 + $0x360] sm:$0xff]
    %v2111 = vld [vmem:[#allocation29 + $0x368] sm:$0xff]
    %v2112 = vld [vmem:[#allocation29 + $0x370] sm:$0xff]
    %v2113 = vld [vmem:[#allocation29 + $0x378] sm:$0xff]
    %v2114 = vld [vmem:[#allocation29 + $0x380] sm:$0xff]
    %v2115 = vld [vmem:[#allocation29 + $0x388] sm:$0xff]
    %v2116 = vld [vmem:[#allocation29 + $0x390] sm:$0xff]
    %v2117 = vld [vmem:[#allocation29 + $0x398] sm:$0xff]
    %v2118 = vld [vmem:[#allocation29 + $0x3a0] sm:$0xff]
    %v2119 = vld [vmem:[#allocation29 + $0x3a8] sm:$0xff]
    %v2120 = vld [vmem:[#allocation29 + $0x3b0] sm:$0xff]
    %v2121 = vld [vmem:[#allocation29 + $0x3b8] sm:$0xff]
    %v2122 = vld [vmem:[#allocation29 + $0x3c0] sm:$0xff]
    %v2123 = vld [vmem:[#allocation29 + $0x3c8] sm:$0xff]
    %v2124 = vld [vmem:[#allocation29 + $0x3d0] sm:$0xff]
    %v2125 = vld [vmem:[#allocation29 + $0x3d8] sm:$0xff]
    %v2126 = vld [vmem:[#allocation29 + $0x3e0] sm:$0xff]
    %v2127 = vld [vmem:[#allocation29 + $0x3e8] sm:$0xff]
    %v2128 = vld [vmem:[#allocation29 + $0x3f0] sm:$0xff]
    %v2129 = vld [vmem:[#allocation29 + $0x3f8] sm:$0xff]
    %v2194 = vunpack.c.l.b16 %v2066
    %v2195 = vunpack.c.h.b16 %v2066
    %v2196 = vunpack.c.l.b16 %v2067
    %v2197 = vunpack.c.h.b16 %v2067
    %v2198 = vunpack.c.l.b16 %v2068
    %v2199 = vunpack.c.h.b16 %v2068
    %v2200 = vunpack.c.l.b16 %v2069
    %v2201 = vunpack.c.h.b16 %v2069
    %v2202 = vunpack.c.l.b16 %v2070
    %v2203 = vunpack.c.h.b16 %v2070
    %v2204 = vunpack.c.l.b16 %v2071
    %v2205 = vunpack.c.h.b16 %v2071
    %v2206 = vunpack.c.l.b16 %v2072
    %v2207 = vunpack.c.h.b16 %v2072
    %v2208 = vunpack.c.l.b16 %v2073
    %v2209 = vunpack.c.h.b16 %v2073
    %v2210 = vunpack.c.l.b16 %v2074
    %v2211 = vunpack.c.h.b16 %v2074
    %v2212 = vunpack.c.l.b16 %v2075
    %v2213 = vunpack.c.h.b16 %v2075
    %v2214 = vunpack.c.l.b16 %v2076
    %v2215 = vunpack.c.h.b16 %v2076
    %v2216 = vunpack.c.l.b16 %v2077
    %v2217 = vunpack.c.h.b16 %v2077
    %v2218 = vunpack.c.l.b16 %v2078
    %v2219 = vunpack.c.h.b16 %v2078
    %v2220 = vunpack.c.l.b16 %v2079
    %v2221 = vunpack.c.h.b16 %v2079
    %v2222 = vunpack.c.l.b16 %v2080
    %v2223 = vunpack.c.h.b16 %v2080
    %v2224 = vunpack.c.l.b16 %v2081
    %v2225 = vunpack.c.h.b16 %v2081
    %v2226 = vunpack.c.l.b16 %v2082
    %v2227 = vunpack.c.h.b16 %v2082
    %v2228 = vunpack.c.l.b16 %v2083
    %v2229 = vunpack.c.h.b16 %v2083
    %v2230 = vunpack.c.l.b16 %v2084
    %v2231 = vunpack.c.h.b16 %v2084
    %v2232 = vunpack.c.l.b16 %v2085
    %v2233 = vunpack.c.h.b16 %v2085
    %v2234 = vunpack.c.l.b16 %v2086
    %v2235 = vunpack.c.h.b16 %v2086
    %v2236 = vunpack.c.l.b16 %v2087
    %v2237 = vunpack.c.h.b16 %v2087
    %v2238 = vunpack.c.l.b16 %v2088
    %v2239 = vunpack.c.h.b16 %v2088
    %v2240 = vunpack.c.l.b16 %v2089
    %v2241 = vunpack.c.h.b16 %v2089
    %v2242 = vunpack.c.l.b16 %v2090
    %v2243 = vunpack.c.h.b16 %v2090
    %v2244 = vunpack.c.l.b16 %v2091
    %v2245 = vunpack.c.h.b16 %v2091
    %v2246 = vunpack.c.l.b16 %v2092
    %v2247 = vunpack.c.h.b16 %v2092
    %v2248 = vunpack.c.l.b16 %v2093
    %v2249 = vunpack.c.h.b16 %v2093
    %v2250 = vunpack.c.l.b16 %v2094
    %v2251 = vunpack.c.h.b16 %v2094
    %v2252 = vunpack.c.l.b16 %v2095
    %v2253 = vunpack.c.h.b16 %v2095
    %v2254 = vunpack.c.l.b16 %v2096
    %v2255 = vunpack.c.h.b16 %v2096
    %v2256 = vunpack.c.l.b16 %v2097
    %v2257 = vunpack.c.h.b16 %v2097
    %v2258 = vunpack.c.l.b16 %v2098
    %v2259 = vunpack.c.h.b16 %v2098
    %v2260 = vunpack.c.l.b16 %v2099
    %v2261 = vunpack.c.h.b16 %v2099
    %v2262 = vunpack.c.l.b16 %v2100
    %v2263 = vunpack.c.h.b16 %v2100
    %v2264 = vunpack.c.l.b16 %v2101
    %v2265 = vunpack.c.h.b16 %v2101
    %v2266 = vunpack.c.l.b16 %v2102
    %v2267 = vunpack.c.h.b16 %v2102
    %v2268 = vunpack.c.l.b16 %v2103
    %v2269 = vunpack.c.h.b16 %v2103
    %v2270 = vunpack.c.l.b16 %v2104
    %v2271 = vunpack.c.h.b16 %v2104
    %v2272 = vunpack.c.l.b16 %v2105
    %v2273 = vunpack.c.h.b16 %v2105
    %v2274 = vunpack.c.l.b16 %v2106
    %v2275 = vunpack.c.h.b16 %v2106
    %v2276 = vunpack.c.l.b16 %v2107
    %v2277 = vunpack.c.h.b16 %v2107
    %v2278 = vunpack.c.l.b16 %v2108
    %v2279 = vunpack.c.h.b16 %v2108
    %v2280 = vunpack.c.l.b16 %v2109
    %v2281 = vunpack.c.h.b16 %v2109
    %v2282 = vunpack.c.l.b16 %v2110
    %v2283 = vunpack.c.h.b16 %v2110
    %v2284 = vunpack.c.l.b16 %v2111
    %v2285 = vunpack.c.h.b16 %v2111
    %v2286 = vunpack.c.l.b16 %v2112
    %v2287 = vunpack.c.h.b16 %v2112
    %v2288 = vunpack.c.l.b16 %v2113
    %v2289 = vunpack.c.h.b16 %v2113
    %v2290 = vunpack.c.l.b16 %v2114
    %v2291 = vunpack.c.h.b16 %v2114
    %v2292 = vunpack.c.l.b16 %v2115
    %v2293 = vunpack.c.h.b16 %v2115
    %v2294 = vunpack.c.l.b16 %v2116
    %v2295 = vunpack.c.h.b16 %v2116
    %v2296 = vunpack.c.l.b16 %v2117
    %v2297 = vunpack.c.h.b16 %v2117
    %v2298 = vunpack.c.l.b16 %v2118
    %v2299 = vunpack.c.h.b16 %v2118
    %v2300 = vunpack.c.l.b16 %v2119
    %v2301 = vunpack.c.h.b16 %v2119
    %v2302 = vunpack.c.l.b16 %v2120
    %v2303 = vunpack.c.h.b16 %v2120
    %v2304 = vunpack.c.l.b16 %v2121
    %v2305 = vunpack.c.h.b16 %v2121
    %v2306 = vunpack.c.l.b16 %v2122
    %v2307 = vunpack.c.h.b16 %v2122
    %v2308 = vunpack.c.l.b16 %v2123
    %v2309 = vunpack.c.h.b16 %v2123
    %v2310 = vunpack.c.l.b16 %v2124
    %v2311 = vunpack.c.h.b16 %v2124
    %v2312 = vunpack.c.l.b16 %v2125
    %v2313 = vunpack.c.h.b16 %v2125
    %v2314 = vunpack.c.l.b16 %v2126
    %v2315 = vunpack.c.h.b16 %v2126
    %v2316 = vunpack.c.l.b16 %v2127
    %v2317 = vunpack.c.h.b16 %v2127
    %v2318 = vunpack.c.l.b16 %v2128
    %v2319 = vunpack.c.h.b16 %v2128
    %v2320 = vunpack.c.l.b16 %v2129
    %v2321 = vunpack.c.h.b16 %v2129
    %v2322 = vpack.c.b16 %v2198, %v2194
    %v2323 = vpack.c.b16 %v2199, %v2195
    %v2324 = vpack.c.b16 %v2200, %v2196
    %v2325 = vpack.c.b16 %v2201, %v2197
    %v2326 = vpack.c.b16 %v2206, %v2202
    %v2327 = vpack.c.b16 %v2207, %v2203
    %v2328 = vpack.c.b16 %v2208, %v2204
    %v2329 = vpack.c.b16 %v2209, %v2205
    %v2330 = vpack.c.b16 %v2214, %v2210
    %v2331 = vpack.c.b16 %v2215, %v2211
    %v2332 = vpack.c.b16 %v2216, %v2212
    %v2333 = vpack.c.b16 %v2217, %v2213
    %v2334 = vpack.c.b16 %v2222, %v2218
    %v2335 = vpack.c.b16 %v2223, %v2219
    %v2336 = vpack.c.b16 %v2224, %v2220
    %v2337 = vpack.c.b16 %v2225, %v2221
    %v2338 = vpack.c.b16 %v2230, %v2226
    %v2339 = vpack.c.b16 %v2231, %v2227
    %v2340 = vpack.c.b16 %v2232, %v2228
    %v2341 = vpack.c.b16 %v2233, %v2229
    %v2342 = vpack.c.b16 %v2238, %v2234
    %v2343 = vpack.c.b16 %v2239, %v2235
    %v2344 = vpack.c.b16 %v2240, %v2236
    %v2345 = vpack.c.b16 %v2241, %v2237
    %v2346 = vpack.c.b16 %v2246, %v2242
    %v2347 = vpack.c.b16 %v2247, %v2243
    %v2348 = vpack.c.b16 %v2248, %v2244
    %v2349 = vpack.c.b16 %v2249, %v2245
    %v2350 = vpack.c.b16 %v2254, %v2250
    %v2351 = vpack.c.b16 %v2255, %v2251
    %v2352 = vpack.c.b16 %v2256, %v2252
    %v2353 = vpack.c.b16 %v2257, %v2253
    %v2354 = vpack.c.b16 %v2262, %v2258
    %v2355 = vpack.c.b16 %v2263, %v2259
    %v2356 = vpack.c.b16 %v2264, %v2260
    %v2357 = vpack.c.b16 %v2265, %v2261
    %v2358 = vpack.c.b16 %v2270, %v2266
    %v2359 = vpack.c.b16 %v2271, %v2267
    %v2360 = vpack.c.b16 %v2272, %v2268
    %v2361 = vpack.c.b16 %v2273, %v2269
    %v2362 = vpack.c.b16 %v2278, %v2274
    %v2363 = vpack.c.b16 %v2279, %v2275
    %v2364 = vpack.c.b16 %v2280, %v2276
    %v2365 = vpack.c.b16 %v2281, %v2277
    %v2366 = vpack.c.b16 %v2286, %v2282
    %v2367 = vpack.c.b16 %v2287, %v2283
    %v2368 = vpack.c.b16 %v2288, %v2284
    %v2369 = vpack.c.b16 %v2289, %v2285
    %v2370 = vpack.c.b16 %v2294, %v2290
    %v2371 = vpack.c.b16 %v2295, %v2291
    %v2372 = vpack.c.b16 %v2296, %v2292
    %v2373 = vpack.c.b16 %v2297, %v2293
    %v2374 = vpack.c.b16 %v2302, %v2298
    %v2375 = vpack.c.b16 %v2303, %v2299
    %v2376 = vpack.c.b16 %v2304, %v2300
    %v2377 = vpack.c.b16 %v2305, %v2301
    %v2378 = vpack.c.b16 %v2310, %v2306
    %v2379 = vpack.c.b16 %v2311, %v2307
    %v2380 = vpack.c.b16 %v2312, %v2308
    %v2381 = vpack.c.b16 %v2313, %v2309
    %v2382 = vpack.c.b16 %v2318, %v2314
    %v2383 = vpack.c.b16 %v2319, %v2315
    %v2384 = vpack.c.b16 %v2320, %v2316
    %v2385 = vpack.c.b16 %v2321, %v2317
    %2450 = vmatpush.bf16.msra.mxu0 %v2350
    %2451 = vmatpush.bf16.msra.mxu0 %v2346
    %2452 = vmatpush.bf16.msra.mxu0 %v2342
    %2453 = vmatpush.bf16.msra.mxu0 %v2338
    %2454 = vmatpush.bf16.msra.mxu0 %v2334
    %2455 = vmatpush.bf16.msra.mxu0 %v2330
    %2456 = vmatpush.bf16.msra.mxu0 %v2326
    %2457 = vmatpush.bf16.msra.mxu0 %v2322
    %2458 = vmatmul.bf16.gmra.mxu0 %v2064
    %v2459 = vpop.f32.mrf.mxu0
    %v2460 = vadd.f32 0.0, %v2459
    %v2461 = vpop.f32.mrf.mxu0
    %2462 = vdwg.mxu0
    %2463 = vmatpush.bf16.msra.mxu0 %v2382
    %2464 = vmatpush.bf16.msra.mxu0 %v2378
    %2465 = vmatpush.bf16.msra.mxu0 %v2374
    %2466 = vmatpush.bf16.msra.mxu0 %v2370
    %2467 = vmatpush.bf16.msra.mxu0 %v2366
    %2468 = vmatpush.bf16.msra.mxu0 %v2362
    %2469 = vmatpush.bf16.msra.mxu0 %v2358
    %2470 = vmatpush.bf16.msra.mxu0 %v2354
    %2471 = vmatmul.bf16.gmra.mxu0 %v2065
    %v2472 = vpop.f32.mrf.mxu0
    %v2473 = vadd.f32 %v2460, %v2472
    %v2474 = vpop.f32.mrf.mxu0
    %2475 = vdwg.mxu0
    %2476 = vmatpush.bf16.msra.mxu0 %v2351
    %2477 = vmatpush.bf16.msra.mxu0 %v2347
    %2478 = vmatpush.bf16.msra.mxu0 %v2343
    %2479 = vmatpush.bf16.msra.mxu0 %v2339
    %2480 = vmatpush.bf16.msra.mxu0 %v2335
    %2481 = vmatpush.bf16.msra.mxu0 %v2331
    %2482 = vmatpush.bf16.msra.mxu0 %v2327
    %2483 = vmatpush.bf16.msra.mxu0 %v2323
    %2484 = vmatmul.bf16.gmra.mxu0 %v2064
    %v2485 = vpop.f32.mrf.mxu0
    %v2486 = vadd.f32 0.0, %v2485
    %v2487 = vpop.f32.mrf.mxu0
    %2488 = vdwg.mxu0
    %2489 = vmatpush.bf16.msra.mxu0 %v2383
    %2490 = vmatpush.bf16.msra.mxu0 %v2379
    %2491 = vmatpush.bf16.msra.mxu0 %v2375
    %2492 = vmatpush.bf16.msra.mxu0 %v2371
    %2493 = vmatpush.bf16.msra.mxu0 %v2367
    %2494 = vmatpush.bf16.msra.mxu0 %v2363
    %2495 = vmatpush.bf16.msra.mxu0 %v2359
    %2496 = vmatpush.bf16.msra.mxu0 %v2355
    %2497 = vmatmul.bf16.gmra.mxu0 %v2065
    %v2498 = vpop.f32.mrf.mxu0
    %v2499 = vadd.f32 %v2486, %v2498
    %v2500 = vpop.f32.mrf.mxu0
    %2501 = vdwg.mxu0
    %2502 = vmatpush.bf16.msra.mxu0 %v2352
    %2503 = vmatpush.bf16.msra.mxu0 %v2348
    %2504 = vmatpush.bf16.msra.mxu0 %v2344
    %2505 = vmatpush.bf16.msra.mxu0 %v2340
    %2506 = vmatpush.bf16.msra.mxu0 %v2336
    %2507 = vmatpush.bf16.msra.mxu0 %v2332
    %2508 = vmatpush.bf16.msra.mxu0 %v2328
    %2509 = vmatpush.bf16.msra.mxu0 %v2324
    %2510 = vmatmul.bf16.gmra.mxu0 %v2064
    %v2511 = vpop.f32.mrf.mxu0
    %v2512 = vadd.f32 0.0, %v2511
    %v2513 = vpop.f32.mrf.mxu0
    %2514 = vdwg.mxu0
    %2515 = vmatpush.bf16.msra.mxu0 %v2384
    %2516 = vmatpush.bf16.msra.mxu0 %v2380
    %2517 = vmatpush.bf16.msra.mxu0 %v2376
    %2518 = vmatpush.bf16.msra.mxu0 %v2372
    %2519 = vmatpush.bf16.msra.mxu0 %v2368
    %2520 = vmatpush.bf16.msra.mxu0 %v2364
    %2521 = vmatpush.bf16.msra.mxu0 %v2360
    %2522 = vmatpush.bf16.msra.mxu0 %v2356
    %2523 = vmatmul.bf16.gmra.mxu0 %v2065
    %v2524 = vpop.f32.mrf.mxu0
    %v2525 = vadd.f32 %v2512, %v2524
    %v2526 = vpop.f32.mrf.mxu0
    %2527 = vdwg.mxu0
    %2528 = vmatpush.bf16.msra.mxu0 %v2353
    %2529 = vmatpush.bf16.msra.mxu0 %v2349
    %2530 = vmatpush.bf16.msra.mxu0 %v2345
    %2531 = vmatpush.bf16.msra.mxu0 %v2341
    %2532 = vmatpush.bf16.msra.mxu0 %v2337
    %2533 = vmatpush.bf16.msra.mxu0 %v2333
    %2534 = vmatpush.bf16.msra.mxu0 %v2329
    %2535 = vmatpush.bf16.msra.mxu0 %v2325
    %2536 = vmatmul.bf16.gmra.mxu0 %v2064
    %v2537 = vpop.f32.mrf.mxu0
    %v2538 = vadd.f32 0.0, %v2537
    %v2539 = vpop.f32.mrf.mxu0
    %2540 = vdwg.mxu0
    %2541 = vmatpush.bf16.msra.mxu0 %v2385
    %2542 = vmatpush.bf16.msra.mxu0 %v2381
    %2543 = vmatpush.bf16.msra.mxu0 %v2377
    %2544 = vmatpush.bf16.msra.mxu0 %v2373
    %2545 = vmatpush.bf16.msra.mxu0 %v2369
    %2546 = vmatpush.bf16.msra.mxu0 %v2365
    %2547 = vmatpush.bf16.msra.mxu0 %v2361
    %2548 = vmatpush.bf16.msra.mxu0 %v2357
    %2549 = vmatmul.bf16.gmra.mxu0 %v2065
    %v2550 = vpop.f32.mrf.mxu0
    %v2551 = vadd.f32 %v2538, %v2550
    %v2552 = vpop.f32.mrf.mxu0
    %2553 = vdwg.mxu0
    %v2618 = vunpack.c.l.b16 %v1955
    %v2619 = vunpack.c.h.b16 %v1955
    %v2620 = vunpack.c.l.b16 %v1956
    %v2621 = vunpack.c.h.b16 %v1956
    %v2622 = vunpack.c.l.b16 %v1957
    %v2623 = vunpack.c.h.b16 %v1957
    %v2624 = vunpack.c.l.b16 %v1958
    %v2625 = vunpack.c.h.b16 %v1958
    %v2626 = vunpack.c.l.b16 %v1959
    %v2627 = vunpack.c.h.b16 %v1959
    %v2628 = vunpack.c.l.b16 %v1960
    %v2629 = vunpack.c.h.b16 %v1960
    %v2630 = vunpack.c.l.b16 %v1961
    %v2631 = vunpack.c.h.b16 %v1961
    %v2632 = vunpack.c.l.b16 %v1962
    %v2633 = vunpack.c.h.b16 %v1962
    %v2634 = vunpack.c.l.b16 %v1963
    %v2635 = vunpack.c.h.b16 %v1963
    %v2636 = vunpack.c.l.b16 %v1964
    %v2637 = vunpack.c.h.b16 %v1964
    %v2638 = vunpack.c.l.b16 %v1965
    %v2639 = vunpack.c.h.b16 %v1965
    %v2640 = vunpack.c.l.b16 %v1966
    %v2641 = vunpack.c.h.b16 %v1966
    %v2642 = vunpack.c.l.b16 %v1967
    %v2643 = vunpack.c.h.b16 %v1967
    %v2644 = vunpack.c.l.b16 %v1968
    %v2645 = vunpack.c.h.b16 %v1968
    %v2646 = vunpack.c.l.b16 %v1969
    %v2647 = vunpack.c.h.b16 %v1969
    %v2648 = vunpack.c.l.b16 %v1970
    %v2649 = vunpack.c.h.b16 %v1970
    %v2650 = vunpack.c.l.b16 %v1971
    %v2651 = vunpack.c.h.b16 %v1971
    %v2652 = vunpack.c.l.b16 %v1972
    %v2653 = vunpack.c.h.b16 %v1972
    %v2654 = vunpack.c.l.b16 %v1973
    %v2655 = vunpack.c.h.b16 %v1973
    %v2656 = vunpack.c.l.b16 %v1974
    %v2657 = vunpack.c.h.b16 %v1974
    %v2658 = vunpack.c.l.b16 %v1975
    %v2659 = vunpack.c.h.b16 %v1975
    %v2660 = vunpack.c.l.b16 %v1976
    %v2661 = vunpack.c.h.b16 %v1976
    %v2662 = vunpack.c.l.b16 %v1977
    %v2663 = vunpack.c.h.b16 %v1977
    %v2664 = vunpack.c.l.b16 %v1978
    %v2665 = vunpack.c.h.b16 %v1978
    %v2666 = vunpack.c.l.b16 %v1979
    %v2667 = vunpack.c.h.b16 %v1979
    %v2668 = vunpack.c.l.b16 %v1980
    %v2669 = vunpack.c.h.b16 %v1980
    %v2670 = vunpack.c.l.b16 %v1981
    %v2671 = vunpack.c.h.b16 %v1981
    %v2672 = vunpack.c.l.b16 %v1982
    %v2673 = vunpack.c.h.b16 %v1982
    %v2674 = vunpack.c.l.b16 %v1983
    %v2675 = vunpack.c.h.b16 %v1983
    %v2676 = vunpack.c.l.b16 %v1984
    %v2677 = vunpack.c.h.b16 %v1984
    %v2678 = vunpack.c.l.b16 %v1985
    %v2679 = vunpack.c.h.b16 %v1985
    %v2680 = vunpack.c.l.b16 %v1986
    %v2681 = vunpack.c.h.b16 %v1986
    %v2682 = vunpack.c.l.b16 %v1987
    %v2683 = vunpack.c.h.b16 %v1987
    %v2684 = vunpack.c.l.b16 %v1988
    %v2685 = vunpack.c.h.b16 %v1988
    %v2686 = vunpack.c.l.b16 %v1989
    %v2687 = vunpack.c.h.b16 %v1989
    %v2688 = vunpack.c.l.b16 %v1990
    %v2689 = vunpack.c.h.b16 %v1990
    %v2690 = vunpack.c.l.b16 %v1991
    %v2691 = vunpack.c.h.b16 %v1991
    %v2692 = vunpack.c.l.b16 %v1992
    %v2693 = vunpack.c.h.b16 %v1992
    %v2694 = vunpack.c.l.b16 %v1993
    %v2695 = vunpack.c.h.b16 %v1993
    %v2696 = vunpack.c.l.b16 %v1994
    %v2697 = vunpack.c.h.b16 %v1994
    %v2698 = vunpack.c.l.b16 %v1995
    %v2699 = vunpack.c.h.b16 %v1995
    %v2700 = vunpack.c.l.b16 %v1996
    %v2701 = vunpack.c.h.b16 %v1996
    %v2702 = vunpack.c.l.b16 %v1997
    %v2703 = vunpack.c.h.b16 %v1997
    %v2704 = vunpack.c.l.b16 %v1998
    %v2705 = vunpack.c.h.b16 %v1998
    %v2706 = vunpack.c.l.b16 %v1999
    %v2707 = vunpack.c.h.b16 %v1999
    %v2708 = vunpack.c.l.b16 %v2000
    %v2709 = vunpack.c.h.b16 %v2000
    %v2710 = vunpack.c.l.b16 %v2001
    %v2711 = vunpack.c.h.b16 %v2001
    %v2712 = vunpack.c.l.b16 %v2002
    %v2713 = vunpack.c.h.b16 %v2002
    %v2714 = vunpack.c.l.b16 %v2003
    %v2715 = vunpack.c.h.b16 %v2003
    %v2716 = vunpack.c.l.b16 %v2004
    %v2717 = vunpack.c.h.b16 %v2004
    %v2718 = vunpack.c.l.b16 %v2005
    %v2719 = vunpack.c.h.b16 %v2005
    %v2720 = vunpack.c.l.b16 %v2006
    %v2721 = vunpack.c.h.b16 %v2006
    %v2722 = vunpack.c.l.b16 %v2007
    %v2723 = vunpack.c.h.b16 %v2007
    %v2724 = vunpack.c.l.b16 %v2008
    %v2725 = vunpack.c.h.b16 %v2008
    %v2726 = vunpack.c.l.b16 %v2009
    %v2727 = vunpack.c.h.b16 %v2009
    %v2728 = vunpack.c.l.b16 %v2010
    %v2729 = vunpack.c.h.b16 %v2010
    %v2730 = vunpack.c.l.b16 %v2011
    %v2731 = vunpack.c.h.b16 %v2011
    %v2732 = vunpack.c.l.b16 %v2012
    %v2733 = vunpack.c.h.b16 %v2012
    %v2734 = vunpack.c.l.b16 %v2013
    %v2735 = vunpack.c.h.b16 %v2013
    %v2736 = vunpack.c.l.b16 %v2014
    %v2737 = vunpack.c.h.b16 %v2014
    %v2738 = vunpack.c.l.b16 %v2015
    %v2739 = vunpack.c.h.b16 %v2015
    %v2740 = vunpack.c.l.b16 %v2016
    %v2741 = vunpack.c.h.b16 %v2016
    %v2742 = vunpack.c.l.b16 %v2017
    %v2743 = vunpack.c.h.b16 %v2017
    %v2744 = vunpack.c.l.b16 %v2018
    %v2745 = vunpack.c.h.b16 %v2018
    %v2746 = vpack.c.b16 %v2622, %v2618
    %v2747 = vpack.c.b16 %v2623, %v2619
    %v2748 = vpack.c.b16 %v2624, %v2620
    %v2749 = vpack.c.b16 %v2625, %v2621
    %v2750 = vpack.c.b16 %v2630, %v2626
    %v2751 = vpack.c.b16 %v2631, %v2627
    %v2752 = vpack.c.b16 %v2632, %v2628
    %v2753 = vpack.c.b16 %v2633, %v2629
    %v2754 = vpack.c.b16 %v2638, %v2634
    %v2755 = vpack.c.b16 %v2639, %v2635
    %v2756 = vpack.c.b16 %v2640, %v2636
    %v2757 = vpack.c.b16 %v2641, %v2637
    %v2758 = vpack.c.b16 %v2646, %v2642
    %v2759 = vpack.c.b16 %v2647, %v2643
    %v2760 = vpack.c.b16 %v2648, %v2644
    %v2761 = vpack.c.b16 %v2649, %v2645
    %v2762 = vpack.c.b16 %v2654, %v2650
    %v2763 = vpack.c.b16 %v2655, %v2651
    %v2764 = vpack.c.b16 %v2656, %v2652
    %v2765 = vpack.c.b16 %v2657, %v2653
    %v2766 = vpack.c.b16 %v2662, %v2658
    %v2767 = vpack.c.b16 %v2663, %v2659
    %v2768 = vpack.c.b16 %v2664, %v2660
    %v2769 = vpack.c.b16 %v2665, %v2661
    %v2770 = vpack.c.b16 %v2670, %v2666
    %v2771 = vpack.c.b16 %v2671, %v2667
    %v2772 = vpack.c.b16 %v2672, %v2668
    %v2773 = vpack.c.b16 %v2673, %v2669
    %v2774 = vpack.c.b16 %v2678, %v2674
    %v2775 = vpack.c.b16 %v2679, %v2675
    %v2776 = vpack.c.b16 %v2680, %v2676
    %v2777 = vpack.c.b16 %v2681, %v2677
    %v2778 = vpack.c.b16 %v2686, %v2682
    %v2779 = vpack.c.b16 %v2687, %v2683
    %v2780 = vpack.c.b16 %v2688, %v2684
    %v2781 = vpack.c.b16 %v2689, %v2685
    %v2782 = vpack.c.b16 %v2694, %v2690
    %v2783 = vpack.c.b16 %v2695, %v2691
    %v2784 = vpack.c.b16 %v2696, %v2692
    %v2785 = vpack.c.b16 %v2697, %v2693
    %v2786 = vpack.c.b16 %v2702, %v2698
    %v2787 = vpack.c.b16 %v2703, %v2699
    %v2788 = vpack.c.b16 %v2704, %v2700
    %v2789 = vpack.c.b16 %v2705, %v2701
    %v2790 = vpack.c.b16 %v2710, %v2706
    %v2791 = vpack.c.b16 %v2711, %v2707
    %v2792 = vpack.c.b16 %v2712, %v2708
    %v2793 = vpack.c.b16 %v2713, %v2709
    %v2794 = vpack.c.b16 %v2718, %v2714
    %v2795 = vpack.c.b16 %v2719, %v2715
    %v2796 = vpack.c.b16 %v2720, %v2716
    %v2797 = vpack.c.b16 %v2721, %v2717
    %v2798 = vpack.c.b16 %v2726, %v2722
    %v2799 = vpack.c.b16 %v2727, %v2723
    %v2800 = vpack.c.b16 %v2728, %v2724
    %v2801 = vpack.c.b16 %v2729, %v2725
    %v2802 = vpack.c.b16 %v2734, %v2730
    %v2803 = vpack.c.b16 %v2735, %v2731
    %v2804 = vpack.c.b16 %v2736, %v2732
    %v2805 = vpack.c.b16 %v2737, %v2733
    %v2806 = vpack.c.b16 %v2742, %v2738
    %v2807 = vpack.c.b16 %v2743, %v2739
    %v2808 = vpack.c.b16 %v2744, %v2740
    %v2809 = vpack.c.b16 %v2745, %v2741
    %2874 = vmatpush.bf16.msra.mxu0 %v2774
    %2875 = vmatpush.bf16.msra.mxu0 %v2770
    %2876 = vmatpush.bf16.msra.mxu0 %v2766
    %2877 = vmatpush.bf16.msra.mxu0 %v2762
    %2878 = vmatpush.bf16.msra.mxu0 %v2758
    %2879 = vmatpush.bf16.msra.mxu0 %v2754
    %2880 = vmatpush.bf16.msra.mxu0 %v2750
    %2881 = vmatpush.bf16.msra.mxu0 %v2746
    %2882 = vmatmul.bf16.gmra.mxu0 %v1953
    %v2883 = vpop.f32.mrf.mxu0
    %v2884 = vadd.f32 %v2473, %v2883
    %v2885 = vpop.f32.mrf.mxu0
    %2886 = vdwg.mxu0
    %2887 = vmatpush.bf16.msra.mxu0 %v2806
    %2888 = vmatpush.bf16.msra.mxu0 %v2802
    %2889 = vmatpush.bf16.msra.mxu0 %v2798
    %2890 = vmatpush.bf16.msra.mxu0 %v2794
    %2891 = vmatpush.bf16.msra.mxu0 %v2790
    %2892 = vmatpush.bf16.msra.mxu0 %v2786
    %2893 = vmatpush.bf16.msra.mxu0 %v2782
    %2894 = vmatpush.bf16.msra.mxu0 %v2778
    %2895 = vmatmul.bf16.gmra.mxu0 %v1954
    %v2896 = vpop.f32.mrf.mxu0
    %v2897 = vadd.f32 %v2884, %v2896
    %v2898 = vpop.f32.mrf.mxu0
    %2899 = vdwg.mxu0
    %2900 = vmatpush.bf16.msra.mxu0 %v2775
    %2901 = vmatpush.bf16.msra.mxu0 %v2771
    %2902 = vmatpush.bf16.msra.mxu0 %v2767
    %2903 = vmatpush.bf16.msra.mxu0 %v2763
    %2904 = vmatpush.bf16.msra.mxu0 %v2759
    %2905 = vmatpush.bf16.msra.mxu0 %v2755
    %2906 = vmatpush.bf16.msra.mxu0 %v2751
    %2907 = vmatpush.bf16.msra.mxu0 %v2747
    %2908 = vmatmul.bf16.gmra.mxu0 %v1953
    %v2909 = vpop.f32.mrf.mxu0
    %v2910 = vadd.f32 %v2499, %v2909
    %v2911 = vpop.f32.mrf.mxu0
    %2912 = vdwg.mxu0
    %2913 = vmatpush.bf16.msra.mxu0 %v2807
    %2914 = vmatpush.bf16.msra.mxu0 %v2803
    %2915 = vmatpush.bf16.msra.mxu0 %v2799
    %2916 = vmatpush.bf16.msra.mxu0 %v2795
    %2917 = vmatpush.bf16.msra.mxu0 %v2791
    %2918 = vmatpush.bf16.msra.mxu0 %v2787
    %2919 = vmatpush.bf16.msra.mxu0 %v2783
    %2920 = vmatpush.bf16.msra.mxu0 %v2779
    %2921 = vmatmul.bf16.gmra.mxu0 %v1954
    %v2922 = vpop.f32.mrf.mxu0
    %v2923 = vadd.f32 %v2910, %v2922
    %v2924 = vpop.f32.mrf.mxu0
    %2925 = vdwg.mxu0
    %2926 = vmatpush.bf16.msra.mxu0 %v2776
    %2927 = vmatpush.bf16.msra.mxu0 %v2772
    %2928 = vmatpush.bf16.msra.mxu0 %v2768
    %2929 = vmatpush.bf16.msra.mxu0 %v2764
    %2930 = vmatpush.bf16.msra.mxu0 %v2760
    %2931 = vmatpush.bf16.msra.mxu0 %v2756
    %2932 = vmatpush.bf16.msra.mxu0 %v2752
    %2933 = vmatpush.bf16.msra.mxu0 %v2748
    %2934 = vmatmul.bf16.gmra.mxu0 %v1953
    %v2935 = vpop.f32.mrf.mxu0
    %v2936 = vadd.f32 %v2525, %v2935
    %v2937 = vpop.f32.mrf.mxu0
    %2938 = vdwg.mxu0
    %2939 = vmatpush.bf16.msra.mxu0 %v2808
    %2940 = vmatpush.bf16.msra.mxu0 %v2804
    %2941 = vmatpush.bf16.msra.mxu0 %v2800
    %2942 = vmatpush.bf16.msra.mxu0 %v2796
    %2943 = vmatpush.bf16.msra.mxu0 %v2792
    %2944 = vmatpush.bf16.msra.mxu0 %v2788
    %2945 = vmatpush.bf16.msra.mxu0 %v2784
    %2946 = vmatpush.bf16.msra.mxu0 %v2780
    %2947 = vmatmul.bf16.gmra.mxu0 %v1954
    %v2948 = vpop.f32.mrf.mxu0
    %v2949 = vadd.f32 %v2936, %v2948
    %v2950 = vpop.f32.mrf.mxu0
    %2951 = vdwg.mxu0
    %2952 = vmatpush.bf16.msra.mxu0 %v2777
    %2953 = vmatpush.bf16.msra.mxu0 %v2773
    %2954 = vmatpush.bf16.msra.mxu0 %v2769
    %2955 = vmatpush.bf16.msra.mxu0 %v2765
    %2956 = vmatpush.bf16.msra.mxu0 %v2761
    %2957 = vmatpush.bf16.msra.mxu0 %v2757
    %2958 = vmatpush.bf16.msra.mxu0 %v2753
    %2959 = vmatpush.bf16.msra.mxu0 %v2749
    %2960 = vmatmul.bf16.gmra.mxu0 %v1953
    %v2961 = vpop.f32.mrf.mxu0
    %v2962 = vadd.f32 %v2551, %v2961
    %v2963 = vpop.f32.mrf.mxu0
    %2964 = vdwg.mxu0
    %2965 = vmatpush.bf16.msra.mxu0 %v2809
    %2966 = vmatpush.bf16.msra.mxu0 %v2805
    %2967 = vmatpush.bf16.msra.mxu0 %v2801
    %2968 = vmatpush.bf16.msra.mxu0 %v2797
    %2969 = vmatpush.bf16.msra.mxu0 %v2793
    %2970 = vmatpush.bf16.msra.mxu0 %v2789
    %2971 = vmatpush.bf16.msra.mxu0 %v2785
    %2972 = vmatpush.bf16.msra.mxu0 %v2781
    %2973 = vmatmul.bf16.gmra.mxu0 %v1954
    %v2974 = vpop.f32.mrf.mxu0
    %v2975 = vadd.f32 %v2962, %v2974
    %v2976 = vpop.f32.mrf.mxu0
    %2977 = vdwg.mxu0
    %s2978 = scalar_lea.vmem [#allocation9], 8
    %v2979 = vld [vmem:[%s2978] sm:$0x7]
    %v2981 = vsel %vm1903, %v2979, 0
    %2983 = vmatpush.msra.mxu0 0.0
    %2984 = vmatpush.msra.mxu0 0.0
    %2985 = vmatpush.msra.mxu0 0.0
    %2986 = vmatpush.msra.mxu0 0.0
    %2987 = vmatpush.msra.mxu0 0.0
    %2988 = vmatpush.msra.mxu0 0.0
    %2989 = vmatpush.msra.mxu0 0.0
    %2990 = vmatpush.msra.mxu0 0.0
    %2991 = vmatpush.msra.mxu0 0.0
    %2992 = vmatpush.msra.mxu0 0.0
    %2993 = vmatpush.msra.mxu0 0.0
    %2994 = vmatpush.msra.mxu0 0.0
    %2995 = vmatpush.msra.mxu0 0.0
    %2996 = vmatpush.msra.mxu0 0.0
    %2997 = vmatpush.msra.mxu0 %v1908
    %2998 = vmatpush.msra.mxu0 %v1898
    %2999 = vmatmul.f32.gmra.mxu0 %v2981
    %v3000 = vpop.f32.mrf.mxu0
    %v3001 = vadd.f32 0.0, %v3000
    %3002 = vdwg.mxu0
    %3003 = vmatpush.msra.mxu0 0.0
    %3004 = vmatpush.msra.mxu0 0.0
    %3005 = vmatpush.msra.mxu0 0.0
    %3006 = vmatpush.msra.mxu0 0.0
    %3007 = vmatpush.msra.mxu0 0.0
    %3008 = vmatpush.msra.mxu0 0.0
    %3009 = vmatpush.msra.mxu0 0.0
    %3010 = vmatpush.msra.mxu0 0.0
    %3011 = vmatpush.msra.mxu0 0.0
    %3012 = vmatpush.msra.mxu0 0.0
    %3013 = vmatpush.msra.mxu0 0.0
    %3014 = vmatpush.msra.mxu0 0.0
    %3015 = vmatpush.msra.mxu0 0.0
    %3016 = vmatpush.msra.mxu0 0.0
    %3017 = vmatpush.msra.mxu0 %v1911
    %3018 = vmatpush.msra.mxu0 %v1899
    %3019 = vmatmul.f32.gmra.mxu0 %v2981
    %v3020 = vpop.f32.mrf.mxu0
    %v3021 = vadd.f32 0.0, %v3020
    %3022 = vdwg.mxu0
    %v3023 = vpack.c.bf16 %v3001, %v3001
    %v3024 = vpack.c.bf16 %v3021, %v3021
    %v3025 = vld [vmem:[#allocation29 + $0x400] sm:$0xff]
    %v3026 = vld [vmem:[#allocation29 + $0x408] sm:$0xff]
    %v3027 = vld [vmem:[#allocation29 + $0x410] sm:$0xff]
    %v3028 = vld [vmem:[#allocation29 + $0x418] sm:$0xff]
    %v3029 = vld [vmem:[#allocation29 + $0x420] sm:$0xff]
    %v3030 = vld [vmem:[#allocation29 + $0x428] sm:$0xff]
    %v3031 = vld [vmem:[#allocation29 + $0x430] sm:$0xff]
    %v3032 = vld [vmem:[#allocation29 + $0x438] sm:$0xff]
    %v3033 = vld [vmem:[#allocation29 + $0x440] sm:$0xff]
    %v3034 = vld [vmem:[#allocation29 + $0x448] sm:$0xff]
    %v3035 = vld [vmem:[#allocation29 + $0x450] sm:$0xff]
    %v3036 = vld [vmem:[#allocation29 + $0x458] sm:$0xff]
    %v3037 = vld [vmem:[#allocation29 + $0x460] sm:$0xff]
    %v3038 = vld [vmem:[#allocation29 + $0x468] sm:$0xff]
    %v3039 = vld [vmem:[#allocation29 + $0x470] sm:$0xff]
    %v3040 = vld [vmem:[#allocation29 + $0x478] sm:$0xff]
    %v3041 = vld [vmem:[#allocation29 + $0x480] sm:$0xff]
    %v3042 = vld [vmem:[#allocation29 + $0x488] sm:$0xff]
    %v3043 = vld [vmem:[#allocation29 + $0x490] sm:$0xff]
    %v3044 = vld [vmem:[#allocation29 + $0x498] sm:$0xff]
    %v3045 = vld [vmem:[#allocation29 + $0x4a0] sm:$0xff]
    %v3046 = vld [vmem:[#allocation29 + $0x4a8] sm:$0xff]
    %v3047 = vld [vmem:[#allocation29 + $0x4b0] sm:$0xff]
    %v3048 = vld [vmem:[#allocation29 + $0x4b8] sm:$0xff]
    %v3049 = vld [vmem:[#allocation29 + $0x4c0] sm:$0xff]
    %v3050 = vld [vmem:[#allocation29 + $0x4c8] sm:$0xff]
    %v3051 = vld [vmem:[#allocation29 + $0x4d0] sm:$0xff]
    %v3052 = vld [vmem:[#allocation29 + $0x4d8] sm:$0xff]
    %v3053 = vld [vmem:[#allocation29 + $0x4e0] sm:$0xff]
    %v3054 = vld [vmem:[#allocation29 + $0x4e8] sm:$0xff]
    %v3055 = vld [vmem:[#allocation29 + $0x4f0] sm:$0xff]
    %v3056 = vld [vmem:[#allocation29 + $0x4f8] sm:$0xff]
    %v3057 = vld [vmem:[#allocation29 + $0x500] sm:$0xff]
    %v3058 = vld [vmem:[#allocation29 + $0x508] sm:$0xff]
    %v3059 = vld [vmem:[#allocation29 + $0x510] sm:$0xff]
    %v3060 = vld [vmem:[#allocation29 + $0x518] sm:$0xff]
    %v3061 = vld [vmem:[#allocation29 + $0x520] sm:$0xff]
    %v3062 = vld [vmem:[#allocation29 + $0x528] sm:$0xff]
    %v3063 = vld [vmem:[#allocation29 + $0x530] sm:$0xff]
    %v3064 = vld [vmem:[#allocation29 + $0x538] sm:$0xff]
    %v3065 = vld [vmem:[#allocation29 + $0x540] sm:$0xff]
    %v3066 = vld [vmem:[#allocation29 + $0x548] sm:$0xff]
    %v3067 = vld [vmem:[#allocation29 + $0x550] sm:$0xff]
    %v3068 = vld [vmem:[#allocation29 + $0x558] sm:$0xff]
    %v3069 = vld [vmem:[#allocation29 + $0x560] sm:$0xff]
    %v3070 = vld [vmem:[#allocation29 + $0x568] sm:$0xff]
    %v3071 = vld [vmem:[#allocation29 + $0x570] sm:$0xff]
    %v3072 = vld [vmem:[#allocation29 + $0x578] sm:$0xff]
    %v3073 = vld [vmem:[#allocation29 + $0x580] sm:$0xff]
    %v3074 = vld [vmem:[#allocation29 + $0x588] sm:$0xff]
    %v3075 = vld [vmem:[#allocation29 + $0x590] sm:$0xff]
    %v3076 = vld [vmem:[#allocation29 + $0x598] sm:$0xff]
    %v3077 = vld [vmem:[#allocation29 + $0x5a0] sm:$0xff]
    %v3078 = vld [vmem:[#allocation29 + $0x5a8] sm:$0xff]
    %v3079 = vld [vmem:[#allocation29 + $0x5b0] sm:$0xff]
    %v3080 = vld [vmem:[#allocation29 + $0x5b8] sm:$0xff]
    %v3081 = vld [vmem:[#allocation29 + $0x5c0] sm:$0xff]
    %v3082 = vld [vmem:[#allocation29 + $0x5c8] sm:$0xff]
    %v3083 = vld [vmem:[#allocation29 + $0x5d0] sm:$0xff]
    %v3084 = vld [vmem:[#allocation29 + $0x5d8] sm:$0xff]
    %v3085 = vld [vmem:[#allocation29 + $0x5e0] sm:$0xff]
    %v3086 = vld [vmem:[#allocation29 + $0x5e8] sm:$0xff]
    %v3087 = vld [vmem:[#allocation29 + $0x5f0] sm:$0xff]
    %v3088 = vld [vmem:[#allocation29 + $0x5f8] sm:$0xff]
    %v3153 = vunpack.c.l.b16 %v3025
    %v3154 = vunpack.c.h.b16 %v3025
    %v3155 = vunpack.c.l.b16 %v3026
    %v3156 = vunpack.c.h.b16 %v3026
    %v3157 = vunpack.c.l.b16 %v3027
    %v3158 = vunpack.c.h.b16 %v3027
    %v3159 = vunpack.c.l.b16 %v3028
    %v3160 = vunpack.c.h.b16 %v3028
    %v3161 = vunpack.c.l.b16 %v3029
    %v3162 = vunpack.c.h.b16 %v3029
    %v3163 = vunpack.c.l.b16 %v3030
    %v3164 = vunpack.c.h.b16 %v3030
    %v3165 = vunpack.c.l.b16 %v3031
    %v3166 = vunpack.c.h.b16 %v3031
    %v3167 = vunpack.c.l.b16 %v3032
    %v3168 = vunpack.c.h.b16 %v3032
    %v3169 = vunpack.c.l.b16 %v3033
    %v3170 = vunpack.c.h.b16 %v3033
    %v3171 = vunpack.c.l.b16 %v3034
    %v3172 = vunpack.c.h.b16 %v3034
    %v3173 = vunpack.c.l.b16 %v3035
    %v3174 = vunpack.c.h.b16 %v3035
    %v3175 = vunpack.c.l.b16 %v3036
    %v3176 = vunpack.c.h.b16 %v3036
    %v3177 = vunpack.c.l.b16 %v3037
    %v3178 = vunpack.c.h.b16 %v3037
    %v3179 = vunpack.c.l.b16 %v3038
    %v3180 = vunpack.c.h.b16 %v3038
    %v3181 = vunpack.c.l.b16 %v3039
    %v3182 = vunpack.c.h.b16 %v3039
    %v3183 = vunpack.c.l.b16 %v3040
    %v3184 = vunpack.c.h.b16 %v3040
    %v3185 = vunpack.c.l.b16 %v3041
    %v3186 = vunpack.c.h.b16 %v3041
    %v3187 = vunpack.c.l.b16 %v3042
    %v3188 = vunpack.c.h.b16 %v3042
    %v3189 = vunpack.c.l.b16 %v3043
    %v3190 = vunpack.c.h.b16 %v3043
    %v3191 = vunpack.c.l.b16 %v3044
    %v3192 = vunpack.c.h.b16 %v3044
    %v3193 = vunpack.c.l.b16 %v3045
    %v3194 = vunpack.c.h.b16 %v3045
    %v3195 = vunpack.c.l.b16 %v3046
    %v3196 = vunpack.c.h.b16 %v3046
    %v3197 = vunpack.c.l.b16 %v3047
    %v3198 = vunpack.c.h.b16 %v3047
    %v3199 = vunpack.c.l.b16 %v3048
    %v3200 = vunpack.c.h.b16 %v3048
    %v3201 = vunpack.c.l.b16 %v3049
    %v3202 = vunpack.c.h.b16 %v3049
    %v3203 = vunpack.c.l.b16 %v3050
    %v3204 = vunpack.c.h.b16 %v3050
    %v3205 = vunpack.c.l.b16 %v3051
    %v3206 = vunpack.c.h.b16 %v3051
    %v3207 = vunpack.c.l.b16 %v3052
    %v3208 = vunpack.c.h.b16 %v3052
    %v3209 = vunpack.c.l.b16 %v3053
    %v3210 = vunpack.c.h.b16 %v3053
    %v3211 = vunpack.c.l.b16 %v3054
    %v3212 = vunpack.c.h.b16 %v3054
    %v3213 = vunpack.c.l.b16 %v3055
    %v3214 = vunpack.c.h.b16 %v3055
    %v3215 = vunpack.c.l.b16 %v3056
    %v3216 = vunpack.c.h.b16 %v3056
    %v3217 = vunpack.c.l.b16 %v3057
    %v3218 = vunpack.c.h.b16 %v3057
    %v3219 = vunpack.c.l.b16 %v3058
    %v3220 = vunpack.c.h.b16 %v3058
    %v3221 = vunpack.c.l.b16 %v3059
    %v3222 = vunpack.c.h.b16 %v3059
    %v3223 = vunpack.c.l.b16 %v3060
    %v3224 = vunpack.c.h.b16 %v3060
    %v3225 = vunpack.c.l.b16 %v3061
    %v3226 = vunpack.c.h.b16 %v3061
    %v3227 = vunpack.c.l.b16 %v3062
    %v3228 = vunpack.c.h.b16 %v3062
    %v3229 = vunpack.c.l.b16 %v3063
    %v3230 = vunpack.c.h.b16 %v3063
    %v3231 = vunpack.c.l.b16 %v3064
    %v3232 = vunpack.c.h.b16 %v3064
    %v3233 = vunpack.c.l.b16 %v3065
    %v3234 = vunpack.c.h.b16 %v3065
    %v3235 = vunpack.c.l.b16 %v3066
    %v3236 = vunpack.c.h.b16 %v3066
    %v3237 = vunpack.c.l.b16 %v3067
    %v3238 = vunpack.c.h.b16 %v3067
    %v3239 = vunpack.c.l.b16 %v3068
    %v3240 = vunpack.c.h.b16 %v3068
    %v3241 = vunpack.c.l.b16 %v3069
    %v3242 = vunpack.c.h.b16 %v3069
    %v3243 = vunpack.c.l.b16 %v3070
    %v3244 = vunpack.c.h.b16 %v3070
    %v3245 = vunpack.c.l.b16 %v3071
    %v3246 = vunpack.c.h.b16 %v3071
    %v3247 = vunpack.c.l.b16 %v3072
    %v3248 = vunpack.c.h.b16 %v3072
    %v3249 = vunpack.c.l.b16 %v3073
    %v3250 = vunpack.c.h.b16 %v3073
    %v3251 = vunpack.c.l.b16 %v3074
    %v3252 = vunpack.c.h.b16 %v3074
    %v3253 = vunpack.c.l.b16 %v3075
    %v3254 = vunpack.c.h.b16 %v3075
    %v3255 = vunpack.c.l.b16 %v3076
    %v3256 = vunpack.c.h.b16 %v3076
    %v3257 = vunpack.c.l.b16 %v3077
    %v3258 = vunpack.c.h.b16 %v3077
    %v3259 = vunpack.c.l.b16 %v3078
    %v3260 = vunpack.c.h.b16 %v3078
    %v3261 = vunpack.c.l.b16 %v3079
    %v3262 = vunpack.c.h.b16 %v3079
    %v3263 = vunpack.c.l.b16 %v3080
    %v3264 = vunpack.c.h.b16 %v3080
    %v3265 = vunpack.c.l.b16 %v3081
    %v3266 = vunpack.c.h.b16 %v3081
    %v3267 = vunpack.c.l.b16 %v3082
    %v3268 = vunpack.c.h.b16 %v3082
    %v3269 = vunpack.c.l.b16 %v3083
    %v3270 = vunpack.c.h.b16 %v3083
    %v3271 = vunpack.c.l.b16 %v3084
    %v3272 = vunpack.c.h.b16 %v3084
    %v3273 = vunpack.c.l.b16 %v3085
    %v3274 = vunpack.c.h.b16 %v3085
    %v3275 = vunpack.c.l.b16 %v3086
    %v3276 = vunpack.c.h.b16 %v3086
    %v3277 = vunpack.c.l.b16 %v3087
    %v3278 = vunpack.c.h.b16 %v3087
    %v3279 = vunpack.c.l.b16 %v3088
    %v3280 = vunpack.c.h.b16 %v3088
    %v3281 = vpack.c.b16 %v3157, %v3153
    %v3282 = vpack.c.b16 %v3158, %v3154
    %v3283 = vpack.c.b16 %v3159, %v3155
    %v3284 = vpack.c.b16 %v3160, %v3156
    %v3285 = vpack.c.b16 %v3165, %v3161
    %v3286 = vpack.c.b16 %v3166, %v3162
    %v3287 = vpack.c.b16 %v3167, %v3163
    %v3288 = vpack.c.b16 %v3168, %v3164
    %v3289 = vpack.c.b16 %v3173, %v3169
    %v3290 = vpack.c.b16 %v3174, %v3170
    %v3291 = vpack.c.b16 %v3175, %v3171
    %v3292 = vpack.c.b16 %v3176, %v3172
    %v3293 = vpack.c.b16 %v3181, %v3177
    %v3294 = vpack.c.b16 %v3182, %v3178
    %v3295 = vpack.c.b16 %v3183, %v3179
    %v3296 = vpack.c.b16 %v3184, %v3180
    %v3297 = vpack.c.b16 %v3189, %v3185
    %v3298 = vpack.c.b16 %v3190, %v3186
    %v3299 = vpack.c.b16 %v3191, %v3187
    %v3300 = vpack.c.b16 %v3192, %v3188
    %v3301 = vpack.c.b16 %v3197, %v3193
    %v3302 = vpack.c.b16 %v3198, %v3194
    %v3303 = vpack.c.b16 %v3199, %v3195
    %v3304 = vpack.c.b16 %v3200, %v3196
    %v3305 = vpack.c.b16 %v3205, %v3201
    %v3306 = vpack.c.b16 %v3206, %v3202
    %v3307 = vpack.c.b16 %v3207, %v3203
    %v3308 = vpack.c.b16 %v3208, %v3204
    %v3309 = vpack.c.b16 %v3213, %v3209
    %v3310 = vpack.c.b16 %v3214, %v3210
    %v3311 = vpack.c.b16 %v3215, %v3211
    %v3312 = vpack.c.b16 %v3216, %v3212
    %v3313 = vpack.c.b16 %v3221, %v3217
    %v3314 = vpack.c.b16 %v3222, %v3218
    %v3315 = vpack.c.b16 %v3223, %v3219
    %v3316 = vpack.c.b16 %v3224, %v3220
    %v3317 = vpack.c.b16 %v3229, %v3225
    %v3318 = vpack.c.b16 %v3230, %v3226
    %v3319 = vpack.c.b16 %v3231, %v3227
    %v3320 = vpack.c.b16 %v3232, %v3228
    %v3321 = vpack.c.b16 %v3237, %v3233
    %v3322 = vpack.c.b16 %v3238, %v3234
    %v3323 = vpack.c.b16 %v3239, %v3235
    %v3324 = vpack.c.b16 %v3240, %v3236
    %v3325 = vpack.c.b16 %v3245, %v3241
    %v3326 = vpack.c.b16 %v3246, %v3242
    %v3327 = vpack.c.b16 %v3247, %v3243
    %v3328 = vpack.c.b16 %v3248, %v3244
    %v3329 = vpack.c.b16 %v3253, %v3249
    %v3330 = vpack.c.b16 %v3254, %v3250
    %v3331 = vpack.c.b16 %v3255, %v3251
    %v3332 = vpack.c.b16 %v3256, %v3252
    %v3333 = vpack.c.b16 %v3261, %v3257
    %v3334 = vpack.c.b16 %v3262, %v3258
    %v3335 = vpack.c.b16 %v3263, %v3259
    %v3336 = vpack.c.b16 %v3264, %v3260
    %v3337 = vpack.c.b16 %v3269, %v3265
    %v3338 = vpack.c.b16 %v3270, %v3266
    %v3339 = vpack.c.b16 %v3271, %v3267
    %v3340 = vpack.c.b16 %v3272, %v3268
    %v3341 = vpack.c.b16 %v3277, %v3273
    %v3342 = vpack.c.b16 %v3278, %v3274
    %v3343 = vpack.c.b16 %v3279, %v3275
    %v3344 = vpack.c.b16 %v3280, %v3276
    %3409 = vmatpush.bf16.msra.mxu0 %v3309
    %3410 = vmatpush.bf16.msra.mxu0 %v3305
    %3411 = vmatpush.bf16.msra.mxu0 %v3301
    %3412 = vmatpush.bf16.msra.mxu0 %v3297
    %3413 = vmatpush.bf16.msra.mxu0 %v3293
    %3414 = vmatpush.bf16.msra.mxu0 %v3289
    %3415 = vmatpush.bf16.msra.mxu0 %v3285
    %3416 = vmatpush.bf16.msra.mxu0 %v3281
    %3417 = vmatmul.bf16.gmra.mxu0 %v3023
    %v3418 = vpop.f32.mrf.mxu0
    %v3419 = vadd.f32 0.0, %v3418
    %v3420 = vpop.f32.mrf.mxu0
    %3421 = vdwg.mxu0
    %3422 = vmatpush.bf16.msra.mxu0 %v3341
    %3423 = vmatpush.bf16.msra.mxu0 %v3337
    %3424 = vmatpush.bf16.msra.mxu0 %v3333
    %3425 = vmatpush.bf16.msra.mxu0 %v3329
    %3426 = vmatpush.bf16.msra.mxu0 %v3325
    %3427 = vmatpush.bf16.msra.mxu0 %v3321
    %3428 = vmatpush.bf16.msra.mxu0 %v3317
    %3429 = vmatpush.bf16.msra.mxu0 %v3313
    %3430 = vmatmul.bf16.gmra.mxu0 %v3024
    %v3431 = vpop.f32.mrf.mxu0
    %v3432 = vadd.f32 %v3419, %v3431
    %v3433 = vpop.f32.mrf.mxu0
    %3434 = vdwg.mxu0
    %3435 = vmatpush.bf16.msra.mxu0 %v3310
    %3436 = vmatpush.bf16.msra.mxu0 %v3306
    %3437 = vmatpush.bf16.msra.mxu0 %v3302
    %3438 = vmatpush.bf16.msra.mxu0 %v3298
    %3439 = vmatpush.bf16.msra.mxu0 %v3294
    %3440 = vmatpush.bf16.msra.mxu0 %v3290
    %3441 = vmatpush.bf16.msra.mxu0 %v3286
    %3442 = vmatpush.bf16.msra.mxu0 %v3282
    %3443 = vmatmul.bf16.gmra.mxu0 %v3023
    %v3444 = vpop.f32.mrf.mxu0
    %v3445 = vadd.f32 0.0, %v3444
    %v3446 = vpop.f32.mrf.mxu0
    %3447 = vdwg.mxu0
    %3448 = vmatpush.bf16.msra.mxu0 %v3342
    %3449 = vmatpush.bf16.msra.mxu0 %v3338
    %3450 = vmatpush.bf16.msra.mxu0 %v3334
    %3451 = vmatpush.bf16.msra.mxu0 %v3330
    %3452 = vmatpush.bf16.msra.mxu0 %v3326
    %3453 = vmatpush.bf16.msra.mxu0 %v3322
    %3454 = vmatpush.bf16.msra.mxu0 %v3318
    %3455 = vmatpush.bf16.msra.mxu0 %v3314
    %3456 = vmatmul.bf16.gmra.mxu0 %v3024
    %v3457 = vpop.f32.mrf.mxu0
    %v3458 = vadd.f32 %v3445, %v3457
    %v3459 = vpop.f32.mrf.mxu0
    %3460 = vdwg.mxu0
    %3461 = vmatpush.bf16.msra.mxu0 %v3311
    %3462 = vmatpush.bf16.msra.mxu0 %v3307
    %3463 = vmatpush.bf16.msra.mxu0 %v3303
    %3464 = vmatpush.bf16.msra.mxu0 %v3299
    %3465 = vmatpush.bf16.msra.mxu0 %v3295
    %3466 = vmatpush.bf16.msra.mxu0 %v3291
    %3467 = vmatpush.bf16.msra.mxu0 %v3287
    %3468 = vmatpush.bf16.msra.mxu0 %v3283
    %3469 = vmatmul.bf16.gmra.mxu0 %v3023
    %v3470 = vpop.f32.mrf.mxu0
    %v3471 = vadd.f32 0.0, %v3470
    %v3472 = vpop.f32.mrf.mxu0
    %3473 = vdwg.mxu0
    %3474 = vmatpush.bf16.msra.mxu0 %v3343
    %3475 = vmatpush.bf16.msra.mxu0 %v3339
    %3476 = vmatpush.bf16.msra.mxu0 %v3335
    %3477 = vmatpush.bf16.msra.mxu0 %v3331
    %3478 = vmatpush.bf16.msra.mxu0 %v3327
    %3479 = vmatpush.bf16.msra.mxu0 %v3323
    %3480 = vmatpush.bf16.msra.mxu0 %v3319
    %3481 = vmatpush.bf16.msra.mxu0 %v3315
    %3482 = vmatmul.bf16.gmra.mxu0 %v3024
    %v3483 = vpop.f32.mrf.mxu0
    %v3484 = vadd.f32 %v3471, %v3483
    %v3485 = vpop.f32.mrf.mxu0
    %3486 = vdwg.mxu0
    %3487 = vmatpush.bf16.msra.mxu0 %v3312
    %3488 = vmatpush.bf16.msra.mxu0 %v3308
    %3489 = vmatpush.bf16.msra.mxu0 %v3304
    %3490 = vmatpush.bf16.msra.mxu0 %v3300
    %3491 = vmatpush.bf16.msra.mxu0 %v3296
    %3492 = vmatpush.bf16.msra.mxu0 %v3292
    %3493 = vmatpush.bf16.msra.mxu0 %v3288
    %3494 = vmatpush.bf16.msra.mxu0 %v3284
    %3495 = vmatmul.bf16.gmra.mxu0 %v3023
    %v3496 = vpop.f32.mrf.mxu0
    %v3497 = vadd.f32 0.0, %v3496
    %v3498 = vpop.f32.mrf.mxu0
    %3499 = vdwg.mxu0
    %3500 = vmatpush.bf16.msra.mxu0 %v3344
    %3501 = vmatpush.bf16.msra.mxu0 %v3340
    %3502 = vmatpush.bf16.msra.mxu0 %v3336
    %3503 = vmatpush.bf16.msra.mxu0 %v3332
    %3504 = vmatpush.bf16.msra.mxu0 %v3328
    %3505 = vmatpush.bf16.msra.mxu0 %v3324
    %3506 = vmatpush.bf16.msra.mxu0 %v3320
    %3507 = vmatpush.bf16.msra.mxu0 %v3316
    %3508 = vmatmul.bf16.gmra.mxu0 %v3024
    %v3509 = vpop.f32.mrf.mxu0
    %v3510 = vadd.f32 %v3497, %v3509
    %v3511 = vpop.f32.mrf.mxu0
    %3512 = vdwg.mxu0
    %v3513 = vadd.f32 %v2897, %v3432
    %v3514 = vadd.f32 %v2923, %v3458
    %v3515 = vadd.f32 %v2949, %v3484
    %v3516 = vadd.f32 %v2975, %v3510
    %s3517 = scalar_lea.vmem [#allocation9], 12
    %v3518 = vld [vmem:[%s3517] sm:$0x7]
    %v3520 = vsel %vm1903, %v3518, 0
    %3522 = vmatpush.msra.mxu0 0.0
    %3523 = vmatpush.msra.mxu0 0.0
    %3524 = vmatpush.msra.mxu0 0.0
    %3525 = vmatpush.msra.mxu0 0.0
    %3526 = vmatpush.msra.mxu0 0.0
    %3527 = vmatpush.msra.mxu0 0.0
    %3528 = vmatpush.msra.mxu0 0.0
    %3529 = vmatpush.msra.mxu0 0.0
    %3530 = vmatpush.msra.mxu0 0.0
    %3531 = vmatpush.msra.mxu0 0.0
    %3532 = vmatpush.msra.mxu0 0.0
    %3533 = vmatpush.msra.mxu0 0.0
    %3534 = vmatpush.msra.mxu0 0.0
    %3535 = vmatpush.msra.mxu0 0.0
    %3536 = vmatpush.msra.mxu0 %v1908
    %3537 = vmatpush.msra.mxu0 %v1898
    %3538 = vmatmul.f32.gmra.mxu0 %v3520
    %v3539 = vpop.f32.mrf.mxu0
    %v3540 = vadd.f32 0.0, %v3539
    %3541 = vdwg.mxu0
    %3542 = vmatpush.msra.mxu0 0.0
    %3543 = vmatpush.msra.mxu0 0.0
    %3544 = vmatpush.msra.mxu0 0.0
    %3545 = vmatpush.msra.mxu0 0.0
    %3546 = vmatpush.msra.mxu0 0.0
    %3547 = vmatpush.msra.mxu0 0.0
    %3548 = vmatpush.msra.mxu0 0.0
    %3549 = vmatpush.msra.mxu0 0.0
    %3550 = vmatpush.msra.mxu0 0.0
    %3551 = vmatpush.msra.mxu0 0.0
    %3552 = vmatpush.msra.mxu0 0.0
    %3553 = vmatpush.msra.mxu0 0.0
    %3554 = vmatpush.msra.mxu0 0.0
    %3555 = vmatpush.msra.mxu0 0.0
    %3556 = vmatpush.msra.mxu0 %v1911
    %3557 = vmatpush.msra.mxu0 %v1899
    %3558 = vmatmul.f32.gmra.mxu0 %v3520
    %v3559 = vpop.f32.mrf.mxu0
    %v3560 = vadd.f32 0.0, %v3559
    %3561 = vdwg.mxu0
    %v3562 = vpack.c.bf16 %v3540, %v3540
    %v3563 = vpack.c.bf16 %v3560, %v3560
    %v3564 = vld [vmem:[#allocation29 + $0x600] sm:$0xff]
    %v3565 = vld [vmem:[#allocation29 + $0x608] sm:$0xff]
    %v3566 = vld [vmem:[#allocation29 + $0x610] sm:$0xff]
    %v3567 = vld [vmem:[#allocation29 + $0x618] sm:$0xff]
    %v3568 = vld [vmem:[#allocation29 + $0x620] sm:$0xff]
    %v3569 = vld [vmem:[#allocation29 + $0x628] sm:$0xff]
    %v3570 = vld [vmem:[#allocation29 + $0x630] sm:$0xff]
    %v3571 = vld [vmem:[#allocation29 + $0x638] sm:$0xff]
    %v3572 = vld [vmem:[#allocation29 + $0x640] sm:$0xff]
    %v3573 = vld [vmem:[#allocation29 + $0x648] sm:$0xff]
    %v3574 = vld [vmem:[#allocation29 + $0x650] sm:$0xff]
    %v3575 = vld [vmem:[#allocation29 + $0x658] sm:$0xff]
    %v3576 = vld [vmem:[#allocation29 + $0x660] sm:$0xff]
    %v3577 = vld [vmem:[#allocation29 + $0x668] sm:$0xff]
    %v3578 = vld [vmem:[#allocation29 + $0x670] sm:$0xff]
    %v3579 = vld [vmem:[#allocation29 + $0x678] sm:$0xff]
    %v3580 = vld [vmem:[#allocation29 + $0x680] sm:$0xff]
    %v3581 = vld [vmem:[#allocation29 + $0x688] sm:$0xff]
    %v3582 = vld [vmem:[#allocation29 + $0x690] sm:$0xff]
    %v3583 = vld [vmem:[#allocation29 + $0x698] sm:$0xff]
    %v3584 = vld [vmem:[#allocation29 + $0x6a0] sm:$0xff]
    %v3585 = vld [vmem:[#allocation29 + $0x6a8] sm:$0xff]
    %v3586 = vld [vmem:[#allocation29 + $0x6b0] sm:$0xff]
    %v3587 = vld [vmem:[#allocation29 + $0x6b8] sm:$0xff]
    %v3588 = vld [vmem:[#allocation29 + $0x6c0] sm:$0xff]
    %v3589 = vld [vmem:[#allocation29 + $0x6c8] sm:$0xff]
    %v3590 = vld [vmem:[#allocation29 + $0x6d0] sm:$0xff]
    %v3591 = vld [vmem:[#allocation29 + $0x6d8] sm:$0xff]
    %v3592 = vld [vmem:[#allocation29 + $0x6e0] sm:$0xff]
    %v3593 = vld [vmem:[#allocation29 + $0x6e8] sm:$0xff]
    %v3594 = vld [vmem:[#allocation29 + $0x6f0] sm:$0xff]
    %v3595 = vld [vmem:[#allocation29 + $0x6f8] sm:$0xff]
    %v3596 = vld [vmem:[#allocation29 + $0x700] sm:$0xff]
    %v3597 = vld [vmem:[#allocation29 + $0x708] sm:$0xff]
    %v3598 = vld [vmem:[#allocation29 + $0x710] sm:$0xff]
    %v3599 = vld [vmem:[#allocation29 + $0x718] sm:$0xff]
    %v3600 = vld [vmem:[#allocation29 + $0x720] sm:$0xff]
    %v3601 = vld [vmem:[#allocation29 + $0x728] sm:$0xff]
    %v3602 = vld [vmem:[#allocation29 + $0x730] sm:$0xff]
    %v3603 = vld [vmem:[#allocation29 + $0x738] sm:$0xff]
    %v3604 = vld [vmem:[#allocation29 + $0x740] sm:$0xff]
    %v3605 = vld [vmem:[#allocation29 + $0x748] sm:$0xff]
    %v3606 = vld [vmem:[#allocation29 + $0x750] sm:$0xff]
    %v3607 = vld [vmem:[#allocation29 + $0x758] sm:$0xff]
    %v3608 = vld [vmem:[#allocation29 + $0x760] sm:$0xff]
    %v3609 = vld [vmem:[#allocation29 + $0x768] sm:$0xff]
    %v3610 = vld [vmem:[#allocation29 + $0x770] sm:$0xff]
    %v3611 = vld [vmem:[#allocation29 + $0x778] sm:$0xff]
    %v3612 = vld [vmem:[#allocation29 + $0x780] sm:$0xff]
    %v3613 = vld [vmem:[#allocation29 + $0x788] sm:$0xff]
    %v3614 = vld [vmem:[#allocation29 + $0x790] sm:$0xff]
    %v3615 = vld [vmem:[#allocation29 + $0x798] sm:$0xff]
    %v3616 = vld [vmem:[#allocation29 + $0x7a0] sm:$0xff]
    %v3617 = vld [vmem:[#allocation29 + $0x7a8] sm:$0xff]
    %v3618 = vld [vmem:[#allocation29 + $0x7b0] sm:$0xff]
    %v3619 = vld [vmem:[#allocation29 + $0x7b8] sm:$0xff]
    %v3620 = vld [vmem:[#allocation29 + $0x7c0] sm:$0xff]
    %v3621 = vld [vmem:[#allocation29 + $0x7c8] sm:$0xff]
    %v3622 = vld [vmem:[#allocation29 + $0x7d0] sm:$0xff]
    %v3623 = vld [vmem:[#allocation29 + $0x7d8] sm:$0xff]
    %v3624 = vld [vmem:[#allocation29 + $0x7e0] sm:$0xff]
    %v3625 = vld [vmem:[#allocation29 + $0x7e8] sm:$0xff]
    %v3626 = vld [vmem:[#allocation29 + $0x7f0] sm:$0xff]
    %v3627 = vld [vmem:[#allocation29 + $0x7f8] sm:$0xff]
    %v3692 = vunpack.c.l.b16 %v3564
    %v3693 = vunpack.c.h.b16 %v3564
    %v3694 = vunpack.c.l.b16 %v3565
    %v3695 = vunpack.c.h.b16 %v3565
    %v3696 = vunpack.c.l.b16 %v3566
    %v3697 = vunpack.c.h.b16 %v3566
    %v3698 = vunpack.c.l.b16 %v3567
    %v3699 = vunpack.c.h.b16 %v3567
    %v3700 = vunpack.c.l.b16 %v3568
    %v3701 = vunpack.c.h.b16 %v3568
    %v3702 = vunpack.c.l.b16 %v3569
    %v3703 = vunpack.c.h.b16 %v3569
    %v3704 = vunpack.c.l.b16 %v3570
    %v3705 = vunpack.c.h.b16 %v3570
    %v3706 = vunpack.c.l.b16 %v3571
    %v3707 = vunpack.c.h.b16 %v3571
    %v3708 = vunpack.c.l.b16 %v3572
    %v3709 = vunpack.c.h.b16 %v3572
    %v3710 = vunpack.c.l.b16 %v3573
    %v3711 = vunpack.c.h.b16 %v3573
    %v3712 = vunpack.c.l.b16 %v3574
    %v3713 = vunpack.c.h.b16 %v3574
    %v3714 = vunpack.c.l.b16 %v3575
    %v3715 = vunpack.c.h.b16 %v3575
    %v3716 = vunpack.c.l.b16 %v3576
    %v3717 = vunpack.c.h.b16 %v3576
    %v3718 = vunpack.c.l.b16 %v3577
    %v3719 = vunpack.c.h.b16 %v3577
    %v3720 = vunpack.c.l.b16 %v3578
    %v3721 = vunpack.c.h.b16 %v3578
    %v3722 = vunpack.c.l.b16 %v3579
    %v3723 = vunpack.c.h.b16 %v3579
    %v3724 = vunpack.c.l.b16 %v3580
    %v3725 = vunpack.c.h.b16 %v3580
    %v3726 = vunpack.c.l.b16 %v3581
    %v3727 = vunpack.c.h.b16 %v3581
    %v3728 = vunpack.c.l.b16 %v3582
    %v3729 = vunpack.c.h.b16 %v3582
    %v3730 = vunpack.c.l.b16 %v3583
    %v3731 = vunpack.c.h.b16 %v3583
    %v3732 = vunpack.c.l.b16 %v3584
    %v3733 = vunpack.c.h.b16 %v3584
    %v3734 = vunpack.c.l.b16 %v3585
    %v3735 = vunpack.c.h.b16 %v3585
    %v3736 = vunpack.c.l.b16 %v3586
    %v3737 = vunpack.c.h.b16 %v3586
    %v3738 = vunpack.c.l.b16 %v3587
    %v3739 = vunpack.c.h.b16 %v3587
    %v3740 = vunpack.c.l.b16 %v3588
    %v3741 = vunpack.c.h.b16 %v3588
    %v3742 = vunpack.c.l.b16 %v3589
    %v3743 = vunpack.c.h.b16 %v3589
    %v3744 = vunpack.c.l.b16 %v3590
    %v3745 = vunpack.c.h.b16 %v3590
    %v3746 = vunpack.c.l.b16 %v3591
    %v3747 = vunpack.c.h.b16 %v3591
    %v3748 = vunpack.c.l.b16 %v3592
    %v3749 = vunpack.c.h.b16 %v3592
    %v3750 = vunpack.c.l.b16 %v3593
    %v3751 = vunpack.c.h.b16 %v3593
    %v3752 = vunpack.c.l.b16 %v3594
    %v3753 = vunpack.c.h.b16 %v3594
    %v3754 = vunpack.c.l.b16 %v3595
    %v3755 = vunpack.c.h.b16 %v3595
    %v3756 = vunpack.c.l.b16 %v3596
    %v3757 = vunpack.c.h.b16 %v3596
    %v3758 = vunpack.c.l.b16 %v3597
    %v3759 = vunpack.c.h.b16 %v3597
    %v3760 = vunpack.c.l.b16 %v3598
    %v3761 = vunpack.c.h.b16 %v3598
    %v3762 = vunpack.c.l.b16 %v3599
    %v3763 = vunpack.c.h.b16 %v3599
    %v3764 = vunpack.c.l.b16 %v3600
    %v3765 = vunpack.c.h.b16 %v3600
    %v3766 = vunpack.c.l.b16 %v3601
    %v3767 = vunpack.c.h.b16 %v3601
    %v3768 = vunpack.c.l.b16 %v3602
    %v3769 = vunpack.c.h.b16 %v3602
    %v3770 = vunpack.c.l.b16 %v3603
    %v3771 = vunpack.c.h.b16 %v3603
    %v3772 = vunpack.c.l.b16 %v3604
    %v3773 = vunpack.c.h.b16 %v3604
    %v3774 = vunpack.c.l.b16 %v3605
    %v3775 = vunpack.c.h.b16 %v3605
    %v3776 = vunpack.c.l.b16 %v3606
    %v3777 = vunpack.c.h.b16 %v3606
    %v3778 = vunpack.c.l.b16 %v3607
    %v3779 = vunpack.c.h.b16 %v3607
    %v3780 = vunpack.c.l.b16 %v3608
    %v3781 = vunpack.c.h.b16 %v3608
    %v3782 = vunpack.c.l.b16 %v3609
    %v3783 = vunpack.c.h.b16 %v3609
    %v3784 = vunpack.c.l.b16 %v3610
    %v3785 = vunpack.c.h.b16 %v3610
    %v3786 = vunpack.c.l.b16 %v3611
    %v3787 = vunpack.c.h.b16 %v3611
    %v3788 = vunpack.c.l.b16 %v3612
    %v3789 = vunpack.c.h.b16 %v3612
    %v3790 = vunpack.c.l.b16 %v3613
    %v3791 = vunpack.c.h.b16 %v3613
    %v3792 = vunpack.c.l.b16 %v3614
    %v3793 = vunpack.c.h.b16 %v3614
    %v3794 = vunpack.c.l.b16 %v3615
    %v3795 = vunpack.c.h.b16 %v3615
    %v3796 = vunpack.c.l.b16 %v3616
    %v3797 = vunpack.c.h.b16 %v3616
    %v3798 = vunpack.c.l.b16 %v3617
    %v3799 = vunpack.c.h.b16 %v3617
    %v3800 = vunpack.c.l.b16 %v3618
    %v3801 = vunpack.c.h.b16 %v3618
    %v3802 = vunpack.c.l.b16 %v3619
    %v3803 = vunpack.c.h.b16 %v3619
    %v3804 = vunpack.c.l.b16 %v3620
    %v3805 = vunpack.c.h.b16 %v3620
    %v3806 = vunpack.c.l.b16 %v3621
    %v3807 = vunpack.c.h.b16 %v3621
    %v3808 = vunpack.c.l.b16 %v3622
    %v3809 = vunpack.c.h.b16 %v3622
    %v3810 = vunpack.c.l.b16 %v3623
    %v3811 = vunpack.c.h.b16 %v3623
    %v3812 = vunpack.c.l.b16 %v3624
    %v3813 = vunpack.c.h.b16 %v3624
    %v3814 = vunpack.c.l.b16 %v3625
    %v3815 = vunpack.c.h.b16 %v3625
    %v3816 = vunpack.c.l.b16 %v3626
    %v3817 = vunpack.c.h.b16 %v3626
    %v3818 = vunpack.c.l.b16 %v3627
    %v3819 = vunpack.c.h.b16 %v3627
    %v3820 = vpack.c.b16 %v3696, %v3692
    %v3821 = vpack.c.b16 %v3697, %v3693
    %v3822 = vpack.c.b16 %v3698, %v3694
    %v3823 = vpack.c.b16 %v3699, %v3695
    %v3824 = vpack.c.b16 %v3704, %v3700
    %v3825 = vpack.c.b16 %v3705, %v3701
    %v3826 = vpack.c.b16 %v3706, %v3702
    %v3827 = vpack.c.b16 %v3707, %v3703
    %v3828 = vpack.c.b16 %v3712, %v3708
    %v3829 = vpack.c.b16 %v3713, %v3709
    %v3830 = vpack.c.b16 %v3714, %v3710
    %v3831 = vpack.c.b16 %v3715, %v3711
    %v3832 = vpack.c.b16 %v3720, %v3716
    %v3833 = vpack.c.b16 %v3721, %v3717
    %v3834 = vpack.c.b16 %v3722, %v3718
    %v3835 = vpack.c.b16 %v3723, %v3719
    %v3836 = vpack.c.b16 %v3728, %v3724
    %v3837 = vpack.c.b16 %v3729, %v3725
    %v3838 = vpack.c.b16 %v3730, %v3726
    %v3839 = vpack.c.b16 %v3731, %v3727
    %v3840 = vpack.c.b16 %v3736, %v3732
    %v3841 = vpack.c.b16 %v3737, %v3733
    %v3842 = vpack.c.b16 %v3738, %v3734
    %v3843 = vpack.c.b16 %v3739, %v3735
    %v3844 = vpack.c.b16 %v3744, %v3740
    %v3845 = vpack.c.b16 %v3745, %v3741
    %v3846 = vpack.c.b16 %v3746, %v3742
    %v3847 = vpack.c.b16 %v3747, %v3743
    %v3848 = vpack.c.b16 %v3752, %v3748
    %v3849 = vpack.c.b16 %v3753, %v3749
    %v3850 = vpack.c.b16 %v3754, %v3750
    %v3851 = vpack.c.b16 %v3755, %v3751
    %v3852 = vpack.c.b16 %v3760, %v3756
    %v3853 = vpack.c.b16 %v3761, %v3757
    %v3854 = vpack.c.b16 %v3762, %v3758
    %v3855 = vpack.c.b16 %v3763, %v3759
    %v3856 = vpack.c.b16 %v3768, %v3764
    %v3857 = vpack.c.b16 %v3769, %v3765
    %v3858 = vpack.c.b16 %v3770, %v3766
    %v3859 = vpack.c.b16 %v3771, %v3767
    %v3860 = vpack.c.b16 %v3776, %v3772
    %v3861 = vpack.c.b16 %v3777, %v3773
    %v3862 = vpack.c.b16 %v3778, %v3774
    %v3863 = vpack.c.b16 %v3779, %v3775
    %v3864 = vpack.c.b16 %v3784, %v3780
    %v3865 = vpack.c.b16 %v3785, %v3781
    %v3866 = vpack.c.b16 %v3786, %v3782
    %v3867 = vpack.c.b16 %v3787, %v3783
    %v3868 = vpack.c.b16 %v3792, %v3788
    %v3869 = vpack.c.b16 %v3793, %v3789
    %v3870 = vpack.c.b16 %v3794, %v3790
    %v3871 = vpack.c.b16 %v3795, %v3791
    %v3872 = vpack.c.b16 %v3800, %v3796
    %v3873 = vpack.c.b16 %v3801, %v3797
    %v3874 = vpack.c.b16 %v3802, %v3798
    %v3875 = vpack.c.b16 %v3803, %v3799
    %v3876 = vpack.c.b16 %v3808, %v3804
    %v3877 = vpack.c.b16 %v3809, %v3805
    %v3878 = vpack.c.b16 %v3810, %v3806
    %v3879 = vpack.c.b16 %v3811, %v3807
    %v3880 = vpack.c.b16 %v3816, %v3812
    %v3881 = vpack.c.b16 %v3817, %v3813
    %v3882 = vpack.c.b16 %v3818, %v3814
    %v3883 = vpack.c.b16 %v3819, %v3815
    %3948 = vmatpush.bf16.msra.mxu0 %v3848
    %3949 = vmatpush.bf16.msra.mxu0 %v3844
    %3950 = vmatpush.bf16.msra.mxu0 %v3840
    %3951 = vmatpush.bf16.msra.mxu0 %v3836
    %3952 = vmatpush.bf16.msra.mxu0 %v3832
    %3953 = vmatpush.bf16.msra.mxu0 %v3828
    %3954 = vmatpush.bf16.msra.mxu0 %v3824
    %3955 = vmatpush.bf16.msra.mxu0 %v3820
    %3956 = vmatmul.bf16.gmra.mxu0 %v3562
    %v3957 = vpop.f32.mrf.mxu0
    %v3958 = vadd.f32 0.0, %v3957
    %v3959 = vpop.f32.mrf.mxu0
    %3960 = vdwg.mxu0
    %3961 = vmatpush.bf16.msra.mxu0 %v3880
    %3962 = vmatpush.bf16.msra.mxu0 %v3876
    %3963 = vmatpush.bf16.msra.mxu0 %v3872
    %3964 = vmatpush.bf16.msra.mxu0 %v3868
    %3965 = vmatpush.bf16.msra.mxu0 %v3864
    %3966 = vmatpush.bf16.msra.mxu0 %v3860
    %3967 = vmatpush.bf16.msra.mxu0 %v3856
    %3968 = vmatpush.bf16.msra.mxu0 %v3852
    %3969 = vmatmul.bf16.gmra.mxu0 %v3563
    %v3970 = vpop.f32.mrf.mxu0
    %v3971 = vadd.f32 %v3958, %v3970
    %v3972 = vpop.f32.mrf.mxu0
    %3973 = vdwg.mxu0
    %3974 = vmatpush.bf16.msra.mxu0 %v3849
    %3975 = vmatpush.bf16.msra.mxu0 %v3845
    %3976 = vmatpush.bf16.msra.mxu0 %v3841
    %3977 = vmatpush.bf16.msra.mxu0 %v3837
    %3978 = vmatpush.bf16.msra.mxu0 %v3833
    %3979 = vmatpush.bf16.msra.mxu0 %v3829
    %3980 = vmatpush.bf16.msra.mxu0 %v3825
    %3981 = vmatpush.bf16.msra.mxu0 %v3821
    %3982 = vmatmul.bf16.gmra.mxu0 %v3562
    %v3983 = vpop.f32.mrf.mxu0
    %v3984 = vadd.f32 0.0, %v3983
    %v3985 = vpop.f32.mrf.mxu0
    %3986 = vdwg.mxu0
    %3987 = vmatpush.bf16.msra.mxu0 %v3881
    %3988 = vmatpush.bf16.msra.mxu0 %v3877
    %3989 = vmatpush.bf16.msra.mxu0 %v3873
    %3990 = vmatpush.bf16.msra.mxu0 %v3869
    %3991 = vmatpush.bf16.msra.mxu0 %v3865
    %3992 = vmatpush.bf16.msra.mxu0 %v3861
    %3993 = vmatpush.bf16.msra.mxu0 %v3857
    %3994 = vmatpush.bf16.msra.mxu0 %v3853
    %3995 = vmatmul.bf16.gmra.mxu0 %v3563
    %v3996 = vpop.f32.mrf.mxu0
    %v3997 = vadd.f32 %v3984, %v3996
    %v3998 = vpop.f32.mrf.mxu0
    %3999 = vdwg.mxu0
    %4000 = vmatpush.bf16.msra.mxu0 %v3850
    %4001 = vmatpush.bf16.msra.mxu0 %v3846
    %4002 = vmatpush.bf16.msra.mxu0 %v3842
    %4003 = vmatpush.bf16.msra.mxu0 %v3838
    %4004 = vmatpush.bf16.msra.mxu0 %v3834
    %4005 = vmatpush.bf16.msra.mxu0 %v3830
    %4006 = vmatpush.bf16.msra.mxu0 %v3826
    %4007 = vmatpush.bf16.msra.mxu0 %v3822
    %4008 = vmatmul.bf16.gmra.mxu0 %v3562
    %v4009 = vpop.f32.mrf.mxu0
    %v4010 = vadd.f32 0.0, %v4009
    %v4011 = vpop.f32.mrf.mxu0
    %4012 = vdwg.mxu0
    %4013 = vmatpush.bf16.msra.mxu0 %v3882
    %4014 = vmatpush.bf16.msra.mxu0 %v3878
    %4015 = vmatpush.bf16.msra.mxu0 %v3874
    %4016 = vmatpush.bf16.msra.mxu0 %v3870
    %4017 = vmatpush.bf16.msra.mxu0 %v3866
    %4018 = vmatpush.bf16.msra.mxu0 %v3862
    %4019 = vmatpush.bf16.msra.mxu0 %v3858
    %4020 = vmatpush.bf16.msra.mxu0 %v3854
    %4021 = vmatmul.bf16.gmra.mxu0 %v3563
    %v4022 = vpop.f32.mrf.mxu0
    %v4023 = vadd.f32 %v4010, %v4022
    %v4024 = vpop.f32.mrf.mxu0
    %4025 = vdwg.mxu0
    %4026 = vmatpush.bf16.msra.mxu0 %v3851
    %4027 = vmatpush.bf16.msra.mxu0 %v3847
    %4028 = vmatpush.bf16.msra.mxu0 %v3843
    %4029 = vmatpush.bf16.msra.mxu0 %v3839
    %4030 = vmatpush.bf16.msra.mxu0 %v3835
    %4031 = vmatpush.bf16.msra.mxu0 %v3831
    %4032 = vmatpush.bf16.msra.mxu0 %v3827
    %4033 = vmatpush.bf16.msra.mxu0 %v3823
    %4034 = vmatmul.bf16.gmra.mxu0 %v3562
    %v4035 = vpop.f32.mrf.mxu0
    %v4036 = vadd.f32 0.0, %v4035
    %v4037 = vpop.f32.mrf.mxu0
    %4038 = vdwg.mxu0
    %4039 = vmatpush.bf16.msra.mxu0 %v3883
    %4040 = vmatpush.bf16.msra.mxu0 %v3879
    %4041 = vmatpush.bf16.msra.mxu0 %v3875
    %4042 = vmatpush.bf16.msra.mxu0 %v3871
    %4043 = vmatpush.bf16.msra.mxu0 %v3867
    %4044 = vmatpush.bf16.msra.mxu0 %v3863
    %4045 = vmatpush.bf16.msra.mxu0 %v3859
    %4046 = vmatpush.bf16.msra.mxu0 %v3855
    %4047 = vmatmul.bf16.gmra.mxu0 %v3563
    %v4048 = vpop.f32.mrf.mxu0
    %v4049 = vadd.f32 %v4036, %v4048
    %v4050 = vpop.f32.mrf.mxu0
    %4051 = vdwg.mxu0
    %v4052 = vadd.f32 %v3513, %v3971
    %v4053 = vadd.f32 %v3514, %v3997
    %v4054 = vadd.f32 %v3515, %v4023
    %v4055 = vadd.f32 %v3516, %v4049
    %s4056 = scalar_lea.vmem [#allocation9], 16
    %v4057 = vld [vmem:[%s4056] sm:$0x7]
    %v4059 = vsel %vm1903, %v4057, 0
    %4061 = vmatpush.msra.mxu0 0.0
    %4062 = vmatpush.msra.mxu0 0.0
    %4063 = vmatpush.msra.mxu0 0.0
    %4064 = vmatpush.msra.mxu0 0.0
    %4065 = vmatpush.msra.mxu0 0.0
    %4066 = vmatpush.msra.mxu0 0.0
    %4067 = vmatpush.msra.mxu0 0.0
    %4068 = vmatpush.msra.mxu0 0.0
    %4069 = vmatpush.msra.mxu0 0.0
    %4070 = vmatpush.msra.mxu0 0.0
    %4071 = vmatpush.msra.mxu0 0.0
    %4072 = vmatpush.msra.mxu0 0.0
    %4073 = vmatpush.msra.mxu0 0.0
    %4074 = vmatpush.msra.mxu0 0.0
    %4075 = vmatpush.msra.mxu0 %v1908
    %4076 = vmatpush.msra.mxu0 %v1898
    %4077 = vmatmul.f32.gmra.mxu0 %v4059
    %v4078 = vpop.f32.mrf.mxu0
    %v4079 = vadd.f32 0.0, %v4078
    %4080 = vdwg.mxu0
    %4081 = vmatpush.msra.mxu0 0.0
    %4082 = vmatpush.msra.mxu0 0.0
    %4083 = vmatpush.msra.mxu0 0.0
    %4084 = vmatpush.msra.mxu0 0.0
    %4085 = vmatpush.msra.mxu0 0.0
    %4086 = vmatpush.msra.mxu0 0.0
    %4087 = vmatpush.msra.mxu0 0.0
    %4088 = vmatpush.msra.mxu0 0.0
    %4089 = vmatpush.msra.mxu0 0.0
    %4090 = vmatpush.msra.mxu0 0.0
    %4091 = vmatpush.msra.mxu0 0.0
    %4092 = vmatpush.msra.mxu0 0.0
    %4093 = vmatpush.msra.mxu0 0.0
    %4094 = vmatpush.msra.mxu0 0.0
    %4095 = vmatpush.msra.mxu0 %v1911
    %4096 = vmatpush.msra.mxu0 %v1899
    %4097 = vmatmul.f32.gmra.mxu0 %v4059
    %v4098 = vpop.f32.mrf.mxu0
    %v4099 = vadd.f32 0.0, %v4098
    %4100 = vdwg.mxu0
    %v4101 = vpack.c.bf16 %v4079, %v4079
    %v4102 = vpack.c.bf16 %v4099, %v4099
    %v4103 = vld [vmem:[#allocation29 + $0x800] sm:$0xff]
    %v4104 = vld [vmem:[#allocation29 + $0x808] sm:$0xff]
    %v4105 = vld [vmem:[#allocation29 + $0x810] sm:$0xff]
    %v4106 = vld [vmem:[#allocation29 + $0x818] sm:$0xff]
    %v4107 = vld [vmem:[#allocation29 + $0x820] sm:$0xff]
    %v4108 = vld [vmem:[#allocation29 + $0x828] sm:$0xff]
    %v4109 = vld [vmem:[#allocation29 + $0x830] sm:$0xff]
    %v4110 = vld [vmem:[#allocation29 + $0x838] sm:$0xff]
    %v4111 = vld [vmem:[#allocation29 + $0x840] sm:$0xff]
    %v4112 = vld [vmem:[#allocation29 + $0x848] sm:$0xff]
    %v4113 = vld [vmem:[#allocation29 + $0x850] sm:$0xff]
    %v4114 = vld [vmem:[#allocation29 + $0x858] sm:$0xff]
    %v4115 = vld [vmem:[#allocation29 + $0x860] sm:$0xff]
    %v4116 = vld [vmem:[#allocation29 + $0x868] sm:$0xff]
    %v4117 = vld [vmem:[#allocation29 + $0x870] sm:$0xff]
    %v4118 = vld [vmem:[#allocation29 + $0x878] sm:$0xff]
    %v4119 = vld [vmem:[#allocation29 + $0x880] sm:$0xff]
    %v4120 = vld [vmem:[#allocation29 + $0x888] sm:$0xff]
    %v4121 = vld [vmem:[#allocation29 + $0x890] sm:$0xff]
    %v4122 = vld [vmem:[#allocation29 + $0x898] sm:$0xff]
    %v4123 = vld [vmem:[#allocation29 + $0x8a0] sm:$0xff]
    %v4124 = vld [vmem:[#allocation29 + $0x8a8] sm:$0xff]
    %v4125 = vld [vmem:[#allocation29 + $0x8b0] sm:$0xff]
    %v4126 = vld [vmem:[#allocation29 + $0x8b8] sm:$0xff]
    %v4127 = vld [vmem:[#allocation29 + $0x8c0] sm:$0xff]
    %v4128 = vld [vmem:[#allocation29 + $0x8c8] sm:$0xff]
    %v4129 = vld [vmem:[#allocation29 + $0x8d0] sm:$0xff]
    %v4130 = vld [vmem:[#allocation29 + $0x8d8] sm:$0xff]
    %v4131 = vld [vmem:[#allocation29 + $0x8e0] sm:$0xff]
    %v4132 = vld [vmem:[#allocation29 + $0x8e8] sm:$0xff]
    %v4133 = vld [vmem:[#allocation29 + $0x8f0] sm:$0xff]
    %v4134 = vld [vmem:[#allocation29 + $0x8f8] sm:$0xff]
    %v4135 = vld [vmem:[#allocation29 + $0x900] sm:$0xff]
    %v4136 = vld [vmem:[#allocation29 + $0x908] sm:$0xff]
    %v4137 = vld [vmem:[#allocation29 + $0x910] sm:$0xff]
    %v4138 = vld [vmem:[#allocation29 + $0x918] sm:$0xff]
    %v4139 = vld [vmem:[#allocation29 + $0x920] sm:$0xff]
    %v4140 = vld [vmem:[#allocation29 + $0x928] sm:$0xff]
    %v4141 = vld [vmem:[#allocation29 + $0x930] sm:$0xff]
    %v4142 = vld [vmem:[#allocation29 + $0x938] sm:$0xff]
    %v4143 = vld [vmem:[#allocation29 + $0x940] sm:$0xff]
    %v4144 = vld [vmem:[#allocation29 + $0x948] sm:$0xff]
    %v4145 = vld [vmem:[#allocation29 + $0x950] sm:$0xff]
    %v4146 = vld [vmem:[#allocation29 + $0x958] sm:$0xff]
    %v4147 = vld [vmem:[#allocation29 + $0x960] sm:$0xff]
    %v4148 = vld [vmem:[#allocation29 + $0x968] sm:$0xff]
    %v4149 = vld [vmem:[#allocation29 + $0x970] sm:$0xff]
    %v4150 = vld [vmem:[#allocation29 + $0x978] sm:$0xff]
    %v4151 = vld [vmem:[#allocation29 + $0x980] sm:$0xff]
    %v4152 = vld [vmem:[#allocation29 + $0x988] sm:$0xff]
    %v4153 = vld [vmem:[#allocation29 + $0x990] sm:$0xff]
    %v4154 = vld [vmem:[#allocation29 + $0x998] sm:$0xff]
    %v4155 = vld [vmem:[#allocation29 + $0x9a0] sm:$0xff]
    %v4156 = vld [vmem:[#allocation29 + $0x9a8] sm:$0xff]
    %v4157 = vld [vmem:[#allocation29 + $0x9b0] sm:$0xff]
    %v4158 = vld [vmem:[#allocation29 + $0x9b8] sm:$0xff]
    %v4159 = vld [vmem:[#allocation29 + $0x9c0] sm:$0xff]
    %v4160 = vld [vmem:[#allocation29 + $0x9c8] sm:$0xff]
    %v4161 = vld [vmem:[#allocation29 + $0x9d0] sm:$0xff]
    %v4162 = vld [vmem:[#allocation29 + $0x9d8] sm:$0xff]
    %v4163 = vld [vmem:[#allocation29 + $0x9e0] sm:$0xff]
    %v4164 = vld [vmem:[#allocation29 + $0x9e8] sm:$0xff]
    %v4165 = vld [vmem:[#allocation29 + $0x9f0] sm:$0xff]
    %v4166 = vld [vmem:[#allocation29 + $0x9f8] sm:$0xff]
    %v4231 = vunpack.c.l.b16 %v4103
    %v4232 = vunpack.c.h.b16 %v4103
    %v4233 = vunpack.c.l.b16 %v4104
    %v4234 = vunpack.c.h.b16 %v4104
    %v4235 = vunpack.c.l.b16 %v4105
    %v4236 = vunpack.c.h.b16 %v4105
    %v4237 = vunpack.c.l.b16 %v4106
    %v4238 = vunpack.c.h.b16 %v4106
    %v4239 = vunpack.c.l.b16 %v4107
    %v4240 = vunpack.c.h.b16 %v4107
    %v4241 = vunpack.c.l.b16 %v4108
    %v4242 = vunpack.c.h.b16 %v4108
    %v4243 = vunpack.c.l.b16 %v4109
    %v4244 = vunpack.c.h.b16 %v4109
    %v4245 = vunpack.c.l.b16 %v4110
    %v4246 = vunpack.c.h.b16 %v4110
    %v4247 = vunpack.c.l.b16 %v4111
    %v4248 = vunpack.c.h.b16 %v4111
    %v4249 = vunpack.c.l.b16 %v4112
    %v4250 = vunpack.c.h.b16 %v4112
    %v4251 = vunpack.c.l.b16 %v4113
    %v4252 = vunpack.c.h.b16 %v4113
    %v4253 = vunpack.c.l.b16 %v4114
    %v4254 = vunpack.c.h.b16 %v4114
    %v4255 = vunpack.c.l.b16 %v4115
    %v4256 = vunpack.c.h.b16 %v4115
    %v4257 = vunpack.c.l.b16 %v4116
    %v4258 = vunpack.c.h.b16 %v4116
    %v4259 = vunpack.c.l.b16 %v4117
    %v4260 = vunpack.c.h.b16 %v4117
    %v4261 = vunpack.c.l.b16 %v4118
    %v4262 = vunpack.c.h.b16 %v4118
    %v4263 = vunpack.c.l.b16 %v4119
    %v4264 = vunpack.c.h.b16 %v4119
    %v4265 = vunpack.c.l.b16 %v4120
    %v4266 = vunpack.c.h.b16 %v4120
    %v4267 = vunpack.c.l.b16 %v4121
    %v4268 = vunpack.c.h.b16 %v4121
    %v4269 = vunpack.c.l.b16 %v4122
    %v4270 = vunpack.c.h.b16 %v4122
    %v4271 = vunpack.c.l.b16 %v4123
    %v4272 = vunpack.c.h.b16 %v4123
    %v4273 = vunpack.c.l.b16 %v4124
    %v4274 = vunpack.c.h.b16 %v4124
    %v4275 = vunpack.c.l.b16 %v4125
    %v4276 = vunpack.c.h.b16 %v4125
    %v4277 = vunpack.c.l.b16 %v4126
    %v4278 = vunpack.c.h.b16 %v4126
    %v4279 = vunpack.c.l.b16 %v4127
    %v4280 = vunpack.c.h.b16 %v4127
    %v4281 = vunpack.c.l.b16 %v4128
    %v4282 = vunpack.c.h.b16 %v4128
    %v4283 = vunpack.c.l.b16 %v4129
    %v4284 = vunpack.c.h.b16 %v4129
    %v4285 = vunpack.c.l.b16 %v4130
    %v4286 = vunpack.c.h.b16 %v4130
    %v4287 = vunpack.c.l.b16 %v4131
    %v4288 = vunpack.c.h.b16 %v4131
    %v4289 = vunpack.c.l.b16 %v4132
    %v4290 = vunpack.c.h.b16 %v4132
    %v4291 = vunpack.c.l.b16 %v4133
    %v4292 = vunpack.c.h.b16 %v4133
    %v4293 = vunpack.c.l.b16 %v4134
    %v4294 = vunpack.c.h.b16 %v4134
    %v4295 = vunpack.c.l.b16 %v4135
    %v4296 = vunpack.c.h.b16 %v4135
    %v4297 = vunpack.c.l.b16 %v4136
    %v4298 = vunpack.c.h.b16 %v4136
    %v4299 = vunpack.c.l.b16 %v4137
    %v4300 = vunpack.c.h.b16 %v4137
    %v4301 = vunpack.c.l.b16 %v4138
    %v4302 = vunpack.c.h.b16 %v4138
    %v4303 = vunpack.c.l.b16 %v4139
    %v4304 = vunpack.c.h.b16 %v4139
    %v4305 = vunpack.c.l.b16 %v4140
    %v4306 = vunpack.c.h.b16 %v4140
    %v4307 = vunpack.c.l.b16 %v4141
    %v4308 = vunpack.c.h.b16 %v4141
    %v4309 = vunpack.c.l.b16 %v4142
    %v4310 = vunpack.c.h.b16 %v4142
    %v4311 = vunpack.c.l.b16 %v4143
    %v4312 = vunpack.c.h.b16 %v4143
    %v4313 = vunpack.c.l.b16 %v4144
    %v4314 = vunpack.c.h.b16 %v4144
    %v4315 = vunpack.c.l.b16 %v4145
    %v4316 = vunpack.c.h.b16 %v4145
    %v4317 = vunpack.c.l.b16 %v4146
    %v4318 = vunpack.c.h.b16 %v4146
    %v4319 = vunpack.c.l.b16 %v4147
    %v4320 = vunpack.c.h.b16 %v4147
    %v4321 = vunpack.c.l.b16 %v4148
    %v4322 = vunpack.c.h.b16 %v4148
    %v4323 = vunpack.c.l.b16 %v4149
    %v4324 = vunpack.c.h.b16 %v4149
    %v4325 = vunpack.c.l.b16 %v4150
    %v4326 = vunpack.c.h.b16 %v4150
    %v4327 = vunpack.c.l.b16 %v4151
    %v4328 = vunpack.c.h.b16 %v4151
    %v4329 = vunpack.c.l.b16 %v4152
    %v4330 = vunpack.c.h.b16 %v4152
    %v4331 = vunpack.c.l.b16 %v4153
    %v4332 = vunpack.c.h.b16 %v4153
    %v4333 = vunpack.c.l.b16 %v4154
    %v4334 = vunpack.c.h.b16 %v4154
    %v4335 = vunpack.c.l.b16 %v4155
    %v4336 = vunpack.c.h.b16 %v4155
    %v4337 = vunpack.c.l.b16 %v4156
    %v4338 = vunpack.c.h.b16 %v4156
    %v4339 = vunpack.c.l.b16 %v4157
    %v4340 = vunpack.c.h.b16 %v4157
    %v4341 = vunpack.c.l.b16 %v4158
    %v4342 = vunpack.c.h.b16 %v4158
    %v4343 = vunpack.c.l.b16 %v4159
    %v4344 = vunpack.c.h.b16 %v4159
    %v4345 = vunpack.c.l.b16 %v4160
    %v4346 = vunpack.c.h.b16 %v4160
    %v4347 = vunpack.c.l.b16 %v4161
    %v4348 = vunpack.c.h.b16 %v4161
    %v4349 = vunpack.c.l.b16 %v4162
    %v4350 = vunpack.c.h.b16 %v4162
    %v4351 = vunpack.c.l.b16 %v4163
    %v4352 = vunpack.c.h.b16 %v4163
    %v4353 = vunpack.c.l.b16 %v4164
    %v4354 = vunpack.c.h.b16 %v4164
    %v4355 = vunpack.c.l.b16 %v4165
    %v4356 = vunpack.c.h.b16 %v4165
    %v4357 = vunpack.c.l.b16 %v4166
    %v4358 = vunpack.c.h.b16 %v4166
    %v4359 = vpack.c.b16 %v4235, %v4231
    %v4360 = vpack.c.b16 %v4236, %v4232
    %v4361 = vpack.c.b16 %v4237, %v4233
    %v4362 = vpack.c.b16 %v4238, %v4234
    %v4363 = vpack.c.b16 %v4243, %v4239
    %v4364 = vpack.c.b16 %v4244, %v4240
    %v4365 = vpack.c.b16 %v4245, %v4241
    %v4366 = vpack.c.b16 %v4246, %v4242
    %v4367 = vpack.c.b16 %v4251, %v4247
    %v4368 = vpack.c.b16 %v4252, %v4248
    %v4369 = vpack.c.b16 %v4253, %v4249
    %v4370 = vpack.c.b16 %v4254, %v4250
    %v4371 = vpack.c.b16 %v4259, %v4255
    %v4372 = vpack.c.b16 %v4260, %v4256
    %v4373 = vpack.c.b16 %v4261, %v4257
    %v4374 = vpack.c.b16 %v4262, %v4258
    %v4375 = vpack.c.b16 %v4267, %v4263
    %v4376 = vpack.c.b16 %v4268, %v4264
    %v4377 = vpack.c.b16 %v4269, %v4265
    %v4378 = vpack.c.b16 %v4270, %v4266
    %v4379 = vpack.c.b16 %v4275, %v4271
    %v4380 = vpack.c.b16 %v4276, %v4272
    %v4381 = vpack.c.b16 %v4277, %v4273
    %v4382 = vpack.c.b16 %v4278, %v4274
    %v4383 = vpack.c.b16 %v4283, %v4279
    %v4384 = vpack.c.b16 %v4284, %v4280
    %v4385 = vpack.c.b16 %v4285, %v4281
    %v4386 = vpack.c.b16 %v4286, %v4282
    %v4387 = vpack.c.b16 %v4291, %v4287
    %v4388 = vpack.c.b16 %v4292, %v4288
    %v4389 = vpack.c.b16 %v4293, %v4289
    %v4390 = vpack.c.b16 %v4294, %v4290
    %v4391 = vpack.c.b16 %v4299, %v4295
    %v4392 = vpack.c.b16 %v4300, %v4296
    %v4393 = vpack.c.b16 %v4301, %v4297
    %v4394 = vpack.c.b16 %v4302, %v4298
    %v4395 = vpack.c.b16 %v4307, %v4303
    %v4396 = vpack.c.b16 %v4308, %v4304
    %v4397 = vpack.c.b16 %v4309, %v4305
    %v4398 = vpack.c.b16 %v4310, %v4306
    %v4399 = vpack.c.b16 %v4315, %v4311
    %v4400 = vpack.c.b16 %v4316, %v4312
    %v4401 = vpack.c.b16 %v4317, %v4313
    %v4402 = vpack.c.b16 %v4318, %v4314
    %v4403 = vpack.c.b16 %v4323, %v4319
    %v4404 = vpack.c.b16 %v4324, %v4320
    %v4405 = vpack.c.b16 %v4325, %v4321
    %v4406 = vpack.c.b16 %v4326, %v4322
    %v4407 = vpack.c.b16 %v4331, %v4327
    %v4408 = vpack.c.b16 %v4332, %v4328
    %v4409 = vpack.c.b16 %v4333, %v4329
    %v4410 = vpack.c.b16 %v4334, %v4330
    %v4411 = vpack.c.b16 %v4339, %v4335
    %v4412 = vpack.c.b16 %v4340, %v4336
    %v4413 = vpack.c.b16 %v4341, %v4337
    %v4414 = vpack.c.b16 %v4342, %v4338
    %v4415 = vpack.c.b16 %v4347, %v4343
    %v4416 = vpack.c.b16 %v4348, %v4344
    %v4417 = vpack.c.b16 %v4349, %v4345
    %v4418 = vpack.c.b16 %v4350, %v4346
    %v4419 = vpack.c.b16 %v4355, %v4351
    %v4420 = vpack.c.b16 %v4356, %v4352
    %v4421 = vpack.c.b16 %v4357, %v4353
    %v4422 = vpack.c.b16 %v4358, %v4354
    %4487 = vmatpush.bf16.msra.mxu0 %v4387
    %4488 = vmatpush.bf16.msra.mxu0 %v4383
    %4489 = vmatpush.bf16.msra.mxu0 %v4379
    %4490 = vmatpush.bf16.msra.mxu0 %v4375
    %4491 = vmatpush.bf16.msra.mxu0 %v4371
    %4492 = vmatpush.bf16.msra.mxu0 %v4367
    %4493 = vmatpush.bf16.msra.mxu0 %v4363
    %4494 = vmatpush.bf16.msra.mxu0 %v4359
    %4495 = vmatmul.bf16.gmra.mxu0 %v4101
    %v4496 = vpop.f32.mrf.mxu0
    %v4497 = vadd.f32 0.0, %v4496
    %v4498 = vpop.f32.mrf.mxu0
    %4499 = vdwg.mxu0
    %4500 = vmatpush.bf16.msra.mxu0 %v4419
    %4501 = vmatpush.bf16.msra.mxu0 %v4415
    %4502 = vmatpush.bf16.msra.mxu0 %v4411
    %4503 = vmatpush.bf16.msra.mxu0 %v4407
    %4504 = vmatpush.bf16.msra.mxu0 %v4403
    %4505 = vmatpush.bf16.msra.mxu0 %v4399
    %4506 = vmatpush.bf16.msra.mxu0 %v4395
    %4507 = vmatpush.bf16.msra.mxu0 %v4391
    %4508 = vmatmul.bf16.gmra.mxu0 %v4102
    %v4509 = vpop.f32.mrf.mxu0
    %v4510 = vadd.f32 %v4497, %v4509
    %v4511 = vpop.f32.mrf.mxu0
    %4512 = vdwg.mxu0
    %4513 = vmatpush.bf16.msra.mxu0 %v4388
    %4514 = vmatpush.bf16.msra.mxu0 %v4384
    %4515 = vmatpush.bf16.msra.mxu0 %v4380
    %4516 = vmatpush.bf16.msra.mxu0 %v4376
    %4517 = vmatpush.bf16.msra.mxu0 %v4372
    %4518 = vmatpush.bf16.msra.mxu0 %v4368
    %4519 = vmatpush.bf16.msra.mxu0 %v4364
    %4520 = vmatpush.bf16.msra.mxu0 %v4360
    %4521 = vmatmul.bf16.gmra.mxu0 %v4101
    %v4522 = vpop.f32.mrf.mxu0
    %v4523 = vadd.f32 0.0, %v4522
    %v4524 = vpop.f32.mrf.mxu0
    %4525 = vdwg.mxu0
    %4526 = vmatpush.bf16.msra.mxu0 %v4420
    %4527 = vmatpush.bf16.msra.mxu0 %v4416
    %4528 = vmatpush.bf16.msra.mxu0 %v4412
    %4529 = vmatpush.bf16.msra.mxu0 %v4408
    %4530 = vmatpush.bf16.msra.mxu0 %v4404
    %4531 = vmatpush.bf16.msra.mxu0 %v4400
    %4532 = vmatpush.bf16.msra.mxu0 %v4396
    %4533 = vmatpush.bf16.msra.mxu0 %v4392
    %4534 = vmatmul.bf16.gmra.mxu0 %v4102
    %v4535 = vpop.f32.mrf.mxu0
    %v4536 = vadd.f32 %v4523, %v4535
    %v4537 = vpop.f32.mrf.mxu0
    %4538 = vdwg.mxu0
    %4539 = vmatpush.bf16.msra.mxu0 %v4389
    %4540 = vmatpush.bf16.msra.mxu0 %v4385
    %4541 = vmatpush.bf16.msra.mxu0 %v4381
    %4542 = vmatpush.bf16.msra.mxu0 %v4377
    %4543 = vmatpush.bf16.msra.mxu0 %v4373
    %4544 = vmatpush.bf16.msra.mxu0 %v4369
    %4545 = vmatpush.bf16.msra.mxu0 %v4365
    %4546 = vmatpush.bf16.msra.mxu0 %v4361
    %4547 = vmatmul.bf16.gmra.mxu0 %v4101
    %v4548 = vpop.f32.mrf.mxu0
    %v4549 = vadd.f32 0.0, %v4548
    %v4550 = vpop.f32.mrf.mxu0
    %4551 = vdwg.mxu0
    %4552 = vmatpush.bf16.msra.mxu0 %v4421
    %4553 = vmatpush.bf16.msra.mxu0 %v4417
    %4554 = vmatpush.bf16.msra.mxu0 %v4413
    %4555 = vmatpush.bf16.msra.mxu0 %v4409
    %4556 = vmatpush.bf16.msra.mxu0 %v4405
    %4557 = vmatpush.bf16.msra.mxu0 %v4401
    %4558 = vmatpush.bf16.msra.mxu0 %v4397
    %4559 = vmatpush.bf16.msra.mxu0 %v4393
    %4560 = vmatmul.bf16.gmra.mxu0 %v4102
    %v4561 = vpop.f32.mrf.mxu0
    %v4562 = vadd.f32 %v4549, %v4561
    %v4563 = vpop.f32.mrf.mxu0
    %4564 = vdwg.mxu0
    %4565 = vmatpush.bf16.msra.mxu0 %v4390
    %4566 = vmatpush.bf16.msra.mxu0 %v4386
    %4567 = vmatpush.bf16.msra.mxu0 %v4382
    %4568 = vmatpush.bf16.msra.mxu0 %v4378
    %4569 = vmatpush.bf16.msra.mxu0 %v4374
    %4570 = vmatpush.bf16.msra.mxu0 %v4370
    %4571 = vmatpush.bf16.msra.mxu0 %v4366
    %4572 = vmatpush.bf16.msra.mxu0 %v4362
    %4573 = vmatmul.bf16.gmra.mxu0 %v4101
    %v4574 = vpop.f32.mrf.mxu0
    %v4575 = vadd.f32 0.0, %v4574
    %v4576 = vpop.f32.mrf.mxu0
    %4577 = vdwg.mxu0
    %4578 = vmatpush.bf16.msra.mxu0 %v4422
    %4579 = vmatpush.bf16.msra.mxu0 %v4418
    %4580 = vmatpush.bf16.msra.mxu0 %v4414
    %4581 = vmatpush.bf16.msra.mxu0 %v4410
    %4582 = vmatpush.bf16.msra.mxu0 %v4406
    %4583 = vmatpush.bf16.msra.mxu0 %v4402
    %4584 = vmatpush.bf16.msra.mxu0 %v4398
    %4585 = vmatpush.bf16.msra.mxu0 %v4394
    %4586 = vmatmul.bf16.gmra.mxu0 %v4102
    %v4587 = vpop.f32.mrf.mxu0
    %v4588 = vadd.f32 %v4575, %v4587
    %v4589 = vpop.f32.mrf.mxu0
    %4590 = vdwg.mxu0
    %v4591 = vadd.f32 %v4052, %v4510
    %v4592 = vadd.f32 %v4053, %v4536
    %v4593 = vadd.f32 %v4054, %v4562
    %v4594 = vadd.f32 %v4055, %v4588
    %v4595 = vld [vmem:[#allocation30] sm:$0xf]
    %v4597 = vperm.slane %v4595, 0
    %v4598 = vperm.slane %v4595, 1
    %v4599 = vperm.slane %v4595, 2
    %v4600 = vperm.slane %v4595, 3
    %v4605 = vadd.f32 %v4591, %v4597
    %v4606 = vadd.f32 %v4592, %v4598
    %v4607 = vadd.f32 %v4593, %v4599
    %v4608 = vadd.f32 %v4594, %v4600
    %vm4609 = vcmask 1042432
    %v4610 = vsel %vm4609, %v4605, 0.0
    %v4611 = vrot.slane %v4610, 4
    %v4612 = vadd.f32 %v4610, %v4611
    %v4613 = vrot.slane %v4612, 2
    %v4614 = vadd.f32 %v4612, %v4613
    %v4615 = vrot.slane %v4614, 1
    %v4616 = vadd.f32 %v4614, %v4615
    %v4617 = vsel %vm4609, %v4606, 0.0
    %v4618 = vrot.slane %v4617, 4
    %v4619 = vadd.f32 %v4617, %v4618
    %v4620 = vrot.slane %v4619, 2
    %v4621 = vadd.f32 %v4619, %v4620
    %v4622 = vrot.slane %v4621, 1
    %v4623 = vadd.f32 %v4621, %v4622
    %v4624 = vsel %vm4609, %v4607, 0.0
    %v4625 = vrot.slane %v4624, 4
    %v4626 = vadd.f32 %v4624, %v4625
    %v4627 = vrot.slane %v4626, 2
    %v4628 = vadd.f32 %v4626, %v4627
    %v4629 = vrot.slane %v4628, 1
    %v4630 = vadd.f32 %v4628, %v4629
    %v4631 = vsel %vm4609, %v4608, 0.0
    %v4632 = vrot.slane %v4631, 4
    %v4633 = vadd.f32 %v4631, %v4632
    %v4634 = vrot.slane %v4633, 2
    %v4635 = vadd.f32 %v4633, %v4634
    %v4636 = vrot.slane %v4635, 1
    %v4637 = vadd.f32 %v4635, %v4636
    %v4638 = vrcp.pop 3.0
    %v4639 = vmul.f32 3.0, %v4638
    %v4640 = vsub.f32 1.0, %v4639
    %v4641 = vmul.f32 %v4638, %v4640
    %v4642 = vadd.f32 %v4638, %v4641
    %vm4643 = vweird.f32 %v4638
    %v4644 = vsel %vm4643, %v4638, %v4642
    %v4645 = vmul.f32 %v4616, %v4644
    %v4646 = vmul.f32 %v4623, %v4644
    %v4647 = vmul.f32 %v4630, %v4644
    %v4648 = vmul.f32 %v4637, %v4644
    %v4649 = vsub.f32 %v4605, %v4645
    %v4650 = vsub.f32 %v4606, %v4646
    %v4651 = vsub.f32 %v4607, %v4647
    %v4652 = vsub.f32 %v4608, %v4648
    %v4653 = vmul.f32 %v4649, %v4649
    %v4654 = vmul.f32 %v4650, %v4650
    %v4655 = vmul.f32 %v4651, %v4651
    %v4656 = vmul.f32 %v4652, %v4652
    %v4657 = vsel %vm4609, %v4653, 0.0
    %v4658 = vrot.slane %v4657, 4
    %v4659 = vadd.f32 %v4657, %v4658
    %v4660 = vrot.slane %v4659, 2
    %v4661 = vadd.f32 %v4659, %v4660
    %v4662 = vrot.slane %v4661, 1
    %v4663 = vadd.f32 %v4661, %v4662
    %v4664 = vsel %vm4609, %v4654, 0.0
    %v4665 = vrot.slane %v4664, 4
    %v4666 = vadd.f32 %v4664, %v4665
    %v4667 = vrot.slane %v4666, 2
    %v4668 = vadd.f32 %v4666, %v4667
    %v4669 = vrot.slane %v4668, 1
    %v4670 = vadd.f32 %v4668, %v4669
    %v4671 = vsel %vm4609, %v4655, 0.0
    %v4672 = vrot.slane %v4671, 4
    %v4673 = vadd.f32 %v4671, %v4672
    %v4674 = vrot.slane %v4673, 2
    %v4675 = vadd.f32 %v4673, %v4674
    %v4676 = vrot.slane %v4675, 1
    %v4677 = vadd.f32 %v4675, %v4676
    %v4678 = vsel %vm4609, %v4656, 0.0
    %v4679 = vrot.slane %v4678, 4
    %v4680 = vadd.f32 %v4678, %v4679
    %v4681 = vrot.slane %v4680, 2
    %v4682 = vadd.f32 %v4680, %v4681
    %v4683 = vrot.slane %v4682, 1
    %v4684 = vadd.f32 %v4682, %v4683
    %v4685 = vmul.f32 %v4663, %v4644
    %v4686 = vmul.f32 %v4670, %v4644
    %v4687 = vmul.f32 %v4677, %v4644
    %v4688 = vmul.f32 %v4684, %v4644
    %v4689 = vadd.f32 %v4685, 1e-05
    %v4690 = vadd.f32 %v4686, 1e-05
    %v4691 = vadd.f32 %v4687, 1e-05
    %v4692 = vadd.f32 %v4688, 1e-05
    %v4693 = vrsqrt.pop %v4689
    %v4694 = vmul.f32 %v4693, %v4689
    %v4695 = vmul.f32 %v4694, %v4693
    %v4696 = vmul.f32 0.5, %v4695
    %v4697 = vsub.f32 1.5, %v4696
    %v4698 = vmul.f32 %v4693, %v4697
    %vm4699 = vweird.f32 %v4689
    %vm4700 = vweird.f32 %v4693
    %vm4701 = vmor %vm4699, %vm4700
    %v4702 = vsel %vm4701, %v4693, %v4698
    %v4703 = vrsqrt.pop %v4690
    %v4704 = vmul.f32 %v4703, %v4690
    %v4705 = vmul.f32 %v4704, %v4703
    %v4706 = vmul.f32 0.5, %v4705
    %v4707 = vsub.f32 1.5, %v4706
    %v4708 = vmul.f32 %v4703, %v4707
    %vm4709 = vweird.f32 %v4690
    %vm4710 = vweird.f32 %v4703
    %vm4711 = vmor %vm4709, %vm4710
    %v4712 = vsel %vm4711, %v4703, %v4708
    %v4713 = vrsqrt.pop %v4691
    %v4714 = vmul.f32 %v4713, %v4691
    %v4715 = vmul.f32 %v4714, %v4713
    %v4716 = vmul.f32 0.5, %v4715
    %v4717 = vsub.f32 1.5, %v4716
    %v4718 = vmul.f32 %v4713, %v4717
    %vm4719 = vweird.f32 %v4691
    %vm4720 = vweird.f32 %v4713
    %vm4721 = vmor %vm4719, %vm4720
    %v4722 = vsel %vm4721, %v4713, %v4718
    %v4723 = vrsqrt.pop %v4692
    %v4724 = vmul.f32 %v4723, %v4692
    %v4725 = vmul.f32 %v4724, %v4723
    %v4726 = vmul.f32 0.5, %v4725
    %v4727 = vsub.f32 1.5, %v4726
    %v4728 = vmul.f32 %v4723, %v4727
    %vm4729 = vweird.f32 %v4692
    %vm4730 = vweird.f32 %v4723
    %vm4731 = vmor %vm4729, %vm4730
    %v4732 = vsel %vm4731, %v4723, %v4728
    %v4733 = vmul.f32 %v4649, %v4702
    %v4734 = vmul.f32 %v4650, %v4712
    %v4735 = vmul.f32 %v4651, %v4722
    %v4736 = vmul.f32 %v4652, %v4732
    %v4737 = vld [vmem:[#allocation32] sm:$0xf]
    %v4739 = vperm.slane %v4737, 0
    %v4740 = vperm.slane %v4737, 1
    %v4741 = vperm.slane %v4737, 2
    %v4742 = vperm.slane %v4737, 3
    %v4747 = vmul.f32 %v4733, %v4739
    %v4748 = vmul.f32 %v4734, %v4740
    %v4749 = vmul.f32 %v4735, %v4741
    %v4750 = vmul.f32 %v4736, %v4742
    %v4751 = vld [vmem:[#allocation33] sm:$0xf]
    %v4753 = vperm.slane %v4751, 0
    %v4754 = vperm.slane %v4751, 1
    %v4755 = vperm.slane %v4751, 2
    %v4756 = vperm.slane %v4751, 3
    %v4761 = vadd.f32 %v4747, %v4753
    %v4762 = vadd.f32 %v4748, %v4754
    %v4763 = vadd.f32 %v4749, %v4755
    %v4764 = vadd.f32 %v4750, %v4756
    %v4765 = vtanh.pop %v4761
    %v4766 = vtanh.pop %v4762
    %v4767 = vtanh.pop %v4763
    %v4768 = vtanh.pop %v4764
    %v4769 = vpack.c.bf16 %v4765, %v4765
    %v4770 = vpack.c.bf16 %v4766, %v4766
    %v4771 = vpack.c.bf16 %v4767, %v4767
    %v4772 = vpack.c.bf16 %v4768, %v4768
    %v4773 = vld [vmem:[%s51] sm:$0xf]
    %v4774 = vld [vmem:[%s51 + $0x4] sm:$0xf]
    %v4775 = vld [vmem:[%s51 + $0x8] sm:$0xf]
    %v4776 = vld [vmem:[%s51 + $0xc] sm:$0xf]
    %v4777 = vld [vmem:[%s51 + $0x10] sm:$0xf]
    %v4778 = vld [vmem:[%s51 + $0x14] sm:$0xf]
    %v4779 = vld [vmem:[%s51 + $0x18] sm:$0xf]
    %v4780 = vld [vmem:[%s51 + $0x1c] sm:$0xf]
    %v4781 = vld [vmem:[%s51 + $0x20] sm:$0xf]
    %v4782 = vld [vmem:[%s51 + $0x24] sm:$0xf]
    %v4783 = vld [vmem:[%s51 + $0x28] sm:$0xf]
    %v4784 = vld [vmem:[%s51 + $0x2c] sm:$0xf]
    %v4785 = vld [vmem:[%s51 + $0x30] sm:$0xf]
    %v4786 = vld [vmem:[%s51 + $0x34] sm:$0xf]
    %v4787 = vld [vmem:[%s51 + $0x38] sm:$0xf]
    %v4788 = vld [vmem:[%s51 + $0x3c] sm:$0xf]
    %v4789 = vld [vmem:[%s51 + $0x40] sm:$0xf]
    %v4790 = vld [vmem:[%s51 + $0x44] sm:$0xf]
    %v4791 = vld [vmem:[%s51 + $0x48] sm:$0xf]
    %v4792 = vld [vmem:[%s51 + $0x4c] sm:$0xf]
    %v4793 = vld [vmem:[%s51 + $0x50] sm:$0xf]
    %v4794 = vld [vmem:[%s51 + $0x54] sm:$0xf]
    %v4795 = vld [vmem:[%s51 + $0x58] sm:$0xf]
    %v4796 = vld [vmem:[%s51 + $0x5c] sm:$0xf]
    %v4797 = vld [vmem:[%s51 + $0x60] sm:$0xf]
    %v4798 = vld [vmem:[%s51 + $0x64] sm:$0xf]
    %v4799 = vld [vmem:[%s51 + $0x68] sm:$0xf]
    %v4800 = vld [vmem:[%s51 + $0x6c] sm:$0xf]
    %v4801 = vld [vmem:[%s51 + $0x70] sm:$0xf]
    %v4802 = vld [vmem:[%s51 + $0x74] sm:$0xf]
    %v4803 = vld [vmem:[%s51 + $0x78] sm:$0xf]
    %v4804 = vld [vmem:[%s51 + $0x7c] sm:$0xf]
    %v4805 = vld [vmem:[%s51 + $0x80] sm:$0xf]
    %v4806 = vld [vmem:[%s51 + $0x84] sm:$0xf]
    %v4807 = vld [vmem:[%s51 + $0x88] sm:$0xf]
    %v4808 = vld [vmem:[%s51 + $0x8c] sm:$0xf]
    %v4809 = vld [vmem:[%s51 + $0x90] sm:$0xf]
    %v4810 = vld [vmem:[%s51 + $0x94] sm:$0xf]
    %v4811 = vld [vmem:[%s51 + $0x98] sm:$0xf]
    %v4812 = vld [vmem:[%s51 + $0x9c] sm:$0xf]
    %v4813 = vld [vmem:[%s51 + $0xa0] sm:$0xf]
    %v4814 = vld [vmem:[%s51 + $0xa4] sm:$0xf]
    %v4815 = vld [vmem:[%s51 + $0xa8] sm:$0xf]
    %v4816 = vld [vmem:[%s51 + $0xac] sm:$0xf]
    %v4817 = vld [vmem:[%s51 + $0xb0] sm:$0xf]
    %v4818 = vld [vmem:[%s51 + $0xb4] sm:$0xf]
    %v4819 = vld [vmem:[%s51 + $0xb8] sm:$0xf]
    %v4820 = vld [vmem:[%s51 + $0xbc] sm:$0xf]
    %v4821 = vld [vmem:[%s51 + $0xc0] sm:$0xf]
    %v4822 = vld [vmem:[%s51 + $0xc4] sm:$0xf]
    %v4823 = vld [vmem:[%s51 + $0xc8] sm:$0xf]
    %v4824 = vld [vmem:[%s51 + $0xcc] sm:$0xf]
    %v4825 = vld [vmem:[%s51 + $0xd0] sm:$0xf]
    %v4826 = vld [vmem:[%s51 + $0xd4] sm:$0xf]
    %v4827 = vld [vmem:[%s51 + $0xd8] sm:$0xf]
    %v4828 = vld [vmem:[%s51 + $0xdc] sm:$0xf]
    %v4829 = vld [vmem:[%s51 + $0xe0] sm:$0xf]
    %v4830 = vld [vmem:[%s51 + $0xe4] sm:$0xf]
    %v4831 = vld [vmem:[%s51 + $0xe8] sm:$0xf]
    %v4832 = vld [vmem:[%s51 + $0xec] sm:$0xf]
    %v4833 = vld [vmem:[%s51 + $0xf0] sm:$0xf]
    %v4834 = vld [vmem:[%s51 + $0xf4] sm:$0xf]
    %v4835 = vld [vmem:[%s51 + $0xf8] sm:$0xf]
    %v4836 = vld [vmem:[%s51 + $0xfc] sm:$0xf]
    %v4837 = vld [vmem:[#allocation35] sm:$0x1]
    %v4839 = vperm.slane %v4837, 0
    %v4905 = vunpack.c.l.b16 %v4773
    %v4906 = vunpack.c.l.b16 %v4774
    %v4907 = vunpack.c.l.b16 %v4775
    %v4908 = vunpack.c.l.b16 %v4776
    %v4909 = vunpack.c.l.b16 %v4777
    %v4910 = vunpack.c.l.b16 %v4778
    %v4911 = vunpack.c.l.b16 %v4779
    %v4912 = vunpack.c.l.b16 %v4780
    %v4913 = vunpack.c.l.b16 %v4781
    %v4914 = vunpack.c.l.b16 %v4782
    %v4915 = vunpack.c.l.b16 %v4783
    %v4916 = vunpack.c.l.b16 %v4784
    %v4917 = vunpack.c.l.b16 %v4785
    %v4918 = vunpack.c.l.b16 %v4786
    %v4919 = vunpack.c.l.b16 %v4787
    %v4920 = vunpack.c.l.b16 %v4788
    %v4921 = vunpack.c.l.b16 %v4789
    %v4922 = vunpack.c.l.b16 %v4790
    %v4923 = vunpack.c.l.b16 %v4791
    %v4924 = vunpack.c.l.b16 %v4792
    %v4925 = vunpack.c.l.b16 %v4793
    %v4926 = vunpack.c.l.b16 %v4794
    %v4927 = vunpack.c.l.b16 %v4795
    %v4928 = vunpack.c.l.b16 %v4796
    %v4929 = vunpack.c.l.b16 %v4797
    %v4930 = vunpack.c.l.b16 %v4798
    %v4931 = vunpack.c.l.b16 %v4799
    %v4932 = vunpack.c.l.b16 %v4800
    %v4933 = vunpack.c.l.b16 %v4801
    %v4934 = vunpack.c.l.b16 %v4802
    %v4935 = vunpack.c.l.b16 %v4803
    %v4936 = vunpack.c.l.b16 %v4804
    %v4937 = vunpack.c.l.b16 %v4805
    %v4938 = vunpack.c.l.b16 %v4806
    %v4939 = vunpack.c.l.b16 %v4807
    %v4940 = vunpack.c.l.b16 %v4808
    %v4941 = vunpack.c.l.b16 %v4809
    %v4942 = vunpack.c.l.b16 %v4810
    %v4943 = vunpack.c.l.b16 %v4811
    %v4944 = vunpack.c.l.b16 %v4812
    %v4945 = vunpack.c.l.b16 %v4813
    %v4946 = vunpack.c.l.b16 %v4814
    %v4947 = vunpack.c.l.b16 %v4815
    %v4948 = vunpack.c.l.b16 %v4816
    %v4949 = vunpack.c.l.b16 %v4817
    %v4950 = vunpack.c.l.b16 %v4818
    %v4951 = vunpack.c.l.b16 %v4819
    %v4952 = vunpack.c.l.b16 %v4820
    %v4953 = vunpack.c.l.b16 %v4821
    %v4954 = vunpack.c.l.b16 %v4822
    %v4955 = vunpack.c.l.b16 %v4823
    %v4956 = vunpack.c.l.b16 %v4824
    %v4957 = vunpack.c.l.b16 %v4825
    %v4958 = vunpack.c.l.b16 %v4826
    %v4959 = vunpack.c.l.b16 %v4827
    %v4960 = vunpack.c.l.b16 %v4828
    %v4961 = vunpack.c.l.b16 %v4829
    %v4962 = vunpack.c.l.b16 %v4830
    %v4963 = vunpack.c.l.b16 %v4831
    %v4964 = vunpack.c.l.b16 %v4832
    %v4965 = vunpack.c.l.b16 %v4833
    %v4966 = vunpack.c.l.b16 %v4834
    %v4967 = vunpack.c.l.b16 %v4835
    %v4968 = vunpack.c.l.b16 %v4836
    %v4969 = vpack.c.b16 %v4906, %v4905
    %v4970 = vpack.c.b16 %v4908, %v4907
    %v4971 = vpack.c.b16 %v4910, %v4909
    %v4972 = vpack.c.b16 %v4912, %v4911
    %v4973 = vpack.c.b16 %v4914, %v4913
    %v4974 = vpack.c.b16 %v4916, %v4915
    %v4975 = vpack.c.b16 %v4918, %v4917
    %v4976 = vpack.c.b16 %v4920, %v4919
    %v4977 = vpack.c.b16 %v4922, %v4921
    %v4978 = vpack.c.b16 %v4924, %v4923
    %v4979 = vpack.c.b16 %v4926, %v4925
    %v4980 = vpack.c.b16 %v4928, %v4927
    %v4981 = vpack.c.b16 %v4930, %v4929
    %v4982 = vpack.c.b16 %v4932, %v4931
    %v4983 = vpack.c.b16 %v4934, %v4933
    %v4984 = vpack.c.b16 %v4936, %v4935
    %v4985 = vpack.c.b16 %v4938, %v4937
    %v4986 = vpack.c.b16 %v4940, %v4939
    %v4987 = vpack.c.b16 %v4942, %v4941
    %v4988 = vpack.c.b16 %v4944, %v4943
    %v4989 = vpack.c.b16 %v4946, %v4945
    %v4990 = vpack.c.b16 %v4948, %v4947
    %v4991 = vpack.c.b16 %v4950, %v4949
    %v4992 = vpack.c.b16 %v4952, %v4951
    %v4993 = vpack.c.b16 %v4954, %v4953
    %v4994 = vpack.c.b16 %v4956, %v4955
    %v4995 = vpack.c.b16 %v4958, %v4957
    %v4996 = vpack.c.b16 %v4960, %v4959
    %v4997 = vpack.c.b16 %v4962, %v4961
    %v4998 = vpack.c.b16 %v4964, %v4963
    %v4999 = vpack.c.b16 %v4966, %v4965
    %v5000 = vpack.c.b16 %v4968, %v4967
    %5033 = vmatpush.bf16.msra.mxu0 %v4976
    %5034 = vmatpush.bf16.msra.mxu0 %v4975
    %5035 = vmatpush.bf16.msra.mxu0 %v4974
    %5036 = vmatpush.bf16.msra.mxu0 %v4973
    %5037 = vmatpush.bf16.msra.mxu0 %v4972
    %5038 = vmatpush.bf16.msra.mxu0 %v4971
    %5039 = vmatpush.bf16.msra.mxu0 %v4970
    %5040 = vmatpush.bf16.msra.mxu0 %v4969
    %5041 = vmatmul.bf16.gmra.mxu0 %v4769
    %v5042 = vpop.f32.mrf.mxu0
    %v5043 = vadd.f32 %v4839, %v5042
    %v5044 = vpop.f32.mrf.mxu0
    %5045 = vdwg.mxu0
    %5046 = vmatpush.bf16.msra.mxu0 %v4984
    %5047 = vmatpush.bf16.msra.mxu0 %v4983
    %5048 = vmatpush.bf16.msra.mxu0 %v4982
    %5049 = vmatpush.bf16.msra.mxu0 %v4981
    %5050 = vmatpush.bf16.msra.mxu0 %v4980
    %5051 = vmatpush.bf16.msra.mxu0 %v4979
    %5052 = vmatpush.bf16.msra.mxu0 %v4978
    %5053 = vmatpush.bf16.msra.mxu0 %v4977
    %5054 = vmatmul.bf16.gmra.mxu0 %v4770
    %v5055 = vpop.f32.mrf.mxu0
    %v5056 = vadd.f32 %v5043, %v5055
    %v5057 = vpop.f32.mrf.mxu0
    %5058 = vdwg.mxu0
    %5059 = vmatpush.bf16.msra.mxu0 %v4992
    %5060 = vmatpush.bf16.msra.mxu0 %v4991
    %5061 = vmatpush.bf16.msra.mxu0 %v4990
    %5062 = vmatpush.bf16.msra.mxu0 %v4989
    %5063 = vmatpush.bf16.msra.mxu0 %v4988
    %5064 = vmatpush.bf16.msra.mxu0 %v4987
    %5065 = vmatpush.bf16.msra.mxu0 %v4986
    %5066 = vmatpush.bf16.msra.mxu0 %v4985
    %5067 = vmatmul.bf16.gmra.mxu0 %v4771
    %v5068 = vpop.f32.mrf.mxu0
    %v5069 = vadd.f32 %v5056, %v5068
    %v5070 = vpop.f32.mrf.mxu0
    %5071 = vdwg.mxu0
    %5072 = vmatpush.bf16.msra.mxu0 %v5000
    %5073 = vmatpush.bf16.msra.mxu0 %v4999
    %5074 = vmatpush.bf16.msra.mxu0 %v4998
    %5075 = vmatpush.bf16.msra.mxu0 %v4997
    %5076 = vmatpush.bf16.msra.mxu0 %v4996
    %5077 = vmatpush.bf16.msra.mxu0 %v4995
    %5078 = vmatpush.bf16.msra.mxu0 %v4994
    %5079 = vmatpush.bf16.msra.mxu0 %v4993
    %5080 = vmatmul.bf16.gmra.mxu0 %v4772
    %v5081 = vpop.f32.mrf.mxu0
    %v5082 = vadd.f32 %v5069, %v5081
    %v5083 = vpop.f32.mrf.mxu0
    %5084 = vdwg.mxu0
    %v5085 = vld [vmem:[#allocation3] sm:$0x7]
    %v5086 = vmul.f32 %v5082, 0.5
    %v5087 = vmul.f32 %v5086, 1.442695
    %v5088 = vpow.pop %v5087
    %5090 = vrot.lane.b32.xlu0 %v5088, 112
    %v5091 = vpop.permute.xlu0 %5090
    %v5093 = vmul.f32 %v5085, %v5091
    %v5094 = vadd.f32 %v5082, %v5093
    %vm5095 = vcmask 124928
    %5096 = vst.msk [vmem:[#allocation60] sm:$0x7] %vm5095, %v5082
    %5098 = vrot.lane.b32.xlu0 %v5082, 112
    %v5099 = vpop.permute.xlu0 %5098
    %5101 = vst.msk [vmem:[#allocation61] sm:$0x7] %vm5095, %v5099
    %5102 = vst.msk [vmem:[#allocation63] sm:$0x7] %vm5095, %v5094
    %v5104 = vrot.slane %v5094, 1
    %v5106 = vsub.f32 %v5094, %v5104
    %v5107 = vmul.f32 %v5106, %v5106
    %5109 = vrot.lane.b32.xlu0 %v5107, 120
    %v5110 = vpop.permute.xlu0 %5109
    %vm5112 = vcmask 58368
    %v5113 = vsel %vm5112, %v5110, 0.0
    %5114 = vadd.xlane.f32.xlu0 %v5113
    %v5115 = vpop.xlane.xlu0 %5114
    %v5116 = vrsqrt.pop %v5115
    %v5117 = vmul.f32 %v5116, %v5115
    %v5118 = vmul.f32 %v5117, %v5116
    %v5119 = vmul.f32 0.5, %v5118
    %v5120 = vsub.f32 1.5, %v5119
    %v5121 = vmul.f32 %v5116, %v5120
    %v5122 = vmul.f32 %v5115, %v5121
    %vm5123 = vcmp.eq.f32.partialorder %v5115, inf
    %v5124 = vsel %vm5123, %v5115, %v5122
    %vm5125 = vcmp.eq.f32.partialorder %v5115, 0.0
    %v5126 = vand.u32 %v5115, 2147483648
    %v5127 = vsel %vm5125, %v5126, %v5124
    %v5128 = vld [vmem:[#allocation2] sm:$0x1]
    %v5130 = vperm.slane %v5128, 0
    %v5132 = vmul.f32 %v5127, %v5130
    %vm5133 = vcmask 1024
    %5134 = vst.msk [vmem:[%s105] sm:$0x3] %vm5133, %v5132
    %v5135 = vpack.c.bf16 %v5094, %v5094
    %v5136 = vld [vmem:[#allocation36] sm:$0xff]
    %v5137 = vld [vmem:[#allocation36 + $0x8] sm:$0xff]
    %v5138 = vld [vmem:[#allocation36 + $0x10] sm:$0xff]
    %v5139 = vld [vmem:[#allocation36 + $0x18] sm:$0xff]
    %v5140 = vld [vmem:[#allocation38] sm:$0xf]
    %v5142 = vperm.slane %v5140, 0
    %v5143 = vperm.slane %v5140, 1
    %v5144 = vperm.slane %v5140, 2
    %v5145 = vperm.slane %v5140, 3
    %v5154 = vunpack.c.l.b16 %v5136
    %v5155 = vunpack.c.h.b16 %v5136
    %v5156 = vunpack.c.l.b16 %v5137
    %v5157 = vunpack.c.h.b16 %v5137
    %v5158 = vunpack.c.l.b16 %v5138
    %v5159 = vunpack.c.h.b16 %v5138
    %v5160 = vunpack.c.l.b16 %v5139
    %v5161 = vunpack.c.h.b16 %v5139
    %v5162 = vpack.c.b16 %v5158, %v5154
    %v5163 = vpack.c.b16 %v5159, %v5155
    %v5164 = vpack.c.b16 %v5160, %v5156
    %v5165 = vpack.c.b16 %v5161, %v5157
    %vm5170 = vcmask 130048
    %v5172 = vsel %vm5170, %v5135, 0
    %5174 = vmatpush.bf16.msra.mxu0 0
    %5175 = vmatpush.bf16.msra.mxu0 0
    %5176 = vmatpush.bf16.msra.mxu0 0
    %5177 = vmatpush.bf16.msra.mxu0 0
    %5178 = vmatpush.bf16.msra.mxu0 0
    %5179 = vmatpush.bf16.msra.mxu0 0
    %5180 = vmatpush.bf16.msra.mxu0 0
    %5181 = vmatpush.bf16.msra.mxu0 %v5162
    %5182 = vmatmul.bf16.gmra.mxu0 %v5172
    %v5183 = vpop.f32.mrf.mxu0
    %v5184 = vadd.f32 %v5142, %v5183
    %v5185 = vpop.f32.mrf.mxu0
    %5186 = vdwg.mxu0
    %5187 = vmatpush.bf16.msra.mxu0 0
    %5188 = vmatpush.bf16.msra.mxu0 0
    %5189 = vmatpush.bf16.msra.mxu0 0
    %5190 = vmatpush.bf16.msra.mxu0 0
    %5191 = vmatpush.bf16.msra.mxu0 0
    %5192 = vmatpush.bf16.msra.mxu0 0
    %5193 = vmatpush.bf16.msra.mxu0 0
    %5194 = vmatpush.bf16.msra.mxu0 %v5163
    %5195 = vmatmul.bf16.gmra.mxu0 %v5172
    %v5196 = vpop.f32.mrf.mxu0
    %v5197 = vadd.f32 %v5143, %v5196
    %v5198 = vpop.f32.mrf.mxu0
    %5199 = vdwg.mxu0
    %5200 = vmatpush.bf16.msra.mxu0 0
    %5201 = vmatpush.bf16.msra.mxu0 0
    %5202 = vmatpush.bf16.msra.mxu0 0
    %5203 = vmatpush.bf16.msra.mxu0 0
    %5204 = vmatpush.bf16.msra.mxu0 0
    %5205 = vmatpush.bf16.msra.mxu0 0
    %5206 = vmatpush.bf16.msra.mxu0 0
    %5207 = vmatpush.bf16.msra.mxu0 %v5164
    %5208 = vmatmul.bf16.gmra.mxu0 %v5172
    %v5209 = vpop.f32.mrf.mxu0
    %v5210 = vadd.f32 %v5144, %v5209
    %v5211 = vpop.f32.mrf.mxu0
    %5212 = vdwg.mxu0
    %5213 = vmatpush.bf16.msra.mxu0 0
    %5214 = vmatpush.bf16.msra.mxu0 0
    %5215 = vmatpush.bf16.msra.mxu0 0
    %5216 = vmatpush.bf16.msra.mxu0 0
    %5217 = vmatpush.bf16.msra.mxu0 0
    %5218 = vmatpush.bf16.msra.mxu0 0
    %5219 = vmatpush.bf16.msra.mxu0 0
    %5220 = vmatpush.bf16.msra.mxu0 %v5165
    %5221 = vmatmul.bf16.gmra.mxu0 %v5172
    %v5222 = vpop.f32.mrf.mxu0
    %v5223 = vadd.f32 %v5145, %v5222
    %v5224 = vpop.f32.mrf.mxu0
    %5225 = vdwg.mxu0
    %v5226 = vsel %vm4609, %v5184, 0.0
    %v5227 = vrot.slane %v5226, 4
    %v5228 = vadd.f32 %v5226, %v5227
    %v5229 = vrot.slane %v5228, 2
    %v5230 = vadd.f32 %v5228, %v5229
    %v5231 = vrot.slane %v5230, 1
    %v5232 = vadd.f32 %v5230, %v5231
    %v5233 = vsel %vm4609, %v5197, 0.0
    %v5234 = vrot.slane %v5233, 4
    %v5235 = vadd.f32 %v5233, %v5234
    %v5236 = vrot.slane %v5235, 2
    %v5237 = vadd.f32 %v5235, %v5236
    %v5238 = vrot.slane %v5237, 1
    %v5239 = vadd.f32 %v5237, %v5238
    %v5240 = vsel %vm4609, %v5210, 0.0
    %v5241 = vrot.slane %v5240, 4
    %v5242 = vadd.f32 %v5240, %v5241
    %v5243 = vrot.slane %v5242, 2
    %v5244 = vadd.f32 %v5242, %v5243
    %v5245 = vrot.slane %v5244, 1
    %v5246 = vadd.f32 %v5244, %v5245
    %v5247 = vsel %vm4609, %v5223, 0.0
    %v5248 = vrot.slane %v5247, 4
    %v5249 = vadd.f32 %v5247, %v5248
    %v5250 = vrot.slane %v5249, 2
    %v5251 = vadd.f32 %v5249, %v5250
    %v5252 = vrot.slane %v5251, 1
    %v5253 = vadd.f32 %v5251, %v5252
    %v5254 = vmul.f32 %v5232, %v4644
    %v5255 = vmul.f32 %v5239, %v4644
    %v5256 = vmul.f32 %v5246, %v4644
    %v5257 = vmul.f32 %v5253, %v4644
    %v5258 = vsub.f32 %v5184, %v5254
    %v5259 = vsub.f32 %v5197, %v5255
    %v5260 = vsub.f32 %v5210, %v5256
    %v5261 = vsub.f32 %v5223, %v5257
    %v5262 = vmul.f32 %v5258, %v5258
    %v5263 = vmul.f32 %v5259, %v5259
    %v5264 = vmul.f32 %v5260, %v5260
    %v5265 = vmul.f32 %v5261, %v5261
    %v5266 = vsel %vm4609, %v5262, 0.0
    %v5267 = vrot.slane %v5266, 4
    %v5268 = vadd.f32 %v5266, %v5267
    %v5269 = vrot.slane %v5268, 2
    %v5270 = vadd.f32 %v5268, %v5269
    %v5271 = vrot.slane %v5270, 1
    %v5272 = vadd.f32 %v5270, %v5271
    %v5273 = vsel %vm4609, %v5263, 0.0
    %v5274 = vrot.slane %v5273, 4
    %v5275 = vadd.f32 %v5273, %v5274
    %v5276 = vrot.slane %v5275, 2
    %v5277 = vadd.f32 %v5275, %v5276
    %v5278 = vrot.slane %v5277, 1
    %v5279 = vadd.f32 %v5277, %v5278
    %v5280 = vsel %vm4609, %v5264, 0.0
    %v5281 = vrot.slane %v5280, 4
    %v5282 = vadd.f32 %v5280, %v5281
    %v5283 = vrot.slane %v5282, 2
    %v5284 = vadd.f32 %v5282, %v5283
    %v5285 = vrot.slane %v5284, 1
    %v5286 = vadd.f32 %v5284, %v5285
    %v5287 = vsel %vm4609, %v5265, 0.0
    %v5288 = vrot.slane %v5287, 4
    %v5289 = vadd.f32 %v5287, %v5288
    %v5290 = vrot.slane %v5289, 2
    %v5291 = vadd.f32 %v5289, %v5290
    %v5292 = vrot.slane %v5291, 1
    %v5293 = vadd.f32 %v5291, %v5292
    %v5294 = vmul.f32 %v5272, %v4644
    %v5295 = vmul.f32 %v5279, %v4644
    %v5296 = vmul.f32 %v5286, %v4644
    %v5297 = vmul.f32 %v5293, %v4644
    %v5298 = vadd.f32 %v5294, 1e-05
    %v5299 = vadd.f32 %v5295, 1e-05
    %v5300 = vadd.f32 %v5296, 1e-05
    %v5301 = vadd.f32 %v5297, 1e-05
    %v5302 = vrsqrt.pop %v5298
    %v5303 = vmul.f32 %v5302, %v5298
    %v5304 = vmul.f32 %v5303, %v5302
    %v5305 = vmul.f32 0.5, %v5304
    %v5306 = vsub.f32 1.5, %v5305
    %v5307 = vmul.f32 %v5302, %v5306
    %vm5308 = vweird.f32 %v5298
    %vm5309 = vweird.f32 %v5302
    %vm5310 = vmor %vm5308, %vm5309
    %v5311 = vsel %vm5310, %v5302, %v5307
    %v5312 = vrsqrt.pop %v5299
    %v5313 = vmul.f32 %v5312, %v5299
    %v5314 = vmul.f32 %v5313, %v5312
    %v5315 = vmul.f32 0.5, %v5314
    %v5316 = vsub.f32 1.5, %v5315
    %v5317 = vmul.f32 %v5312, %v5316
    %vm5318 = vweird.f32 %v5299
    %vm5319 = vweird.f32 %v5312
    %vm5320 = vmor %vm5318, %vm5319
    %v5321 = vsel %vm5320, %v5312, %v5317
    %v5322 = vrsqrt.pop %v5300
    %v5323 = vmul.f32 %v5322, %v5300
    %v5324 = vmul.f32 %v5323, %v5322
    %v5325 = vmul.f32 0.5, %v5324
    %v5326 = vsub.f32 1.5, %v5325
    %v5327 = vmul.f32 %v5322, %v5326
    %vm5328 = vweird.f32 %v5300
    %vm5329 = vweird.f32 %v5322
    %vm5330 = vmor %vm5328, %vm5329
    %v5331 = vsel %vm5330, %v5322, %v5327
    %v5332 = vrsqrt.pop %v5301
    %v5333 = vmul.f32 %v5332, %v5301
    %v5334 = vmul.f32 %v5333, %v5332
    %v5335 = vmul.f32 0.5, %v5334
    %v5336 = vsub.f32 1.5, %v5335
    %v5337 = vmul.f32 %v5332, %v5336
    %vm5338 = vweird.f32 %v5301
    %vm5339 = vweird.f32 %v5332
    %vm5340 = vmor %vm5338, %vm5339
    %v5341 = vsel %vm5340, %v5332, %v5337
    %v5342 = vmul.f32 %v5258, %v5311
    %v5343 = vmul.f32 %v5259, %v5321
    %v5344 = vmul.f32 %v5260, %v5331
    %v5345 = vmul.f32 %v5261, %v5341
    %v5346 = vld [vmem:[#allocation39] sm:$0xf]
    %v5348 = vperm.slane %v5346, 0
    %v5349 = vperm.slane %v5346, 1
    %v5350 = vperm.slane %v5346, 2
    %v5351 = vperm.slane %v5346, 3
    %v5356 = vmul.f32 %v5342, %v5348
    %v5357 = vmul.f32 %v5343, %v5349
    %v5358 = vmul.f32 %v5344, %v5350
    %v5359 = vmul.f32 %v5345, %v5351
    %v5360 = vld [vmem:[#allocation41] sm:$0xf]
    %v5362 = vperm.slane %v5360, 0
    %v5363 = vperm.slane %v5360, 1
    %v5364 = vperm.slane %v5360, 2
    %v5365 = vperm.slane %v5360, 3
    %v5370 = vadd.f32 %v5356, %v5362
    %v5371 = vadd.f32 %v5357, %v5363
    %v5372 = vadd.f32 %v5358, %v5364
    %v5373 = vadd.f32 %v5359, %v5365
    %v5374 = vtanh.pop %v5370
    %v5375 = vtanh.pop %v5371
    %v5376 = vtanh.pop %v5372
    %v5377 = vtanh.pop %v5373
    %v5378 = vpack.c.bf16 %v5374, %v5374
    %v5379 = vpack.c.bf16 %v5375, %v5375
    %v5380 = vpack.c.bf16 %v5376, %v5376
    %v5381 = vpack.c.bf16 %v5377, %v5377
    %v5382 = vld [vmem:[#allocation42] sm:$0xff]
    %v5383 = vld [vmem:[#allocation42 + $0x8] sm:$0xff]
    %v5384 = vld [vmem:[#allocation42 + $0x10] sm:$0xff]
    %v5385 = vld [vmem:[#allocation42 + $0x18] sm:$0xff]
    %v5386 = vld [vmem:[#allocation42 + $0x20] sm:$0xff]
    %v5387 = vld [vmem:[#allocation42 + $0x28] sm:$0xff]
    %v5388 = vld [vmem:[#allocation42 + $0x30] sm:$0xff]
    %v5389 = vld [vmem:[#allocation42 + $0x38] sm:$0xff]
    %v5390 = vld [vmem:[#allocation42 + $0x40] sm:$0xff]
    %v5391 = vld [vmem:[#allocation42 + $0x48] sm:$0xff]
    %v5392 = vld [vmem:[#allocation42 + $0x50] sm:$0xff]
    %v5393 = vld [vmem:[#allocation42 + $0x58] sm:$0xff]
    %v5394 = vld [vmem:[#allocation42 + $0x60] sm:$0xff]
    %v5395 = vld [vmem:[#allocation42 + $0x68] sm:$0xff]
    %v5396 = vld [vmem:[#allocation42 + $0x70] sm:$0xff]
    %v5397 = vld [vmem:[#allocation42 + $0x78] sm:$0xff]
    %v5398 = vld [vmem:[#allocation42 + $0x80] sm:$0xff]
    %v5399 = vld [vmem:[#allocation42 + $0x88] sm:$0xff]
    %v5400 = vld [vmem:[#allocation42 + $0x90] sm:$0xff]
    %v5401 = vld [vmem:[#allocation42 + $0x98] sm:$0xff]
    %v5402 = vld [vmem:[#allocation42 + $0xa0] sm:$0xff]
    %v5403 = vld [vmem:[#allocation42 + $0xa8] sm:$0xff]
    %v5404 = vld [vmem:[#allocation42 + $0xb0] sm:$0xff]
    %v5405 = vld [vmem:[#allocation42 + $0xb8] sm:$0xff]
    %v5406 = vld [vmem:[#allocation42 + $0xc0] sm:$0xff]
    %v5407 = vld [vmem:[#allocation42 + $0xc8] sm:$0xff]
    %v5408 = vld [vmem:[#allocation42 + $0xd0] sm:$0xff]
    %v5409 = vld [vmem:[#allocation42 + $0xd8] sm:$0xff]
    %v5410 = vld [vmem:[#allocation42 + $0xe0] sm:$0xff]
    %v5411 = vld [vmem:[#allocation42 + $0xe8] sm:$0xff]
    %v5412 = vld [vmem:[#allocation42 + $0xf0] sm:$0xff]
    %v5413 = vld [vmem:[#allocation42 + $0xf8] sm:$0xff]
    %v5414 = vld [vmem:[#allocation42 + $0x100] sm:$0xff]
    %v5415 = vld [vmem:[#allocation42 + $0x108] sm:$0xff]
    %v5416 = vld [vmem:[#allocation42 + $0x110] sm:$0xff]
    %v5417 = vld [vmem:[#allocation42 + $0x118] sm:$0xff]
    %v5418 = vld [vmem:[#allocation42 + $0x120] sm:$0xff]
    %v5419 = vld [vmem:[#allocation42 + $0x128] sm:$0xff]
    %v5420 = vld [vmem:[#allocation42 + $0x130] sm:$0xff]
    %v5421 = vld [vmem:[#allocation42 + $0x138] sm:$0xff]
    %v5422 = vld [vmem:[#allocation42 + $0x140] sm:$0xff]
    %v5423 = vld [vmem:[#allocation42 + $0x148] sm:$0xff]
    %v5424 = vld [vmem:[#allocation42 + $0x150] sm:$0xff]
    %v5425 = vld [vmem:[#allocation42 + $0x158] sm:$0xff]
    %v5426 = vld [vmem:[#allocation42 + $0x160] sm:$0xff]
    %v5427 = vld [vmem:[#allocation42 + $0x168] sm:$0xff]
    %v5428 = vld [vmem:[#allocation42 + $0x170] sm:$0xff]
    %v5429 = vld [vmem:[#allocation42 + $0x178] sm:$0xff]
    %v5430 = vld [vmem:[#allocation42 + $0x180] sm:$0xff]
    %v5431 = vld [vmem:[#allocation42 + $0x188] sm:$0xff]
    %v5432 = vld [vmem:[#allocation42 + $0x190] sm:$0xff]
    %v5433 = vld [vmem:[#allocation42 + $0x198] sm:$0xff]
    %v5434 = vld [vmem:[#allocation42 + $0x1a0] sm:$0xff]
    %v5435 = vld [vmem:[#allocation42 + $0x1a8] sm:$0xff]
    %v5436 = vld [vmem:[#allocation42 + $0x1b0] sm:$0xff]
    %v5437 = vld [vmem:[#allocation42 + $0x1b8] sm:$0xff]
    %v5438 = vld [vmem:[#allocation42 + $0x1c0] sm:$0xff]
    %v5439 = vld [vmem:[#allocation42 + $0x1c8] sm:$0xff]
    %v5440 = vld [vmem:[#allocation42 + $0x1d0] sm:$0xff]
    %v5441 = vld [vmem:[#allocation42 + $0x1d8] sm:$0xff]
    %v5442 = vld [vmem:[#allocation42 + $0x1e0] sm:$0xff]
    %v5443 = vld [vmem:[#allocation42 + $0x1e8] sm:$0xff]
    %v5444 = vld [vmem:[#allocation42 + $0x1f0] sm:$0xff]
    %v5445 = vld [vmem:[#allocation42 + $0x1f8] sm:$0xff]
    %v5446 = vld [vmem:[#allocation42 + $0x200] sm:$0xff]
    %v5447 = vld [vmem:[#allocation42 + $0x208] sm:$0xff]
    %v5448 = vld [vmem:[#allocation42 + $0x210] sm:$0xff]
    %v5449 = vld [vmem:[#allocation42 + $0x218] sm:$0xff]
    %v5450 = vld [vmem:[#allocation42 + $0x220] sm:$0xff]
    %v5451 = vld [vmem:[#allocation42 + $0x228] sm:$0xff]
    %v5452 = vld [vmem:[#allocation42 + $0x230] sm:$0xff]
    %v5453 = vld [vmem:[#allocation42 + $0x238] sm:$0xff]
    %v5454 = vld [vmem:[#allocation42 + $0x240] sm:$0xff]
    %v5455 = vld [vmem:[#allocation42 + $0x248] sm:$0xff]
    %v5456 = vld [vmem:[#allocation42 + $0x250] sm:$0xff]
    %v5457 = vld [vmem:[#allocation42 + $0x258] sm:$0xff]
    %v5458 = vld [vmem:[#allocation42 + $0x260] sm:$0xff]
    %v5459 = vld [vmem:[#allocation42 + $0x268] sm:$0xff]
    %v5460 = vld [vmem:[#allocation42 + $0x270] sm:$0xff]
    %v5461 = vld [vmem:[#allocation42 + $0x278] sm:$0xff]
    %v5462 = vld [vmem:[#allocation42 + $0x280] sm:$0xff]
    %v5463 = vld [vmem:[#allocation42 + $0x288] sm:$0xff]
    %v5464 = vld [vmem:[#allocation42 + $0x290] sm:$0xff]
    %v5465 = vld [vmem:[#allocation42 + $0x298] sm:$0xff]
    %v5466 = vld [vmem:[#allocation42 + $0x2a0] sm:$0xff]
    %v5467 = vld [vmem:[#allocation42 + $0x2a8] sm:$0xff]
    %v5468 = vld [vmem:[#allocation42 + $0x2b0] sm:$0xff]
    %v5469 = vld [vmem:[#allocation42 + $0x2b8] sm:$0xff]
    %v5470 = vld [vmem:[#allocation42 + $0x2c0] sm:$0xff]
    %v5471 = vld [vmem:[#allocation42 + $0x2c8] sm:$0xff]
    %v5472 = vld [vmem:[#allocation42 + $0x2d0] sm:$0xff]
    %v5473 = vld [vmem:[#allocation42 + $0x2d8] sm:$0xff]
    %v5474 = vld [vmem:[#allocation42 + $0x2e0] sm:$0xff]
    %v5475 = vld [vmem:[#allocation42 + $0x2e8] sm:$0xff]
    %v5476 = vld [vmem:[#allocation42 + $0x2f0] sm:$0xff]
    %v5477 = vld [vmem:[#allocation42 + $0x2f8] sm:$0xff]
    %v5478 = vld [vmem:[#allocation42 + $0x300] sm:$0xff]
    %v5479 = vld [vmem:[#allocation42 + $0x308] sm:$0xff]
    %v5480 = vld [vmem:[#allocation42 + $0x310] sm:$0xff]
    %v5481 = vld [vmem:[#allocation42 + $0x318] sm:$0xff]
    %v5482 = vld [vmem:[#allocation42 + $0x320] sm:$0xff]
    %v5483 = vld [vmem:[#allocation42 + $0x328] sm:$0xff]
    %v5484 = vld [vmem:[#allocation42 + $0x330] sm:$0xff]
    %v5485 = vld [vmem:[#allocation42 + $0x338] sm:$0xff]
    %v5486 = vld [vmem:[#allocation42 + $0x340] sm:$0xff]
    %v5487 = vld [vmem:[#allocation42 + $0x348] sm:$0xff]
    %v5488 = vld [vmem:[#allocation42 + $0x350] sm:$0xff]
    %v5489 = vld [vmem:[#allocation42 + $0x358] sm:$0xff]
    %v5490 = vld [vmem:[#allocation42 + $0x360] sm:$0xff]
    %v5491 = vld [vmem:[#allocation42 + $0x368] sm:$0xff]
    %v5492 = vld [vmem:[#allocation42 + $0x370] sm:$0xff]
    %v5493 = vld [vmem:[#allocation42 + $0x378] sm:$0xff]
    %v5494 = vld [vmem:[#allocation42 + $0x380] sm:$0xff]
    %v5495 = vld [vmem:[#allocation42 + $0x388] sm:$0xff]
    %v5496 = vld [vmem:[#allocation42 + $0x390] sm:$0xff]
    %v5497 = vld [vmem:[#allocation42 + $0x398] sm:$0xff]
    %v5498 = vld [vmem:[#allocation42 + $0x3a0] sm:$0xff]
    %v5499 = vld [vmem:[#allocation42 + $0x3a8] sm:$0xff]
    %v5500 = vld [vmem:[#allocation42 + $0x3b0] sm:$0xff]
    %v5501 = vld [vmem:[#allocation42 + $0x3b8] sm:$0xff]
    %v5502 = vld [vmem:[#allocation42 + $0x3c0] sm:$0xff]
    %v5503 = vld [vmem:[#allocation42 + $0x3c8] sm:$0xff]
    %v5504 = vld [vmem:[#allocation42 + $0x3d0] sm:$0xff]
    %v5505 = vld [vmem:[#allocation42 + $0x3d8] sm:$0xff]
    %v5506 = vld [vmem:[#allocation42 + $0x3e0] sm:$0xff]
    %v5507 = vld [vmem:[#allocation42 + $0x3e8] sm:$0xff]
    %v5508 = vld [vmem:[#allocation42 + $0x3f0] sm:$0xff]
    %v5509 = vld [vmem:[#allocation42 + $0x3f8] sm:$0xff]
    %v5510 = vld [vmem:[#allocation42 + $0x400] sm:$0xff]
    %v5511 = vld [vmem:[#allocation42 + $0x408] sm:$0xff]
    %v5512 = vld [vmem:[#allocation42 + $0x410] sm:$0xff]
    %v5513 = vld [vmem:[#allocation42 + $0x418] sm:$0xff]
    %v5514 = vld [vmem:[#allocation42 + $0x420] sm:$0xff]
    %v5515 = vld [vmem:[#allocation42 + $0x428] sm:$0xff]
    %v5516 = vld [vmem:[#allocation42 + $0x430] sm:$0xff]
    %v5517 = vld [vmem:[#allocation42 + $0x438] sm:$0xff]
    %v5518 = vld [vmem:[#allocation42 + $0x440] sm:$0xff]
    %v5519 = vld [vmem:[#allocation42 + $0x448] sm:$0xff]
    %v5520 = vld [vmem:[#allocation42 + $0x450] sm:$0xff]
    %v5521 = vld [vmem:[#allocation42 + $0x458] sm:$0xff]
    %v5522 = vld [vmem:[#allocation42 + $0x460] sm:$0xff]
    %v5523 = vld [vmem:[#allocation42 + $0x468] sm:$0xff]
    %v5524 = vld [vmem:[#allocation42 + $0x470] sm:$0xff]
    %v5525 = vld [vmem:[#allocation42 + $0x478] sm:$0xff]
    %v5526 = vld [vmem:[#allocation42 + $0x480] sm:$0xff]
    %v5527 = vld [vmem:[#allocation42 + $0x488] sm:$0xff]
    %v5528 = vld [vmem:[#allocation42 + $0x490] sm:$0xff]
    %v5529 = vld [vmem:[#allocation42 + $0x498] sm:$0xff]
    %v5530 = vld [vmem:[#allocation42 + $0x4a0] sm:$0xff]
    %v5531 = vld [vmem:[#allocation42 + $0x4a8] sm:$0xff]
    %v5532 = vld [vmem:[#allocation42 + $0x4b0] sm:$0xff]
    %v5533 = vld [vmem:[#allocation42 + $0x4b8] sm:$0xff]
    %v5534 = vld [vmem:[#allocation42 + $0x4c0] sm:$0xff]
    %v5535 = vld [vmem:[#allocation42 + $0x4c8] sm:$0xff]
    %v5536 = vld [vmem:[#allocation42 + $0x4d0] sm:$0xff]
    %v5537 = vld [vmem:[#allocation42 + $0x4d8] sm:$0xff]
    %v5538 = vld [vmem:[#allocation42 + $0x4e0] sm:$0xff]
    %v5539 = vld [vmem:[#allocation42 + $0x4e8] sm:$0xff]
    %v5540 = vld [vmem:[#allocation42 + $0x4f0] sm:$0xff]
    %v5541 = vld [vmem:[#allocation42 + $0x4f8] sm:$0xff]
    %v5542 = vld [vmem:[#allocation42 + $0x500] sm:$0xff]
    %v5543 = vld [vmem:[#allocation42 + $0x508] sm:$0xff]
    %v5544 = vld [vmem:[#allocation42 + $0x510] sm:$0xff]
    %v5545 = vld [vmem:[#allocation42 + $0x518] sm:$0xff]
    %v5546 = vld [vmem:[#allocation42 + $0x520] sm:$0xff]
    %v5547 = vld [vmem:[#allocation42 + $0x528] sm:$0xff]
    %v5548 = vld [vmem:[#allocation42 + $0x530] sm:$0xff]
    %v5549 = vld [vmem:[#allocation42 + $0x538] sm:$0xff]
    %v5550 = vld [vmem:[#allocation42 + $0x540] sm:$0xff]
    %v5551 = vld [vmem:[#allocation42 + $0x548] sm:$0xff]
    %v5552 = vld [vmem:[#allocation42 + $0x550] sm:$0xff]
    %v5553 = vld [vmem:[#allocation42 + $0x558] sm:$0xff]
    %v5554 = vld [vmem:[#allocation42 + $0x560] sm:$0xff]
    %v5555 = vld [vmem:[#allocation42 + $0x568] sm:$0xff]
    %v5556 = vld [vmem:[#allocation42 + $0x570] sm:$0xff]
    %v5557 = vld [vmem:[#allocation42 + $0x578] sm:$0xff]
    %v5558 = vld [vmem:[#allocation42 + $0x580] sm:$0xff]
    %v5559 = vld [vmem:[#allocation42 + $0x588] sm:$0xff]
    %v5560 = vld [vmem:[#allocation42 + $0x590] sm:$0xff]
    %v5561 = vld [vmem:[#allocation42 + $0x598] sm:$0xff]
    %v5562 = vld [vmem:[#allocation42 + $0x5a0] sm:$0xff]
    %v5563 = vld [vmem:[#allocation42 + $0x5a8] sm:$0xff]
    %v5564 = vld [vmem:[#allocation42 + $0x5b0] sm:$0xff]
    %v5565 = vld [vmem:[#allocation42 + $0x5b8] sm:$0xff]
    %v5566 = vld [vmem:[#allocation42 + $0x5c0] sm:$0xff]
    %v5567 = vld [vmem:[#allocation42 + $0x5c8] sm:$0xff]
    %v5568 = vld [vmem:[#allocation42 + $0x5d0] sm:$0xff]
    %v5569 = vld [vmem:[#allocation42 + $0x5d8] sm:$0xff]
    %v5570 = vld [vmem:[#allocation42 + $0x5e0] sm:$0xff]
    %v5571 = vld [vmem:[#allocation42 + $0x5e8] sm:$0xff]
    %v5572 = vld [vmem:[#allocation42 + $0x5f0] sm:$0xff]
    %v5573 = vld [vmem:[#allocation42 + $0x5f8] sm:$0xff]
    %v5574 = vld [vmem:[#allocation42 + $0x600] sm:$0xff]
    %v5575 = vld [vmem:[#allocation42 + $0x608] sm:$0xff]
    %v5576 = vld [vmem:[#allocation42 + $0x610] sm:$0xff]
    %v5577 = vld [vmem:[#allocation42 + $0x618] sm:$0xff]
    %v5578 = vld [vmem:[#allocation42 + $0x620] sm:$0xff]
    %v5579 = vld [vmem:[#allocation42 + $0x628] sm:$0xff]
    %v5580 = vld [vmem:[#allocation42 + $0x630] sm:$0xff]
    %v5581 = vld [vmem:[#allocation42 + $0x638] sm:$0xff]
    %v5582 = vld [vmem:[#allocation42 + $0x640] sm:$0xff]
    %v5583 = vld [vmem:[#allocation42 + $0x648] sm:$0xff]
    %v5584 = vld [vmem:[#allocation42 + $0x650] sm:$0xff]
    %v5585 = vld [vmem:[#allocation42 + $0x658] sm:$0xff]
    %v5586 = vld [vmem:[#allocation42 + $0x660] sm:$0xff]
    %v5587 = vld [vmem:[#allocation42 + $0x668] sm:$0xff]
    %v5588 = vld [vmem:[#allocation42 + $0x670] sm:$0xff]
    %v5589 = vld [vmem:[#allocation42 + $0x678] sm:$0xff]
    %v5590 = vld [vmem:[#allocation42 + $0x680] sm:$0xff]
    %v5591 = vld [vmem:[#allocation42 + $0x688] sm:$0xff]
    %v5592 = vld [vmem:[#allocation42 + $0x690] sm:$0xff]
    %v5593 = vld [vmem:[#allocation42 + $0x698] sm:$0xff]
    %v5594 = vld [vmem:[#allocation42 + $0x6a0] sm:$0xff]
    %v5595 = vld [vmem:[#allocation42 + $0x6a8] sm:$0xff]
    %v5596 = vld [vmem:[#allocation42 + $0x6b0] sm:$0xff]
    %v5597 = vld [vmem:[#allocation42 + $0x6b8] sm:$0xff]
    %v5598 = vld [vmem:[#allocation42 + $0x6c0] sm:$0xff]
    %v5599 = vld [vmem:[#allocation42 + $0x6c8] sm:$0xff]
    %v5600 = vld [vmem:[#allocation42 + $0x6d0] sm:$0xff]
    %v5601 = vld [vmem:[#allocation42 + $0x6d8] sm:$0xff]
    %v5602 = vld [vmem:[#allocation42 + $0x6e0] sm:$0xff]
    %v5603 = vld [vmem:[#allocation42 + $0x6e8] sm:$0xff]
    %v5604 = vld [vmem:[#allocation42 + $0x6f0] sm:$0xff]
    %v5605 = vld [vmem:[#allocation42 + $0x6f8] sm:$0xff]
    %v5606 = vld [vmem:[#allocation42 + $0x700] sm:$0xff]
    %v5607 = vld [vmem:[#allocation42 + $0x708] sm:$0xff]
    %v5608 = vld [vmem:[#allocation42 + $0x710] sm:$0xff]
    %v5609 = vld [vmem:[#allocation42 + $0x718] sm:$0xff]
    %v5610 = vld [vmem:[#allocation42 + $0x720] sm:$0xff]
    %v5611 = vld [vmem:[#allocation42 + $0x728] sm:$0xff]
    %v5612 = vld [vmem:[#allocation42 + $0x730] sm:$0xff]
    %v5613 = vld [vmem:[#allocation42 + $0x738] sm:$0xff]
    %v5614 = vld [vmem:[#allocation42 + $0x740] sm:$0xff]
    %v5615 = vld [vmem:[#allocation42 + $0x748] sm:$0xff]
    %v5616 = vld [vmem:[#allocation42 + $0x750] sm:$0xff]
    %v5617 = vld [vmem:[#allocation42 + $0x758] sm:$0xff]
    %v5618 = vld [vmem:[#allocation42 + $0x760] sm:$0xff]
    %v5619 = vld [vmem:[#allocation42 + $0x768] sm:$0xff]
    %v5620 = vld [vmem:[#allocation42 + $0x770] sm:$0xff]
    %v5621 = vld [vmem:[#allocation42 + $0x778] sm:$0xff]
    %v5622 = vld [vmem:[#allocation42 + $0x780] sm:$0xff]
    %v5623 = vld [vmem:[#allocation42 + $0x788] sm:$0xff]
    %v5624 = vld [vmem:[#allocation42 + $0x790] sm:$0xff]
    %v5625 = vld [vmem:[#allocation42 + $0x798] sm:$0xff]
    %v5626 = vld [vmem:[#allocation42 + $0x7a0] sm:$0xff]
    %v5627 = vld [vmem:[#allocation42 + $0x7a8] sm:$0xff]
    %v5628 = vld [vmem:[#allocation42 + $0x7b0] sm:$0xff]
    %v5629 = vld [vmem:[#allocation42 + $0x7b8] sm:$0xff]
    %v5630 = vld [vmem:[#allocation42 + $0x7c0] sm:$0xff]
    %v5631 = vld [vmem:[#allocation42 + $0x7c8] sm:$0xff]
    %v5632 = vld [vmem:[#allocation42 + $0x7d0] sm:$0xff]
    %v5633 = vld [vmem:[#allocation42 + $0x7d8] sm:$0xff]
    %v5634 = vld [vmem:[#allocation42 + $0x7e0] sm:$0xff]
    %v5635 = vld [vmem:[#allocation42 + $0x7e8] sm:$0xff]
    %v5636 = vld [vmem:[#allocation42 + $0x7f0] sm:$0xff]
    %v5637 = vld [vmem:[#allocation42 + $0x7f8] sm:$0xff]
    %v5638 = vld [vmem:[#allocation42 + $0x800] sm:$0xff]
    %v5639 = vld [vmem:[#allocation42 + $0x808] sm:$0xff]
    %v5640 = vld [vmem:[#allocation42 + $0x810] sm:$0xff]
    %v5641 = vld [vmem:[#allocation42 + $0x818] sm:$0xff]
    %v5642 = vld [vmem:[#allocation42 + $0x820] sm:$0xff]
    %v5643 = vld [vmem:[#allocation42 + $0x828] sm:$0xff]
    %v5644 = vld [vmem:[#allocation42 + $0x830] sm:$0xff]
    %v5645 = vld [vmem:[#allocation42 + $0x838] sm:$0xff]
    %v5646 = vld [vmem:[#allocation42 + $0x840] sm:$0xff]
    %v5647 = vld [vmem:[#allocation42 + $0x848] sm:$0xff]
    %v5648 = vld [vmem:[#allocation42 + $0x850] sm:$0xff]
    %v5649 = vld [vmem:[#allocation42 + $0x858] sm:$0xff]
    %v5650 = vld [vmem:[#allocation42 + $0x860] sm:$0xff]
    %v5651 = vld [vmem:[#allocation42 + $0x868] sm:$0xff]
    %v5652 = vld [vmem:[#allocation42 + $0x870] sm:$0xff]
    %v5653 = vld [vmem:[#allocation42 + $0x878] sm:$0xff]
    %v5654 = vld [vmem:[#allocation42 + $0x880] sm:$0xff]
    %v5655 = vld [vmem:[#allocation42 + $0x888] sm:$0xff]
    %v5656 = vld [vmem:[#allocation42 + $0x890] sm:$0xff]
    %v5657 = vld [vmem:[#allocation42 + $0x898] sm:$0xff]
    %v5658 = vld [vmem:[#allocation42 + $0x8a0] sm:$0xff]
    %v5659 = vld [vmem:[#allocation42 + $0x8a8] sm:$0xff]
    %v5660 = vld [vmem:[#allocation42 + $0x8b0] sm:$0xff]
    %v5661 = vld [vmem:[#allocation42 + $0x8b8] sm:$0xff]
    %v5662 = vld [vmem:[#allocation42 + $0x8c0] sm:$0xff]
    %v5663 = vld [vmem:[#allocation42 + $0x8c8] sm:$0xff]
    %v5664 = vld [vmem:[#allocation42 + $0x8d0] sm:$0xff]
    %v5665 = vld [vmem:[#allocation42 + $0x8d8] sm:$0xff]
    %v5666 = vld [vmem:[#allocation42 + $0x8e0] sm:$0xff]
    %v5667 = vld [vmem:[#allocation42 + $0x8e8] sm:$0xff]
    %v5668 = vld [vmem:[#allocation42 + $0x8f0] sm:$0xff]
    %v5669 = vld [vmem:[#allocation42 + $0x8f8] sm:$0xff]
    %v5670 = vld [vmem:[#allocation42 + $0x900] sm:$0xff]
    %v5671 = vld [vmem:[#allocation42 + $0x908] sm:$0xff]
    %v5672 = vld [vmem:[#allocation42 + $0x910] sm:$0xff]
    %v5673 = vld [vmem:[#allocation42 + $0x918] sm:$0xff]
    %v5674 = vld [vmem:[#allocation42 + $0x920] sm:$0xff]
    %v5675 = vld [vmem:[#allocation42 + $0x928] sm:$0xff]
    %v5676 = vld [vmem:[#allocation42 + $0x930] sm:$0xff]
    %v5677 = vld [vmem:[#allocation42 + $0x938] sm:$0xff]
    %v5678 = vld [vmem:[#allocation42 + $0x940] sm:$0xff]
    %v5679 = vld [vmem:[#allocation42 + $0x948] sm:$0xff]
    %v5680 = vld [vmem:[#allocation42 + $0x950] sm:$0xff]
    %v5681 = vld [vmem:[#allocation42 + $0x958] sm:$0xff]
    %v5682 = vld [vmem:[#allocation42 + $0x960] sm:$0xff]
    %v5683 = vld [vmem:[#allocation42 + $0x968] sm:$0xff]
    %v5684 = vld [vmem:[#allocation42 + $0x970] sm:$0xff]
    %v5685 = vld [vmem:[#allocation42 + $0x978] sm:$0xff]
    %v5686 = vld [vmem:[#allocation42 + $0x980] sm:$0xff]
    %v5687 = vld [vmem:[#allocation42 + $0x988] sm:$0xff]
    %v5688 = vld [vmem:[#allocation42 + $0x990] sm:$0xff]
    %v5689 = vld [vmem:[#allocation42 + $0x998] sm:$0xff]
    %v5690 = vld [vmem:[#allocation42 + $0x9a0] sm:$0xff]
    %v5691 = vld [vmem:[#allocation42 + $0x9a8] sm:$0xff]
    %v5692 = vld [vmem:[#allocation42 + $0x9b0] sm:$0xff]
    %v5693 = vld [vmem:[#allocation42 + $0x9b8] sm:$0xff]
    %v5694 = vld [vmem:[#allocation42 + $0x9c0] sm:$0xff]
    %v5695 = vld [vmem:[#allocation42 + $0x9c8] sm:$0xff]
    %v5696 = vld [vmem:[#allocation42 + $0x9d0] sm:$0xff]
    %v5697 = vld [vmem:[#allocation42 + $0x9d8] sm:$0xff]
    %v5698 = vld [vmem:[#allocation42 + $0x9e0] sm:$0xff]
    %v5699 = vld [vmem:[#allocation42 + $0x9e8] sm:$0xff]
    %v5700 = vld [vmem:[#allocation42 + $0x9f0] sm:$0xff]
    %v5701 = vld [vmem:[#allocation42 + $0x9f8] sm:$0xff]
    %v5702 = vld [vmem:[#allocation44] sm:$0xff]
    %v5703 = vld [vmem:[#allocation44 + $0x8] sm:$0x3]
    %v5706 = vperm.slane %v5702, 0
    %v5707 = vperm.slane %v5702, 1
    %v5708 = vperm.slane %v5702, 2
    %v5709 = vperm.slane %v5702, 3
    %v5710 = vperm.slane %v5702, 4
    %v5711 = vperm.slane %v5702, 5
    %v5712 = vperm.slane %v5702, 6
    %v5713 = vperm.slane %v5702, 7
    %v5714 = vperm.slane %v5703, 0
    %v5715 = vperm.slane %v5703, 1
    %v6046 = vunpack.c.l.b16 %v5382
    %v6047 = vunpack.c.h.b16 %v5382
    %v6048 = vunpack.c.l.b16 %v5383
    %v6049 = vunpack.c.h.b16 %v5383
    %v6050 = vunpack.c.l.b16 %v5384
    %v6051 = vunpack.c.h.b16 %v5384
    %v6052 = vunpack.c.l.b16 %v5385
    %v6053 = vunpack.c.h.b16 %v5385
    %v6054 = vunpack.c.l.b16 %v5386
    %v6055 = vunpack.c.h.b16 %v5386
    %v6056 = vunpack.c.l.b16 %v5387
    %v6057 = vunpack.c.h.b16 %v5387
    %v6058 = vunpack.c.l.b16 %v5388
    %v6059 = vunpack.c.h.b16 %v5388
    %v6060 = vunpack.c.l.b16 %v5389
    %v6061 = vunpack.c.h.b16 %v5389
    %v6062 = vunpack.c.l.b16 %v5390
    %v6063 = vunpack.c.h.b16 %v5390
    %v6064 = vunpack.c.l.b16 %v5391
    %v6065 = vunpack.c.h.b16 %v5391
    %v6066 = vunpack.c.l.b16 %v5392
    %v6067 = vunpack.c.h.b16 %v5392
    %v6068 = vunpack.c.l.b16 %v5393
    %v6069 = vunpack.c.h.b16 %v5393
    %v6070 = vunpack.c.l.b16 %v5394
    %v6071 = vunpack.c.h.b16 %v5394
    %v6072 = vunpack.c.l.b16 %v5395
    %v6073 = vunpack.c.h.b16 %v5395
    %v6074 = vunpack.c.l.b16 %v5396
    %v6075 = vunpack.c.h.b16 %v5396
    %v6076 = vunpack.c.l.b16 %v5397
    %v6077 = vunpack.c.h.b16 %v5397
    %v6078 = vunpack.c.l.b16 %v5398
    %v6079 = vunpack.c.h.b16 %v5398
    %v6080 = vunpack.c.l.b16 %v5399
    %v6081 = vunpack.c.h.b16 %v5399
    %v6082 = vunpack.c.l.b16 %v5400
    %v6083 = vunpack.c.h.b16 %v5400
    %v6084 = vunpack.c.l.b16 %v5401
    %v6085 = vunpack.c.h.b16 %v5401
    %v6086 = vunpack.c.l.b16 %v5402
    %v6087 = vunpack.c.h.b16 %v5402
    %v6088 = vunpack.c.l.b16 %v5403
    %v6089 = vunpack.c.h.b16 %v5403
    %v6090 = vunpack.c.l.b16 %v5404
    %v6091 = vunpack.c.h.b16 %v5404
    %v6092 = vunpack.c.l.b16 %v5405
    %v6093 = vunpack.c.h.b16 %v5405
    %v6094 = vunpack.c.l.b16 %v5406
    %v6095 = vunpack.c.h.b16 %v5406
    %v6096 = vunpack.c.l.b16 %v5407
    %v6097 = vunpack.c.h.b16 %v5407
    %v6098 = vunpack.c.l.b16 %v5408
    %v6099 = vunpack.c.h.b16 %v5408
    %v6100 = vunpack.c.l.b16 %v5409
    %v6101 = vunpack.c.h.b16 %v5409
    %v6102 = vunpack.c.l.b16 %v5410
    %v6103 = vunpack.c.h.b16 %v5410
    %v6104 = vunpack.c.l.b16 %v5411
    %v6105 = vunpack.c.h.b16 %v5411
    %v6106 = vunpack.c.l.b16 %v5412
    %v6107 = vunpack.c.h.b16 %v5412
    %v6108 = vunpack.c.l.b16 %v5413
    %v6109 = vunpack.c.h.b16 %v5413
    %v6110 = vunpack.c.l.b16 %v5414
    %v6111 = vunpack.c.h.b16 %v5414
    %v6112 = vunpack.c.l.b16 %v5415
    %v6113 = vunpack.c.h.b16 %v5415
    %v6114 = vunpack.c.l.b16 %v5416
    %v6115 = vunpack.c.h.b16 %v5416
    %v6116 = vunpack.c.l.b16 %v5417
    %v6117 = vunpack.c.h.b16 %v5417
    %v6118 = vunpack.c.l.b16 %v5418
    %v6119 = vunpack.c.h.b16 %v5418
    %v6120 = vunpack.c.l.b16 %v5419
    %v6121 = vunpack.c.h.b16 %v5419
    %v6122 = vunpack.c.l.b16 %v5420
    %v6123 = vunpack.c.h.b16 %v5420
    %v6124 = vunpack.c.l.b16 %v5421
    %v6125 = vunpack.c.h.b16 %v5421
    %v6126 = vunpack.c.l.b16 %v5422
    %v6127 = vunpack.c.h.b16 %v5422
    %v6128 = vunpack.c.l.b16 %v5423
    %v6129 = vunpack.c.h.b16 %v5423
    %v6130 = vunpack.c.l.b16 %v5424
    %v6131 = vunpack.c.h.b16 %v5424
    %v6132 = vunpack.c.l.b16 %v5425
    %v6133 = vunpack.c.h.b16 %v5425
    %v6134 = vunpack.c.l.b16 %v5426
    %v6135 = vunpack.c.h.b16 %v5426
    %v6136 = vunpack.c.l.b16 %v5427
    %v6137 = vunpack.c.h.b16 %v5427
    %v6138 = vunpack.c.l.b16 %v5428
    %v6139 = vunpack.c.h.b16 %v5428
    %v6140 = vunpack.c.l.b16 %v5429
    %v6141 = vunpack.c.h.b16 %v5429
    %v6142 = vunpack.c.l.b16 %v5430
    %v6143 = vunpack.c.h.b16 %v5430
    %v6144 = vunpack.c.l.b16 %v5431
    %v6145 = vunpack.c.h.b16 %v5431
    %v6146 = vunpack.c.l.b16 %v5432
    %v6147 = vunpack.c.h.b16 %v5432
    %v6148 = vunpack.c.l.b16 %v5433
    %v6149 = vunpack.c.h.b16 %v5433
    %v6150 = vunpack.c.l.b16 %v5434
    %v6151 = vunpack.c.h.b16 %v5434
    %v6152 = vunpack.c.l.b16 %v5435
    %v6153 = vunpack.c.h.b16 %v5435
    %v6154 = vunpack.c.l.b16 %v5436
    %v6155 = vunpack.c.h.b16 %v5436
    %v6156 = vunpack.c.l.b16 %v5437
    %v6157 = vunpack.c.h.b16 %v5437
    %v6158 = vunpack.c.l.b16 %v5438
    %v6159 = vunpack.c.h.b16 %v5438
    %v6160 = vunpack.c.l.b16 %v5439
    %v6161 = vunpack.c.h.b16 %v5439
    %v6162 = vunpack.c.l.b16 %v5440
    %v6163 = vunpack.c.h.b16 %v5440
    %v6164 = vunpack.c.l.b16 %v5441
    %v6165 = vunpack.c.h.b16 %v5441
    %v6166 = vunpack.c.l.b16 %v5442
    %v6167 = vunpack.c.h.b16 %v5442
    %v6168 = vunpack.c.l.b16 %v5443
    %v6169 = vunpack.c.h.b16 %v5443
    %v6170 = vunpack.c.l.b16 %v5444
    %v6171 = vunpack.c.h.b16 %v5444
    %v6172 = vunpack.c.l.b16 %v5445
    %v6173 = vunpack.c.h.b16 %v5445
    %v6174 = vunpack.c.l.b16 %v5446
    %v6175 = vunpack.c.h.b16 %v5446
    %v6176 = vunpack.c.l.b16 %v5447
    %v6177 = vunpack.c.h.b16 %v5447
    %v6178 = vunpack.c.l.b16 %v5448
    %v6179 = vunpack.c.h.b16 %v5448
    %v6180 = vunpack.c.l.b16 %v5449
    %v6181 = vunpack.c.h.b16 %v5449
    %v6182 = vunpack.c.l.b16 %v5450
    %v6183 = vunpack.c.h.b16 %v5450
    %v6184 = vunpack.c.l.b16 %v5451
    %v6185 = vunpack.c.h.b16 %v5451
    %v6186 = vunpack.c.l.b16 %v5452
    %v6187 = vunpack.c.h.b16 %v5452
    %v6188 = vunpack.c.l.b16 %v5453
    %v6189 = vunpack.c.h.b16 %v5453
    %v6190 = vunpack.c.l.b16 %v5454
    %v6191 = vunpack.c.h.b16 %v5454
    %v6192 = vunpack.c.l.b16 %v5455
    %v6193 = vunpack.c.h.b16 %v5455
    %v6194 = vunpack.c.l.b16 %v5456
    %v6195 = vunpack.c.h.b16 %v5456
    %v6196 = vunpack.c.l.b16 %v5457
    %v6197 = vunpack.c.h.b16 %v5457
    %v6198 = vunpack.c.l.b16 %v5458
    %v6199 = vunpack.c.h.b16 %v5458
    %v6200 = vunpack.c.l.b16 %v5459
    %v6201 = vunpack.c.h.b16 %v5459
    %v6202 = vunpack.c.l.b16 %v5460
    %v6203 = vunpack.c.h.b16 %v5460
    %v6204 = vunpack.c.l.b16 %v5461
    %v6205 = vunpack.c.h.b16 %v5461
    %v6206 = vunpack.c.l.b16 %v5462
    %v6207 = vunpack.c.h.b16 %v5462
    %v6208 = vunpack.c.l.b16 %v5463
    %v6209 = vunpack.c.h.b16 %v5463
    %v6210 = vunpack.c.l.b16 %v5464
    %v6211 = vunpack.c.h.b16 %v5464
    %v6212 = vunpack.c.l.b16 %v5465
    %v6213 = vunpack.c.h.b16 %v5465
    %v6214 = vunpack.c.l.b16 %v5466
    %v6215 = vunpack.c.h.b16 %v5466
    %v6216 = vunpack.c.l.b16 %v5467
    %v6217 = vunpack.c.h.b16 %v5467
    %v6218 = vunpack.c.l.b16 %v5468
    %v6219 = vunpack.c.h.b16 %v5468
    %v6220 = vunpack.c.l.b16 %v5469
    %v6221 = vunpack.c.h.b16 %v5469
    %v6222 = vunpack.c.l.b16 %v5470
    %v6223 = vunpack.c.h.b16 %v5470
    %v6224 = vunpack.c.l.b16 %v5471
    %v6225 = vunpack.c.h.b16 %v5471
    %v6226 = vunpack.c.l.b16 %v5472
    %v6227 = vunpack.c.h.b16 %v5472
    %v6228 = vunpack.c.l.b16 %v5473
    %v6229 = vunpack.c.h.b16 %v5473
    %v6230 = vunpack.c.l.b16 %v5474
    %v6231 = vunpack.c.h.b16 %v5474
    %v6232 = vunpack.c.l.b16 %v5475
    %v6233 = vunpack.c.h.b16 %v5475
    %v6234 = vunpack.c.l.b16 %v5476
    %v6235 = vunpack.c.h.b16 %v5476
    %v6236 = vunpack.c.l.b16 %v5477
    %v6237 = vunpack.c.h.b16 %v5477
    %v6238 = vunpack.c.l.b16 %v5478
    %v6239 = vunpack.c.h.b16 %v5478
    %v6240 = vunpack.c.l.b16 %v5479
    %v6241 = vunpack.c.h.b16 %v5479
    %v6242 = vunpack.c.l.b16 %v5480
    %v6243 = vunpack.c.h.b16 %v5480
    %v6244 = vunpack.c.l.b16 %v5481
    %v6245 = vunpack.c.h.b16 %v5481
    %v6246 = vunpack.c.l.b16 %v5482
    %v6247 = vunpack.c.h.b16 %v5482
    %v6248 = vunpack.c.l.b16 %v5483
    %v6249 = vunpack.c.h.b16 %v5483
    %v6250 = vunpack.c.l.b16 %v5484
    %v6251 = vunpack.c.h.b16 %v5484
    %v6252 = vunpack.c.l.b16 %v5485
    %v6253 = vunpack.c.h.b16 %v5485
    %v6254 = vunpack.c.l.b16 %v5486
    %v6255 = vunpack.c.h.b16 %v5486
    %v6256 = vunpack.c.l.b16 %v5487
    %v6257 = vunpack.c.h.b16 %v5487
    %v6258 = vunpack.c.l.b16 %v5488
    %v6259 = vunpack.c.h.b16 %v5488
    %v6260 = vunpack.c.l.b16 %v5489
    %v6261 = vunpack.c.h.b16 %v5489
    %v6262 = vunpack.c.l.b16 %v5490
    %v6263 = vunpack.c.h.b16 %v5490
    %v6264 = vunpack.c.l.b16 %v5491
    %v6265 = vunpack.c.h.b16 %v5491
    %v6266 = vunpack.c.l.b16 %v5492
    %v6267 = vunpack.c.h.b16 %v5492
    %v6268 = vunpack.c.l.b16 %v5493
    %v6269 = vunpack.c.h.b16 %v5493
    %v6270 = vunpack.c.l.b16 %v5494
    %v6271 = vunpack.c.h.b16 %v5494
    %v6272 = vunpack.c.l.b16 %v5495
    %v6273 = vunpack.c.h.b16 %v5495
    %v6274 = vunpack.c.l.b16 %v5496
    %v6275 = vunpack.c.h.b16 %v5496
    %v6276 = vunpack.c.l.b16 %v5497
    %v6277 = vunpack.c.h.b16 %v5497
    %v6278 = vunpack.c.l.b16 %v5498
    %v6279 = vunpack.c.h.b16 %v5498
    %v6280 = vunpack.c.l.b16 %v5499
    %v6281 = vunpack.c.h.b16 %v5499
    %v6282 = vunpack.c.l.b16 %v5500
    %v6283 = vunpack.c.h.b16 %v5500
    %v6284 = vunpack.c.l.b16 %v5501
    %v6285 = vunpack.c.h.b16 %v5501
    %v6286 = vunpack.c.l.b16 %v5502
    %v6287 = vunpack.c.h.b16 %v5502
    %v6288 = vunpack.c.l.b16 %v5503
    %v6289 = vunpack.c.h.b16 %v5503
    %v6290 = vunpack.c.l.b16 %v5504
    %v6291 = vunpack.c.h.b16 %v5504
    %v6292 = vunpack.c.l.b16 %v5505
    %v6293 = vunpack.c.h.b16 %v5505
    %v6294 = vunpack.c.l.b16 %v5506
    %v6295 = vunpack.c.h.b16 %v5506
    %v6296 = vunpack.c.l.b16 %v5507
    %v6297 = vunpack.c.h.b16 %v5507
    %v6298 = vunpack.c.l.b16 %v5508
    %v6299 = vunpack.c.h.b16 %v5508
    %v6300 = vunpack.c.l.b16 %v5509
    %v6301 = vunpack.c.h.b16 %v5509
    %v6302 = vunpack.c.l.b16 %v5510
    %v6303 = vunpack.c.h.b16 %v5510
    %v6304 = vunpack.c.l.b16 %v5511
    %v6305 = vunpack.c.h.b16 %v5511
    %v6306 = vunpack.c.l.b16 %v5512
    %v6307 = vunpack.c.h.b16 %v5512
    %v6308 = vunpack.c.l.b16 %v5513
    %v6309 = vunpack.c.h.b16 %v5513
    %v6310 = vunpack.c.l.b16 %v5514
    %v6311 = vunpack.c.h.b16 %v5514
    %v6312 = vunpack.c.l.b16 %v5515
    %v6313 = vunpack.c.h.b16 %v5515
    %v6314 = vunpack.c.l.b16 %v5516
    %v6315 = vunpack.c.h.b16 %v5516
    %v6316 = vunpack.c.l.b16 %v5517
    %v6317 = vunpack.c.h.b16 %v5517
    %v6318 = vunpack.c.l.b16 %v5518
    %v6319 = vunpack.c.h.b16 %v5518
    %v6320 = vunpack.c.l.b16 %v5519
    %v6321 = vunpack.c.h.b16 %v5519
    %v6322 = vunpack.c.l.b16 %v5520
    %v6323 = vunpack.c.h.b16 %v5520
    %v6324 = vunpack.c.l.b16 %v5521
    %v6325 = vunpack.c.h.b16 %v5521
    %v6326 = vunpack.c.l.b16 %v5522
    %v6327 = vunpack.c.h.b16 %v5522
    %v6328 = vunpack.c.l.b16 %v5523
    %v6329 = vunpack.c.h.b16 %v5523
    %v6330 = vunpack.c.l.b16 %v5524
    %v6331 = vunpack.c.h.b16 %v5524
    %v6332 = vunpack.c.l.b16 %v5525
    %v6333 = vunpack.c.h.b16 %v5525
    %v6334 = vunpack.c.l.b16 %v5526
    %v6335 = vunpack.c.h.b16 %v5526
    %v6336 = vunpack.c.l.b16 %v5527
    %v6337 = vunpack.c.h.b16 %v5527
    %v6338 = vunpack.c.l.b16 %v5528
    %v6339 = vunpack.c.h.b16 %v5528
    %v6340 = vunpack.c.l.b16 %v5529
    %v6341 = vunpack.c.h.b16 %v5529
    %v6342 = vunpack.c.l.b16 %v5530
    %v6343 = vunpack.c.h.b16 %v5530
    %v6344 = vunpack.c.l.b16 %v5531
    %v6345 = vunpack.c.h.b16 %v5531
    %v6346 = vunpack.c.l.b16 %v5532
    %v6347 = vunpack.c.h.b16 %v5532
    %v6348 = vunpack.c.l.b16 %v5533
    %v6349 = vunpack.c.h.b16 %v5533
    %v6350 = vunpack.c.l.b16 %v5534
    %v6351 = vunpack.c.h.b16 %v5534
    %v6352 = vunpack.c.l.b16 %v5535
    %v6353 = vunpack.c.h.b16 %v5535
    %v6354 = vunpack.c.l.b16 %v5536
    %v6355 = vunpack.c.h.b16 %v5536
    %v6356 = vunpack.c.l.b16 %v5537
    %v6357 = vunpack.c.h.b16 %v5537
    %v6358 = vunpack.c.l.b16 %v5538
    %v6359 = vunpack.c.h.b16 %v5538
    %v6360 = vunpack.c.l.b16 %v5539
    %v6361 = vunpack.c.h.b16 %v5539
    %v6362 = vunpack.c.l.b16 %v5540
    %v6363 = vunpack.c.h.b16 %v5540
    %v6364 = vunpack.c.l.b16 %v5541
    %v6365 = vunpack.c.h.b16 %v5541
    %v6366 = vunpack.c.l.b16 %v5542
    %v6367 = vunpack.c.h.b16 %v5542
    %v6368 = vunpack.c.l.b16 %v5543
    %v6369 = vunpack.c.h.b16 %v5543
    %v6370 = vunpack.c.l.b16 %v5544
    %v6371 = vunpack.c.h.b16 %v5544
    %v6372 = vunpack.c.l.b16 %v5545
    %v6373 = vunpack.c.h.b16 %v5545
    %v6374 = vunpack.c.l.b16 %v5546
    %v6375 = vunpack.c.h.b16 %v5546
    %v6376 = vunpack.c.l.b16 %v5547
    %v6377 = vunpack.c.h.b16 %v5547
    %v6378 = vunpack.c.l.b16 %v5548
    %v6379 = vunpack.c.h.b16 %v5548
    %v6380 = vunpack.c.l.b16 %v5549
    %v6381 = vunpack.c.h.b16 %v5549
    %v6382 = vunpack.c.l.b16 %v5550
    %v6383 = vunpack.c.h.b16 %v5550
    %v6384 = vunpack.c.l.b16 %v5551
    %v6385 = vunpack.c.h.b16 %v5551
    %v6386 = vunpack.c.l.b16 %v5552
    %v6387 = vunpack.c.h.b16 %v5552
    %v6388 = vunpack.c.l.b16 %v5553
    %v6389 = vunpack.c.h.b16 %v5553
    %v6390 = vunpack.c.l.b16 %v5554
    %v6391 = vunpack.c.h.b16 %v5554
    %v6392 = vunpack.c.l.b16 %v5555
    %v6393 = vunpack.c.h.b16 %v5555
    %v6394 = vunpack.c.l.b16 %v5556
    %v6395 = vunpack.c.h.b16 %v5556
    %v6396 = vunpack.c.l.b16 %v5557
    %v6397 = vunpack.c.h.b16 %v5557
    %v6398 = vunpack.c.l.b16 %v5558
    %v6399 = vunpack.c.h.b16 %v5558
    %v6400 = vunpack.c.l.b16 %v5559
    %v6401 = vunpack.c.h.b16 %v5559
    %v6402 = vunpack.c.l.b16 %v5560
    %v6403 = vunpack.c.h.b16 %v5560
    %v6404 = vunpack.c.l.b16 %v5561
    %v6405 = vunpack.c.h.b16 %v5561
    %v6406 = vunpack.c.l.b16 %v5562
    %v6407 = vunpack.c.h.b16 %v5562
    %v6408 = vunpack.c.l.b16 %v5563
    %v6409 = vunpack.c.h.b16 %v5563
    %v6410 = vunpack.c.l.b16 %v5564
    %v6411 = vunpack.c.h.b16 %v5564
    %v6412 = vunpack.c.l.b16 %v5565
    %v6413 = vunpack.c.h.b16 %v5565
    %v6414 = vunpack.c.l.b16 %v5566
    %v6415 = vunpack.c.h.b16 %v5566
    %v6416 = vunpack.c.l.b16 %v5567
    %v6417 = vunpack.c.h.b16 %v5567
    %v6418 = vunpack.c.l.b16 %v5568
    %v6419 = vunpack.c.h.b16 %v5568
    %v6420 = vunpack.c.l.b16 %v5569
    %v6421 = vunpack.c.h.b16 %v5569
    %v6422 = vunpack.c.l.b16 %v5570
    %v6423 = vunpack.c.h.b16 %v5570
    %v6424 = vunpack.c.l.b16 %v5571
    %v6425 = vunpack.c.h.b16 %v5571
    %v6426 = vunpack.c.l.b16 %v5572
    %v6427 = vunpack.c.h.b16 %v5572
    %v6428 = vunpack.c.l.b16 %v5573
    %v6429 = vunpack.c.h.b16 %v5573
    %v6430 = vunpack.c.l.b16 %v5574
    %v6431 = vunpack.c.h.b16 %v5574
    %v6432 = vunpack.c.l.b16 %v5575
    %v6433 = vunpack.c.h.b16 %v5575
    %v6434 = vunpack.c.l.b16 %v5576
    %v6435 = vunpack.c.h.b16 %v5576
    %v6436 = vunpack.c.l.b16 %v5577
    %v6437 = vunpack.c.h.b16 %v5577
    %v6438 = vunpack.c.l.b16 %v5578
    %v6439 = vunpack.c.h.b16 %v5578
    %v6440 = vunpack.c.l.b16 %v5579
    %v6441 = vunpack.c.h.b16 %v5579
    %v6442 = vunpack.c.l.b16 %v5580
    %v6443 = vunpack.c.h.b16 %v5580
    %v6444 = vunpack.c.l.b16 %v5581
    %v6445 = vunpack.c.h.b16 %v5581
    %v6446 = vunpack.c.l.b16 %v5582
    %v6447 = vunpack.c.h.b16 %v5582
    %v6448 = vunpack.c.l.b16 %v5583
    %v6449 = vunpack.c.h.b16 %v5583
    %v6450 = vunpack.c.l.b16 %v5584
    %v6451 = vunpack.c.h.b16 %v5584
    %v6452 = vunpack.c.l.b16 %v5585
    %v6453 = vunpack.c.h.b16 %v5585
    %v6454 = vunpack.c.l.b16 %v5586
    %v6455 = vunpack.c.h.b16 %v5586
    %v6456 = vunpack.c.l.b16 %v5587
    %v6457 = vunpack.c.h.b16 %v5587
    %v6458 = vunpack.c.l.b16 %v5588
    %v6459 = vunpack.c.h.b16 %v5588
    %v6460 = vunpack.c.l.b16 %v5589
    %v6461 = vunpack.c.h.b16 %v5589
    %v6462 = vunpack.c.l.b16 %v5590
    %v6463 = vunpack.c.h.b16 %v5590
    %v6464 = vunpack.c.l.b16 %v5591
    %v6465 = vunpack.c.h.b16 %v5591
    %v6466 = vunpack.c.l.b16 %v5592
    %v6467 = vunpack.c.h.b16 %v5592
    %v6468 = vunpack.c.l.b16 %v5593
    %v6469 = vunpack.c.h.b16 %v5593
    %v6470 = vunpack.c.l.b16 %v5594
    %v6471 = vunpack.c.h.b16 %v5594
    %v6472 = vunpack.c.l.b16 %v5595
    %v6473 = vunpack.c.h.b16 %v5595
    %v6474 = vunpack.c.l.b16 %v5596
    %v6475 = vunpack.c.h.b16 %v5596
    %v6476 = vunpack.c.l.b16 %v5597
    %v6477 = vunpack.c.h.b16 %v5597
    %v6478 = vunpack.c.l.b16 %v5598
    %v6479 = vunpack.c.h.b16 %v5598
    %v6480 = vunpack.c.l.b16 %v5599
    %v6481 = vunpack.c.h.b16 %v5599
    %v6482 = vunpack.c.l.b16 %v5600
    %v6483 = vunpack.c.h.b16 %v5600
    %v6484 = vunpack.c.l.b16 %v5601
    %v6485 = vunpack.c.h.b16 %v5601
    %v6486 = vunpack.c.l.b16 %v5602
    %v6487 = vunpack.c.h.b16 %v5602
    %v6488 = vunpack.c.l.b16 %v5603
    %v6489 = vunpack.c.h.b16 %v5603
    %v6490 = vunpack.c.l.b16 %v5604
    %v6491 = vunpack.c.h.b16 %v5604
    %v6492 = vunpack.c.l.b16 %v5605
    %v6493 = vunpack.c.h.b16 %v5605
    %v6494 = vunpack.c.l.b16 %v5606
    %v6495 = vunpack.c.h.b16 %v5606
    %v6496 = vunpack.c.l.b16 %v5607
    %v6497 = vunpack.c.h.b16 %v5607
    %v6498 = vunpack.c.l.b16 %v5608
    %v6499 = vunpack.c.h.b16 %v5608
    %v6500 = vunpack.c.l.b16 %v5609
    %v6501 = vunpack.c.h.b16 %v5609
    %v6502 = vunpack.c.l.b16 %v5610
    %v6503 = vunpack.c.h.b16 %v5610
    %v6504 = vunpack.c.l.b16 %v5611
    %v6505 = vunpack.c.h.b16 %v5611
    %v6506 = vunpack.c.l.b16 %v5612
    %v6507 = vunpack.c.h.b16 %v5612
    %v6508 = vunpack.c.l.b16 %v5613
    %v6509 = vunpack.c.h.b16 %v5613
    %v6510 = vunpack.c.l.b16 %v5614
    %v6511 = vunpack.c.h.b16 %v5614
    %v6512 = vunpack.c.l.b16 %v5615
    %v6513 = vunpack.c.h.b16 %v5615
    %v6514 = vunpack.c.l.b16 %v5616
    %v6515 = vunpack.c.h.b16 %v5616
    %v6516 = vunpack.c.l.b16 %v5617
    %v6517 = vunpack.c.h.b16 %v5617
    %v6518 = vunpack.c.l.b16 %v5618
    %v6519 = vunpack.c.h.b16 %v5618
    %v6520 = vunpack.c.l.b16 %v5619
    %v6521 = vunpack.c.h.b16 %v5619
    %v6522 = vunpack.c.l.b16 %v5620
    %v6523 = vunpack.c.h.b16 %v5620
    %v6524 = vunpack.c.l.b16 %v5621
    %v6525 = vunpack.c.h.b16 %v5621
    %v6526 = vunpack.c.l.b16 %v5622
    %v6527 = vunpack.c.h.b16 %v5622
    %v6528 = vunpack.c.l.b16 %v5623
    %v6529 = vunpack.c.h.b16 %v5623
    %v6530 = vunpack.c.l.b16 %v5624
    %v6531 = vunpack.c.h.b16 %v5624
    %v6532 = vunpack.c.l.b16 %v5625
    %v6533 = vunpack.c.h.b16 %v5625
    %v6534 = vunpack.c.l.b16 %v5626
    %v6535 = vunpack.c.h.b16 %v5626
    %v6536 = vunpack.c.l.b16 %v5627
    %v6537 = vunpack.c.h.b16 %v5627
    %v6538 = vunpack.c.l.b16 %v5628
    %v6539 = vunpack.c.h.b16 %v5628
    %v6540 = vunpack.c.l.b16 %v5629
    %v6541 = vunpack.c.h.b16 %v5629
    %v6542 = vunpack.c.l.b16 %v5630
    %v6543 = vunpack.c.h.b16 %v5630
    %v6544 = vunpack.c.l.b16 %v5631
    %v6545 = vunpack.c.h.b16 %v5631
    %v6546 = vunpack.c.l.b16 %v5632
    %v6547 = vunpack.c.h.b16 %v5632
    %v6548 = vunpack.c.l.b16 %v5633
    %v6549 = vunpack.c.h.b16 %v5633
    %v6550 = vunpack.c.l.b16 %v5634
    %v6551 = vunpack.c.h.b16 %v5634
    %v6552 = vunpack.c.l.b16 %v5635
    %v6553 = vunpack.c.h.b16 %v5635
    %v6554 = vunpack.c.l.b16 %v5636
    %v6555 = vunpack.c.h.b16 %v5636
    %v6556 = vunpack.c.l.b16 %v5637
    %v6557 = vunpack.c.h.b16 %v5637
    %v6558 = vunpack.c.l.b16 %v5638
    %v6559 = vunpack.c.h.b16 %v5638
    %v6560 = vunpack.c.l.b16 %v5639
    %v6561 = vunpack.c.h.b16 %v5639
    %v6562 = vunpack.c.l.b16 %v5640
    %v6563 = vunpack.c.h.b16 %v5640
    %v6564 = vunpack.c.l.b16 %v5641
    %v6565 = vunpack.c.h.b16 %v5641
    %v6566 = vunpack.c.l.b16 %v5642
    %v6567 = vunpack.c.h.b16 %v5642
    %v6568 = vunpack.c.l.b16 %v5643
    %v6569 = vunpack.c.h.b16 %v5643
    %v6570 = vunpack.c.l.b16 %v5644
    %v6571 = vunpack.c.h.b16 %v5644
    %v6572 = vunpack.c.l.b16 %v5645
    %v6573 = vunpack.c.h.b16 %v5645
    %v6574 = vunpack.c.l.b16 %v5646
    %v6575 = vunpack.c.h.b16 %v5646
    %v6576 = vunpack.c.l.b16 %v5647
    %v6577 = vunpack.c.h.b16 %v5647
    %v6578 = vunpack.c.l.b16 %v5648
    %v6579 = vunpack.c.h.b16 %v5648
    %v6580 = vunpack.c.l.b16 %v5649
    %v6581 = vunpack.c.h.b16 %v5649
    %v6582 = vunpack.c.l.b16 %v5650
    %v6583 = vunpack.c.h.b16 %v5650
    %v6584 = vunpack.c.l.b16 %v5651
    %v6585 = vunpack.c.h.b16 %v5651
    %v6586 = vunpack.c.l.b16 %v5652
    %v6587 = vunpack.c.h.b16 %v5652
    %v6588 = vunpack.c.l.b16 %v5653
    %v6589 = vunpack.c.h.b16 %v5653
    %v6590 = vunpack.c.l.b16 %v5654
    %v6591 = vunpack.c.h.b16 %v5654
    %v6592 = vunpack.c.l.b16 %v5655
    %v6593 = vunpack.c.h.b16 %v5655
    %v6594 = vunpack.c.l.b16 %v5656
    %v6595 = vunpack.c.h.b16 %v5656
    %v6596 = vunpack.c.l.b16 %v5657
    %v6597 = vunpack.c.h.b16 %v5657
    %v6598 = vunpack.c.l.b16 %v5658
    %v6599 = vunpack.c.h.b16 %v5658
    %v6600 = vunpack.c.l.b16 %v5659
    %v6601 = vunpack.c.h.b16 %v5659
    %v6602 = vunpack.c.l.b16 %v5660
    %v6603 = vunpack.c.h.b16 %v5660
    %v6604 = vunpack.c.l.b16 %v5661
    %v6605 = vunpack.c.h.b16 %v5661
    %v6606 = vunpack.c.l.b16 %v5662
    %v6607 = vunpack.c.h.b16 %v5662
    %v6608 = vunpack.c.l.b16 %v5663
    %v6609 = vunpack.c.h.b16 %v5663
    %v6610 = vunpack.c.l.b16 %v5664
    %v6611 = vunpack.c.h.b16 %v5664
    %v6612 = vunpack.c.l.b16 %v5665
    %v6613 = vunpack.c.h.b16 %v5665
    %v6614 = vunpack.c.l.b16 %v5666
    %v6615 = vunpack.c.h.b16 %v5666
    %v6616 = vunpack.c.l.b16 %v5667
    %v6617 = vunpack.c.h.b16 %v5667
    %v6618 = vunpack.c.l.b16 %v5668
    %v6619 = vunpack.c.h.b16 %v5668
    %v6620 = vunpack.c.l.b16 %v5669
    %v6621 = vunpack.c.h.b16 %v5669
    %v6622 = vunpack.c.l.b16 %v5670
    %v6623 = vunpack.c.h.b16 %v5670
    %v6624 = vunpack.c.l.b16 %v5671
    %v6625 = vunpack.c.h.b16 %v5671
    %v6626 = vunpack.c.l.b16 %v5672
    %v6627 = vunpack.c.h.b16 %v5672
    %v6628 = vunpack.c.l.b16 %v5673
    %v6629 = vunpack.c.h.b16 %v5673
    %v6630 = vunpack.c.l.b16 %v5674
    %v6631 = vunpack.c.h.b16 %v5674
    %v6632 = vunpack.c.l.b16 %v5675
    %v6633 = vunpack.c.h.b16 %v5675
    %v6634 = vunpack.c.l.b16 %v5676
    %v6635 = vunpack.c.h.b16 %v5676
    %v6636 = vunpack.c.l.b16 %v5677
    %v6637 = vunpack.c.h.b16 %v5677
    %v6638 = vunpack.c.l.b16 %v5678
    %v6639 = vunpack.c.h.b16 %v5678
    %v6640 = vunpack.c.l.b16 %v5679
    %v6641 = vunpack.c.h.b16 %v5679
    %v6642 = vunpack.c.l.b16 %v5680
    %v6643 = vunpack.c.h.b16 %v5680
    %v6644 = vunpack.c.l.b16 %v5681
    %v6645 = vunpack.c.h.b16 %v5681
    %v6646 = vunpack.c.l.b16 %v5682
    %v6647 = vunpack.c.h.b16 %v5682
    %v6648 = vunpack.c.l.b16 %v5683
    %v6649 = vunpack.c.h.b16 %v5683
    %v6650 = vunpack.c.l.b16 %v5684
    %v6651 = vunpack.c.h.b16 %v5684
    %v6652 = vunpack.c.l.b16 %v5685
    %v6653 = vunpack.c.h.b16 %v5685
    %v6654 = vunpack.c.l.b16 %v5686
    %v6655 = vunpack.c.h.b16 %v5686
    %v6656 = vunpack.c.l.b16 %v5687
    %v6657 = vunpack.c.h.b16 %v5687
    %v6658 = vunpack.c.l.b16 %v5688
    %v6659 = vunpack.c.h.b16 %v5688
    %v6660 = vunpack.c.l.b16 %v5689
    %v6661 = vunpack.c.h.b16 %v5689
    %v6662 = vunpack.c.l.b16 %v5690
    %v6663 = vunpack.c.h.b16 %v5690
    %v6664 = vunpack.c.l.b16 %v5691
    %v6665 = vunpack.c.h.b16 %v5691
    %v6666 = vunpack.c.l.b16 %v5692
    %v6667 = vunpack.c.h.b16 %v5692
    %v6668 = vunpack.c.l.b16 %v5693
    %v6669 = vunpack.c.h.b16 %v5693
    %v6670 = vunpack.c.l.b16 %v5694
    %v6671 = vunpack.c.h.b16 %v5694
    %v6672 = vunpack.c.l.b16 %v5695
    %v6673 = vunpack.c.h.b16 %v5695
    %v6674 = vunpack.c.l.b16 %v5696
    %v6675 = vunpack.c.h.b16 %v5696
    %v6676 = vunpack.c.l.b16 %v5697
    %v6677 = vunpack.c.h.b16 %v5697
    %v6678 = vunpack.c.l.b16 %v5698
    %v6679 = vunpack.c.h.b16 %v5698
    %v6680 = vunpack.c.l.b16 %v5699
    %v6681 = vunpack.c.h.b16 %v5699
    %v6682 = vunpack.c.l.b16 %v5700
    %v6683 = vunpack.c.h.b16 %v5700
    %v6684 = vunpack.c.l.b16 %v5701
    %v6685 = vunpack.c.h.b16 %v5701
    %v6686 = vpack.c.b16 %v6056, %v6046
    %v6687 = vpack.c.b16 %v6057, %v6047
    %v6688 = vpack.c.b16 %v6058, %v6048
    %v6689 = vpack.c.b16 %v6059, %v6049
    %v6690 = vpack.c.b16 %v6060, %v6050
    %v6691 = vpack.c.b16 %v6061, %v6051
    %v6692 = vpack.c.b16 %v6062, %v6052
    %v6693 = vpack.c.b16 %v6063, %v6053
    %v6694 = vpack.c.b16 %v6064, %v6054
    %v6695 = vpack.c.b16 %v6065, %v6055
    %v6696 = vpack.c.b16 %v6076, %v6066
    %v6697 = vpack.c.b16 %v6077, %v6067
    %v6698 = vpack.c.b16 %v6078, %v6068
    %v6699 = vpack.c.b16 %v6079, %v6069
    %v6700 = vpack.c.b16 %v6080, %v6070
    %v6701 = vpack.c.b16 %v6081, %v6071
    %v6702 = vpack.c.b16 %v6082, %v6072
    %v6703 = vpack.c.b16 %v6083, %v6073
    %v6704 = vpack.c.b16 %v6084, %v6074
    %v6705 = vpack.c.b16 %v6085, %v6075
    %v6706 = vpack.c.b16 %v6096, %v6086
    %v6707 = vpack.c.b16 %v6097, %v6087
    %v6708 = vpack.c.b16 %v6098, %v6088
    %v6709 = vpack.c.b16 %v6099, %v6089
    %v6710 = vpack.c.b16 %v6100, %v6090
    %v6711 = vpack.c.b16 %v6101, %v6091
    %v6712 = vpack.c.b16 %v6102, %v6092
    %v6713 = vpack.c.b16 %v6103, %v6093
    %v6714 = vpack.c.b16 %v6104, %v6094
    %v6715 = vpack.c.b16 %v6105, %v6095
    %v6716 = vpack.c.b16 %v6116, %v6106
    %v6717 = vpack.c.b16 %v6117, %v6107
    %v6718 = vpack.c.b16 %v6118, %v6108
    %v6719 = vpack.c.b16 %v6119, %v6109
    %v6720 = vpack.c.b16 %v6120, %v6110
    %v6721 = vpack.c.b16 %v6121, %v6111
    %v6722 = vpack.c.b16 %v6122, %v6112
    %v6723 = vpack.c.b16 %v6123, %v6113
    %v6724 = vpack.c.b16 %v6124, %v6114
    %v6725 = vpack.c.b16 %v6125, %v6115
    %v6726 = vpack.c.b16 %v6136, %v6126
    %v6727 = vpack.c.b16 %v6137, %v6127
    %v6728 = vpack.c.b16 %v6138, %v6128
    %v6729 = vpack.c.b16 %v6139, %v6129
    %v6730 = vpack.c.b16 %v6140, %v6130
    %v6731 = vpack.c.b16 %v6141, %v6131
    %v6732 = vpack.c.b16 %v6142, %v6132
    %v6733 = vpack.c.b16 %v6143, %v6133
    %v6734 = vpack.c.b16 %v6144, %v6134
    %v6735 = vpack.c.b16 %v6145, %v6135
    %v6736 = vpack.c.b16 %v6156, %v6146
    %v6737 = vpack.c.b16 %v6157, %v6147
    %v6738 = vpack.c.b16 %v6158, %v6148
    %v6739 = vpack.c.b16 %v6159, %v6149
    %v6740 = vpack.c.b16 %v6160, %v6150
    %v6741 = vpack.c.b16 %v6161, %v6151
    %v6742 = vpack.c.b16 %v6162, %v6152
    %v6743 = vpack.c.b16 %v6163, %v6153
    %v6744 = vpack.c.b16 %v6164, %v6154
    %v6745 = vpack.c.b16 %v6165, %v6155
    %v6746 = vpack.c.b16 %v6176, %v6166
    %v6747 = vpack.c.b16 %v6177, %v6167
    %v6748 = vpack.c.b16 %v6178, %v6168
    %v6749 = vpack.c.b16 %v6179, %v6169
    %v6750 = vpack.c.b16 %v6180, %v6170
    %v6751 = vpack.c.b16 %v6181, %v6171
    %v6752 = vpack.c.b16 %v6182, %v6172
    %v6753 = vpack.c.b16 %v6183, %v6173
    %v6754 = vpack.c.b16 %v6184, %v6174
    %v6755 = vpack.c.b16 %v6185, %v6175
    %v6756 = vpack.c.b16 %v6196, %v6186
    %v6757 = vpack.c.b16 %v6197, %v6187
    %v6758 = vpack.c.b16 %v6198, %v6188
    %v6759 = vpack.c.b16 %v6199, %v6189
    %v6760 = vpack.c.b16 %v6200, %v6190
    %v6761 = vpack.c.b16 %v6201, %v6191
    %v6762 = vpack.c.b16 %v6202, %v6192
    %v6763 = vpack.c.b16 %v6203, %v6193
    %v6764 = vpack.c.b16 %v6204, %v6194
    %v6765 = vpack.c.b16 %v6205, %v6195
    %v6766 = vpack.c.b16 %v6216, %v6206
    %v6767 = vpack.c.b16 %v6217, %v6207
    %v6768 = vpack.c.b16 %v6218, %v6208
    %v6769 = vpack.c.b16 %v6219, %v6209
    %v6770 = vpack.c.b16 %v6220, %v6210
    %v6771 = vpack.c.b16 %v6221, %v6211
    %v6772 = vpack.c.b16 %v6222, %v6212
    %v6773 = vpack.c.b16 %v6223, %v6213
    %v6774 = vpack.c.b16 %v6224, %v6214
    %v6775 = vpack.c.b16 %v6225, %v6215
    %v6776 = vpack.c.b16 %v6236, %v6226
    %v6777 = vpack.c.b16 %v6237, %v6227
    %v6778 = vpack.c.b16 %v6238, %v6228
    %v6779 = vpack.c.b16 %v6239, %v6229
    %v6780 = vpack.c.b16 %v6240, %v6230
    %v6781 = vpack.c.b16 %v6241, %v6231
    %v6782 = vpack.c.b16 %v6242, %v6232
    %v6783 = vpack.c.b16 %v6243, %v6233
    %v6784 = vpack.c.b16 %v6244, %v6234
    %v6785 = vpack.c.b16 %v6245, %v6235
    %v6786 = vpack.c.b16 %v6256, %v6246
    %v6787 = vpack.c.b16 %v6257, %v6247
    %v6788 = vpack.c.b16 %v6258, %v6248
    %v6789 = vpack.c.b16 %v6259, %v6249
    %v6790 = vpack.c.b16 %v6260, %v6250
    %v6791 = vpack.c.b16 %v6261, %v6251
    %v6792 = vpack.c.b16 %v6262, %v6252
    %v6793 = vpack.c.b16 %v6263, %v6253
    %v6794 = vpack.c.b16 %v6264, %v6254
    %v6795 = vpack.c.b16 %v6265, %v6255
    %v6796 = vpack.c.b16 %v6276, %v6266
    %v6797 = vpack.c.b16 %v6277, %v6267
    %v6798 = vpack.c.b16 %v6278, %v6268
    %v6799 = vpack.c.b16 %v6279, %v6269
    %v6800 = vpack.c.b16 %v6280, %v6270
    %v6801 = vpack.c.b16 %v6281, %v6271
    %v6802 = vpack.c.b16 %v6282, %v6272
    %v6803 = vpack.c.b16 %v6283, %v6273
    %v6804 = vpack.c.b16 %v6284, %v6274
    %v6805 = vpack.c.b16 %v6285, %v6275
    %v6806 = vpack.c.b16 %v6296, %v6286
    %v6807 = vpack.c.b16 %v6297, %v6287
    %v6808 = vpack.c.b16 %v6298, %v6288
    %v6809 = vpack.c.b16 %v6299, %v6289
    %v6810 = vpack.c.b16 %v6300, %v6290
    %v6811 = vpack.c.b16 %v6301, %v6291
    %v6812 = vpack.c.b16 %v6302, %v6292
    %v6813 = vpack.c.b16 %v6303, %v6293
    %v6814 = vpack.c.b16 %v6304, %v6294
    %v6815 = vpack.c.b16 %v6305, %v6295
    %v6816 = vpack.c.b16 %v6316, %v6306
    %v6817 = vpack.c.b16 %v6317, %v6307
    %v6818 = vpack.c.b16 %v6318, %v6308
    %v6819 = vpack.c.b16 %v6319, %v6309
    %v6820 = vpack.c.b16 %v6320, %v6310
    %v6821 = vpack.c.b16 %v6321, %v6311
    %v6822 = vpack.c.b16 %v6322, %v6312
    %v6823 = vpack.c.b16 %v6323, %v6313
    %v6824 = vpack.c.b16 %v6324, %v6314
    %v6825 = vpack.c.b16 %v6325, %v6315
    %v6826 = vpack.c.b16 %v6336, %v6326
    %v6827 = vpack.c.b16 %v6337, %v6327
    %v6828 = vpack.c.b16 %v6338, %v6328
    %v6829 = vpack.c.b16 %v6339, %v6329
    %v6830 = vpack.c.b16 %v6340, %v6330
    %v6831 = vpack.c.b16 %v6341, %v6331
    %v6832 = vpack.c.b16 %v6342, %v6332
    %v6833 = vpack.c.b16 %v6343, %v6333
    %v6834 = vpack.c.b16 %v6344, %v6334
    %v6835 = vpack.c.b16 %v6345, %v6335
    %v6836 = vpack.c.b16 %v6356, %v6346
    %v6837 = vpack.c.b16 %v6357, %v6347
    %v6838 = vpack.c.b16 %v6358, %v6348
    %v6839 = vpack.c.b16 %v6359, %v6349
    %v6840 = vpack.c.b16 %v6360, %v6350
    %v6841 = vpack.c.b16 %v6361, %v6351
    %v6842 = vpack.c.b16 %v6362, %v6352
    %v6843 = vpack.c.b16 %v6363, %v6353
    %v6844 = vpack.c.b16 %v6364, %v6354
    %v6845 = vpack.c.b16 %v6365, %v6355
    %v6846 = vpack.c.b16 %v6376, %v6366
    %v6847 = vpack.c.b16 %v6377, %v6367
    %v6848 = vpack.c.b16 %v6378, %v6368
    %v6849 = vpack.c.b16 %v6379, %v6369
    %v6850 = vpack.c.b16 %v6380, %v6370
    %v6851 = vpack.c.b16 %v6381, %v6371
    %v6852 = vpack.c.b16 %v6382, %v6372
    %v6853 = vpack.c.b16 %v6383, %v6373
    %v6854 = vpack.c.b16 %v6384, %v6374
    %v6855 = vpack.c.b16 %v6385, %v6375
    %v6856 = vpack.c.b16 %v6396, %v6386
    %v6857 = vpack.c.b16 %v6397, %v6387
    %v6858 = vpack.c.b16 %v6398, %v6388
    %v6859 = vpack.c.b16 %v6399, %v6389
    %v6860 = vpack.c.b16 %v6400, %v6390
    %v6861 = vpack.c.b16 %v6401, %v6391
    %v6862 = vpack.c.b16 %v6402, %v6392
    %v6863 = vpack.c.b16 %v6403, %v6393
    %v6864 = vpack.c.b16 %v6404, %v6394
    %v6865 = vpack.c.b16 %v6405, %v6395
    %v6866 = vpack.c.b16 %v6416, %v6406
    %v6867 = vpack.c.b16 %v6417, %v6407
    %v6868 = vpack.c.b16 %v6418, %v6408
    %v6869 = vpack.c.b16 %v6419, %v6409
    %v6870 = vpack.c.b16 %v6420, %v6410
    %v6871 = vpack.c.b16 %v6421, %v6411
    %v6872 = vpack.c.b16 %v6422, %v6412
    %v6873 = vpack.c.b16 %v6423, %v6413
    %v6874 = vpack.c.b16 %v6424, %v6414
    %v6875 = vpack.c.b16 %v6425, %v6415
    %v6876 = vpack.c.b16 %v6436, %v6426
    %v6877 = vpack.c.b16 %v6437, %v6427
    %v6878 = vpack.c.b16 %v6438, %v6428
    %v6879 = vpack.c.b16 %v6439, %v6429
    %v6880 = vpack.c.b16 %v6440, %v6430
    %v6881 = vpack.c.b16 %v6441, %v6431
    %v6882 = vpack.c.b16 %v6442, %v6432
    %v6883 = vpack.c.b16 %v6443, %v6433
    %v6884 = vpack.c.b16 %v6444, %v6434
    %v6885 = vpack.c.b16 %v6445, %v6435
    %v6886 = vpack.c.b16 %v6456, %v6446
    %v6887 = vpack.c.b16 %v6457, %v6447
    %v6888 = vpack.c.b16 %v6458, %v6448
    %v6889 = vpack.c.b16 %v6459, %v6449
    %v6890 = vpack.c.b16 %v6460, %v6450
    %v6891 = vpack.c.b16 %v6461, %v6451
    %v6892 = vpack.c.b16 %v6462, %v6452
    %v6893 = vpack.c.b16 %v6463, %v6453
    %v6894 = vpack.c.b16 %v6464, %v6454
    %v6895 = vpack.c.b16 %v6465, %v6455
    %v6896 = vpack.c.b16 %v6476, %v6466
    %v6897 = vpack.c.b16 %v6477, %v6467
    %v6898 = vpack.c.b16 %v6478, %v6468
    %v6899 = vpack.c.b16 %v6479, %v6469
    %v6900 = vpack.c.b16 %v6480, %v6470
    %v6901 = vpack.c.b16 %v6481, %v6471
    %v6902 = vpack.c.b16 %v6482, %v6472
    %v6903 = vpack.c.b16 %v6483, %v6473
    %v6904 = vpack.c.b16 %v6484, %v6474
    %v6905 = vpack.c.b16 %v6485, %v6475
    %v6906 = vpack.c.b16 %v6496, %v6486
    %v6907 = vpack.c.b16 %v6497, %v6487
    %v6908 = vpack.c.b16 %v6498, %v6488
    %v6909 = vpack.c.b16 %v6499, %v6489
    %v6910 = vpack.c.b16 %v6500, %v6490
    %v6911 = vpack.c.b16 %v6501, %v6491
    %v6912 = vpack.c.b16 %v6502, %v6492
    %v6913 = vpack.c.b16 %v6503, %v6493
    %v6914 = vpack.c.b16 %v6504, %v6494
    %v6915 = vpack.c.b16 %v6505, %v6495
    %v6916 = vpack.c.b16 %v6516, %v6506
    %v6917 = vpack.c.b16 %v6517, %v6507
    %v6918 = vpack.c.b16 %v6518, %v6508
    %v6919 = vpack.c.b16 %v6519, %v6509
    %v6920 = vpack.c.b16 %v6520, %v6510
    %v6921 = vpack.c.b16 %v6521, %v6511
    %v6922 = vpack.c.b16 %v6522, %v6512
    %v6923 = vpack.c.b16 %v6523, %v6513
    %v6924 = vpack.c.b16 %v6524, %v6514
    %v6925 = vpack.c.b16 %v6525, %v6515
    %v6926 = vpack.c.b16 %v6536, %v6526
    %v6927 = vpack.c.b16 %v6537, %v6527
    %v6928 = vpack.c.b16 %v6538, %v6528
    %v6929 = vpack.c.b16 %v6539, %v6529
    %v6930 = vpack.c.b16 %v6540, %v6530
    %v6931 = vpack.c.b16 %v6541, %v6531
    %v6932 = vpack.c.b16 %v6542, %v6532
    %v6933 = vpack.c.b16 %v6543, %v6533
    %v6934 = vpack.c.b16 %v6544, %v6534
    %v6935 = vpack.c.b16 %v6545, %v6535
    %v6936 = vpack.c.b16 %v6556, %v6546
    %v6937 = vpack.c.b16 %v6557, %v6547
    %v6938 = vpack.c.b16 %v6558, %v6548
    %v6939 = vpack.c.b16 %v6559, %v6549
    %v6940 = vpack.c.b16 %v6560, %v6550
    %v6941 = vpack.c.b16 %v6561, %v6551
    %v6942 = vpack.c.b16 %v6562, %v6552
    %v6943 = vpack.c.b16 %v6563, %v6553
    %v6944 = vpack.c.b16 %v6564, %v6554
    %v6945 = vpack.c.b16 %v6565, %v6555
    %v6946 = vpack.c.b16 %v6576, %v6566
    %v6947 = vpack.c.b16 %v6577, %v6567
    %v6948 = vpack.c.b16 %v6578, %v6568
    %v6949 = vpack.c.b16 %v6579, %v6569
    %v6950 = vpack.c.b16 %v6580, %v6570
    %v6951 = vpack.c.b16 %v6581, %v6571
    %v6952 = vpack.c.b16 %v6582, %v6572
    %v6953 = vpack.c.b16 %v6583, %v6573
    %v6954 = vpack.c.b16 %v6584, %v6574
    %v6955 = vpack.c.b16 %v6585, %v6575
    %v6956 = vpack.c.b16 %v6596, %v6586
    %v6957 = vpack.c.b16 %v6597, %v6587
    %v6958 = vpack.c.b16 %v6598, %v6588
    %v6959 = vpack.c.b16 %v6599, %v6589
    %v6960 = vpack.c.b16 %v6600, %v6590
    %v6961 = vpack.c.b16 %v6601, %v6591
    %v6962 = vpack.c.b16 %v6602, %v6592
    %v6963 = vpack.c.b16 %v6603, %v6593
    %v6964 = vpack.c.b16 %v6604, %v6594
    %v6965 = vpack.c.b16 %v6605, %v6595
    %v6966 = vpack.c.b16 %v6616, %v6606
    %v6967 = vpack.c.b16 %v6617, %v6607
    %v6968 = vpack.c.b16 %v6618, %v6608
    %v6969 = vpack.c.b16 %v6619, %v6609
    %v6970 = vpack.c.b16 %v6620, %v6610
    %v6971 = vpack.c.b16 %v6621, %v6611
    %v6972 = vpack.c.b16 %v6622, %v6612
    %v6973 = vpack.c.b16 %v6623, %v6613
    %v6974 = vpack.c.b16 %v6624, %v6614
    %v6975 = vpack.c.b16 %v6625, %v6615
    %v6976 = vpack.c.b16 %v6636, %v6626
    %v6977 = vpack.c.b16 %v6637, %v6627
    %v6978 = vpack.c.b16 %v6638, %v6628
    %v6979 = vpack.c.b16 %v6639, %v6629
    %v6980 = vpack.c.b16 %v6640, %v6630
    %v6981 = vpack.c.b16 %v6641, %v6631
    %v6982 = vpack.c.b16 %v6642, %v6632
    %v6983 = vpack.c.b16 %v6643, %v6633
    %v6984 = vpack.c.b16 %v6644, %v6634
    %v6985 = vpack.c.b16 %v6645, %v6635
    %v6986 = vpack.c.b16 %v6656, %v6646
    %v6987 = vpack.c.b16 %v6657, %v6647
    %v6988 = vpack.c.b16 %v6658, %v6648
    %v6989 = vpack.c.b16 %v6659, %v6649
    %v6990 = vpack.c.b16 %v6660, %v6650
    %v6991 = vpack.c.b16 %v6661, %v6651
    %v6992 = vpack.c.b16 %v6662, %v6652
    %v6993 = vpack.c.b16 %v6663, %v6653
    %v6994 = vpack.c.b16 %v6664, %v6654
    %v6995 = vpack.c.b16 %v6665, %v6655
    %v6996 = vpack.c.b16 %v6676, %v6666
    %v6997 = vpack.c.b16 %v6677, %v6667
    %v6998 = vpack.c.b16 %v6678, %v6668
    %v6999 = vpack.c.b16 %v6679, %v6669
    %v7000 = vpack.c.b16 %v6680, %v6670
    %v7001 = vpack.c.b16 %v6681, %v6671
    %v7002 = vpack.c.b16 %v6682, %v6672
    %v7003 = vpack.c.b16 %v6683, %v6673
    %v7004 = vpack.c.b16 %v6684, %v6674
    %v7005 = vpack.c.b16 %v6685, %v6675
    %7326 = vmatpush.bf16.msra.mxu0 %v6756
    %7327 = vmatpush.bf16.msra.mxu0 %v6746
    %7328 = vmatpush.bf16.msra.mxu0 %v6736
    %7329 = vmatpush.bf16.msra.mxu0 %v6726
    %7330 = vmatpush.bf16.msra.mxu0 %v6716
    %7331 = vmatpush.bf16.msra.mxu0 %v6706
    %7332 = vmatpush.bf16.msra.mxu0 %v6696
    %7333 = vmatpush.bf16.msra.mxu0 %v6686
    %7334 = vmatmul.bf16.gmra.mxu0 %v5378
    %v7335 = vpop.f32.mrf.mxu0
    %v7336 = vadd.f32 %v5706, %v7335
    %v7337 = vpop.f32.mrf.mxu0
    %7338 = vdwg.mxu0
    %7339 = vmatpush.bf16.msra.mxu0 %v6836
    %7340 = vmatpush.bf16.msra.mxu0 %v6826
    %7341 = vmatpush.bf16.msra.mxu0 %v6816
    %7342 = vmatpush.bf16.msra.mxu0 %v6806
    %7343 = vmatpush.bf16.msra.mxu0 %v6796
    %7344 = vmatpush.bf16.msra.mxu0 %v6786
    %7345 = vmatpush.bf16.msra.mxu0 %v6776
    %7346 = vmatpush.bf16.msra.mxu0 %v6766
    %7347 = vmatmul.bf16.gmra.mxu0 %v5379
    %v7348 = vpop.f32.mrf.mxu0
    %v7349 = vadd.f32 %v7336, %v7348
    %v7350 = vpop.f32.mrf.mxu0
    %7351 = vdwg.mxu0
    %7352 = vmatpush.bf16.msra.mxu0 %v6916
    %7353 = vmatpush.bf16.msra.mxu0 %v6906
    %7354 = vmatpush.bf16.msra.mxu0 %v6896
    %7355 = vmatpush.bf16.msra.mxu0 %v6886
    %7356 = vmatpush.bf16.msra.mxu0 %v6876
    %7357 = vmatpush.bf16.msra.mxu0 %v6866
    %7358 = vmatpush.bf16.msra.mxu0 %v6856
    %7359 = vmatpush.bf16.msra.mxu0 %v6846
    %7360 = vmatmul.bf16.gmra.mxu0 %v5380
    %v7361 = vpop.f32.mrf.mxu0
    %v7362 = vadd.f32 %v7349, %v7361
    %v7363 = vpop.f32.mrf.mxu0
    %7364 = vdwg.mxu0
    %7365 = vmatpush.bf16.msra.mxu0 %v6996
    %7366 = vmatpush.bf16.msra.mxu0 %v6986
    %7367 = vmatpush.bf16.msra.mxu0 %v6976
    %7368 = vmatpush.bf16.msra.mxu0 %v6966
    %7369 = vmatpush.bf16.msra.mxu0 %v6956
    %7370 = vmatpush.bf16.msra.mxu0 %v6946
    %7371 = vmatpush.bf16.msra.mxu0 %v6936
    %7372 = vmatpush.bf16.msra.mxu0 %v6926
    %7373 = vmatmul.bf16.gmra.mxu0 %v5381
    %v7374 = vpop.f32.mrf.mxu0
    %v7375 = vadd.f32 %v7362, %v7374
    %v7376 = vpop.f32.mrf.mxu0
    %7377 = vdwg.mxu0
    %7378 = vmatpush.bf16.msra.mxu0 %v6757
    %7379 = vmatpush.bf16.msra.mxu0 %v6747
    %7380 = vmatpush.bf16.msra.mxu0 %v6737
    %7381 = vmatpush.bf16.msra.mxu0 %v6727
    %7382 = vmatpush.bf16.msra.mxu0 %v6717
    %7383 = vmatpush.bf16.msra.mxu0 %v6707
    %7384 = vmatpush.bf16.msra.mxu0 %v6697
    %7385 = vmatpush.bf16.msra.mxu0 %v6687
    %7386 = vmatmul.bf16.gmra.mxu0 %v5378
    %v7387 = vpop.f32.mrf.mxu0
    %v7388 = vadd.f32 %v5707, %v7387
    %v7389 = vpop.f32.mrf.mxu0
    %7390 = vdwg.mxu0
    %7391 = vmatpush.bf16.msra.mxu0 %v6837
    %7392 = vmatpush.bf16.msra.mxu0 %v6827
    %7393 = vmatpush.bf16.msra.mxu0 %v6817
    %7394 = vmatpush.bf16.msra.mxu0 %v6807
    %7395 = vmatpush.bf16.msra.mxu0 %v6797
    %7396 = vmatpush.bf16.msra.mxu0 %v6787
    %7397 = vmatpush.bf16.msra.mxu0 %v6777
    %7398 = vmatpush.bf16.msra.mxu0 %v6767
    %7399 = vmatmul.bf16.gmra.mxu0 %v5379
    %v7400 = vpop.f32.mrf.mxu0
    %v7401 = vadd.f32 %v7388, %v7400
    %v7402 = vpop.f32.mrf.mxu0
    %7403 = vdwg.mxu0
    %7404 = vmatpush.bf16.msra.mxu0 %v6917
    %7405 = vmatpush.bf16.msra.mxu0 %v6907
    %7406 = vmatpush.bf16.msra.mxu0 %v6897
    %7407 = vmatpush.bf16.msra.mxu0 %v6887
    %7408 = vmatpush.bf16.msra.mxu0 %v6877
    %7409 = vmatpush.bf16.msra.mxu0 %v6867
    %7410 = vmatpush.bf16.msra.mxu0 %v6857
    %7411 = vmatpush.bf16.msra.mxu0 %v6847
    %7412 = vmatmul.bf16.gmra.mxu0 %v5380
    %v7413 = vpop.f32.mrf.mxu0
    %v7414 = vadd.f32 %v7401, %v7413
    %v7415 = vpop.f32.mrf.mxu0
    %7416 = vdwg.mxu0
    %7417 = vmatpush.bf16.msra.mxu0 %v6997
    %7418 = vmatpush.bf16.msra.mxu0 %v6987
    %7419 = vmatpush.bf16.msra.mxu0 %v6977
    %7420 = vmatpush.bf16.msra.mxu0 %v6967
    %7421 = vmatpush.bf16.msra.mxu0 %v6957
    %7422 = vmatpush.bf16.msra.mxu0 %v6947
    %7423 = vmatpush.bf16.msra.mxu0 %v6937
    %7424 = vmatpush.bf16.msra.mxu0 %v6927
    %7425 = vmatmul.bf16.gmra.mxu0 %v5381
    %v7426 = vpop.f32.mrf.mxu0
    %v7427 = vadd.f32 %v7414, %v7426
    %v7428 = vpop.f32.mrf.mxu0
    %7429 = vdwg.mxu0
    %7430 = vmatpush.bf16.msra.mxu0 %v6758
    %7431 = vmatpush.bf16.msra.mxu0 %v6748
    %7432 = vmatpush.bf16.msra.mxu0 %v6738
    %7433 = vmatpush.bf16.msra.mxu0 %v6728
    %7434 = vmatpush.bf16.msra.mxu0 %v6718
    %7435 = vmatpush.bf16.msra.mxu0 %v6708
    %7436 = vmatpush.bf16.msra.mxu0 %v6698
    %7437 = vmatpush.bf16.msra.mxu0 %v6688
    %7438 = vmatmul.bf16.gmra.mxu0 %v5378
    %v7439 = vpop.f32.mrf.mxu0
    %v7440 = vadd.f32 %v5708, %v7439
    %v7441 = vpop.f32.mrf.mxu0
    %7442 = vdwg.mxu0
    %7443 = vmatpush.bf16.msra.mxu0 %v6838
    %7444 = vmatpush.bf16.msra.mxu0 %v6828
    %7445 = vmatpush.bf16.msra.mxu0 %v6818
    %7446 = vmatpush.bf16.msra.mxu0 %v6808
    %7447 = vmatpush.bf16.msra.mxu0 %v6798
    %7448 = vmatpush.bf16.msra.mxu0 %v6788
    %7449 = vmatpush.bf16.msra.mxu0 %v6778
    %7450 = vmatpush.bf16.msra.mxu0 %v6768
    %7451 = vmatmul.bf16.gmra.mxu0 %v5379
    %v7452 = vpop.f32.mrf.mxu0
    %v7453 = vadd.f32 %v7440, %v7452
    %v7454 = vpop.f32.mrf.mxu0
    %7455 = vdwg.mxu0
    %7456 = vmatpush.bf16.msra.mxu0 %v6918
    %7457 = vmatpush.bf16.msra.mxu0 %v6908
    %7458 = vmatpush.bf16.msra.mxu0 %v6898
    %7459 = vmatpush.bf16.msra.mxu0 %v6888
    %7460 = vmatpush.bf16.msra.mxu0 %v6878
    %7461 = vmatpush.bf16.msra.mxu0 %v6868
    %7462 = vmatpush.bf16.msra.mxu0 %v6858
    %7463 = vmatpush.bf16.msra.mxu0 %v6848
    %7464 = vmatmul.bf16.gmra.mxu0 %v5380
    %v7465 = vpop.f32.mrf.mxu0
    %v7466 = vadd.f32 %v7453, %v7465
    %v7467 = vpop.f32.mrf.mxu0
    %7468 = vdwg.mxu0
    %7469 = vmatpush.bf16.msra.mxu0 %v6998
    %7470 = vmatpush.bf16.msra.mxu0 %v6988
    %7471 = vmatpush.bf16.msra.mxu0 %v6978
    %7472 = vmatpush.bf16.msra.mxu0 %v6968
    %7473 = vmatpush.bf16.msra.mxu0 %v6958
    %7474 = vmatpush.bf16.msra.mxu0 %v6948
    %7475 = vmatpush.bf16.msra.mxu0 %v6938
    %7476 = vmatpush.bf16.msra.mxu0 %v6928
    %7477 = vmatmul.bf16.gmra.mxu0 %v5381
    %v7478 = vpop.f32.mrf.mxu0
    %v7479 = vadd.f32 %v7466, %v7478
    %v7480 = vpop.f32.mrf.mxu0
    %7481 = vdwg.mxu0
    %7482 = vmatpush.bf16.msra.mxu0 %v6759
    %7483 = vmatpush.bf16.msra.mxu0 %v6749
    %7484 = vmatpush.bf16.msra.mxu0 %v6739
    %7485 = vmatpush.bf16.msra.mxu0 %v6729
    %7486 = vmatpush.bf16.msra.mxu0 %v6719
    %7487 = vmatpush.bf16.msra.mxu0 %v6709
    %7488 = vmatpush.bf16.msra.mxu0 %v6699
    %7489 = vmatpush.bf16.msra.mxu0 %v6689
    %7490 = vmatmul.bf16.gmra.mxu0 %v5378
    %v7491 = vpop.f32.mrf.mxu0
    %v7492 = vadd.f32 %v5709, %v7491
    %v7493 = vpop.f32.mrf.mxu0
    %7494 = vdwg.mxu0
    %7495 = vmatpush.bf16.msra.mxu0 %v6839
    %7496 = vmatpush.bf16.msra.mxu0 %v6829
    %7497 = vmatpush.bf16.msra.mxu0 %v6819
    %7498 = vmatpush.bf16.msra.mxu0 %v6809
    %7499 = vmatpush.bf16.msra.mxu0 %v6799
    %7500 = vmatpush.bf16.msra.mxu0 %v6789
    %7501 = vmatpush.bf16.msra.mxu0 %v6779
    %7502 = vmatpush.bf16.msra.mxu0 %v6769
    %7503 = vmatmul.bf16.gmra.mxu0 %v5379
    %v7504 = vpop.f32.mrf.mxu0
    %v7505 = vadd.f32 %v7492, %v7504
    %v7506 = vpop.f32.mrf.mxu0
    %7507 = vdwg.mxu0
    %7508 = vmatpush.bf16.msra.mxu0 %v6919
    %7509 = vmatpush.bf16.msra.mxu0 %v6909
    %7510 = vmatpush.bf16.msra.mxu0 %v6899
    %7511 = vmatpush.bf16.msra.mxu0 %v6889
    %7512 = vmatpush.bf16.msra.mxu0 %v6879
    %7513 = vmatpush.bf16.msra.mxu0 %v6869
    %7514 = vmatpush.bf16.msra.mxu0 %v6859
    %7515 = vmatpush.bf16.msra.mxu0 %v6849
    %7516 = vmatmul.bf16.gmra.mxu0 %v5380
    %v7517 = vpop.f32.mrf.mxu0
    %v7518 = vadd.f32 %v7505, %v7517
    %v7519 = vpop.f32.mrf.mxu0
    %7520 = vdwg.mxu0
    %7521 = vmatpush.bf16.msra.mxu0 %v6999
    %7522 = vmatpush.bf16.msra.mxu0 %v6989
    %7523 = vmatpush.bf16.msra.mxu0 %v6979
    %7524 = vmatpush.bf16.msra.mxu0 %v6969
    %7525 = vmatpush.bf16.msra.mxu0 %v6959
    %7526 = vmatpush.bf16.msra.mxu0 %v6949
    %7527 = vmatpush.bf16.msra.mxu0 %v6939
    %7528 = vmatpush.bf16.msra.mxu0 %v6929
    %7529 = vmatmul.bf16.gmra.mxu0 %v5381
    %v7530 = vpop.f32.mrf.mxu0
    %v7531 = vadd.f32 %v7518, %v7530
    %v7532 = vpop.f32.mrf.mxu0
    %7533 = vdwg.mxu0
    %7534 = vmatpush.bf16.msra.mxu0 %v6760
    %7535 = vmatpush.bf16.msra.mxu0 %v6750
    %7536 = vmatpush.bf16.msra.mxu0 %v6740
    %7537 = vmatpush.bf16.msra.mxu0 %v6730
    %7538 = vmatpush.bf16.msra.mxu0 %v6720
    %7539 = vmatpush.bf16.msra.mxu0 %v6710
    %7540 = vmatpush.bf16.msra.mxu0 %v6700
    %7541 = vmatpush.bf16.msra.mxu0 %v6690
    %7542 = vmatmul.bf16.gmra.mxu0 %v5378
    %v7543 = vpop.f32.mrf.mxu0
    %v7544 = vadd.f32 %v5710, %v7543
    %v7545 = vpop.f32.mrf.mxu0
    %7546 = vdwg.mxu0
    %7547 = vmatpush.bf16.msra.mxu0 %v6840
    %7548 = vmatpush.bf16.msra.mxu0 %v6830
    %7549 = vmatpush.bf16.msra.mxu0 %v6820
    %7550 = vmatpush.bf16.msra.mxu0 %v6810
    %7551 = vmatpush.bf16.msra.mxu0 %v6800
    %7552 = vmatpush.bf16.msra.mxu0 %v6790
    %7553 = vmatpush.bf16.msra.mxu0 %v6780
    %7554 = vmatpush.bf16.msra.mxu0 %v6770
    %7555 = vmatmul.bf16.gmra.mxu0 %v5379
    %v7556 = vpop.f32.mrf.mxu0
    %v7557 = vadd.f32 %v7544, %v7556
    %v7558 = vpop.f32.mrf.mxu0
    %7559 = vdwg.mxu0
    %7560 = vmatpush.bf16.msra.mxu0 %v6920
    %7561 = vmatpush.bf16.msra.mxu0 %v6910
    %7562 = vmatpush.bf16.msra.mxu0 %v6900
    %7563 = vmatpush.bf16.msra.mxu0 %v6890
    %7564 = vmatpush.bf16.msra.mxu0 %v6880
    %7565 = vmatpush.bf16.msra.mxu0 %v6870
    %7566 = vmatpush.bf16.msra.mxu0 %v6860
    %7567 = vmatpush.bf16.msra.mxu0 %v6850
    %7568 = vmatmul.bf16.gmra.mxu0 %v5380
    %v7569 = vpop.f32.mrf.mxu0
    %v7570 = vadd.f32 %v7557, %v7569
    %v7571 = vpop.f32.mrf.mxu0
    %7572 = vdwg.mxu0
    %7573 = vmatpush.bf16.msra.mxu0 %v7000
    %7574 = vmatpush.bf16.msra.mxu0 %v6990
    %7575 = vmatpush.bf16.msra.mxu0 %v6980
    %7576 = vmatpush.bf16.msra.mxu0 %v6970
    %7577 = vmatpush.bf16.msra.mxu0 %v6960
    %7578 = vmatpush.bf16.msra.mxu0 %v6950
    %7579 = vmatpush.bf16.msra.mxu0 %v6940
    %7580 = vmatpush.bf16.msra.mxu0 %v6930
    %7581 = vmatmul.bf16.gmra.mxu0 %v5381
    %v7582 = vpop.f32.mrf.mxu0
    %v7583 = vadd.f32 %v7570, %v7582
    %v7584 = vpop.f32.mrf.mxu0
    %7585 = vdwg.mxu0
    %7586 = vmatpush.bf16.msra.mxu0 %v6761
    %7587 = vmatpush.bf16.msra.mxu0 %v6751
    %7588 = vmatpush.bf16.msra.mxu0 %v6741
    %7589 = vmatpush.bf16.msra.mxu0 %v6731
    %7590 = vmatpush.bf16.msra.mxu0 %v6721
    %7591 = vmatpush.bf16.msra.mxu0 %v6711
    %7592 = vmatpush.bf16.msra.mxu0 %v6701
    %7593 = vmatpush.bf16.msra.mxu0 %v6691
    %7594 = vmatmul.bf16.gmra.mxu0 %v5378
    %v7595 = vpop.f32.mrf.mxu0
    %v7596 = vadd.f32 %v5711, %v7595
    %v7597 = vpop.f32.mrf.mxu0
    %7598 = vdwg.mxu0
    %7599 = vmatpush.bf16.msra.mxu0 %v6841
    %7600 = vmatpush.bf16.msra.mxu0 %v6831
    %7601 = vmatpush.bf16.msra.mxu0 %v6821
    %7602 = vmatpush.bf16.msra.mxu0 %v6811
    %7603 = vmatpush.bf16.msra.mxu0 %v6801
    %7604 = vmatpush.bf16.msra.mxu0 %v6791
    %7605 = vmatpush.bf16.msra.mxu0 %v6781
    %7606 = vmatpush.bf16.msra.mxu0 %v6771
    %7607 = vmatmul.bf16.gmra.mxu0 %v5379
    %v7608 = vpop.f32.mrf.mxu0
    %v7609 = vadd.f32 %v7596, %v7608
    %v7610 = vpop.f32.mrf.mxu0
    %7611 = vdwg.mxu0
    %7612 = vmatpush.bf16.msra.mxu0 %v6921
    %7613 = vmatpush.bf16.msra.mxu0 %v6911
    %7614 = vmatpush.bf16.msra.mxu0 %v6901
    %7615 = vmatpush.bf16.msra.mxu0 %v6891
    %7616 = vmatpush.bf16.msra.mxu0 %v6881
    %7617 = vmatpush.bf16.msra.mxu0 %v6871
    %7618 = vmatpush.bf16.msra.mxu0 %v6861
    %7619 = vmatpush.bf16.msra.mxu0 %v6851
    %7620 = vmatmul.bf16.gmra.mxu0 %v5380
    %v7621 = vpop.f32.mrf.mxu0
    %v7622 = vadd.f32 %v7609, %v7621
    %v7623 = vpop.f32.mrf.mxu0
    %7624 = vdwg.mxu0
    %7625 = vmatpush.bf16.msra.mxu0 %v7001
    %7626 = vmatpush.bf16.msra.mxu0 %v6991
    %7627 = vmatpush.bf16.msra.mxu0 %v6981
    %7628 = vmatpush.bf16.msra.mxu0 %v6971
    %7629 = vmatpush.bf16.msra.mxu0 %v6961
    %7630 = vmatpush.bf16.msra.mxu0 %v6951
    %7631 = vmatpush.bf16.msra.mxu0 %v6941
    %7632 = vmatpush.bf16.msra.mxu0 %v6931
    %7633 = vmatmul.bf16.gmra.mxu0 %v5381
    %v7634 = vpop.f32.mrf.mxu0
    %v7635 = vadd.f32 %v7622, %v7634
    %v7636 = vpop.f32.mrf.mxu0
    %7637 = vdwg.mxu0
    %7638 = vmatpush.bf16.msra.mxu0 %v6762
    %7639 = vmatpush.bf16.msra.mxu0 %v6752
    %7640 = vmatpush.bf16.msra.mxu0 %v6742
    %7641 = vmatpush.bf16.msra.mxu0 %v6732
    %7642 = vmatpush.bf16.msra.mxu0 %v6722
    %7643 = vmatpush.bf16.msra.mxu0 %v6712
    %7644 = vmatpush.bf16.msra.mxu0 %v6702
    %7645 = vmatpush.bf16.msra.mxu0 %v6692
    %7646 = vmatmul.bf16.gmra.mxu0 %v5378
    %v7647 = vpop.f32.mrf.mxu0
    %v7648 = vadd.f32 %v5712, %v7647
    %v7649 = vpop.f32.mrf.mxu0
    %7650 = vdwg.mxu0
    %7651 = vmatpush.bf16.msra.mxu0 %v6842
    %7652 = vmatpush.bf16.msra.mxu0 %v6832
    %7653 = vmatpush.bf16.msra.mxu0 %v6822
    %7654 = vmatpush.bf16.msra.mxu0 %v6812
    %7655 = vmatpush.bf16.msra.mxu0 %v6802
    %7656 = vmatpush.bf16.msra.mxu0 %v6792
    %7657 = vmatpush.bf16.msra.mxu0 %v6782
    %7658 = vmatpush.bf16.msra.mxu0 %v6772
    %7659 = vmatmul.bf16.gmra.mxu0 %v5379
    %v7660 = vpop.f32.mrf.mxu0
    %v7661 = vadd.f32 %v7648, %v7660
    %v7662 = vpop.f32.mrf.mxu0
    %7663 = vdwg.mxu0
    %7664 = vmatpush.bf16.msra.mxu0 %v6922
    %7665 = vmatpush.bf16.msra.mxu0 %v6912
    %7666 = vmatpush.bf16.msra.mxu0 %v6902
    %7667 = vmatpush.bf16.msra.mxu0 %v6892
    %7668 = vmatpush.bf16.msra.mxu0 %v6882
    %7669 = vmatpush.bf16.msra.mxu0 %v6872
    %7670 = vmatpush.bf16.msra.mxu0 %v6862
    %7671 = vmatpush.bf16.msra.mxu0 %v6852
    %7672 = vmatmul.bf16.gmra.mxu0 %v5380
    %v7673 = vpop.f32.mrf.mxu0
    %v7674 = vadd.f32 %v7661, %v7673
    %v7675 = vpop.f32.mrf.mxu0
    %7676 = vdwg.mxu0
    %7677 = vmatpush.bf16.msra.mxu0 %v7002
    %7678 = vmatpush.bf16.msra.mxu0 %v6992
    %7679 = vmatpush.bf16.msra.mxu0 %v6982
    %7680 = vmatpush.bf16.msra.mxu0 %v6972
    %7681 = vmatpush.bf16.msra.mxu0 %v6962
    %7682 = vmatpush.bf16.msra.mxu0 %v6952
    %7683 = vmatpush.bf16.msra.mxu0 %v6942
    %7684 = vmatpush.bf16.msra.mxu0 %v6932
    %7685 = vmatmul.bf16.gmra.mxu0 %v5381
    %v7686 = vpop.f32.mrf.mxu0
    %v7687 = vadd.f32 %v7674, %v7686
    %v7688 = vpop.f32.mrf.mxu0
    %7689 = vdwg.mxu0
    %7690 = vmatpush.bf16.msra.mxu0 %v6763
    %7691 = vmatpush.bf16.msra.mxu0 %v6753
    %7692 = vmatpush.bf16.msra.mxu0 %v6743
    %7693 = vmatpush.bf16.msra.mxu0 %v6733
    %7694 = vmatpush.bf16.msra.mxu0 %v6723
    %7695 = vmatpush.bf16.msra.mxu0 %v6713
    %7696 = vmatpush.bf16.msra.mxu0 %v6703
    %7697 = vmatpush.bf16.msra.mxu0 %v6693
    %7698 = vmatmul.bf16.gmra.mxu0 %v5378
    %v7699 = vpop.f32.mrf.mxu0
    %v7700 = vadd.f32 %v5713, %v7699
    %v7701 = vpop.f32.mrf.mxu0
    %7702 = vdwg.mxu0
    %7703 = vmatpush.bf16.msra.mxu0 %v6843
    %7704 = vmatpush.bf16.msra.mxu0 %v6833
    %7705 = vmatpush.bf16.msra.mxu0 %v6823
    %7706 = vmatpush.bf16.msra.mxu0 %v6813
    %7707 = vmatpush.bf16.msra.mxu0 %v6803
    %7708 = vmatpush.bf16.msra.mxu0 %v6793
    %7709 = vmatpush.bf16.msra.mxu0 %v6783
    %7710 = vmatpush.bf16.msra.mxu0 %v6773
    %7711 = vmatmul.bf16.gmra.mxu0 %v5379
    %v7712 = vpop.f32.mrf.mxu0
    %v7713 = vadd.f32 %v7700, %v7712
    %v7714 = vpop.f32.mrf.mxu0
    %7715 = vdwg.mxu0
    %7716 = vmatpush.bf16.msra.mxu0 %v6923
    %7717 = vmatpush.bf16.msra.mxu0 %v6913
    %7718 = vmatpush.bf16.msra.mxu0 %v6903
    %7719 = vmatpush.bf16.msra.mxu0 %v6893
    %7720 = vmatpush.bf16.msra.mxu0 %v6883
    %7721 = vmatpush.bf16.msra.mxu0 %v6873
    %7722 = vmatpush.bf16.msra.mxu0 %v6863
    %7723 = vmatpush.bf16.msra.mxu0 %v6853
    %7724 = vmatmul.bf16.gmra.mxu0 %v5380
    %v7725 = vpop.f32.mrf.mxu0
    %v7726 = vadd.f32 %v7713, %v7725
    %v7727 = vpop.f32.mrf.mxu0
    %7728 = vdwg.mxu0
    %7729 = vmatpush.bf16.msra.mxu0 %v7003
    %7730 = vmatpush.bf16.msra.mxu0 %v6993
    %7731 = vmatpush.bf16.msra.mxu0 %v6983
    %7732 = vmatpush.bf16.msra.mxu0 %v6973
    %7733 = vmatpush.bf16.msra.mxu0 %v6963
    %7734 = vmatpush.bf16.msra.mxu0 %v6953
    %7735 = vmatpush.bf16.msra.mxu0 %v6943
    %7736 = vmatpush.bf16.msra.mxu0 %v6933
    %7737 = vmatmul.bf16.gmra.mxu0 %v5381
    %v7738 = vpop.f32.mrf.mxu0
    %v7739 = vadd.f32 %v7726, %v7738
    %v7740 = vpop.f32.mrf.mxu0
    %7741 = vdwg.mxu0
    %7742 = vmatpush.bf16.msra.mxu0 %v6764
    %7743 = vmatpush.bf16.msra.mxu0 %v6754
    %7744 = vmatpush.bf16.msra.mxu0 %v6744
    %7745 = vmatpush.bf16.msra.mxu0 %v6734
    %7746 = vmatpush.bf16.msra.mxu0 %v6724
    %7747 = vmatpush.bf16.msra.mxu0 %v6714
    %7748 = vmatpush.bf16.msra.mxu0 %v6704
    %7749 = vmatpush.bf16.msra.mxu0 %v6694
    %7750 = vmatmul.bf16.gmra.mxu0 %v5378
    %v7751 = vpop.f32.mrf.mxu0
    %v7752 = vadd.f32 %v5714, %v7751
    %v7753 = vpop.f32.mrf.mxu0
    %7754 = vdwg.mxu0
    %7755 = vmatpush.bf16.msra.mxu0 %v6844
    %7756 = vmatpush.bf16.msra.mxu0 %v6834
    %7757 = vmatpush.bf16.msra.mxu0 %v6824
    %7758 = vmatpush.bf16.msra.mxu0 %v6814
    %7759 = vmatpush.bf16.msra.mxu0 %v6804
    %7760 = vmatpush.bf16.msra.mxu0 %v6794
    %7761 = vmatpush.bf16.msra.mxu0 %v6784
    %7762 = vmatpush.bf16.msra.mxu0 %v6774
    %7763 = vmatmul.bf16.gmra.mxu0 %v5379
    %v7764 = vpop.f32.mrf.mxu0
    %v7765 = vadd.f32 %v7752, %v7764
    %v7766 = vpop.f32.mrf.mxu0
    %7767 = vdwg.mxu0
    %7768 = vmatpush.bf16.msra.mxu0 %v6924
    %7769 = vmatpush.bf16.msra.mxu0 %v6914
    %7770 = vmatpush.bf16.msra.mxu0 %v6904
    %7771 = vmatpush.bf16.msra.mxu0 %v6894
    %7772 = vmatpush.bf16.msra.mxu0 %v6884
    %7773 = vmatpush.bf16.msra.mxu0 %v6874
    %7774 = vmatpush.bf16.msra.mxu0 %v6864
    %7775 = vmatpush.bf16.msra.mxu0 %v6854
    %7776 = vmatmul.bf16.gmra.mxu0 %v5380
    %v7777 = vpop.f32.mrf.mxu0
    %v7778 = vadd.f32 %v7765, %v7777
    %v7779 = vpop.f32.mrf.mxu0
    %7780 = vdwg.mxu0
    %7781 = vmatpush.bf16.msra.mxu0 %v7004
    %7782 = vmatpush.bf16.msra.mxu0 %v6994
    %7783 = vmatpush.bf16.msra.mxu0 %v6984
    %7784 = vmatpush.bf16.msra.mxu0 %v6974
    %7785 = vmatpush.bf16.msra.mxu0 %v6964
    %7786 = vmatpush.bf16.msra.mxu0 %v6954
    %7787 = vmatpush.bf16.msra.mxu0 %v6944
    %7788 = vmatpush.bf16.msra.mxu0 %v6934
    %7789 = vmatmul.bf16.gmra.mxu0 %v5381
    %v7790 = vpop.f32.mrf.mxu0
    %v7791 = vadd.f32 %v7778, %v7790
    %v7792 = vpop.f32.mrf.mxu0
    %7793 = vdwg.mxu0
    %7794 = vmatpush.bf16.msra.mxu0 %v6765
    %7795 = vmatpush.bf16.msra.mxu0 %v6755
    %7796 = vmatpush.bf16.msra.mxu0 %v6745
    %7797 = vmatpush.bf16.msra.mxu0 %v6735
    %7798 = vmatpush.bf16.msra.mxu0 %v6725
    %7799 = vmatpush.bf16.msra.mxu0 %v6715
    %7800 = vmatpush.bf16.msra.mxu0 %v6705
    %7801 = vmatpush.bf16.msra.mxu0 %v6695
    %7802 = vmatmul.bf16.gmra.mxu0 %v5378
    %v7803 = vpop.f32.mrf.mxu0
    %v7804 = vadd.f32 %v5715, %v7803
    %v7805 = vpop.f32.mrf.mxu0
    %7806 = vdwg.mxu0
    %7807 = vmatpush.bf16.msra.mxu0 %v6845
    %7808 = vmatpush.bf16.msra.mxu0 %v6835
    %7809 = vmatpush.bf16.msra.mxu0 %v6825
    %7810 = vmatpush.bf16.msra.mxu0 %v6815
    %7811 = vmatpush.bf16.msra.mxu0 %v6805
    %7812 = vmatpush.bf16.msra.mxu0 %v6795
    %7813 = vmatpush.bf16.msra.mxu0 %v6785
    %7814 = vmatpush.bf16.msra.mxu0 %v6775
    %7815 = vmatmul.bf16.gmra.mxu0 %v5379
    %v7816 = vpop.f32.mrf.mxu0
    %v7817 = vadd.f32 %v7804, %v7816
    %v7818 = vpop.f32.mrf.mxu0
    %7819 = vdwg.mxu0
    %7820 = vmatpush.bf16.msra.mxu0 %v6925
    %7821 = vmatpush.bf16.msra.mxu0 %v6915
    %7822 = vmatpush.bf16.msra.mxu0 %v6905
    %7823 = vmatpush.bf16.msra.mxu0 %v6895
    %7824 = vmatpush.bf16.msra.mxu0 %v6885
    %7825 = vmatpush.bf16.msra.mxu0 %v6875
    %7826 = vmatpush.bf16.msra.mxu0 %v6865
    %7827 = vmatpush.bf16.msra.mxu0 %v6855
    %7828 = vmatmul.bf16.gmra.mxu0 %v5380
    %v7829 = vpop.f32.mrf.mxu0
    %v7830 = vadd.f32 %v7817, %v7829
    %v7831 = vpop.f32.mrf.mxu0
    %7832 = vdwg.mxu0
    %7833 = vmatpush.bf16.msra.mxu0 %v7005
    %7834 = vmatpush.bf16.msra.mxu0 %v6995
    %7835 = vmatpush.bf16.msra.mxu0 %v6985
    %7836 = vmatpush.bf16.msra.mxu0 %v6975
    %7837 = vmatpush.bf16.msra.mxu0 %v6965
    %7838 = vmatpush.bf16.msra.mxu0 %v6955
    %7839 = vmatpush.bf16.msra.mxu0 %v6945
    %7840 = vmatpush.bf16.msra.mxu0 %v6935
    %7841 = vmatmul.bf16.gmra.mxu0 %v5381
    %v7842 = vpop.f32.mrf.mxu0
    %v7843 = vadd.f32 %v7830, %v7842
    %v7844 = vpop.f32.mrf.mxu0
    %7845 = vdwg.mxu0
    %v7846 = vsel %vm4609, %v7375, 0.0
    %v7847 = vrot.slane %v7846, 4
    %v7848 = vadd.f32 %v7846, %v7847
    %v7849 = vrot.slane %v7848, 2
    %v7850 = vadd.f32 %v7848, %v7849
    %v7851 = vrot.slane %v7850, 1
    %v7852 = vadd.f32 %v7850, %v7851
    %v7853 = vsel %vm4609, %v7427, 0.0
    %v7854 = vrot.slane %v7853, 4
    %v7855 = vadd.f32 %v7853, %v7854
    %v7856 = vrot.slane %v7855, 2
    %v7857 = vadd.f32 %v7855, %v7856
    %v7858 = vrot.slane %v7857, 1
    %v7859 = vadd.f32 %v7857, %v7858
    %v7860 = vsel %vm4609, %v7479, 0.0
    %v7861 = vrot.slane %v7860, 4
    %v7862 = vadd.f32 %v7860, %v7861
    %v7863 = vrot.slane %v7862, 2
    %v7864 = vadd.f32 %v7862, %v7863
    %v7865 = vrot.slane %v7864, 1
    %v7866 = vadd.f32 %v7864, %v7865
    %v7867 = vsel %vm4609, %v7531, 0.0
    %v7868 = vrot.slane %v7867, 4
    %v7869 = vadd.f32 %v7867, %v7868
    %v7870 = vrot.slane %v7869, 2
    %v7871 = vadd.f32 %v7869, %v7870
    %v7872 = vrot.slane %v7871, 1
    %v7873 = vadd.f32 %v7871, %v7872
    %v7874 = vsel %vm4609, %v7583, 0.0
    %v7875 = vrot.slane %v7874, 4
    %v7876 = vadd.f32 %v7874, %v7875
    %v7877 = vrot.slane %v7876, 2
    %v7878 = vadd.f32 %v7876, %v7877
    %v7879 = vrot.slane %v7878, 1
    %v7880 = vadd.f32 %v7878, %v7879
    %v7881 = vsel %vm4609, %v7635, 0.0
    %v7882 = vrot.slane %v7881, 4
    %v7883 = vadd.f32 %v7881, %v7882
    %v7884 = vrot.slane %v7883, 2
    %v7885 = vadd.f32 %v7883, %v7884
    %v7886 = vrot.slane %v7885, 1
    %v7887 = vadd.f32 %v7885, %v7886
    %v7888 = vsel %vm4609, %v7687, 0.0
    %v7889 = vrot.slane %v7888, 4
    %v7890 = vadd.f32 %v7888, %v7889
    %v7891 = vrot.slane %v7890, 2
    %v7892 = vadd.f32 %v7890, %v7891
    %v7893 = vrot.slane %v7892, 1
    %v7894 = vadd.f32 %v7892, %v7893
    %v7895 = vsel %vm4609, %v7739, 0.0
    %v7896 = vrot.slane %v7895, 4
    %v7897 = vadd.f32 %v7895, %v7896
    %v7898 = vrot.slane %v7897, 2
    %v7899 = vadd.f32 %v7897, %v7898
    %v7900 = vrot.slane %v7899, 1
    %v7901 = vadd.f32 %v7899, %v7900
    %v7902 = vsel %vm4609, %v7791, 0.0
    %v7903 = vrot.slane %v7902, 4
    %v7904 = vadd.f32 %v7902, %v7903
    %v7905 = vrot.slane %v7904, 2
    %v7906 = vadd.f32 %v7904, %v7905
    %v7907 = vrot.slane %v7906, 1
    %v7908 = vadd.f32 %v7906, %v7907
    %v7909 = vsel %vm4609, %v7843, 0.0
    %v7910 = vrot.slane %v7909, 4
    %v7911 = vadd.f32 %v7909, %v7910
    %v7912 = vrot.slane %v7911, 2
    %v7913 = vadd.f32 %v7911, %v7912
    %v7914 = vrot.slane %v7913, 1
    %v7915 = vadd.f32 %v7913, %v7914
    %v7916 = vmul.f32 %v7852, %v4644
    %v7917 = vmul.f32 %v7859, %v4644
    %v7918 = vmul.f32 %v7866, %v4644
    %v7919 = vmul.f32 %v7873, %v4644
    %v7920 = vmul.f32 %v7880, %v4644
    %v7921 = vmul.f32 %v7887, %v4644
    %v7922 = vmul.f32 %v7894, %v4644
    %v7923 = vmul.f32 %v7901, %v4644
    %v7924 = vmul.f32 %v7908, %v4644
    %v7925 = vmul.f32 %v7915, %v4644
    %v7926 = vsub.f32 %v7375, %v7916
    %v7927 = vsub.f32 %v7427, %v7917
    %v7928 = vsub.f32 %v7479, %v7918
    %v7929 = vsub.f32 %v7531, %v7919
    %v7930 = vsub.f32 %v7583, %v7920
    %v7931 = vsub.f32 %v7635, %v7921
    %v7932 = vsub.f32 %v7687, %v7922
    %v7933 = vsub.f32 %v7739, %v7923
    %v7934 = vsub.f32 %v7791, %v7924
    %v7935 = vsub.f32 %v7843, %v7925
    %v7936 = vmul.f32 %v7926, %v7926
    %v7937 = vmul.f32 %v7927, %v7927
    %v7938 = vmul.f32 %v7928, %v7928
    %v7939 = vmul.f32 %v7929, %v7929
    %v7940 = vmul.f32 %v7930, %v7930
    %v7941 = vmul.f32 %v7931, %v7931
    %v7942 = vmul.f32 %v7932, %v7932
    %v7943 = vmul.f32 %v7933, %v7933
    %v7944 = vmul.f32 %v7934, %v7934
    %v7945 = vmul.f32 %v7935, %v7935
    %v7946 = vsel %vm4609, %v7936, 0.0
    %v7947 = vrot.slane %v7946, 4
    %v7948 = vadd.f32 %v7946, %v7947
    %v7949 = vrot.slane %v7948, 2
    %v7950 = vadd.f32 %v7948, %v7949
    %v7951 = vrot.slane %v7950, 1
    %v7952 = vadd.f32 %v7950, %v7951
    %v7953 = vsel %vm4609, %v7937, 0.0
    %v7954 = vrot.slane %v7953, 4
    %v7955 = vadd.f32 %v7953, %v7954
    %v7956 = vrot.slane %v7955, 2
    %v7957 = vadd.f32 %v7955, %v7956
    %v7958 = vrot.slane %v7957, 1
    %v7959 = vadd.f32 %v7957, %v7958
    %v7960 = vsel %vm4609, %v7938, 0.0
    %v7961 = vrot.slane %v7960, 4
    %v7962 = vadd.f32 %v7960, %v7961
    %v7963 = vrot.slane %v7962, 2
    %v7964 = vadd.f32 %v7962, %v7963
    %v7965 = vrot.slane %v7964, 1
    %v7966 = vadd.f32 %v7964, %v7965
    %v7967 = vsel %vm4609, %v7939, 0.0
    %v7968 = vrot.slane %v7967, 4
    %v7969 = vadd.f32 %v7967, %v7968
    %v7970 = vrot.slane %v7969, 2
    %v7971 = vadd.f32 %v7969, %v7970
    %v7972 = vrot.slane %v7971, 1
    %v7973 = vadd.f32 %v7971, %v7972
    %v7974 = vsel %vm4609, %v7940, 0.0
    %v7975 = vrot.slane %v7974, 4
    %v7976 = vadd.f32 %v7974, %v7975
    %v7977 = vrot.slane %v7976, 2
    %v7978 = vadd.f32 %v7976, %v7977
    %v7979 = vrot.slane %v7978, 1
    %v7980 = vadd.f32 %v7978, %v7979
    %v7981 = vsel %vm4609, %v7941, 0.0
    %v7982 = vrot.slane %v7981, 4
    %v7983 = vadd.f32 %v7981, %v7982
    %v7984 = vrot.slane %v7983, 2
    %v7985 = vadd.f32 %v7983, %v7984
    %v7986 = vrot.slane %v7985, 1
    %v7987 = vadd.f32 %v7985, %v7986
    %v7988 = vsel %vm4609, %v7942, 0.0
    %v7989 = vrot.slane %v7988, 4
    %v7990 = vadd.f32 %v7988, %v7989
    %v7991 = vrot.slane %v7990, 2
    %v7992 = vadd.f32 %v7990, %v7991
    %v7993 = vrot.slane %v7992, 1
    %v7994 = vadd.f32 %v7992, %v7993
    %v7995 = vsel %vm4609, %v7943, 0.0
    %v7996 = vrot.slane %v7995, 4
    %v7997 = vadd.f32 %v7995, %v7996
    %v7998 = vrot.slane %v7997, 2
    %v7999 = vadd.f32 %v7997, %v7998
    %v8000 = vrot.slane %v7999, 1
    %v8001 = vadd.f32 %v7999, %v8000
    %v8002 = vsel %vm4609, %v7944, 0.0
    %v8003 = vrot.slane %v8002, 4
    %v8004 = vadd.f32 %v8002, %v8003
    %v8005 = vrot.slane %v8004, 2
    %v8006 = vadd.f32 %v8004, %v8005
    %v8007 = vrot.slane %v8006, 1
    %v8008 = vadd.f32 %v8006, %v8007
    %v8009 = vsel %vm4609, %v7945, 0.0
    %v8010 = vrot.slane %v8009, 4
    %v8011 = vadd.f32 %v8009, %v8010
    %v8012 = vrot.slane %v8011, 2
    %v8013 = vadd.f32 %v8011, %v8012
    %v8014 = vrot.slane %v8013, 1
    %v8015 = vadd.f32 %v8013, %v8014
    %v8016 = vmul.f32 %v7952, %v4644
    %v8017 = vmul.f32 %v7959, %v4644
    %v8018 = vmul.f32 %v7966, %v4644
    %v8019 = vmul.f32 %v7973, %v4644
    %v8020 = vmul.f32 %v7980, %v4644
    %v8021 = vmul.f32 %v7987, %v4644
    %v8022 = vmul.f32 %v7994, %v4644
    %v8023 = vmul.f32 %v8001, %v4644
    %v8024 = vmul.f32 %v8008, %v4644
    %v8025 = vmul.f32 %v8015, %v4644
    %v8026 = vadd.f32 %v8016, 1e-05
    %v8027 = vadd.f32 %v8017, 1e-05
    %v8028 = vadd.f32 %v8018, 1e-05
    %v8029 = vadd.f32 %v8019, 1e-05
    %v8030 = vadd.f32 %v8020, 1e-05
    %v8031 = vadd.f32 %v8021, 1e-05
    %v8032 = vadd.f32 %v8022, 1e-05
    %v8033 = vadd.f32 %v8023, 1e-05
    %v8034 = vadd.f32 %v8024, 1e-05
    %v8035 = vadd.f32 %v8025, 1e-05
    %v8036 = vrsqrt.pop %v8026
    %v8037 = vmul.f32 %v8036, %v8026
    %v8038 = vmul.f32 %v8037, %v8036
    %v8039 = vmul.f32 0.5, %v8038
    %v8040 = vsub.f32 1.5, %v8039
    %v8041 = vmul.f32 %v8036, %v8040
    %vm8042 = vweird.f32 %v8026
    %vm8043 = vweird.f32 %v8036
    %vm8044 = vmor %vm8042, %vm8043
    %v8045 = vsel %vm8044, %v8036, %v8041
    %v8046 = vrsqrt.pop %v8027
    %v8047 = vmul.f32 %v8046, %v8027
    %v8048 = vmul.f32 %v8047, %v8046
    %v8049 = vmul.f32 0.5, %v8048
    %v8050 = vsub.f32 1.5, %v8049
    %v8051 = vmul.f32 %v8046, %v8050
    %vm8052 = vweird.f32 %v8027
    %vm8053 = vweird.f32 %v8046
    %vm8054 = vmor %vm8052, %vm8053
    %v8055 = vsel %vm8054, %v8046, %v8051
    %v8056 = vrsqrt.pop %v8028
    %v8057 = vmul.f32 %v8056, %v8028
    %v8058 = vmul.f32 %v8057, %v8056
    %v8059 = vmul.f32 0.5, %v8058
    %v8060 = vsub.f32 1.5, %v8059
    %v8061 = vmul.f32 %v8056, %v8060
    %vm8062 = vweird.f32 %v8028
    %vm8063 = vweird.f32 %v8056
    %vm8064 = vmor %vm8062, %vm8063
    %v8065 = vsel %vm8064, %v8056, %v8061
    %v8066 = vrsqrt.pop %v8029
    %v8067 = vmul.f32 %v8066, %v8029
    %v8068 = vmul.f32 %v8067, %v8066
    %v8069 = vmul.f32 0.5, %v8068
    %v8070 = vsub.f32 1.5, %v8069
    %v8071 = vmul.f32 %v8066, %v8070
    %vm8072 = vweird.f32 %v8029
    %vm8073 = vweird.f32 %v8066
    %vm8074 = vmor %vm8072, %vm8073
    %v8075 = vsel %vm8074, %v8066, %v8071
    %v8076 = vrsqrt.pop %v8030
    %v8077 = vmul.f32 %v8076, %v8030
    %v8078 = vmul.f32 %v8077, %v8076
    %v8079 = vmul.f32 0.5, %v8078
    %v8080 = vsub.f32 1.5, %v8079
    %v8081 = vmul.f32 %v8076, %v8080
    %vm8082 = vweird.f32 %v8030
    %vm8083 = vweird.f32 %v8076
    %vm8084 = vmor %vm8082, %vm8083
    %v8085 = vsel %vm8084, %v8076, %v8081
    %v8086 = vrsqrt.pop %v8031
    %v8087 = vmul.f32 %v8086, %v8031
    %v8088 = vmul.f32 %v8087, %v8086
    %v8089 = vmul.f32 0.5, %v8088
    %v8090 = vsub.f32 1.5, %v8089
    %v8091 = vmul.f32 %v8086, %v8090
    %vm8092 = vweird.f32 %v8031
    %vm8093 = vweird.f32 %v8086
    %vm8094 = vmor %vm8092, %vm8093
    %v8095 = vsel %vm8094, %v8086, %v8091
    %v8096 = vrsqrt.pop %v8032
    %v8097 = vmul.f32 %v8096, %v8032
    %v8098 = vmul.f32 %v8097, %v8096
    %v8099 = vmul.f32 0.5, %v8098
    %v8100 = vsub.f32 1.5, %v8099
    %v8101 = vmul.f32 %v8096, %v8100
    %vm8102 = vweird.f32 %v8032
    %vm8103 = vweird.f32 %v8096
    %vm8104 = vmor %vm8102, %vm8103
    %v8105 = vsel %vm8104, %v8096, %v8101
    %v8106 = vrsqrt.pop %v8033
    %v8107 = vmul.f32 %v8106, %v8033
    %v8108 = vmul.f32 %v8107, %v8106
    %v8109 = vmul.f32 0.5, %v8108
    %v8110 = vsub.f32 1.5, %v8109
    %v8111 = vmul.f32 %v8106, %v8110
    %vm8112 = vweird.f32 %v8033
    %vm8113 = vweird.f32 %v8106
    %vm8114 = vmor %vm8112, %vm8113
    %v8115 = vsel %vm8114, %v8106, %v8111
    %v8116 = vrsqrt.pop %v8034
    %v8117 = vmul.f32 %v8116, %v8034
    %v8118 = vmul.f32 %v8117, %v8116
    %v8119 = vmul.f32 0.5, %v8118
    %v8120 = vsub.f32 1.5, %v8119
    %v8121 = vmul.f32 %v8116, %v8120
    %vm8122 = vweird.f32 %v8034
    %vm8123 = vweird.f32 %v8116
    %vm8124 = vmor %vm8122, %vm8123
    %v8125 = vsel %vm8124, %v8116, %v8121
    %v8126 = vrsqrt.pop %v8035
    %v8127 = vmul.f32 %v8126, %v8035
    %v8128 = vmul.f32 %v8127, %v8126
    %v8129 = vmul.f32 0.5, %v8128
    %v8130 = vsub.f32 1.5, %v8129
    %v8131 = vmul.f32 %v8126, %v8130
    %vm8132 = vweird.f32 %v8035
    %vm8133 = vweird.f32 %v8126
    %vm8134 = vmor %vm8132, %vm8133
    %v8135 = vsel %vm8134, %v8126, %v8131
    %v8136 = vmul.f32 %v7926, %v8045
    %v8137 = vmul.f32 %v7927, %v8055
    %v8138 = vmul.f32 %v7928, %v8065
    %v8139 = vmul.f32 %v7929, %v8075
    %v8140 = vmul.f32 %v7930, %v8085
    %v8141 = vmul.f32 %v7931, %v8095
    %v8142 = vmul.f32 %v7932, %v8105
    %v8143 = vmul.f32 %v7933, %v8115
    %v8144 = vmul.f32 %v7934, %v8125
    %v8145 = vmul.f32 %v7935, %v8135
    %v8146 = vld [vmem:[#allocation45] sm:$0xff]
    %v8147 = vld [vmem:[#allocation45 + $0x8] sm:$0x3]
    %v8150 = vperm.slane %v8146, 0
    %v8151 = vperm.slane %v8146, 1
    %v8152 = vperm.slane %v8146, 2
    %v8153 = vperm.slane %v8146, 3
    %v8154 = vperm.slane %v8146, 4
    %v8155 = vperm.slane %v8146, 5
    %v8156 = vperm.slane %v8146, 6
    %v8157 = vperm.slane %v8146, 7
    %v8158 = vperm.slane %v8147, 0
    %v8159 = vperm.slane %v8147, 1
    %v8170 = vmul.f32 %v8136, %v8150
    %v8171 = vmul.f32 %v8137, %v8151
    %v8172 = vmul.f32 %v8138, %v8152
    %v8173 = vmul.f32 %v8139, %v8153
    %v8174 = vmul.f32 %v8140, %v8154
    %v8175 = vmul.f32 %v8141, %v8155
    %v8176 = vmul.f32 %v8142, %v8156
    %v8177 = vmul.f32 %v8143, %v8157
    %v8178 = vmul.f32 %v8144, %v8158
    %v8179 = vmul.f32 %v8145, %v8159
    %v8180 = vld [vmem:[#allocation47] sm:$0xff]
    %v8181 = vld [vmem:[#allocation47 + $0x8] sm:$0x3]
    %v8184 = vperm.slane %v8180, 0
    %v8185 = vperm.slane %v8180, 1
    %v8186 = vperm.slane %v8180, 2
    %v8187 = vperm.slane %v8180, 3
    %v8188 = vperm.slane %v8180, 4
    %v8189 = vperm.slane %v8180, 5
    %v8190 = vperm.slane %v8180, 6
    %v8191 = vperm.slane %v8180, 7
    %v8192 = vperm.slane %v8181, 0
    %v8193 = vperm.slane %v8181, 1
    %v8204 = vadd.f32 %v8170, %v8184
    %v8205 = vadd.f32 %v8171, %v8185
    %v8206 = vadd.f32 %v8172, %v8186
    %v8207 = vadd.f32 %v8173, %v8187
    %v8208 = vadd.f32 %v8174, %v8188
    %v8209 = vadd.f32 %v8175, %v8189
    %v8210 = vadd.f32 %v8176, %v8190
    %v8211 = vadd.f32 %v8177, %v8191
    %v8212 = vadd.f32 %v8178, %v8192
    %v8213 = vadd.f32 %v8179, %v8193
    %v8214 = vtanh.pop %v8204
    %v8215 = vtanh.pop %v8205
    %v8216 = vtanh.pop %v8206
    %v8217 = vtanh.pop %v8207
    %v8218 = vtanh.pop %v8208
    %v8219 = vtanh.pop %v8209
    %v8220 = vtanh.pop %v8210
    %v8221 = vtanh.pop %v8211
    %v8222 = vtanh.pop %v8212
    %v8223 = vtanh.pop %v8213
    %v8224 = vld [vmem:[%s13] sm:$0xff]
    %v8225 = vld [vmem:[%s13 + $0x8] sm:$0x7f]
    %s8226 = scalar_lea.vmem %s13, 16
    %v8227 = vld [vmem:[%s8226] sm:$0xff]
    %v8228 = vld [vmem:[%s8226 + $0x8] sm:$0x7f]
    %vm8229 = vcmask 23552
    %v8231 = vsel %vm8229, %v8227, 0
    %v8234 = vsel %vm8229, %v8228, 0
    %v8237 = vsel %vm4609, %v8216, 0
    %v8240 = vsel %vm4609, %v8217, 0
    %8242 = vmatpush.msra.mxu0 0.0
    %8243 = vmatpush.msra.mxu0 0.0
    %8244 = vmatpush.msra.mxu0 0.0
    %8245 = vmatpush.msra.mxu0 0.0
    %8246 = vmatpush.msra.mxu0 0.0
    %8247 = vmatpush.msra.mxu0 0.0
    %8248 = vmatpush.msra.mxu0 0.0
    %8249 = vmatpush.msra.mxu0 0.0
    %8250 = vmatpush.msra.mxu0 0.0
    %8251 = vmatpush.msra.mxu0 0.0
    %8252 = vmatpush.msra.mxu0 0.0
    %8253 = vmatpush.msra.mxu0 0.0
    %8254 = vmatpush.msra.mxu0 0.0
    %8255 = vmatpush.msra.mxu0 0.0
    %8256 = vmatpush.msra.mxu0 0.0
    %8257 = vmatpush.msra.mxu0 %v8237
    %8258 = vmatmul.f32.gmra.mxu0 %v8231
    %v8259 = vpop.f32.mrf.mxu0
    %v8260 = vadd.f32 0.0, %v8259
    %8261 = vmatmul.f32.gmra.mxu0 %v8234
    %v8262 = vpop.f32.mrf.mxu0
    %v8263 = vadd.f32 0.0, %v8262
    %8264 = vdwg.mxu0
    %8265 = vmatpush.msra.mxu0 0.0
    %8266 = vmatpush.msra.mxu0 0.0
    %8267 = vmatpush.msra.mxu0 0.0
    %8268 = vmatpush.msra.mxu0 0.0
    %8269 = vmatpush.msra.mxu0 0.0
    %8270 = vmatpush.msra.mxu0 0.0
    %8271 = vmatpush.msra.mxu0 0.0
    %8272 = vmatpush.msra.mxu0 0.0
    %8273 = vmatpush.msra.mxu0 0.0
    %8274 = vmatpush.msra.mxu0 0.0
    %8275 = vmatpush.msra.mxu0 0.0
    %8276 = vmatpush.msra.mxu0 0.0
    %8277 = vmatpush.msra.mxu0 0.0
    %8278 = vmatpush.msra.mxu0 0.0
    %8279 = vmatpush.msra.mxu0 0.0
    %8280 = vmatpush.msra.mxu0 %v8240
    %8281 = vmatmul.f32.gmra.mxu0 %v8231
    %v8282 = vpop.f32.mrf.mxu0
    %v8283 = vadd.f32 0.0, %v8282
    %8284 = vmatmul.f32.gmra.mxu0 %v8234
    %v8285 = vpop.f32.mrf.mxu0
    %v8286 = vadd.f32 0.0, %v8285
    %8287 = vdwg.mxu0
    %v8289 = vsel %vm8229, %v8224, 0
    %v8292 = vsel %vm8229, %v8225, 0
    %v8295 = vsel %vm4609, %v8214, 0
    %v8298 = vsel %vm4609, %v8215, 0
    %8300 = vmatpush.msra.mxu0 0.0
    %8301 = vmatpush.msra.mxu0 0.0
    %8302 = vmatpush.msra.mxu0 0.0
    %8303 = vmatpush.msra.mxu0 0.0
    %8304 = vmatpush.msra.mxu0 0.0
    %8305 = vmatpush.msra.mxu0 0.0
    %8306 = vmatpush.msra.mxu0 0.0
    %8307 = vmatpush.msra.mxu0 0.0
    %8308 = vmatpush.msra.mxu0 0.0
    %8309 = vmatpush.msra.mxu0 0.0
    %8310 = vmatpush.msra.mxu0 0.0
    %8311 = vmatpush.msra.mxu0 0.0
    %8312 = vmatpush.msra.mxu0 0.0
    %8313 = vmatpush.msra.mxu0 0.0
    %8314 = vmatpush.msra.mxu0 0.0
    %8315 = vmatpush.msra.mxu0 %v8295
    %8316 = vmatmul.f32.gmra.mxu0 %v8289
    %v8317 = vpop.f32.mrf.mxu0
    %v8318 = vadd.f32 %v8260, %v8317
    %8319 = vmatmul.f32.gmra.mxu0 %v8292
    %v8320 = vpop.f32.mrf.mxu0
    %v8321 = vadd.f32 %v8263, %v8320
    %8322 = vdwg.mxu0
    %8323 = vmatpush.msra.mxu0 0.0
    %8324 = vmatpush.msra.mxu0 0.0
    %8325 = vmatpush.msra.mxu0 0.0
    %8326 = vmatpush.msra.mxu0 0.0
    %8327 = vmatpush.msra.mxu0 0.0
    %8328 = vmatpush.msra.mxu0 0.0
    %8329 = vmatpush.msra.mxu0 0.0
    %8330 = vmatpush.msra.mxu0 0.0
    %8331 = vmatpush.msra.mxu0 0.0
    %8332 = vmatpush.msra.mxu0 0.0
    %8333 = vmatpush.msra.mxu0 0.0
    %8334 = vmatpush.msra.mxu0 0.0
    %8335 = vmatpush.msra.mxu0 0.0
    %8336 = vmatpush.msra.mxu0 0.0
    %8337 = vmatpush.msra.mxu0 0.0
    %8338 = vmatpush.msra.mxu0 %v8298
    %8339 = vmatmul.f32.gmra.mxu0 %v8289
    %v8340 = vpop.f32.mrf.mxu0
    %v8341 = vadd.f32 %v8283, %v8340
    %8342 = vmatmul.f32.gmra.mxu0 %v8292
    %v8343 = vpop.f32.mrf.mxu0
    %v8344 = vadd.f32 %v8286, %v8343
    %8345 = vdwg.mxu0
    %s8346 = scalar_lea.vmem %s13, 32
    %v8347 = vld [vmem:[%s8346] sm:$0xff]
    %v8348 = vld [vmem:[%s8346 + $0x8] sm:$0x7f]
    %v8350 = vsel %vm8229, %v8347, 0
    %v8353 = vsel %vm8229, %v8348, 0
    %v8356 = vsel %vm4609, %v8218, 0
    %v8359 = vsel %vm4609, %v8219, 0
    %8361 = vmatpush.msra.mxu0 0.0
    %8362 = vmatpush.msra.mxu0 0.0
    %8363 = vmatpush.msra.mxu0 0.0
    %8364 = vmatpush.msra.mxu0 0.0
    %8365 = vmatpush.msra.mxu0 0.0
    %8366 = vmatpush.msra.mxu0 0.0
    %8367 = vmatpush.msra.mxu0 0.0
    %8368 = vmatpush.msra.mxu0 0.0
    %8369 = vmatpush.msra.mxu0 0.0
    %8370 = vmatpush.msra.mxu0 0.0
    %8371 = vmatpush.msra.mxu0 0.0
    %8372 = vmatpush.msra.mxu0 0.0
    %8373 = vmatpush.msra.mxu0 0.0
    %8374 = vmatpush.msra.mxu0 0.0
    %8375 = vmatpush.msra.mxu0 0.0
    %8376 = vmatpush.msra.mxu0 %v8356
    %8377 = vmatmul.f32.gmra.mxu0 %v8350
    %v8378 = vpop.f32.mrf.mxu0
    %v8379 = vadd.f32 0.0, %v8378
    %8380 = vmatmul.f32.gmra.mxu0 %v8353
    %v8381 = vpop.f32.mrf.mxu0
    %v8382 = vadd.f32 0.0, %v8381
    %8383 = vdwg.mxu0
    %8384 = vmatpush.msra.mxu0 0.0
    %8385 = vmatpush.msra.mxu0 0.0
    %8386 = vmatpush.msra.mxu0 0.0
    %8387 = vmatpush.msra.mxu0 0.0
    %8388 = vmatpush.msra.mxu0 0.0
    %8389 = vmatpush.msra.mxu0 0.0
    %8390 = vmatpush.msra.mxu0 0.0
    %8391 = vmatpush.msra.mxu0 0.0
    %8392 = vmatpush.msra.mxu0 0.0
    %8393 = vmatpush.msra.mxu0 0.0
    %8394 = vmatpush.msra.mxu0 0.0
    %8395 = vmatpush.msra.mxu0 0.0
    %8396 = vmatpush.msra.mxu0 0.0
    %8397 = vmatpush.msra.mxu0 0.0
    %8398 = vmatpush.msra.mxu0 0.0
    %8399 = vmatpush.msra.mxu0 %v8359
    %8400 = vmatmul.f32.gmra.mxu0 %v8350
    %v8401 = vpop.f32.mrf.mxu0
    %v8402 = vadd.f32 0.0, %v8401
    %8403 = vmatmul.f32.gmra.mxu0 %v8353
    %v8404 = vpop.f32.mrf.mxu0
    %v8405 = vadd.f32 0.0, %v8404
    %8406 = vdwg.mxu0
    %v8407 = vadd.f32 %v8318, %v8379
    %v8408 = vadd.f32 %v8341, %v8402
    %v8409 = vadd.f32 %v8321, %v8382
    %v8410 = vadd.f32 %v8344, %v8405
    %s8411 = scalar_lea.vmem %s13, 48
    %v8412 = vld [vmem:[%s8411] sm:$0xff]
    %v8413 = vld [vmem:[%s8411 + $0x8] sm:$0x7f]
    %v8415 = vsel %vm8229, %v8412, 0
    %v8418 = vsel %vm8229, %v8413, 0
    %v8421 = vsel %vm4609, %v8220, 0
    %v8424 = vsel %vm4609, %v8221, 0
    %8426 = vmatpush.msra.mxu0 0.0
    %8427 = vmatpush.msra.mxu0 0.0
    %8428 = vmatpush.msra.mxu0 0.0
    %8429 = vmatpush.msra.mxu0 0.0
    %8430 = vmatpush.msra.mxu0 0.0
    %8431 = vmatpush.msra.mxu0 0.0
    %8432 = vmatpush.msra.mxu0 0.0
    %8433 = vmatpush.msra.mxu0 0.0
    %8434 = vmatpush.msra.mxu0 0.0
    %8435 = vmatpush.msra.mxu0 0.0
    %8436 = vmatpush.msra.mxu0 0.0
    %8437 = vmatpush.msra.mxu0 0.0
    %8438 = vmatpush.msra.mxu0 0.0
    %8439 = vmatpush.msra.mxu0 0.0
    %8440 = vmatpush.msra.mxu0 0.0
    %8441 = vmatpush.msra.mxu0 %v8421
    %8442 = vmatmul.f32.gmra.mxu0 %v8415
    %v8443 = vpop.f32.mrf.mxu0
    %v8444 = vadd.f32 0.0, %v8443
    %8445 = vmatmul.f32.gmra.mxu0 %v8418
    %v8446 = vpop.f32.mrf.mxu0
    %v8447 = vadd.f32 0.0, %v8446
    %8448 = vdwg.mxu0
    %8449 = vmatpush.msra.mxu0 0.0
    %8450 = vmatpush.msra.mxu0 0.0
    %8451 = vmatpush.msra.mxu0 0.0
    %8452 = vmatpush.msra.mxu0 0.0
    %8453 = vmatpush.msra.mxu0 0.0
    %8454 = vmatpush.msra.mxu0 0.0
    %8455 = vmatpush.msra.mxu0 0.0
    %8456 = vmatpush.msra.mxu0 0.0
    %8457 = vmatpush.msra.mxu0 0.0
    %8458 = vmatpush.msra.mxu0 0.0
    %8459 = vmatpush.msra.mxu0 0.0
    %8460 = vmatpush.msra.mxu0 0.0
    %8461 = vmatpush.msra.mxu0 0.0
    %8462 = vmatpush.msra.mxu0 0.0
    %8463 = vmatpush.msra.mxu0 0.0
    %8464 = vmatpush.msra.mxu0 %v8424
    %8465 = vmatmul.f32.gmra.mxu0 %v8415
    %v8466 = vpop.f32.mrf.mxu0
    %v8467 = vadd.f32 0.0, %v8466
    %8468 = vmatmul.f32.gmra.mxu0 %v8418
    %v8469 = vpop.f32.mrf.mxu0
    %v8470 = vadd.f32 0.0, %v8469
    %8471 = vdwg.mxu0
    %v8472 = vadd.f32 %v8407, %v8444
    %v8473 = vadd.f32 %v8408, %v8467
    %v8474 = vadd.f32 %v8409, %v8447
    %v8475 = vadd.f32 %v8410, %v8470
    %s8476 = scalar_lea.vmem %s13, 64
    %v8477 = vld [vmem:[%s8476] sm:$0xff]
    %v8478 = vld [vmem:[%s8476 + $0x8] sm:$0x7f]
    %v8480 = vsel %vm8229, %v8477, 0
    %v8483 = vsel %vm8229, %v8478, 0
    %v8486 = vsel %vm4609, %v8222, 0
    %v8489 = vsel %vm4609, %v8223, 0
    %8491 = vmatpush.msra.mxu0 0.0
    %8492 = vmatpush.msra.mxu0 0.0
    %8493 = vmatpush.msra.mxu0 0.0
    %8494 = vmatpush.msra.mxu0 0.0
    %8495 = vmatpush.msra.mxu0 0.0
    %8496 = vmatpush.msra.mxu0 0.0
    %8497 = vmatpush.msra.mxu0 0.0
    %8498 = vmatpush.msra.mxu0 0.0
    %8499 = vmatpush.msra.mxu0 0.0
    %8500 = vmatpush.msra.mxu0 0.0
    %8501 = vmatpush.msra.mxu0 0.0
    %8502 = vmatpush.msra.mxu0 0.0
    %8503 = vmatpush.msra.mxu0 0.0
    %8504 = vmatpush.msra.mxu0 0.0
    %8505 = vmatpush.msra.mxu0 0.0
    %8506 = vmatpush.msra.mxu0 %v8486
    %8507 = vmatmul.f32.gmra.mxu0 %v8480
    %v8508 = vpop.f32.mrf.mxu0
    %v8509 = vadd.f32 0.0, %v8508
    %8510 = vmatmul.f32.gmra.mxu0 %v8483
    %v8511 = vpop.f32.mrf.mxu0
    %v8512 = vadd.f32 0.0, %v8511
    %8513 = vdwg.mxu0
    %8514 = vmatpush.msra.mxu0 0.0
    %8515 = vmatpush.msra.mxu0 0.0
    %8516 = vmatpush.msra.mxu0 0.0
    %8517 = vmatpush.msra.mxu0 0.0
    %8518 = vmatpush.msra.mxu0 0.0
    %8519 = vmatpush.msra.mxu0 0.0
    %8520 = vmatpush.msra.mxu0 0.0
    %8521 = vmatpush.msra.mxu0 0.0
    %8522 = vmatpush.msra.mxu0 0.0
    %8523 = vmatpush.msra.mxu0 0.0
    %8524 = vmatpush.msra.mxu0 0.0
    %8525 = vmatpush.msra.mxu0 0.0
    %8526 = vmatpush.msra.mxu0 0.0
    %8527 = vmatpush.msra.mxu0 0.0
    %8528 = vmatpush.msra.mxu0 0.0
    %8529 = vmatpush.msra.mxu0 %v8489
    %8530 = vmatmul.f32.gmra.mxu0 %v8480
    %v8531 = vpop.f32.mrf.mxu0
    %v8532 = vadd.f32 0.0, %v8531
    %8533 = vmatmul.f32.gmra.mxu0 %v8483
    %v8534 = vpop.f32.mrf.mxu0
    %v8535 = vadd.f32 0.0, %v8534
    %8536 = vdwg.mxu0
    %v8537 = vadd.f32 %v8472, %v8509
    %v8538 = vadd.f32 %v8473, %v8532
    %v8539 = vadd.f32 %v8474, %v8512
    %v8540 = vadd.f32 %v8475, %v8535
    %v8541 = vld [vmem:[%s15] sm:$0xff]
    %v8542 = vld [vmem:[%s15 + $0x8] sm:$0xff]
    %v8543 = vld [vmem:[%s15 + $0x10] sm:$0xff]
    %v8544 = vld [vmem:[%s15 + $0x18] sm:$0x3f]
    %v8546 = vsel %vm1903, %v8541, 0
    %v8549 = vsel %vm1903, %v8542, 0
    %v8552 = vsel %vm1903, %v8543, 0
    %v8555 = vsel %vm1903, %v8544, 0
    %v8558 = vsel %vm1800, %v8539, 0
    %v8561 = vsel %vm1800, %v8540, 0
    %8563 = vmatpush.msra.mxu0 0.0
    %8564 = vmatpush.msra.mxu0 0.0
    %8565 = vmatpush.msra.mxu0 0.0
    %8566 = vmatpush.msra.mxu0 0.0
    %8567 = vmatpush.msra.mxu0 0.0
    %8568 = vmatpush.msra.mxu0 0.0
    %8569 = vmatpush.msra.mxu0 0.0
    %8570 = vmatpush.msra.mxu0 0.0
    %8571 = vmatpush.msra.mxu0 0.0
    %8572 = vmatpush.msra.mxu0 0.0
    %8573 = vmatpush.msra.mxu0 0.0
    %8574 = vmatpush.msra.mxu0 0.0
    %8575 = vmatpush.msra.mxu0 0.0
    %8576 = vmatpush.msra.mxu0 0.0
    %8577 = vmatpush.msra.mxu0 %v8558
    %8578 = vmatpush.msra.mxu0 %v8537
    %8579 = vmatmul.f32.gmra.mxu0 %v8546
    %v8580 = vpop.f32.mrf.mxu0
    %v8581 = vadd.f32 0.0, %v8580
    %8582 = vmatmul.f32.gmra.mxu0 %v8549
    %v8583 = vpop.f32.mrf.mxu0
    %v8584 = vadd.f32 0.0, %v8583
    %8585 = vmatmul.f32.gmra.mxu0 %v8552
    %v8586 = vpop.f32.mrf.mxu0
    %v8587 = vadd.f32 0.0, %v8586
    %8588 = vmatmul.f32.gmra.mxu0 %v8555
    %v8589 = vpop.f32.mrf.mxu0
    %v8590 = vadd.f32 0.0, %v8589
    %8591 = vdwg.mxu0
    %8592 = vmatpush.msra.mxu0 0.0
    %8593 = vmatpush.msra.mxu0 0.0
    %8594 = vmatpush.msra.mxu0 0.0
    %8595 = vmatpush.msra.mxu0 0.0
    %8596 = vmatpush.msra.mxu0 0.0
    %8597 = vmatpush.msra.mxu0 0.0
    %8598 = vmatpush.msra.mxu0 0.0
    %8599 = vmatpush.msra.mxu0 0.0
    %8600 = vmatpush.msra.mxu0 0.0
    %8601 = vmatpush.msra.mxu0 0.0
    %8602 = vmatpush.msra.mxu0 0.0
    %8603 = vmatpush.msra.mxu0 0.0
    %8604 = vmatpush.msra.mxu0 0.0
    %8605 = vmatpush.msra.mxu0 0.0
    %8606 = vmatpush.msra.mxu0 %v8561
    %8607 = vmatpush.msra.mxu0 %v8538
    %8608 = vmatmul.f32.gmra.mxu0 %v8546
    %v8609 = vpop.f32.mrf.mxu0
    %v8610 = vadd.f32 0.0, %v8609
    %8611 = vmatmul.f32.gmra.mxu0 %v8549
    %v8612 = vpop.f32.mrf.mxu0
    %v8613 = vadd.f32 0.0, %v8612
    %8614 = vmatmul.f32.gmra.mxu0 %v8552
    %v8615 = vpop.f32.mrf.mxu0
    %v8616 = vadd.f32 0.0, %v8615
    %8617 = vmatmul.f32.gmra.mxu0 %v8555
    %v8618 = vpop.f32.mrf.mxu0
    %v8619 = vadd.f32 0.0, %v8618
    %8620 = vdwg.mxu0
    %v8621 = vpack.c.bf16 %v8584, %v8581
    %v8622 = vpack.c.bf16 %v8613, %v8610
    %v8623 = vpack.c.bf16 %v8590, %v8587
    %v8624 = vpack.c.bf16 %v8619, %v8616
    %v8625 = vld [vmem:[#allocation48] sm:$0xf]
    %v8626 = vld [vmem:[#allocation48 + $0x4] sm:$0xf]
    %v8627 = vld [vmem:[#allocation48 + $0x8] sm:$0xf]
    %v8628 = vld [vmem:[#allocation48 + $0xc] sm:$0xf]
    %v8629 = vld [vmem:[#allocation48 + $0x10] sm:$0xf]
    %v8630 = vld [vmem:[#allocation48 + $0x14] sm:$0xf]
    %v8631 = vld [vmem:[#allocation48 + $0x18] sm:$0xf]
    %v8632 = vld [vmem:[#allocation48 + $0x1c] sm:$0xf]
    %v8633 = vld [vmem:[#allocation48 + $0x20] sm:$0xf]
    %v8634 = vld [vmem:[#allocation48 + $0x24] sm:$0xf]
    %v8635 = vld [vmem:[#allocation48 + $0x28] sm:$0xf]
    %v8636 = vld [vmem:[#allocation48 + $0x2c] sm:$0xf]
    %v8637 = vld [vmem:[#allocation48 + $0x30] sm:$0xf]
    %v8638 = vld [vmem:[#allocation48 + $0x34] sm:$0xf]
    %v8639 = vld [vmem:[#allocation48 + $0x38] sm:$0xf]
    %v8640 = vld [vmem:[#allocation48 + $0x3c] sm:$0xf]
    %v8641 = vld [vmem:[#allocation48 + $0x40] sm:$0xf]
    %v8642 = vld [vmem:[#allocation48 + $0x44] sm:$0xf]
    %v8643 = vld [vmem:[#allocation48 + $0x48] sm:$0xf]
    %v8644 = vld [vmem:[#allocation48 + $0x4c] sm:$0xf]
    %v8645 = vld [vmem:[#allocation48 + $0x50] sm:$0xf]
    %v8646 = vld [vmem:[#allocation48 + $0x54] sm:$0xf]
    %v8647 = vld [vmem:[#allocation48 + $0x58] sm:$0xf]
    %v8648 = vld [vmem:[#allocation48 + $0x5c] sm:$0xf]
    %v8649 = vld [vmem:[#allocation48 + $0x60] sm:$0xf]
    %v8650 = vld [vmem:[#allocation48 + $0x64] sm:$0xf]
    %v8651 = vld [vmem:[#allocation48 + $0x68] sm:$0xf]
    %v8652 = vld [vmem:[#allocation48 + $0x6c] sm:$0xf]
    %v8653 = vld [vmem:[#allocation48 + $0x70] sm:$0xf]
    %v8654 = vld [vmem:[#allocation48 + $0x74] sm:$0xf]
    %v8655 = vld [vmem:[#allocation48 + $0x78] sm:$0xf]
    %v8656 = vld [vmem:[#allocation48 + $0x7c] sm:$0xf]
    %s8657 = scalar_lea.vmem %s15, 32
    %v8658 = vld [vmem:[%s8657] sm:$0xff]
    %v8659 = vld [vmem:[%s8657 + $0x8] sm:$0xff]
    %v8660 = vld [vmem:[%s8657 + $0x10] sm:$0xff]
    %v8661 = vld [vmem:[%s8657 + $0x18] sm:$0x3f]
    %v8663 = vsel %vm1903, %v8658, 0
    %v8666 = vsel %vm1903, %v8659, 0
    %v8669 = vsel %vm1903, %v8660, 0
    %v8672 = vsel %vm1903, %v8661, 0
    %8674 = vmatpush.msra.mxu0 0.0
    %8675 = vmatpush.msra.mxu0 0.0
    %8676 = vmatpush.msra.mxu0 0.0
    %8677 = vmatpush.msra.mxu0 0.0
    %8678 = vmatpush.msra.mxu0 0.0
    %8679 = vmatpush.msra.mxu0 0.0
    %8680 = vmatpush.msra.mxu0 0.0
    %8681 = vmatpush.msra.mxu0 0.0
    %8682 = vmatpush.msra.mxu0 0.0
    %8683 = vmatpush.msra.mxu0 0.0
    %8684 = vmatpush.msra.mxu0 0.0
    %8685 = vmatpush.msra.mxu0 0.0
    %8686 = vmatpush.msra.mxu0 0.0
    %8687 = vmatpush.msra.mxu0 0.0
    %8688 = vmatpush.msra.mxu0 %v8558
    %8689 = vmatpush.msra.mxu0 %v8537
    %8690 = vmatmul.f32.gmra.mxu0 %v8663
    %v8691 = vpop.f32.mrf.mxu0
    %v8692 = vadd.f32 0.0, %v8691
    %8693 = vmatmul.f32.gmra.mxu0 %v8666
    %v8694 = vpop.f32.mrf.mxu0
    %v8695 = vadd.f32 0.0, %v8694
    %8696 = vmatmul.f32.gmra.mxu0 %v8669
    %v8697 = vpop.f32.mrf.mxu0
    %v8698 = vadd.f32 0.0, %v8697
    %8699 = vmatmul.f32.gmra.mxu0 %v8672
    %v8700 = vpop.f32.mrf.mxu0
    %v8701 = vadd.f32 0.0, %v8700
    %8702 = vdwg.mxu0
    %8703 = vmatpush.msra.mxu0 0.0
    %8704 = vmatpush.msra.mxu0 0.0
    %8705 = vmatpush.msra.mxu0 0.0
    %8706 = vmatpush.msra.mxu0 0.0
    %8707 = vmatpush.msra.mxu0 0.0
    %8708 = vmatpush.msra.mxu0 0.0
    %8709 = vmatpush.msra.mxu0 0.0
    %8710 = vmatpush.msra.mxu0 0.0
    %8711 = vmatpush.msra.mxu0 0.0
    %8712 = vmatpush.msra.mxu0 0.0
    %8713 = vmatpush.msra.mxu0 0.0
    %8714 = vmatpush.msra.mxu0 0.0
    %8715 = vmatpush.msra.mxu0 0.0
    %8716 = vmatpush.msra.mxu0 0.0
    %8717 = vmatpush.msra.mxu0 %v8561
    %8718 = vmatpush.msra.mxu0 %v8538
    %8719 = vmatmul.f32.gmra.mxu0 %v8663
    %v8720 = vpop.f32.mrf.mxu0
    %v8721 = vadd.f32 0.0, %v8720
    %8722 = vmatmul.f32.gmra.mxu0 %v8666
    %v8723 = vpop.f32.mrf.mxu0
    %v8724 = vadd.f32 0.0, %v8723
    %8725 = vmatmul.f32.gmra.mxu0 %v8669
    %v8726 = vpop.f32.mrf.mxu0
    %v8727 = vadd.f32 0.0, %v8726
    %8728 = vmatmul.f32.gmra.mxu0 %v8672
    %v8729 = vpop.f32.mrf.mxu0
    %v8730 = vadd.f32 0.0, %v8729
    %8731 = vdwg.mxu0
    %v8732 = vpack.c.bf16 %v8695, %v8692
    %v8733 = vpack.c.bf16 %v8724, %v8721
    %v8734 = vpack.c.bf16 %v8701, %v8698
    %v8735 = vpack.c.bf16 %v8730, %v8727
    %v8736 = vld [vmem:[#allocation48 + $0x80] sm:$0xf]
    %v8737 = vld [vmem:[#allocation48 + $0x84] sm:$0xf]
    %v8738 = vld [vmem:[#allocation48 + $0x88] sm:$0xf]
    %v8739 = vld [vmem:[#allocation48 + $0x8c] sm:$0xf]
    %v8740 = vld [vmem:[#allocation48 + $0x90] sm:$0xf]
    %v8741 = vld [vmem:[#allocation48 + $0x94] sm:$0xf]
    %v8742 = vld [vmem:[#allocation48 + $0x98] sm:$0xf]
    %v8743 = vld [vmem:[#allocation48 + $0x9c] sm:$0xf]
    %v8744 = vld [vmem:[#allocation48 + $0xa0] sm:$0xf]
    %v8745 = vld [vmem:[#allocation48 + $0xa4] sm:$0xf]
    %v8746 = vld [vmem:[#allocation48 + $0xa8] sm:$0xf]
    %v8747 = vld [vmem:[#allocation48 + $0xac] sm:$0xf]
    %v8748 = vld [vmem:[#allocation48 + $0xb0] sm:$0xf]
    %v8749 = vld [vmem:[#allocation48 + $0xb4] sm:$0xf]
    %v8750 = vld [vmem:[#allocation48 + $0xb8] sm:$0xf]
    %v8751 = vld [vmem:[#allocation48 + $0xbc] sm:$0xf]
    %v8752 = vld [vmem:[#allocation48 + $0xc0] sm:$0xf]
    %v8753 = vld [vmem:[#allocation48 + $0xc4] sm:$0xf]
    %v8754 = vld [vmem:[#allocation48 + $0xc8] sm:$0xf]
    %v8755 = vld [vmem:[#allocation48 + $0xcc] sm:$0xf]
    %v8756 = vld [vmem:[#allocation48 + $0xd0] sm:$0xf]
    %v8757 = vld [vmem:[#allocation48 + $0xd4] sm:$0xf]
    %v8758 = vld [vmem:[#allocation48 + $0xd8] sm:$0xf]
    %v8759 = vld [vmem:[#allocation48 + $0xdc] sm:$0xf]
    %v8760 = vld [vmem:[#allocation48 + $0xe0] sm:$0xf]
    %v8761 = vld [vmem:[#allocation48 + $0xe4] sm:$0xf]
    %v8762 = vld [vmem:[#allocation48 + $0xe8] sm:$0xf]
    %v8763 = vld [vmem:[#allocation48 + $0xec] sm:$0xf]
    %v8764 = vld [vmem:[#allocation48 + $0xf0] sm:$0xf]
    %v8765 = vld [vmem:[#allocation48 + $0xf4] sm:$0xf]
    %v8766 = vld [vmem:[#allocation48 + $0xf8] sm:$0xf]
    %v8767 = vld [vmem:[#allocation48 + $0xfc] sm:$0xf]
    %v8800 = vunpack.c.l.b16 %v8736
    %v8801 = vunpack.c.l.b16 %v8737
    %v8802 = vunpack.c.l.b16 %v8738
    %v8803 = vunpack.c.l.b16 %v8739
    %v8804 = vunpack.c.l.b16 %v8740
    %v8805 = vunpack.c.l.b16 %v8741
    %v8806 = vunpack.c.l.b16 %v8742
    %v8807 = vunpack.c.l.b16 %v8743
    %v8808 = vunpack.c.l.b16 %v8744
    %v8809 = vunpack.c.l.b16 %v8745
    %v8810 = vunpack.c.l.b16 %v8746
    %v8811 = vunpack.c.l.b16 %v8747
    %v8812 = vunpack.c.l.b16 %v8748
    %v8813 = vunpack.c.l.b16 %v8749
    %v8814 = vunpack.c.l.b16 %v8750
    %v8815 = vunpack.c.l.b16 %v8751
    %v8816 = vunpack.c.l.b16 %v8752
    %v8817 = vunpack.c.l.b16 %v8753
    %v8818 = vunpack.c.l.b16 %v8754
    %v8819 = vunpack.c.l.b16 %v8755
    %v8820 = vunpack.c.l.b16 %v8756
    %v8821 = vunpack.c.l.b16 %v8757
    %v8822 = vunpack.c.l.b16 %v8758
    %v8823 = vunpack.c.l.b16 %v8759
    %v8824 = vunpack.c.l.b16 %v8760
    %v8825 = vunpack.c.l.b16 %v8761
    %v8826 = vunpack.c.l.b16 %v8762
    %v8827 = vunpack.c.l.b16 %v8763
    %v8828 = vunpack.c.l.b16 %v8764
    %v8829 = vunpack.c.l.b16 %v8765
    %v8830 = vunpack.c.l.b16 %v8766
    %v8831 = vunpack.c.l.b16 %v8767
    %v8832 = vpack.c.b16 %v8801, %v8800
    %v8833 = vpack.c.b16 %v8803, %v8802
    %v8834 = vpack.c.b16 %v8805, %v8804
    %v8835 = vpack.c.b16 %v8807, %v8806
    %v8836 = vpack.c.b16 %v8809, %v8808
    %v8837 = vpack.c.b16 %v8811, %v8810
    %v8838 = vpack.c.b16 %v8813, %v8812
    %v8839 = vpack.c.b16 %v8815, %v8814
    %v8840 = vpack.c.b16 %v8817, %v8816
    %v8841 = vpack.c.b16 %v8819, %v8818
    %v8842 = vpack.c.b16 %v8821, %v8820
    %v8843 = vpack.c.b16 %v8823, %v8822
    %v8844 = vpack.c.b16 %v8825, %v8824
    %v8845 = vpack.c.b16 %v8827, %v8826
    %v8846 = vpack.c.b16 %v8829, %v8828
    %v8847 = vpack.c.b16 %v8831, %v8830
    %8864 = vmatpush.bf16.msra.mxu0 %v8839
    %8865 = vmatpush.bf16.msra.mxu0 %v8838
    %8866 = vmatpush.bf16.msra.mxu0 %v8837
    %8867 = vmatpush.bf16.msra.mxu0 %v8836
    %8868 = vmatpush.bf16.msra.mxu0 %v8835
    %8869 = vmatpush.bf16.msra.mxu0 %v8834
    %8870 = vmatpush.bf16.msra.mxu0 %v8833
    %8871 = vmatpush.bf16.msra.mxu0 %v8832
    %8872 = vmatmul.bf16.gmra.mxu0 %v8732
    %v8873 = vpop.f32.mrf.mxu0
    %v8874 = vadd.f32 0.0, %v8873
    %v8875 = vpop.f32.mrf.mxu0
    %v8876 = vadd.f32 0.0, %v8875
    %8877 = vmatmul.bf16.gmra.mxu0 %v8734
    %v8878 = vpop.f32.mrf.mxu0
    %v8879 = vadd.f32 0.0, %v8878
    %v8880 = vpop.f32.mrf.mxu0
    %v8881 = vadd.f32 0.0, %v8880
    %8882 = vdwg.mxu0
    %8883 = vmatpush.bf16.msra.mxu0 %v8847
    %8884 = vmatpush.bf16.msra.mxu0 %v8846
    %8885 = vmatpush.bf16.msra.mxu0 %v8845
    %8886 = vmatpush.bf16.msra.mxu0 %v8844
    %8887 = vmatpush.bf16.msra.mxu0 %v8843
    %8888 = vmatpush.bf16.msra.mxu0 %v8842
    %8889 = vmatpush.bf16.msra.mxu0 %v8841
    %8890 = vmatpush.bf16.msra.mxu0 %v8840
    %8891 = vmatmul.bf16.gmra.mxu0 %v8733
    %v8892 = vpop.f32.mrf.mxu0
    %v8893 = vadd.f32 %v8874, %v8892
    %v8894 = vpop.f32.mrf.mxu0
    %v8895 = vadd.f32 %v8876, %v8894
    %8896 = vmatmul.bf16.gmra.mxu0 %v8735
    %v8897 = vpop.f32.mrf.mxu0
    %v8898 = vadd.f32 %v8879, %v8897
    %v8899 = vpop.f32.mrf.mxu0
    %v8900 = vadd.f32 %v8881, %v8899
    %8901 = vdwg.mxu0
    %v8934 = vunpack.c.l.b16 %v8625
    %v8935 = vunpack.c.l.b16 %v8626
    %v8936 = vunpack.c.l.b16 %v8627
    %v8937 = vunpack.c.l.b16 %v8628
    %v8938 = vunpack.c.l.b16 %v8629
    %v8939 = vunpack.c.l.b16 %v8630
    %v8940 = vunpack.c.l.b16 %v8631
    %v8941 = vunpack.c.l.b16 %v8632
    %v8942 = vunpack.c.l.b16 %v8633
    %v8943 = vunpack.c.l.b16 %v8634
    %v8944 = vunpack.c.l.b16 %v8635
    %v8945 = vunpack.c.l.b16 %v8636
    %v8946 = vunpack.c.l.b16 %v8637
    %v8947 = vunpack.c.l.b16 %v8638
    %v8948 = vunpack.c.l.b16 %v8639
    %v8949 = vunpack.c.l.b16 %v8640
    %v8950 = vunpack.c.l.b16 %v8641
    %v8951 = vunpack.c.l.b16 %v8642
    %v8952 = vunpack.c.l.b16 %v8643
    %v8953 = vunpack.c.l.b16 %v8644
    %v8954 = vunpack.c.l.b16 %v8645
    %v8955 = vunpack.c.l.b16 %v8646
    %v8956 = vunpack.c.l.b16 %v8647
    %v8957 = vunpack.c.l.b16 %v8648
    %v8958 = vunpack.c.l.b16 %v8649
    %v8959 = vunpack.c.l.b16 %v8650
    %v8960 = vunpack.c.l.b16 %v8651
    %v8961 = vunpack.c.l.b16 %v8652
    %v8962 = vunpack.c.l.b16 %v8653
    %v8963 = vunpack.c.l.b16 %v8654
    %v8964 = vunpack.c.l.b16 %v8655
    %v8965 = vunpack.c.l.b16 %v8656
    %v8966 = vpack.c.b16 %v8935, %v8934
    %v8967 = vpack.c.b16 %v8937, %v8936
    %v8968 = vpack.c.b16 %v8939, %v8938
    %v8969 = vpack.c.b16 %v8941, %v8940
    %v8970 = vpack.c.b16 %v8943, %v8942
    %v8971 = vpack.c.b16 %v8945, %v8944
    %v8972 = vpack.c.b16 %v8947, %v8946
    %v8973 = vpack.c.b16 %v8949, %v8948
    %v8974 = vpack.c.b16 %v8951, %v8950
    %v8975 = vpack.c.b16 %v8953, %v8952
    %v8976 = vpack.c.b16 %v8955, %v8954
    %v8977 = vpack.c.b16 %v8957, %v8956
    %v8978 = vpack.c.b16 %v8959, %v8958
    %v8979 = vpack.c.b16 %v8961, %v8960
    %v8980 = vpack.c.b16 %v8963, %v8962
    %v8981 = vpack.c.b16 %v8965, %v8964
    %8998 = vmatpush.bf16.msra.mxu0 %v8973
    %8999 = vmatpush.bf16.msra.mxu0 %v8972
    %9000 = vmatpush.bf16.msra.mxu0 %v8971
    %9001 = vmatpush.bf16.msra.mxu0 %v8970
    %9002 = vmatpush.bf16.msra.mxu0 %v8969
    %9003 = vmatpush.bf16.msra.mxu0 %v8968
    %9004 = vmatpush.bf16.msra.mxu0 %v8967
    %9005 = vmatpush.bf16.msra.mxu0 %v8966
    %9006 = vmatmul.bf16.gmra.mxu0 %v8621
    %v9007 = vpop.f32.mrf.mxu0
    %v9008 = vadd.f32 %v8893, %v9007
    %v9009 = vpop.f32.mrf.mxu0
    %v9010 = vadd.f32 %v8895, %v9009
    %9011 = vmatmul.bf16.gmra.mxu0 %v8623
    %v9012 = vpop.f32.mrf.mxu0
    %v9013 = vadd.f32 %v8898, %v9012
    %v9014 = vpop.f32.mrf.mxu0
    %v9015 = vadd.f32 %v8900, %v9014
    %9016 = vdwg.mxu0
    %9017 = vmatpush.bf16.msra.mxu0 %v8981
    %9018 = vmatpush.bf16.msra.mxu0 %v8980
    %9019 = vmatpush.bf16.msra.mxu0 %v8979
    %9020 = vmatpush.bf16.msra.mxu0 %v8978
    %9021 = vmatpush.bf16.msra.mxu0 %v8977
    %9022 = vmatpush.bf16.msra.mxu0 %v8976
    %9023 = vmatpush.bf16.msra.mxu0 %v8975
    %9024 = vmatpush.bf16.msra.mxu0 %v8974
    %9025 = vmatmul.bf16.gmra.mxu0 %v8622
    %v9026 = vpop.f32.mrf.mxu0
    %v9027 = vadd.f32 %v9008, %v9026
    %v9028 = vpop.f32.mrf.mxu0
    %v9029 = vadd.f32 %v9010, %v9028
    %9030 = vmatmul.bf16.gmra.mxu0 %v8624
    %v9031 = vpop.f32.mrf.mxu0
    %v9032 = vadd.f32 %v9013, %v9031
    %v9033 = vpop.f32.mrf.mxu0
    %v9034 = vadd.f32 %v9015, %v9033
    %9035 = vdwg.mxu0
    %s9036 = scalar_lea.vmem %s15, 64
    %v9037 = vld [vmem:[%s9036] sm:$0xff]
    %v9038 = vld [vmem:[%s9036 + $0x8] sm:$0xff]
    %v9039 = vld [vmem:[%s9036 + $0x10] sm:$0xff]
    %v9040 = vld [vmem:[%s9036 + $0x18] sm:$0x3f]
    %v9042 = vsel %vm1903, %v9037, 0
    %v9045 = vsel %vm1903, %v9038, 0
    %v9048 = vsel %vm1903, %v9039, 0
    %v9051 = vsel %vm1903, %v9040, 0
    %9053 = vmatpush.msra.mxu0 0.0
    %9054 = vmatpush.msra.mxu0 0.0
    %9055 = vmatpush.msra.mxu0 0.0
    %9056 = vmatpush.msra.mxu0 0.0
    %9057 = vmatpush.msra.mxu0 0.0
    %9058 = vmatpush.msra.mxu0 0.0
    %9059 = vmatpush.msra.mxu0 0.0
    %9060 = vmatpush.msra.mxu0 0.0
    %9061 = vmatpush.msra.mxu0 0.0
    %9062 = vmatpush.msra.mxu0 0.0
    %9063 = vmatpush.msra.mxu0 0.0
    %9064 = vmatpush.msra.mxu0 0.0
    %9065 = vmatpush.msra.mxu0 0.0
    %9066 = vmatpush.msra.mxu0 0.0
    %9067 = vmatpush.msra.mxu0 %v8558
    %9068 = vmatpush.msra.mxu0 %v8537
    %9069 = vmatmul.f32.gmra.mxu0 %v9042
    %v9070 = vpop.f32.mrf.mxu0
    %v9071 = vadd.f32 0.0, %v9070
    %9072 = vmatmul.f32.gmra.mxu0 %v9045
    %v9073 = vpop.f32.mrf.mxu0
    %v9074 = vadd.f32 0.0, %v9073
    %9075 = vmatmul.f32.gmra.mxu0 %v9048
    %v9076 = vpop.f32.mrf.mxu0
    %v9077 = vadd.f32 0.0, %v9076
    %9078 = vmatmul.f32.gmra.mxu0 %v9051
    %v9079 = vpop.f32.mrf.mxu0
    %v9080 = vadd.f32 0.0, %v9079
    %9081 = vdwg.mxu0
    %9082 = vmatpush.msra.mxu0 0.0
    %9083 = vmatpush.msra.mxu0 0.0
    %9084 = vmatpush.msra.mxu0 0.0
    %9085 = vmatpush.msra.mxu0 0.0
    %9086 = vmatpush.msra.mxu0 0.0
    %9087 = vmatpush.msra.mxu0 0.0
    %9088 = vmatpush.msra.mxu0 0.0
    %9089 = vmatpush.msra.mxu0 0.0
    %9090 = vmatpush.msra.mxu0 0.0
    %9091 = vmatpush.msra.mxu0 0.0
    %9092 = vmatpush.msra.mxu0 0.0
    %9093 = vmatpush.msra.mxu0 0.0
    %9094 = vmatpush.msra.mxu0 0.0
    %9095 = vmatpush.msra.mxu0 0.0
    %9096 = vmatpush.msra.mxu0 %v8561
    %9097 = vmatpush.msra.mxu0 %v8538
    %9098 = vmatmul.f32.gmra.mxu0 %v9042
    %v9099 = vpop.f32.mrf.mxu0
    %v9100 = vadd.f32 0.0, %v9099
    %9101 = vmatmul.f32.gmra.mxu0 %v9045
    %v9102 = vpop.f32.mrf.mxu0
    %v9103 = vadd.f32 0.0, %v9102
    %9104 = vmatmul.f32.gmra.mxu0 %v9048
    %v9105 = vpop.f32.mrf.mxu0
    %v9106 = vadd.f32 0.0, %v9105
    %9107 = vmatmul.f32.gmra.mxu0 %v9051
    %v9108 = vpop.f32.mrf.mxu0
    %v9109 = vadd.f32 0.0, %v9108
    %9110 = vdwg.mxu0
    %v9111 = vpack.c.bf16 %v9074, %v9071
    %v9112 = vpack.c.bf16 %v9103, %v9100
    %v9113 = vpack.c.bf16 %v9080, %v9077
    %v9114 = vpack.c.bf16 %v9109, %v9106
    %v9115 = vld [vmem:[#allocation48 + $0x100] sm:$0xf]
    %v9116 = vld [vmem:[#allocation48 + $0x104] sm:$0xf]
    %v9117 = vld [vmem:[#allocation48 + $0x108] sm:$0xf]
    %v9118 = vld [vmem:[#allocation48 + $0x10c] sm:$0xf]
    %v9119 = vld [vmem:[#allocation48 + $0x110] sm:$0xf]
    %v9120 = vld [vmem:[#allocation48 + $0x114] sm:$0xf]
    %v9121 = vld [vmem:[#allocation48 + $0x118] sm:$0xf]
    %v9122 = vld [vmem:[#allocation48 + $0x11c] sm:$0xf]
    %v9123 = vld [vmem:[#allocation48 + $0x120] sm:$0xf]
    %v9124 = vld [vmem:[#allocation48 + $0x124] sm:$0xf]
    %v9125 = vld [vmem:[#allocation48 + $0x128] sm:$0xf]
    %v9126 = vld [vmem:[#allocation48 + $0x12c] sm:$0xf]
    %v9127 = vld [vmem:[#allocation48 + $0x130] sm:$0xf]
    %v9128 = vld [vmem:[#allocation48 + $0x134] sm:$0xf]
    %v9129 = vld [vmem:[#allocation48 + $0x138] sm:$0xf]
    %v9130 = vld [vmem:[#allocation48 + $0x13c] sm:$0xf]
    %v9131 = vld [vmem:[#allocation48 + $0x140] sm:$0xf]
    %v9132 = vld [vmem:[#allocation48 + $0x144] sm:$0xf]
    %v9133 = vld [vmem:[#allocation48 + $0x148] sm:$0xf]
    %v9134 = vld [vmem:[#allocation48 + $0x14c] sm:$0xf]
    %v9135 = vld [vmem:[#allocation48 + $0x150] sm:$0xf]
    %v9136 = vld [vmem:[#allocation48 + $0x154] sm:$0xf]
    %v9137 = vld [vmem:[#allocation48 + $0x158] sm:$0xf]
    %v9138 = vld [vmem:[#allocation48 + $0x15c] sm:$0xf]
    %v9139 = vld [vmem:[#allocation48 + $0x160] sm:$0xf]
    %v9140 = vld [vmem:[#allocation48 + $0x164] sm:$0xf]
    %v9141 = vld [vmem:[#allocation48 + $0x168] sm:$0xf]
    %v9142 = vld [vmem:[#allocation48 + $0x16c] sm:$0xf]
    %v9143 = vld [vmem:[#allocation48 + $0x170] sm:$0xf]
    %v9144 = vld [vmem:[#allocation48 + $0x174] sm:$0xf]
    %v9145 = vld [vmem:[#allocation48 + $0x178] sm:$0xf]
    %v9146 = vld [vmem:[#allocation48 + $0x17c] sm:$0xf]
    %v9179 = vunpack.c.l.b16 %v9115
    %v9180 = vunpack.c.l.b16 %v9116
    %v9181 = vunpack.c.l.b16 %v9117
    %v9182 = vunpack.c.l.b16 %v9118
    %v9183 = vunpack.c.l.b16 %v9119
    %v9184 = vunpack.c.l.b16 %v9120
    %v9185 = vunpack.c.l.b16 %v9121
    %v9186 = vunpack.c.l.b16 %v9122
    %v9187 = vunpack.c.l.b16 %v9123
    %v9188 = vunpack.c.l.b16 %v9124
    %v9189 = vunpack.c.l.b16 %v9125
    %v9190 = vunpack.c.l.b16 %v9126
    %v9191 = vunpack.c.l.b16 %v9127
    %v9192 = vunpack.c.l.b16 %v9128
    %v9193 = vunpack.c.l.b16 %v9129
    %v9194 = vunpack.c.l.b16 %v9130
    %v9195 = vunpack.c.l.b16 %v9131
    %v9196 = vunpack.c.l.b16 %v9132
    %v9197 = vunpack.c.l.b16 %v9133
    %v9198 = vunpack.c.l.b16 %v9134
    %v9199 = vunpack.c.l.b16 %v9135
    %v9200 = vunpack.c.l.b16 %v9136
    %v9201 = vunpack.c.l.b16 %v9137
    %v9202 = vunpack.c.l.b16 %v9138
    %v9203 = vunpack.c.l.b16 %v9139
    %v9204 = vunpack.c.l.b16 %v9140
    %v9205 = vunpack.c.l.b16 %v9141
    %v9206 = vunpack.c.l.b16 %v9142
    %v9207 = vunpack.c.l.b16 %v9143
    %v9208 = vunpack.c.l.b16 %v9144
    %v9209 = vunpack.c.l.b16 %v9145
    %v9210 = vunpack.c.l.b16 %v9146
    %v9211 = vpack.c.b16 %v9180, %v9179
    %v9212 = vpack.c.b16 %v9182, %v9181
    %v9213 = vpack.c.b16 %v9184, %v9183
    %v9214 = vpack.c.b16 %v9186, %v9185
    %v9215 = vpack.c.b16 %v9188, %v9187
    %v9216 = vpack.c.b16 %v9190, %v9189
    %v9217 = vpack.c.b16 %v9192, %v9191
    %v9218 = vpack.c.b16 %v9194, %v9193
    %v9219 = vpack.c.b16 %v9196, %v9195
    %v9220 = vpack.c.b16 %v9198, %v9197
    %v9221 = vpack.c.b16 %v9200, %v9199
    %v9222 = vpack.c.b16 %v9202, %v9201
    %v9223 = vpack.c.b16 %v9204, %v9203
    %v9224 = vpack.c.b16 %v9206, %v9205
    %v9225 = vpack.c.b16 %v9208, %v9207
    %v9226 = vpack.c.b16 %v9210, %v9209
    %9243 = vmatpush.bf16.msra.mxu0 %v9218
    %9244 = vmatpush.bf16.msra.mxu0 %v9217
    %9245 = vmatpush.bf16.msra.mxu0 %v9216
    %9246 = vmatpush.bf16.msra.mxu0 %v9215
    %9247 = vmatpush.bf16.msra.mxu0 %v9214
    %9248 = vmatpush.bf16.msra.mxu0 %v9213
    %9249 = vmatpush.bf16.msra.mxu0 %v9212
    %9250 = vmatpush.bf16.msra.mxu0 %v9211
    %9251 = vmatmul.bf16.gmra.mxu0 %v9111
    %v9252 = vpop.f32.mrf.mxu0
    %v9253 = vadd.f32 0.0, %v9252
    %v9254 = vpop.f32.mrf.mxu0
    %v9255 = vadd.f32 0.0, %v9254
    %9256 = vmatmul.bf16.gmra.mxu0 %v9113
    %v9257 = vpop.f32.mrf.mxu0
    %v9258 = vadd.f32 0.0, %v9257
    %v9259 = vpop.f32.mrf.mxu0
    %v9260 = vadd.f32 0.0, %v9259
    %9261 = vdwg.mxu0
    %9262 = vmatpush.bf16.msra.mxu0 %v9226
    %9263 = vmatpush.bf16.msra.mxu0 %v9225
    %9264 = vmatpush.bf16.msra.mxu0 %v9224
    %9265 = vmatpush.bf16.msra.mxu0 %v9223
    %9266 = vmatpush.bf16.msra.mxu0 %v9222
    %9267 = vmatpush.bf16.msra.mxu0 %v9221
    %9268 = vmatpush.bf16.msra.mxu0 %v9220
    %9269 = vmatpush.bf16.msra.mxu0 %v9219
    %9270 = vmatmul.bf16.gmra.mxu0 %v9112
    %v9271 = vpop.f32.mrf.mxu0
    %v9272 = vadd.f32 %v9253, %v9271
    %v9273 = vpop.f32.mrf.mxu0
    %v9274 = vadd.f32 %v9255, %v9273
    %9275 = vmatmul.bf16.gmra.mxu0 %v9114
    %v9276 = vpop.f32.mrf.mxu0
    %v9277 = vadd.f32 %v9258, %v9276
    %v9278 = vpop.f32.mrf.mxu0
    %v9279 = vadd.f32 %v9260, %v9278
    %9280 = vdwg.mxu0
    %v9281 = vadd.f32 %v9027, %v9272
    %v9282 = vadd.f32 %v9029, %v9274
    %v9283 = vadd.f32 %v9032, %v9277
    %v9284 = vadd.f32 %v9034, %v9279
    %v9285 = vld [vmem:[#allocation50] sm:$0x1]
    %v9287 = vperm.slane %v9285, 0
    %v9289 = vadd.f32 %v9281, %v9287
    %v9290 = vadd.f32 %v9282, %v9287
    %v9291 = vadd.f32 %v9283, %v9287
    %v9292 = vadd.f32 %v9284, %v9287
    %v9293 = vadd.f32 %v9289, %v9290
    %v9294 = vadd.f32 %v9293, %v9291
    %v9295 = vsel %vm1241, %v9292, 0.0
    %v9296 = vadd.f32 %v9294, %v9295
    %v9297 = vrot.slane %v9296, 4
    %v9298 = vadd.f32 %v9296, %v9297
    %v9299 = vrot.slane %v9298, 2
    %v9300 = vadd.f32 %v9298, %v9299
    %v9301 = vrot.slane %v9300, 1
    %v9302 = vadd.f32 %v9300, %v9301
    %v9303 = vmul.f32 %v9302, %v1256
    %v9304 = vsub.f32 %v9289, %v9303
    %v9305 = vsub.f32 %v9290, %v9303
    %v9306 = vsub.f32 %v9291, %v9303
    %v9307 = vsub.f32 %v9292, %v9303
    %v9308 = vmul.f32 %v9304, %v9304
    %v9309 = vmul.f32 %v9305, %v9305
    %v9310 = vmul.f32 %v9306, %v9306
    %v9311 = vmul.f32 %v9307, %v9307
    %v9312 = vadd.f32 %v9308, %v9309
    %v9313 = vadd.f32 %v9312, %v9310
    %v9314 = vsel %vm1241, %v9311, 0.0
    %v9315 = vadd.f32 %v9313, %v9314
    %v9316 = vrot.slane %v9315, 4
    %v9317 = vadd.f32 %v9315, %v9316
    %v9318 = vrot.slane %v9317, 2
    %v9319 = vadd.f32 %v9317, %v9318
    %v9320 = vrot.slane %v9319, 1
    %v9321 = vadd.f32 %v9319, %v9320
    %v9322 = vmul.f32 %v9321, %v1256
    %v9323 = vadd.f32 %v9322, 1e-05
    %v9324 = vrsqrt.pop %v9323
    %v9325 = vmul.f32 %v9324, %v9323
    %v9326 = vmul.f32 %v9325, %v9324
    %v9327 = vmul.f32 0.5, %v9326
    %v9328 = vsub.f32 1.5, %v9327
    %v9329 = vmul.f32 %v9324, %v9328
    %vm9330 = vweird.f32 %v9323
    %vm9331 = vweird.f32 %v9324
    %vm9332 = vmor %vm9330, %vm9331
    %v9333 = vsel %vm9332, %v9324, %v9329
    %v9334 = vmul.f32 %v9304, %v9333
    %v9335 = vmul.f32 %v9305, %v9333
    %v9336 = vmul.f32 %v9306, %v9333
    %v9337 = vmul.f32 %v9307, %v9333
    %v9338 = vld [vmem:[#allocation51] sm:$0x1]
    %v9340 = vperm.slane %v9338, 0
    %v9342 = vmul.f32 %v9334, %v9340
    %v9343 = vmul.f32 %v9335, %v9340
    %v9344 = vmul.f32 %v9336, %v9340
    %v9345 = vmul.f32 %v9337, %v9340
    %v9346 = vld [vmem:[#allocation53] sm:$0x1]
    %v9348 = vperm.slane %v9346, 0
    %v9350 = vadd.f32 %v9342, %v9348
    %v9351 = vadd.f32 %v9343, %v9348
    %v9352 = vadd.f32 %v9344, %v9348
    %v9353 = vadd.f32 %v9345, %v9348
    %v9354 = vtanh.pop %v9350
    %v9355 = vtanh.pop %v9351
    %v9356 = vtanh.pop %v9352
    %v9357 = vtanh.pop %v9353
    %v9358 = vld [vmem:[%s17] sm:$0xff]
    %v9359 = vld [vmem:[%s17 + $0x8] sm:$0xff]
    %v9360 = vld [vmem:[%s17 + $0x10] sm:$0xff]
    %v9361 = vld [vmem:[%s17 + $0x18] sm:$0xff]
    %v9362 = vld [vmem:[%s17 + $0x20] sm:$0xff]
    %v9363 = vld [vmem:[%s17 + $0x28] sm:$0xff]
    %v9364 = vld [vmem:[%s17 + $0x30] sm:$0xff]
    %v9365 = vld [vmem:[%s17 + $0x38] sm:$0xf]
    %v9367 = vsel %vm1314, %v9358, 0
    %v9370 = vsel %vm1314, %v9359, 0
    %v9373 = vsel %vm1314, %v9360, 0
    %v9376 = vsel %vm1314, %v9361, 0
    %v9379 = vsel %vm1314, %v9362, 0
    %v9382 = vsel %vm1314, %v9363, 0
    %v9385 = vsel %vm1314, %v9364, 0
    %v9388 = vsel %vm1314, %v9365, 0
    %v9391 = vsel %vm1241, %v9357, 0
    %9393 = vmatpush.msra.mxu0 0.0
    %9394 = vmatpush.msra.mxu0 0.0
    %9395 = vmatpush.msra.mxu0 0.0
    %9396 = vmatpush.msra.mxu0 0.0
    %9397 = vmatpush.msra.mxu0 0.0
    %9398 = vmatpush.msra.mxu0 0.0
    %9399 = vmatpush.msra.mxu0 0.0
    %9400 = vmatpush.msra.mxu0 0.0
    %9401 = vmatpush.msra.mxu0 0.0
    %9402 = vmatpush.msra.mxu0 0.0
    %9403 = vmatpush.msra.mxu0 0.0
    %9404 = vmatpush.msra.mxu0 0.0
    %9405 = vmatpush.msra.mxu0 %v9391
    %9406 = vmatpush.msra.mxu0 %v9356
    %9407 = vmatpush.msra.mxu0 %v9355
    %9408 = vmatpush.msra.mxu0 %v9354
    %9409 = vmatmul.f32.gmra.mxu0 %v9367
    %v9410 = vpop.f32.mrf.mxu0
    %v9411 = vadd.f32 0.0, %v9410
    %9412 = vmatmul.f32.gmra.mxu0 %v9370
    %v9413 = vpop.f32.mrf.mxu0
    %v9414 = vadd.f32 0.0, %v9413
    %9415 = vmatmul.f32.gmra.mxu0 %v9373
    %v9416 = vpop.f32.mrf.mxu0
    %v9417 = vadd.f32 0.0, %v9416
    %9418 = vmatmul.f32.gmra.mxu0 %v9376
    %v9419 = vpop.f32.mrf.mxu0
    %v9420 = vadd.f32 0.0, %v9419
    %9421 = vmatmul.f32.gmra.mxu0 %v9379
    %v9422 = vpop.f32.mrf.mxu0
    %v9423 = vadd.f32 0.0, %v9422
    %9424 = vmatmul.f32.gmra.mxu0 %v9382
    %v9425 = vpop.f32.mrf.mxu0
    %v9426 = vadd.f32 0.0, %v9425
    %9427 = vmatmul.f32.gmra.mxu0 %v9385
    %v9428 = vpop.f32.mrf.mxu0
    %v9429 = vadd.f32 0.0, %v9428
    %9430 = vmatmul.f32.gmra.mxu0 %v9388
    %v9431 = vpop.f32.mrf.mxu0
    %v9432 = vadd.f32 0.0, %v9431
    %9433 = vdwg.mxu0
    %v9434 = vpack.c.bf16 %v9414, %v9411
    %v9435 = vpack.c.bf16 %v9420, %v9417
    %v9436 = vpack.c.bf16 %v9426, %v9423
    %v9437 = vpack.c.bf16 %v9432, %v9429
    %v9438 = vld [vmem:[%s79] sm:$0xf]
    %v9439 = vld [vmem:[%s79 + $0x4] sm:$0xf]
    %v9440 = vld [vmem:[%s79 + $0x8] sm:$0xf]
    %v9441 = vld [vmem:[%s79 + $0xc] sm:$0xf]
    %v9442 = vld [vmem:[%s79 + $0x10] sm:$0xf]
    %v9443 = vld [vmem:[%s79 + $0x14] sm:$0xf]
    %v9444 = vld [vmem:[%s79 + $0x18] sm:$0xf]
    %v9445 = vld [vmem:[%s79 + $0x1c] sm:$0xf]
    %v9446 = vld [vmem:[%s79 + $0x20] sm:$0xf]
    %v9447 = vld [vmem:[%s79 + $0x24] sm:$0xf]
    %v9448 = vld [vmem:[%s79 + $0x28] sm:$0xf]
    %v9449 = vld [vmem:[%s79 + $0x2c] sm:$0xf]
    %v9450 = vld [vmem:[%s79 + $0x30] sm:$0xf]
    %v9451 = vld [vmem:[%s79 + $0x34] sm:$0xf]
    %v9452 = vld [vmem:[%s79 + $0x38] sm:$0xf]
    %v9453 = vld [vmem:[%s79 + $0x3c] sm:$0xf]
    %s9454 = scalar_lea.vmem %s17, 64
    %v9455 = vld [vmem:[%s9454] sm:$0xff]
    %v9456 = vld [vmem:[%s9454 + $0x8] sm:$0xff]
    %v9457 = vld [vmem:[%s9454 + $0x10] sm:$0xff]
    %v9458 = vld [vmem:[%s9454 + $0x18] sm:$0xff]
    %v9459 = vld [vmem:[%s9454 + $0x20] sm:$0xff]
    %v9460 = vld [vmem:[%s9454 + $0x28] sm:$0xff]
    %v9461 = vld [vmem:[%s9454 + $0x30] sm:$0xff]
    %v9462 = vld [vmem:[%s9454 + $0x38] sm:$0xf]
    %v9464 = vsel %vm1314, %v9455, 0
    %v9467 = vsel %vm1314, %v9456, 0
    %v9470 = vsel %vm1314, %v9457, 0
    %v9473 = vsel %vm1314, %v9458, 0
    %v9476 = vsel %vm1314, %v9459, 0
    %v9479 = vsel %vm1314, %v9460, 0
    %v9482 = vsel %vm1314, %v9461, 0
    %v9485 = vsel %vm1314, %v9462, 0
    %9487 = vmatpush.msra.mxu0 0.0
    %9488 = vmatpush.msra.mxu0 0.0
    %9489 = vmatpush.msra.mxu0 0.0
    %9490 = vmatpush.msra.mxu0 0.0
    %9491 = vmatpush.msra.mxu0 0.0
    %9492 = vmatpush.msra.mxu0 0.0
    %9493 = vmatpush.msra.mxu0 0.0
    %9494 = vmatpush.msra.mxu0 0.0
    %9495 = vmatpush.msra.mxu0 0.0
    %9496 = vmatpush.msra.mxu0 0.0
    %9497 = vmatpush.msra.mxu0 0.0
    %9498 = vmatpush.msra.mxu0 0.0
    %9499 = vmatpush.msra.mxu0 %v9391
    %9500 = vmatpush.msra.mxu0 %v9356
    %9501 = vmatpush.msra.mxu0 %v9355
    %9502 = vmatpush.msra.mxu0 %v9354
    %9503 = vmatmul.f32.gmra.mxu0 %v9464
    %v9504 = vpop.f32.mrf.mxu0
    %v9505 = vadd.f32 0.0, %v9504
    %9506 = vmatmul.f32.gmra.mxu0 %v9467
    %v9507 = vpop.f32.mrf.mxu0
    %v9508 = vadd.f32 0.0, %v9507
    %9509 = vmatmul.f32.gmra.mxu0 %v9470
    %v9510 = vpop.f32.mrf.mxu0
    %v9511 = vadd.f32 0.0, %v9510
    %9512 = vmatmul.f32.gmra.mxu0 %v9473
    %v9513 = vpop.f32.mrf.mxu0
    %v9514 = vadd.f32 0.0, %v9513
    %9515 = vmatmul.f32.gmra.mxu0 %v9476
    %v9516 = vpop.f32.mrf.mxu0
    %v9517 = vadd.f32 0.0, %v9516
    %9518 = vmatmul.f32.gmra.mxu0 %v9479
    %v9519 = vpop.f32.mrf.mxu0
    %v9520 = vadd.f32 0.0, %v9519
    %9521 = vmatmul.f32.gmra.mxu0 %v9482
    %v9522 = vpop.f32.mrf.mxu0
    %v9523 = vadd.f32 0.0, %v9522
    %9524 = vmatmul.f32.gmra.mxu0 %v9485
    %v9525 = vpop.f32.mrf.mxu0
    %v9526 = vadd.f32 0.0, %v9525
    %9527 = vdwg.mxu0
    %v9528 = vpack.c.bf16 %v9508, %v9505
    %v9529 = vpack.c.bf16 %v9514, %v9511
    %v9530 = vpack.c.bf16 %v9520, %v9517
    %v9531 = vpack.c.bf16 %v9526, %v9523
    %v9532 = vld [vmem:[%s79 + $0x40] sm:$0xf]
    %v9533 = vld [vmem:[%s79 + $0x44] sm:$0xf]
    %v9534 = vld [vmem:[%s79 + $0x48] sm:$0xf]
    %v9535 = vld [vmem:[%s79 + $0x4c] sm:$0xf]
    %v9536 = vld [vmem:[%s79 + $0x50] sm:$0xf]
    %v9537 = vld [vmem:[%s79 + $0x54] sm:$0xf]
    %v9538 = vld [vmem:[%s79 + $0x58] sm:$0xf]
    %v9539 = vld [vmem:[%s79 + $0x5c] sm:$0xf]
    %v9540 = vld [vmem:[%s79 + $0x60] sm:$0xf]
    %v9541 = vld [vmem:[%s79 + $0x64] sm:$0xf]
    %v9542 = vld [vmem:[%s79 + $0x68] sm:$0xf]
    %v9543 = vld [vmem:[%s79 + $0x6c] sm:$0xf]
    %v9544 = vld [vmem:[%s79 + $0x70] sm:$0xf]
    %v9545 = vld [vmem:[%s79 + $0x74] sm:$0xf]
    %v9546 = vld [vmem:[%s79 + $0x78] sm:$0xf]
    %v9547 = vld [vmem:[%s79 + $0x7c] sm:$0xf]
    %v9564 = vunpack.c.l.b16 %v9532
    %v9565 = vunpack.c.l.b16 %v9533
    %v9566 = vunpack.c.l.b16 %v9534
    %v9567 = vunpack.c.l.b16 %v9535
    %v9568 = vunpack.c.l.b16 %v9536
    %v9569 = vunpack.c.l.b16 %v9537
    %v9570 = vunpack.c.l.b16 %v9538
    %v9571 = vunpack.c.l.b16 %v9539
    %v9572 = vunpack.c.l.b16 %v9540
    %v9573 = vunpack.c.l.b16 %v9541
    %v9574 = vunpack.c.l.b16 %v9542
    %v9575 = vunpack.c.l.b16 %v9543
    %v9576 = vunpack.c.l.b16 %v9544
    %v9577 = vunpack.c.l.b16 %v9545
    %v9578 = vunpack.c.l.b16 %v9546
    %v9579 = vunpack.c.l.b16 %v9547
    %v9580 = vpack.c.b16 %v9565, %v9564
    %v9581 = vpack.c.b16 %v9567, %v9566
    %v9582 = vpack.c.b16 %v9569, %v9568
    %v9583 = vpack.c.b16 %v9571, %v9570
    %v9584 = vpack.c.b16 %v9573, %v9572
    %v9585 = vpack.c.b16 %v9575, %v9574
    %v9586 = vpack.c.b16 %v9577, %v9576
    %v9587 = vpack.c.b16 %v9579, %v9578
    %9596 = vmatpush.bf16.msra.mxu0 %v9587
    %9597 = vmatpush.bf16.msra.mxu0 %v9586
    %9598 = vmatpush.bf16.msra.mxu0 %v9585
    %9599 = vmatpush.bf16.msra.mxu0 %v9584
    %9600 = vmatpush.bf16.msra.mxu0 %v9583
    %9601 = vmatpush.bf16.msra.mxu0 %v9582
    %9602 = vmatpush.bf16.msra.mxu0 %v9581
    %9603 = vmatpush.bf16.msra.mxu0 %v9580
    %9604 = vmatmul.bf16.gmra.mxu0 %v9528
    %v9605 = vpop.f32.mrf.mxu0
    %v9606 = vadd.f32 0.0, %v9605
    %v9607 = vpop.f32.mrf.mxu0
    %v9608 = vadd.f32 0.0, %v9607
    %9609 = vmatmul.bf16.gmra.mxu0 %v9529
    %v9610 = vpop.f32.mrf.mxu0
    %v9611 = vadd.f32 0.0, %v9610
    %v9612 = vpop.f32.mrf.mxu0
    %v9613 = vadd.f32 0.0, %v9612
    %9614 = vmatmul.bf16.gmra.mxu0 %v9530
    %v9615 = vpop.f32.mrf.mxu0
    %v9616 = vadd.f32 0.0, %v9615
    %v9617 = vpop.f32.mrf.mxu0
    %v9618 = vadd.f32 0.0, %v9617
    %9619 = vmatmul.bf16.gmra.mxu0 %v9531
    %v9620 = vpop.f32.mrf.mxu0
    %v9621 = vadd.f32 0.0, %v9620
    %v9622 = vpop.f32.mrf.mxu0
    %v9623 = vadd.f32 0.0, %v9622
    %9624 = vdwg.mxu0
    %v9641 = vunpack.c.l.b16 %v9438
    %v9642 = vunpack.c.l.b16 %v9439
    %v9643 = vunpack.c.l.b16 %v9440
    %v9644 = vunpack.c.l.b16 %v9441
    %v9645 = vunpack.c.l.b16 %v9442
    %v9646 = vunpack.c.l.b16 %v9443
    %v9647 = vunpack.c.l.b16 %v9444
    %v9648 = vunpack.c.l.b16 %v9445
    %v9649 = vunpack.c.l.b16 %v9446
    %v9650 = vunpack.c.l.b16 %v9447
    %v9651 = vunpack.c.l.b16 %v9448
    %v9652 = vunpack.c.l.b16 %v9449
    %v9653 = vunpack.c.l.b16 %v9450
    %v9654 = vunpack.c.l.b16 %v9451
    %v9655 = vunpack.c.l.b16 %v9452
    %v9656 = vunpack.c.l.b16 %v9453
    %v9657 = vpack.c.b16 %v9642, %v9641
    %v9658 = vpack.c.b16 %v9644, %v9643
    %v9659 = vpack.c.b16 %v9646, %v9645
    %v9660 = vpack.c.b16 %v9648, %v9647
    %v9661 = vpack.c.b16 %v9650, %v9649
    %v9662 = vpack.c.b16 %v9652, %v9651
    %v9663 = vpack.c.b16 %v9654, %v9653
    %v9664 = vpack.c.b16 %v9656, %v9655
    %9673 = vmatpush.bf16.msra.mxu0 %v9664
    %9674 = vmatpush.bf16.msra.mxu0 %v9663
    %9675 = vmatpush.bf16.msra.mxu0 %v9662
    %9676 = vmatpush.bf16.msra.mxu0 %v9661
    %9677 = vmatpush.bf16.msra.mxu0 %v9660
    %9678 = vmatpush.bf16.msra.mxu0 %v9659
    %9679 = vmatpush.bf16.msra.mxu0 %v9658
    %9680 = vmatpush.bf16.msra.mxu0 %v9657
    %9681 = vmatmul.bf16.gmra.mxu0 %v9434
    %v9682 = vpop.f32.mrf.mxu0
    %v9683 = vadd.f32 %v9606, %v9682
    %v9684 = vpop.f32.mrf.mxu0
    %v9685 = vadd.f32 %v9608, %v9684
    %9686 = vmatmul.bf16.gmra.mxu0 %v9435
    %v9687 = vpop.f32.mrf.mxu0
    %v9688 = vadd.f32 %v9611, %v9687
    %v9689 = vpop.f32.mrf.mxu0
    %v9690 = vadd.f32 %v9613, %v9689
    %9691 = vmatmul.bf16.gmra.mxu0 %v9436
    %v9692 = vpop.f32.mrf.mxu0
    %v9693 = vadd.f32 %v9616, %v9692
    %v9694 = vpop.f32.mrf.mxu0
    %v9695 = vadd.f32 %v9618, %v9694
    %9696 = vmatmul.bf16.gmra.mxu0 %v9437
    %v9697 = vpop.f32.mrf.mxu0
    %v9698 = vadd.f32 %v9621, %v9697
    %v9699 = vpop.f32.mrf.mxu0
    %v9700 = vadd.f32 %v9623, %v9699
    %9701 = vdwg.mxu0
    %s9702 = scalar_lea.vmem %s17, 128
    %v9703 = vld [vmem:[%s9702] sm:$0xff]
    %v9704 = vld [vmem:[%s9702 + $0x8] sm:$0xff]
    %v9705 = vld [vmem:[%s9702 + $0x10] sm:$0xff]
    %v9706 = vld [vmem:[%s9702 + $0x18] sm:$0xff]
    %v9707 = vld [vmem:[%s9702 + $0x20] sm:$0xff]
    %v9708 = vld [vmem:[%s9702 + $0x28] sm:$0xff]
    %v9709 = vld [vmem:[%s9702 + $0x30] sm:$0xff]
    %v9710 = vld [vmem:[%s9702 + $0x38] sm:$0xf]
    %v9712 = vsel %vm1314, %v9703, 0
    %v9715 = vsel %vm1314, %v9704, 0
    %v9718 = vsel %vm1314, %v9705, 0
    %v9721 = vsel %vm1314, %v9706, 0
    %v9724 = vsel %vm1314, %v9707, 0
    %v9727 = vsel %vm1314, %v9708, 0
    %v9730 = vsel %vm1314, %v9709, 0
    %v9733 = vsel %vm1314, %v9710, 0
    %9735 = vmatpush.msra.mxu0 0.0
    %9736 = vmatpush.msra.mxu0 0.0
    %9737 = vmatpush.msra.mxu0 0.0
    %9738 = vmatpush.msra.mxu0 0.0
    %9739 = vmatpush.msra.mxu0 0.0
    %9740 = vmatpush.msra.mxu0 0.0
    %9741 = vmatpush.msra.mxu0 0.0
    %9742 = vmatpush.msra.mxu0 0.0
    %9743 = vmatpush.msra.mxu0 0.0
    %9744 = vmatpush.msra.mxu0 0.0
    %9745 = vmatpush.msra.mxu0 0.0
    %9746 = vmatpush.msra.mxu0 0.0
    %9747 = vmatpush.msra.mxu0 %v9391
    %9748 = vmatpush.msra.mxu0 %v9356
    %9749 = vmatpush.msra.mxu0 %v9355
    %9750 = vmatpush.msra.mxu0 %v9354
    %9751 = vmatmul.f32.gmra.mxu0 %v9712
    %v9752 = vpop.f32.mrf.mxu0
    %v9753 = vadd.f32 0.0, %v9752
    %9754 = vmatmul.f32.gmra.mxu0 %v9715
    %v9755 = vpop.f32.mrf.mxu0
    %v9756 = vadd.f32 0.0, %v9755
    %9757 = vmatmul.f32.gmra.mxu0 %v9718
    %v9758 = vpop.f32.mrf.mxu0
    %v9759 = vadd.f32 0.0, %v9758
    %9760 = vmatmul.f32.gmra.mxu0 %v9721
    %v9761 = vpop.f32.mrf.mxu0
    %v9762 = vadd.f32 0.0, %v9761
    %9763 = vmatmul.f32.gmra.mxu0 %v9724
    %v9764 = vpop.f32.mrf.mxu0
    %v9765 = vadd.f32 0.0, %v9764
    %9766 = vmatmul.f32.gmra.mxu0 %v9727
    %v9767 = vpop.f32.mrf.mxu0
    %v9768 = vadd.f32 0.0, %v9767
    %9769 = vmatmul.f32.gmra.mxu0 %v9730
    %v9770 = vpop.f32.mrf.mxu0
    %v9771 = vadd.f32 0.0, %v9770
    %9772 = vmatmul.f32.gmra.mxu0 %v9733
    %v9773 = vpop.f32.mrf.mxu0
    %v9774 = vadd.f32 0.0, %v9773
    %9775 = vdwg.mxu0
    %v9776 = vpack.c.bf16 %v9756, %v9753
    %v9777 = vpack.c.bf16 %v9762, %v9759
    %v9778 = vpack.c.bf16 %v9768, %v9765
    %v9779 = vpack.c.bf16 %v9774, %v9771
    %v9780 = vld [vmem:[%s79 + $0x80] sm:$0xf]
    %v9781 = vld [vmem:[%s79 + $0x84] sm:$0xf]
    %v9782 = vld [vmem:[%s79 + $0x88] sm:$0xf]
    %v9783 = vld [vmem:[%s79 + $0x8c] sm:$0xf]
    %v9784 = vld [vmem:[%s79 + $0x90] sm:$0xf]
    %v9785 = vld [vmem:[%s79 + $0x94] sm:$0xf]
    %v9786 = vld [vmem:[%s79 + $0x98] sm:$0xf]
    %v9787 = vld [vmem:[%s79 + $0x9c] sm:$0xf]
    %v9788 = vld [vmem:[%s79 + $0xa0] sm:$0xf]
    %v9789 = vld [vmem:[%s79 + $0xa4] sm:$0xf]
    %v9790 = vld [vmem:[%s79 + $0xa8] sm:$0xf]
    %v9791 = vld [vmem:[%s79 + $0xac] sm:$0xf]
    %v9792 = vld [vmem:[%s79 + $0xb0] sm:$0xf]
    %v9793 = vld [vmem:[%s79 + $0xb4] sm:$0xf]
    %v9794 = vld [vmem:[%s79 + $0xb8] sm:$0xf]
    %v9795 = vld [vmem:[%s79 + $0xbc] sm:$0xf]
    %v9812 = vunpack.c.l.b16 %v9780
    %v9813 = vunpack.c.l.b16 %v9781
    %v9814 = vunpack.c.l.b16 %v9782
    %v9815 = vunpack.c.l.b16 %v9783
    %v9816 = vunpack.c.l.b16 %v9784
    %v9817 = vunpack.c.l.b16 %v9785
    %v9818 = vunpack.c.l.b16 %v9786
    %v9819 = vunpack.c.l.b16 %v9787
    %v9820 = vunpack.c.l.b16 %v9788
    %v9821 = vunpack.c.l.b16 %v9789
    %v9822 = vunpack.c.l.b16 %v9790
    %v9823 = vunpack.c.l.b16 %v9791
    %v9824 = vunpack.c.l.b16 %v9792
    %v9825 = vunpack.c.l.b16 %v9793
    %v9826 = vunpack.c.l.b16 %v9794
    %v9827 = vunpack.c.l.b16 %v9795
    %v9828 = vpack.c.b16 %v9813, %v9812
    %v9829 = vpack.c.b16 %v9815, %v9814
    %v9830 = vpack.c.b16 %v9817, %v9816
    %v9831 = vpack.c.b16 %v9819, %v9818
    %v9832 = vpack.c.b16 %v9821, %v9820
    %v9833 = vpack.c.b16 %v9823, %v9822
    %v9834 = vpack.c.b16 %v9825, %v9824
    %v9835 = vpack.c.b16 %v9827, %v9826
    %9844 = vmatpush.bf16.msra.mxu0 %v9835
    %9845 = vmatpush.bf16.msra.mxu0 %v9834
    %9846 = vmatpush.bf16.msra.mxu0 %v9833
    %9847 = vmatpush.bf16.msra.mxu0 %v9832
    %9848 = vmatpush.bf16.msra.mxu0 %v9831
    %9849 = vmatpush.bf16.msra.mxu0 %v9830
    %9850 = vmatpush.bf16.msra.mxu0 %v9829
    %9851 = vmatpush.bf16.msra.mxu0 %v9828
    %9852 = vmatmul.bf16.gmra.mxu0 %v9776
    %v9853 = vpop.f32.mrf.mxu0
    %v9854 = vadd.f32 0.0, %v9853
    %v9855 = vpop.f32.mrf.mxu0
    %v9856 = vadd.f32 0.0, %v9855
    %9857 = vmatmul.bf16.gmra.mxu0 %v9777
    %v9858 = vpop.f32.mrf.mxu0
    %v9859 = vadd.f32 0.0, %v9858
    %v9860 = vpop.f32.mrf.mxu0
    %v9861 = vadd.f32 0.0, %v9860
    %9862 = vmatmul.bf16.gmra.mxu0 %v9778
    %v9863 = vpop.f32.mrf.mxu0
    %v9864 = vadd.f32 0.0, %v9863
    %v9865 = vpop.f32.mrf.mxu0
    %v9866 = vadd.f32 0.0, %v9865
    %9867 = vmatmul.bf16.gmra.mxu0 %v9779
    %v9868 = vpop.f32.mrf.mxu0
    %v9869 = vadd.f32 0.0, %v9868
    %v9870 = vpop.f32.mrf.mxu0
    %v9871 = vadd.f32 0.0, %v9870
    %9872 = vdwg.mxu0
    %v9873 = vadd.f32 %v9683, %v9854
    %v9874 = vadd.f32 %v9685, %v9856
    %v9875 = vadd.f32 %v9688, %v9859
    %v9876 = vadd.f32 %v9690, %v9861
    %v9877 = vadd.f32 %v9693, %v9864
    %v9878 = vadd.f32 %v9695, %v9866
    %v9879 = vadd.f32 %v9698, %v9869
    %v9880 = vadd.f32 %v9700, %v9871
    %v9881 = vld [vmem:[#allocation54] sm:$0x1]
    %v9883 = vperm.slane %v9881, 0
    %v9885 = vadd.f32 %v9873, %v9883
    %v9886 = vadd.f32 %v9874, %v9883
    %v9887 = vadd.f32 %v9875, %v9883
    %v9888 = vadd.f32 %v9876, %v9883
    %v9889 = vadd.f32 %v9877, %v9883
    %v9890 = vadd.f32 %v9878, %v9883
    %v9891 = vadd.f32 %v9879, %v9883
    %v9892 = vadd.f32 %v9880, %v9883
    %v9893 = vsel %vm789, %v9885, 0.0
    %v9894 = vsel %vm789, %v9886, 0.0
    %v9895 = vadd.f32 %v9893, %v9894
    %v9896 = vsel %vm789, %v9887, 0.0
    %v9897 = vadd.f32 %v9895, %v9896
    %v9898 = vsel %vm789, %v9888, 0.0
    %v9899 = vadd.f32 %v9897, %v9898
    %v9900 = vsel %vm789, %v9889, 0.0
    %v9901 = vadd.f32 %v9899, %v9900
    %v9902 = vsel %vm789, %v9890, 0.0
    %v9903 = vadd.f32 %v9901, %v9902
    %v9904 = vsel %vm789, %v9891, 0.0
    %v9905 = vadd.f32 %v9903, %v9904
    %v9906 = vsel %vm803, %v9892, 0.0
    %v9907 = vadd.f32 %v9905, %v9906
    %v9908 = vrot.slane %v9907, 4
    %v9909 = vadd.f32 %v9907, %v9908
    %v9910 = vrot.slane %v9909, 2
    %v9911 = vadd.f32 %v9909, %v9910
    %v9912 = vrot.slane %v9911, 1
    %v9913 = vadd.f32 %v9911, %v9912
    %v9914 = vmul.f32 %v9913, %v818
    %v9915 = vsub.f32 %v9885, %v9914
    %v9916 = vsub.f32 %v9886, %v9914
    %v9917 = vsub.f32 %v9887, %v9914
    %v9918 = vsub.f32 %v9888, %v9914
    %v9919 = vsub.f32 %v9889, %v9914
    %v9920 = vsub.f32 %v9890, %v9914
    %v9921 = vsub.f32 %v9891, %v9914
    %v9922 = vsub.f32 %v9892, %v9914
    %v9923 = vmul.f32 %v9915, %v9915
    %v9924 = vmul.f32 %v9916, %v9916
    %v9925 = vmul.f32 %v9917, %v9917
    %v9926 = vmul.f32 %v9918, %v9918
    %v9927 = vmul.f32 %v9919, %v9919
    %v9928 = vmul.f32 %v9920, %v9920
    %v9929 = vmul.f32 %v9921, %v9921
    %v9930 = vmul.f32 %v9922, %v9922
    %v9931 = vsel %vm789, %v9923, 0.0
    %v9932 = vsel %vm789, %v9924, 0.0
    %v9933 = vadd.f32 %v9931, %v9932
    %v9934 = vsel %vm789, %v9925, 0.0
    %v9935 = vadd.f32 %v9933, %v9934
    %v9936 = vsel %vm789, %v9926, 0.0
    %v9937 = vadd.f32 %v9935, %v9936
    %v9938 = vsel %vm789, %v9927, 0.0
    %v9939 = vadd.f32 %v9937, %v9938
    %v9940 = vsel %vm789, %v9928, 0.0
    %v9941 = vadd.f32 %v9939, %v9940
    %v9942 = vsel %vm789, %v9929, 0.0
    %v9943 = vadd.f32 %v9941, %v9942
    %v9944 = vsel %vm803, %v9930, 0.0
    %v9945 = vadd.f32 %v9943, %v9944
    %v9946 = vrot.slane %v9945, 4
    %v9947 = vadd.f32 %v9945, %v9946
    %v9948 = vrot.slane %v9947, 2
    %v9949 = vadd.f32 %v9947, %v9948
    %v9950 = vrot.slane %v9949, 1
    %v9951 = vadd.f32 %v9949, %v9950
    %v9952 = vmul.f32 %v9951, %v818
    %v9953 = vadd.f32 %v9952, 1e-05
    %v9954 = vrsqrt.pop %v9953
    %v9955 = vmul.f32 %v9954, %v9953
    %v9956 = vmul.f32 %v9955, %v9954
    %v9957 = vmul.f32 0.5, %v9956
    %v9958 = vsub.f32 1.5, %v9957
    %v9959 = vmul.f32 %v9954, %v9958
    %vm9960 = vweird.f32 %v9953
    %vm9961 = vweird.f32 %v9954
    %vm9962 = vmor %vm9960, %vm9961
    %v9963 = vsel %vm9962, %v9954, %v9959
    %v9964 = vmul.f32 %v9915, %v9963
    %v9965 = vmul.f32 %v9916, %v9963
    %v9966 = vmul.f32 %v9917, %v9963
    %v9967 = vmul.f32 %v9918, %v9963
    %v9968 = vmul.f32 %v9919, %v9963
    %v9969 = vmul.f32 %v9920, %v9963
    %v9970 = vmul.f32 %v9921, %v9963
    %v9971 = vmul.f32 %v9922, %v9963
    %v9972 = vld [vmem:[#allocation56] sm:$0x1]
    %v9974 = vperm.slane %v9972, 0
    %v9976 = vmul.f32 %v9964, %v9974
    %v9977 = vmul.f32 %v9965, %v9974
    %v9978 = vmul.f32 %v9966, %v9974
    %v9979 = vmul.f32 %v9967, %v9974
    %v9980 = vmul.f32 %v9968, %v9974
    %v9981 = vmul.f32 %v9969, %v9974
    %v9982 = vmul.f32 %v9970, %v9974
    %v9983 = vmul.f32 %v9971, %v9974
    %v9984 = vld [vmem:[#allocation57] sm:$0x1]
    %v9986 = vperm.slane %v9984, 0
    %v9988 = vadd.f32 %v9976, %v9986
    %v9989 = vadd.f32 %v9977, %v9986
    %v9990 = vadd.f32 %v9978, %v9986
    %v9991 = vadd.f32 %v9979, %v9986
    %v9992 = vadd.f32 %v9980, %v9986
    %v9993 = vadd.f32 %v9981, %v9986
    %v9994 = vadd.f32 %v9982, %v9986
    %v9995 = vadd.f32 %v9983, %v9986
    %v9996 = vtanh.pop %v9988
    %v9997 = vtanh.pop %v9989
    %v9998 = vtanh.pop %v9990
    %v9999 = vtanh.pop %v9991
    %v10000 = vtanh.pop %v9992
    %v10001 = vtanh.pop %v9993
    %v10002 = vtanh.pop %v9994
    %v10003 = vtanh.pop %v9995
    %v10004 = vpack.c.bf16 %v9997, %v9996
    %v10005 = vpack.c.bf16 %v9999, %v9998
    %v10006 = vpack.c.bf16 %v10001, %v10000
    %v10007 = vpack.c.bf16 %v10003, %v10002
    %v10008 = vld [vmem:[%s87] sm:$0xf]
    %v10009 = vld [vmem:[%s87 + $0x4] sm:$0xf]
    %v10010 = vld [vmem:[%s87 + $0x8] sm:$0xf]
    %v10011 = vld [vmem:[%s87 + $0xc] sm:$0xf]
    %v10012 = vld [vmem:[%s87 + $0x10] sm:$0xf]
    %v10013 = vld [vmem:[%s87 + $0x14] sm:$0xf]
    %v10014 = vld [vmem:[%s87 + $0x18] sm:$0xf]
    %v10015 = vld [vmem:[%s87 + $0x1c] sm:$0xf]
    %v10016 = vld [vmem:[#allocation59] sm:$0x1]
    %v10018 = vperm.slane %v10016, 0
    %v10028 = vunpack.c.l.b16 %v10008
    %v10029 = vunpack.c.l.b16 %v10009
    %v10030 = vunpack.c.l.b16 %v10010
    %v10031 = vunpack.c.l.b16 %v10011
    %v10032 = vunpack.c.l.b16 %v10012
    %v10033 = vunpack.c.l.b16 %v10013
    %v10034 = vunpack.c.l.b16 %v10014
    %v10035 = vunpack.c.l.b16 %v10015
    %v10036 = vpack.c.b16 %v10029, %v10028
    %v10037 = vpack.c.b16 %v10031, %v10030
    %v10038 = vpack.c.b16 %v10033, %v10032
    %v10039 = vpack.c.b16 %v10035, %v10034
    %v10045 = vsel %vm789, %v10004, 0
    %v10048 = vsel %vm789, %v10005, 0
    %v10051 = vsel %vm789, %v10006, 0
    %v10054 = vsel %vm789, %v10007, 0
    %10056 = vmatpush.bf16.msra.mxu0 0
    %10057 = vmatpush.bf16.msra.mxu0 0
    %10058 = vmatpush.bf16.msra.mxu0 0
    %10059 = vmatpush.bf16.msra.mxu0 0
    %10060 = vmatpush.bf16.msra.mxu0 %v10039
    %10061 = vmatpush.bf16.msra.mxu0 %v10038
    %10062 = vmatpush.bf16.msra.mxu0 %v10037
    %10063 = vmatpush.bf16.msra.mxu0 %v10036
    %10064 = vmatmul.bf16.gmra.mxu0 %v10045
    %v10065 = vpop.f32.mrf.mxu0
    %v10066 = vadd.f32 %v10018, %v10065
    %v10067 = vpop.f32.mrf.mxu0
    %v10068 = vadd.f32 %v10018, %v10067
    %10069 = vmatmul.bf16.gmra.mxu0 %v10048
    %v10070 = vpop.f32.mrf.mxu0
    %v10071 = vadd.f32 %v10018, %v10070
    %v10072 = vpop.f32.mrf.mxu0
    %v10073 = vadd.f32 %v10018, %v10072
    %10074 = vmatmul.bf16.gmra.mxu0 %v10051
    %v10075 = vpop.f32.mrf.mxu0
    %v10076 = vadd.f32 %v10018, %v10075
    %v10077 = vpop.f32.mrf.mxu0
    %v10078 = vadd.f32 %v10018, %v10077
    %10079 = vmatmul.bf16.gmra.mxu0 %v10054
    %v10080 = vpop.f32.mrf.mxu0
    %v10081 = vadd.f32 %v10018, %v10080
    %v10082 = vpop.f32.mrf.mxu0
    %v10083 = vadd.f32 %v10018, %v10082
    %10084 = vdwg.mxu0
    %v10085 = vld [vmem:[%s5] sm:$0xff]
    %v10086 = vld [vmem:[%s5 + $0x8] sm:$0xff]
    %v10087 = vld [vmem:[%s5 + $0x10] sm:$0xff]
    %v10088 = vld [vmem:[%s5 + $0x18] sm:$0xff]
    %v10089 = vld [vmem:[%s5 + $0x20] sm:$0xff]
    %v10090 = vld [vmem:[%s5 + $0x28] sm:$0xff]
    %v10091 = vld [vmem:[%s5 + $0x30] sm:$0xff]
    %v10092 = vld [vmem:[%s5 + $0x38] sm:$0xf]
    %v10093 = vmul.f32 %v10066, 0.5
    %v10094 = vmul.f32 %v10068, 0.5
    %v10095 = vmul.f32 %v10071, 0.5
    %v10096 = vmul.f32 %v10073, 0.5
    %v10097 = vmul.f32 %v10076, 0.5
    %v10098 = vmul.f32 %v10078, 0.5
    %v10099 = vmul.f32 %v10081, 0.5
    %v10100 = vmul.f32 %v10083, 0.5
    %v10101 = vmul.f32 %v10093, 1.442695
    %v10102 = vpow.pop %v10101
    %v10103 = vmul.f32 %v10094, 1.442695
    %v10104 = vpow.pop %v10103
    %v10105 = vmul.f32 %v10095, 1.442695
    %v10106 = vpow.pop %v10105
    %v10107 = vmul.f32 %v10096, 1.442695
    %v10108 = vpow.pop %v10107
    %v10109 = vmul.f32 %v10097, 1.442695
    %v10110 = vpow.pop %v10109
    %v10111 = vmul.f32 %v10098, 1.442695
    %v10112 = vpow.pop %v10111
    %v10113 = vmul.f32 %v10099, 1.442695
    %v10114 = vpow.pop %v10113
    %v10115 = vmul.f32 %v10100, 1.442695
    %v10116 = vpow.pop %v10115
    %10125 = vrot.lane.b32.xlu0 %v10102, 120
    %v10126 = vpop.permute.xlu0 %10125
    %10127 = vrot.lane.b32.xlu0 %v10104, 120
    %v10128 = vpop.permute.xlu0 %10127
    %10129 = vrot.lane.b32.xlu0 %v10106, 120
    %v10130 = vpop.permute.xlu0 %10129
    %10131 = vrot.lane.b32.xlu0 %v10108, 120
    %v10132 = vpop.permute.xlu0 %10131
    %10133 = vrot.lane.b32.xlu0 %v10110, 120
    %v10134 = vpop.permute.xlu0 %10133
    %10135 = vrot.lane.b32.xlu0 %v10112, 120
    %v10136 = vpop.permute.xlu0 %10135
    %10137 = vrot.lane.b32.xlu0 %v10114, 120
    %v10138 = vpop.permute.xlu0 %10137
    %10139 = vrot.lane.b32.xlu0 %v10116, 120
    %v10140 = vpop.permute.xlu0 %10139
    %v10149 = vmul.f32 %v10085, %v10126
    %v10150 = vmul.f32 %v10086, %v10128
    %v10151 = vmul.f32 %v10087, %v10130
    %v10152 = vmul.f32 %v10088, %v10132
    %v10153 = vmul.f32 %v10089, %v10134
    %v10154 = vmul.f32 %v10090, %v10136
    %v10155 = vmul.f32 %v10091, %v10138
    %v10156 = vmul.f32 %v10092, %v10140
    %v10157 = vadd.f32 %v10066, %v10149
    %v10158 = vadd.f32 %v10068, %v10150
    %v10159 = vadd.f32 %v10071, %v10151
    %v10160 = vadd.f32 %v10073, %v10152
    %v10161 = vadd.f32 %v10076, %v10153
    %v10162 = vadd.f32 %v10078, %v10154
    %v10163 = vadd.f32 %v10081, %v10155
    %v10164 = vadd.f32 %v10083, %v10156
    %10165 = vst.msk [vmem:[%s99] sm:$0xff] %vm743, %v10066
    %10166 = vst.msk [vmem:[%s99 + $0x8] sm:$0xff] %vm743, %v10068
    %10167 = vst.msk [vmem:[%s99 + $0x10] sm:$0xff] %vm743, %v10071
    %10168 = vst.msk [vmem:[%s99 + $0x18] sm:$0xff] %vm743, %v10073
    %10169 = vst.msk [vmem:[%s99 + $0x20] sm:$0xff] %vm743, %v10076
    %10170 = vst.msk [vmem:[%s99 + $0x28] sm:$0xff] %vm743, %v10078
    %10171 = vst.msk [vmem:[%s99 + $0x30] sm:$0xff] %vm743, %v10081
    %vm10172 = vcmask 60416
    %10173 = vst.msk [vmem:[%s99 + $0x38] sm:$0xf] %vm10172, %v10083
    %10182 = vrot.lane.b32.xlu0 %v10066, 120
    %v10183 = vpop.permute.xlu0 %10182
    %10184 = vrot.lane.b32.xlu0 %v10068, 120
    %v10185 = vpop.permute.xlu0 %10184
    %10186 = vrot.lane.b32.xlu0 %v10071, 120
    %v10187 = vpop.permute.xlu0 %10186
    %10188 = vrot.lane.b32.xlu0 %v10073, 120
    %v10189 = vpop.permute.xlu0 %10188
    %10190 = vrot.lane.b32.xlu0 %v10076, 120
    %v10191 = vpop.permute.xlu0 %10190
    %10192 = vrot.lane.b32.xlu0 %v10078, 120
    %v10193 = vpop.permute.xlu0 %10192
    %10194 = vrot.lane.b32.xlu0 %v10081, 120
    %v10195 = vpop.permute.xlu0 %10194
    %10196 = vrot.lane.b32.xlu0 %v10083, 120
    %v10197 = vpop.permute.xlu0 %10196
    %10206 = vst.msk [vmem:[%s101] sm:$0xff] %vm743, %v10183
    %10207 = vst.msk [vmem:[%s101 + $0x8] sm:$0xff] %vm743, %v10185
    %10208 = vst.msk [vmem:[%s101 + $0x10] sm:$0xff] %vm743, %v10187
    %10209 = vst.msk [vmem:[%s101 + $0x18] sm:$0xff] %vm743, %v10189
    %10210 = vst.msk [vmem:[%s101 + $0x20] sm:$0xff] %vm743, %v10191
    %10211 = vst.msk [vmem:[%s101 + $0x28] sm:$0xff] %vm743, %v10193
    %10212 = vst.msk [vmem:[%s101 + $0x30] sm:$0xff] %vm743, %v10195
    %10213 = vst.msk [vmem:[%s101 + $0x38] sm:$0xf] %vm10172, %v10197
    %10214 = vst.msk [vmem:[%s103] sm:$0xff] %vm743, %v10157
    %10215 = vst.msk [vmem:[%s103 + $0x8] sm:$0xff] %vm743, %v10158
    %10216 = vst.msk [vmem:[%s103 + $0x10] sm:$0xff] %vm743, %v10159
    %10217 = vst.msk [vmem:[%s103 + $0x18] sm:$0xff] %vm743, %v10160
    %10218 = vst.msk [vmem:[%s103 + $0x20] sm:$0xff] %vm743, %v10161
    %10219 = vst.msk [vmem:[%s103 + $0x28] sm:$0xff] %vm743, %v10162
    %10220 = vst.msk [vmem:[%s103 + $0x30] sm:$0xff] %vm743, %v10163
    %10221 = vst.msk [vmem:[%s103 + $0x38] sm:$0xf] %vm10172, %v10164
    // Predicated region
    $region334: #{_forward_jit.1} parent=1 // pred_check
      _
    $region335: #{_forward_jit.1} parent=1 // pred_check_branch
      %10223 = sbr.rel (0) target = $region337
    $region336: #{_forward_jit.1} parent=1 // pred_region
      %10225 = vsyncadd [#allocation5], 0
      %s10227 = sshll.u32 [#allocation60], 4
      %s10228 = int_to_ptr.vmem [resolvable:$true] %s10227
      %s10229 = sshll.u32 %s93, 4
      %s10230 = int_to_ptr.hbm [resolvable:$true] %s10229
      %10232 = dma.vmem_to_hbm [thread:$0]  %s10228, 64, %s10230, [#allocation5]
    $region337: #{_forward_jit.1} parent=1 // pred_fallthru
      _
    // Predicated region
    $region338: #{_forward_jit.1} parent=1 // pred_check
      _
    $region339: #{_forward_jit.1} parent=1 // pred_check_branch
      %10234 = sbr.rel (0) target = $region341
    $region340: #{_forward_jit.1} parent=1 // pred_region
      %10236 = vsyncadd [#allocation62], 0
      %s10238 = sshll.u32 [#allocation61], 4
      %s10239 = int_to_ptr.vmem [resolvable:$true] %s10238
      %s10240 = sshll.u32 %s95, 4
      %s10241 = int_to_ptr.hbm [resolvable:$true] %s10240
      %10243 = dma.vmem_to_hbm [thread:$0]  %s10239, 64, %s10241, [#allocation62]
    $region341: #{_forward_jit.1} parent=1 // pred_fallthru
      _
    // Predicated region
    $region342: #{_forward_jit.1} parent=1 // pred_check
      _
    $region343: #{_forward_jit.1} parent=1 // pred_check_branch
      %10245 = sbr.rel (0) target = $region345
    $region344: #{_forward_jit.1} parent=1 // pred_region
      %10247 = vsyncadd [#allocation62], 0
      %s10249 = sshll.u32 [#allocation63], 4
      %s10250 = int_to_ptr.vmem [resolvable:$true] %s10249
      %s10251 = sshll.u32 %s97, 4
      %s10252 = int_to_ptr.hbm [resolvable:$true] %s10251
      %10254 = dma.vmem_to_hbm [thread:$0]  %s10250, 64, %s10252, [#allocation62]
    $region345: #{_forward_jit.1} parent=1 // pred_fallthru
      _
    // Predicated region
    $region346: #{_forward_jit.1} parent=1 // pred_check
      _
    $region347: #{_forward_jit.1} parent=1 // pred_check_branch
      %10256 = sbr.rel (0) target = $region349
    $region348: #{_forward_jit.1} parent=1 // pred_region
      _
    $region349: #{_forward_jit.1} parent=1 // pred_fallthru
      _
    // Predicated region
    $region350: #{_forward_jit.1} parent=1 // pred_check
      _
    $region351: #{_forward_jit.1} parent=1 // pred_check_branch
      %10258 = sbr.rel (0) target = $region353
    $region352: #{_forward_jit.1} parent=1 // pred_region
      _
    $region353: #{_forward_jit.1} parent=1 // pred_fallthru
      _
    // Predicated region
    $region354: #{_forward_jit.1} parent=1 // pred_check
      _
    $region355: #{_forward_jit.1} parent=1 // pred_check_branch
      %10260 = sbr.rel (0) target = $region357
    $region356: #{_forward_jit.1} parent=1 // pred_region
      _
    $region357: #{_forward_jit.1} parent=1 // pred_fallthru
      _
    // Predicated region
    $region358: #{_forward_jit.1} parent=1 // pred_check
      _
    $region359: #{_forward_jit.1} parent=1 // pred_check_branch
      %10262 = sbr.rel (0) target = $region361
    $region360: #{_forward_jit.1} parent=1 // pred_region
      _
    $region361: #{_forward_jit.1} parent=1 // pred_fallthru
      _
    // Predicated region
    $region362: #{_forward_jit.1} parent=1 // pred_check
      _
    $region363: #{_forward_jit.1} parent=1 // pred_check_branch
      %10264 = sbr.rel (0) target = $region365
    $region364: #{_forward_jit.1} parent=1 // pred_region
      %10266 = dma.done [#allocation5], 64
    $region365: #{_forward_jit.1} parent=1 // pred_fallthru
      _
    // Predicated region
    $region366: #{_forward_jit.1} parent=1 // pred_check
      _
    $region367: #{_forward_jit.1} parent=1 // pred_check_branch
      %10268 = sbr.rel (0) target = $region369
    $region368: #{_forward_jit.1} parent=1 // pred_region
      %10270 = dma.done [#allocation62], 64
    $region369: #{_forward_jit.1} parent=1 // pred_fallthru
      _
    // Predicated region
    $region370: #{_forward_jit.1} parent=1 // pred_check
      _
    $region371: #{_forward_jit.1} parent=1 // pred_check_branch
      %10272 = sbr.rel (0) target = $region373
    $region372: #{_forward_jit.1} parent=1 // pred_region
      %10274 = dma.done [#allocation62], 64
    $region373: #{_forward_jit.1} parent=1 // pred_fallthru
      _
    // Predicated region
    $region374: #{_forward_jit.1} parent=1 // pred_check
      _
    $region375: #{_forward_jit.1} parent=1 // pred_check_branch
      %10276 = sbr.rel (0) target = $region377
    $region376: #{_forward_jit.1} parent=1 // pred_region
      _
    $region377: #{_forward_jit.1} parent=1 // pred_fallthru
      _
    // Predicated region
    $region378: #{_forward_jit.1} parent=1 // pred_check
      _
    $region379: #{_forward_jit.1} parent=1 // pred_check_branch
      %10278 = sbr.rel (0) target = $region381
    $region380: #{_forward_jit.1} parent=1 // pred_region
      _
    $region381: #{_forward_jit.1} parent=1 // pred_fallthru
      _
    // Predicated region
    $region382: #{_forward_jit.1} parent=1 // pred_check
      _
    $region383: #{_forward_jit.1} parent=1 // pred_check_branch
      %10280 = sbr.rel (0) target = $region385
    $region384: #{_forward_jit.1} parent=1 // pred_region
      _
    $region385: #{_forward_jit.1} parent=1 // pred_fallthru
      _
    // Predicated region
    $region386: #{_forward_jit.1} parent=1 // pred_check
      _
    $region387: #{_forward_jit.1} parent=1 // pred_check_branch
      %10282 = sbr.rel (0) target = $region389
    $region388: #{_forward_jit.1} parent=1 // pred_region
      _
    $region389: #{_forward_jit.1} parent=1 // pred_fallthru
      _
    %10283 = vsyncpa [#allocation4], 1
    %10284 = vsyncpa [#allocation7], 1
    %10285 = vsyncpa [#allocation10], 1
    %10286 = vsyncpa [#allocation13], 1
    %10287 = vsyncpa [#allocation16], 1
    %10288 = vsyncpa [#allocation19], 1
    %10289 = vsyncpa [#allocation22], 1
    %10290 = vsyncpa [#allocation25], 1
    %10291 = vsyncpa [#allocation28], 1
    %10292 = vsyncpa [#allocation31], 1
    %10293 = vsyncpa [#allocation34], 1
    %10294 = vsyncpa [#allocation37], 1
    %10295 = vsyncpa [#allocation40], 1
    %10296 = vsyncpa [#allocation43], 1
    %10297 = vsyncpa [#allocation46], 1
    %10298 = vsyncpa [#allocation49], 1
    %10299 = vsyncpa [#allocation52], 1
    %10300 = vsyncpa [#allocation55], 1
    %10301 = vsyncpa [#allocation58], 1
    %10302 = vsyncpa [#allocation5], 1
    %10303 = vsyncpa [#allocation62], 1

</llo_original>
